<compile_context>
chip_gen: v7x
topology: tpu7x:2x2x1
jax: 0.10.0
libtpu: 0.0.40
codegen_flags: <defaults>
</compile_context>

<pallas_src>
import functools
import math

import jax
import jax.numpy as jnp
from jax import lax
from jax.experimental import pallas as pl
from jax.experimental.pallas import tpu as pltpu


# ----------------------------------------------------------------------------
# Fused Pallas kernel: all GRU layers + both directions + final Linear
# ----------------------------------------------------------------------------
def _classifier_kernel(*refs, num_layers, T, B, H):
    """refs layout (inputs, outputs, scratch):
      inputs : x2d (T*B, D0) f32,
               per layer: wi (D_l, 6H) bf16, bi (1, 6H) f32,
                          wh (6, H, H) bf16, bhn (2, 1, H) f32,
               out_w (2H, 10) f32, out_b (1, 10) f32
      outputs: o (B, 10) f32
      scratch: gi (6, T, B, H) f32                  [dir*3+gate, t leading axes]
               [seq_f (T*B, H) f32, seq_b (T*B, H) f32]   (only if num_layers>1)
    """
    n_in = 3 + 4 * num_layers
    x_ref = refs[0]
    layer_refs = refs[1:1 + 4 * num_layers]
    out_w_ref = refs[1 + 4 * num_layers]
    out_b_ref = refs[2 + 4 * num_layers]
    o_ref = refs[n_in]
    gi_ref = refs[n_in + 1]
    seq_f_ref = refs[n_in + 2] if num_layers > 1 else None
    seq_b_ref = refs[n_in + 3] if num_layers > 1 else None

    def gru_cell(h, gi_r, gi_z, gi_n, w_r, w_z, w_n, b_hn):
        # Per-gate (B,H)@(H,H) bf16 matmuls with f32 accumulation: no lane-axis
        # gate extracts on the serial chain; the three pushes only depend on h,
        # so they pipeline back-to-back on the MXU.
        hb = h.astype(jnp.bfloat16)
        gh_r = jnp.dot(hb, w_r, preferred_element_type=jnp.float32)
        gh_z = jnp.dot(hb, w_z, preferred_element_type=jnp.float32)
        gh_n = jnp.dot(hb, w_n, preferred_element_type=jnp.float32) + b_hn
        r = jax.nn.sigmoid(gi_r + gh_r)          # b_ir + b_hr folded into gi_r
        z = jax.nn.sigmoid(gi_z + gh_z)          # b_iz + b_hz folded into gi_z
        n = jnp.tanh(gi_n + r * gh_n)            # b_in in gi_n, b_hn inside r*(.)
        return n + z * (h - n)                   # == (1 - z) * n + z * h

    h_f = h_b = None
    for layer in range(num_layers):
        wi_ref, bi_ref, wh_ref, bhn_ref = layer_refs[4 * layer:4 * layer + 4]

        # ---- hoisted input projection: all T steps, BOTH directions, one pass
        if layer == 0:
            proj = jnp.dot(x_ref[...].astype(jnp.bfloat16), wi_ref[...],
                           preferred_element_type=jnp.float32)
        else:
            # previous layer output kept split per direction:
            #   seq @ Wi == seq_f @ Wi[:H] + seq_b @ Wi[H:]   (no lane concat)
            proj = (jnp.dot(seq_f_ref[...].astype(jnp.bfloat16), wi_ref[0:H, :],
                            preferred_element_type=jnp.float32)
                    + jnp.dot(seq_b_ref[...].astype(jnp.bfloat16), wi_ref[H:2 * H, :],
                              preferred_element_type=jnp.float32))
        proj = proj + bi_ref[...]       # single folded-bias broadcast add

        # Scatter gates/timesteps onto the leading axes of the gi scratch so the
        # recurrence only does whole-tile (B, H) loads.  This scatter happens
        # once per layer and is off the recurrent dependence chain.
        for d in range(2):
            for g in range(3):
                col = proj[:, (3 * d + g) * H:(3 * d + g + 1) * H]
                for t in range(T):
                    gi_ref[3 * d + g, t] = col[t * B:(t + 1) * B, :]

        # hoist per-gate hidden weights / n-gate hidden bias out of the loop
        w_f = [wh_ref[g] for g in range(3)]
        w_b = [wh_ref[3 + g] for g in range(3)]
        bhn_f = jnp.broadcast_to(bhn_ref[0], (B, H))
        bhn_b = jnp.broadcast_to(bhn_ref[1], (B, H))

        h_f = jnp.zeros((B, H), jnp.float32)
        h_b = jnp.zeros((B, H), jnp.float32)

        # TODO(synk): for long sequences switch these Python unrolls to
        #   lax.fori_loop over the leading time axis to bound vreg live ranges.
        if layer < num_layers - 1:
            # Full bidirectional sequence needed as the next layer's input;
            # fwd/bwd chains are independent -> interleaved for ILP.
            for t in range(T):
                tb = T - 1 - t
                h_f = gru_cell(h_f, gi_ref[0, t], gi_ref[1, t], gi_ref[2, t],
                               w_f[0], w_f[1], w_f[2], bhn_f)
                h_b = gru_cell(h_b, gi_ref[3, tb], gi_ref[4, tb], gi_ref[5, tb],
                               w_b[0], w_b[1], w_b[2], bhn_b)
                # stores are off the h -> h' dependence chain; flat time-major
                # layout feeds the next layer's single wide matmul directly.
                seq_f_ref[t * B:(t + 1) * B, :] = h_f
                seq_b_ref[tb * B:(tb + 1) * B, :] = h_b
        else:
            # Top layer: output uses only r_out[:, -1] = [h_fwd(T-1), h_bwd(T-1)];
            # h_bwd(T-1) is the backward GRU's first step -> one cell evaluation.
            h_b = gru_cell(h_b, gi_ref[3, T - 1], gi_ref[4, T - 1], gi_ref[5, T - 1],
                           w_b[0], w_b[1], w_b[2], bhn_b)
            for t in range(T):
                h_f = gru_cell(h_f, gi_ref[0, t], gi_ref[1, t], gi_ref[2, t],
                               w_f[0], w_f[1], w_f[2], bhn_f)

    # ---- final Linear fused, split into two dots (no lane-axis concat) ----
    o_ref[...] = (jnp.dot(h_f, out_w_ref[0:H, :], preferred_element_type=jnp.float32)
                  + jnp.dot(h_b, out_w_ref[H:2 * H, :], preferred_element_type=jnp.float32)
                  + out_b_ref[...]).astype(o_ref.dtype)


# ----------------------------------------------------------------------------
# Wrapper
# ----------------------------------------------------------------------------
def classifier_forward(x_btd, layers, out_w, out_b):
    """x_btd: (B, T, input_size), batch-first like the PyTorch module."""
    B, T, D = x_btd.shape
    H = layers[0]["wh"].shape[-1]
    L = len(layers)
    assert L >= 1, "num_layers must be >= 1"

    # time-major flattening done once in XLA (layout plumbing, not compute)
    x_2d = jnp.transpose(x_btd, (1, 0, 2)).reshape(T * B, D)

    args = [x_2d]
    for lp in layers:
        args += [lp["wi"], lp["bi"], lp["wh"], lp["bhn"]]
    args += [out_w, out_b]

    scratch = [pltpu.VMEM((6, T, B, H), jnp.float32)]        # gi, gate/dir-leading
    if L > 1:
        scratch += [pltpu.VMEM((T * B, H), jnp.float32),     # seq_f
                    pltpu.VMEM((T * B, H), jnp.float32)]     # seq_b

    # TODO(synk): on v7x split the fwd/bwd chains across the 2 TensorCores via
    #   pl.core_map(pltpu.create_tensorcore_mesh(...)) + pltpu.core_barrier per
    #   layer; kept single-core interleaved here for v5e/v6e portability.
    # TODO(synk): for many layers / long sequences, add a layer grid axis with
    #   BlockSpec index_maps so layer l+1 weights prefetch while layer l runs.
    kernel = functools.partial(_classifier_kernel, num_layers=L, T=T, B=B, H=H)
    return pl.pallas_call(
        kernel,
        out_shape=jax.ShapeDtypeStruct((B, out_w.shape[1]), jnp.float32),
        scratch_shapes=scratch,
        compiler_params=pltpu.CompilerParams(vmem_limit_bytes=32 * 1024 * 1024),
    )(*args)


# ----------------------------------------------------------------------------
# Pure-JAX reference (mirrors torch.nn.GRU eval math) for a correctness check.
# Uses the same (bf16-rounded) weight values as the kernel, but computes the
# recurrence entirely in f32.
# ----------------------------------------------------------------------------
def _ref_forward(x_btd, ref_layers, out_w, out_b):
    B = x_btd.shape[0]
    h_seq = jnp.transpose(x_btd, (1, 0, 2)).astype(jnp.float32)   # (T, B, D)
    for dirs in ref_layers:
        outs = []
        for d in range(2):
            w_ih, w_hh, b_ih, b_hh = dirs[d]
            H = w_hh.shape[1]
            gi = jnp.einsum("tbd,gd->tbg", h_seq, w_ih) + b_ih
            gi_d = gi if d == 0 else gi[::-1]

            def cell(h, gi_t, w_hh=w_hh, b_hh=b_hh, H=H):
                gh = h @ w_hh.T + b_hh
                r = jax.nn.sigmoid(gi_t[:, :H] + gh[:, :H])
                z = jax.nn.sigmoid(gi_t[:, H:2 * H] + gh[:, H:2 * H])
                n = jnp.tanh(gi_t[:, 2 * H:] + r * gh[:, 2 * H:])
                h2 = (1.0 - z) * n + z * h
                return h2, h2

            _, ys = lax.scan(cell, jnp.zeros((B, H), jnp.float32), gi_d)
            outs.append(ys if d == 0 else ys[::-1])
        h_seq = jnp.concatenate(outs, axis=-1)
    return h_seq[-1] @ out_w + out_b


# ----------------------------------------------------------------------------
# Deterministic parameter init (PyTorch-style U(-1/sqrt(H), 1/sqrt(H))).
# Weights are rounded to bf16 once; the kernel stores them as bf16 (MXU-native)
# while the reference uses the identical values in f32, so the only divergence
# in the check is bf16 rounding of activations inside the kernel's matmuls.
# ----------------------------------------------------------------------------
def init_params(key, input_size, hidden_size, num_layers):
    H = hidden_size
    bound = 1.0 / math.sqrt(H)

    def unif(k, shape, b):
        return jax.random.uniform(k, shape, jnp.float32, -b, b)

    kernel_layers = []
    ref_layers = []
    for layer in range(num_layers):
        D_l = input_size if layer == 0 else 2 * H
        key, kf, kb = jax.random.split(key, 3)
        dirs = []
        for kd in (kf, kb):
            ks = jax.random.split(kd, 4)
            w_ih = unif(ks[0], (3 * H, D_l), bound)   # torch weight_ih (r|z|n rows)
            w_hh = unif(ks[1], (3 * H, H), bound)     # torch weight_hh
            b_ih = unif(ks[2], (3 * H,), bound)
            b_hh = unif(ks[3], (3 * H,), bound)
            # round weights to bf16 once -> same values in kernel and reference
            w_ih = w_ih.astype(jnp.bfloat16).astype(jnp.float32)
            w_hh = w_hh.astype(jnp.bfloat16).astype(jnp.float32)
            dirs.append((w_ih, w_hh, b_ih, b_hh))
        ref_layers.append(tuple(dirs))

        # ---- kernel packing ----
        # wi: (D_l, 6H) bf16, columns [f_r|f_z|f_n|b_r|b_z|b_n]
        wi = jnp.concatenate([dirs[0][0].T, dirs[1][0].T], axis=1).astype(jnp.bfloat16)

        # bi: (1, 6H) f32, folded b_i (all gates) + b_h (r,z only)
        def fold_bias(d):
            b_ih, b_hh = dirs[d][2], dirs[d][3]
            return jnp.concatenate([b_ih[:H] + b_hh[:H],
                                    b_ih[H:2 * H] + b_hh[H:2 * H],
                                    b_ih[2 * H:]])
        bi = jnp.concatenate([fold_bias(0), fold_bias(1)]).reshape(1, 6 * H)

        # wh: (6, H, H) bf16 -- per (dir, gate) transposed hidden weights
        wh = jnp.stack([dirs[d][1][g * H:(g + 1) * H, :].T
                        for d in range(2) for g in range(3)],
                       axis=0).astype(jnp.bfloat16)
        # bhn: (2, 1, H) f32 -- hidden bias of the n gate (stays inside r*(.))
        bhn = jnp.stack([dirs[d][3][2 * H:].reshape(1, H) for d in range(2)], axis=0)

        kernel_layers.append({"wi": wi, "bi": bi, "wh": wh, "bhn": bhn})

    key, kw, kb2 = jax.random.split(key, 3)
    lin_bound = 1.0 / math.sqrt(2 * H)
    out_w = unif(kw, (2 * H, 10), lin_bound)
    out_b = unif(kb2, (1, 10), lin_bound)
    return kernel_layers, ref_layers, out_w, out_b


# ----------------------------------------------------------------------------
if __name__ == "__main__":
    B, T, INPUT_SIZE, HIDDEN, NUM_LAYERS = 2, 8, 16, 32, 2

    key = jax.random.PRNGKey(0)
    key, kx = jax.random.split(key)
    x = jax.random.normal(kx, (B, T, INPUT_SIZE), jnp.float32)

    kernel_layers, ref_layers, out_w, out_b = init_params(
        key, INPUT_SIZE, HIDDEN, NUM_LAYERS)

    out = jax.block_until_ready(classifier_forward(x, kernel_layers, out_w, out_b))
    assert out.shape == (B, 10)

    ref = jax.block_until_ready(_ref_forward(x, ref_layers, out_w, out_b))
    # bf16 matmul operands (f32 accumulation) vs f32 reference -> loosened tol.
    assert jnp.allclose(out, ref, rtol=1e-2, atol=1e-2), "mismatch vs JAX reference"

    print("KERNEL_OK")
</pallas_src>

<mosaic_0001>
module attributes {stable_mosaic.version = 11 : i64} {
  func.func @_classifier_kernel(%arg0: memref<16x16xf32, #tpu.memory_space<vmem>>, %arg1: memref<16x192xbf16, #tpu.memory_space<vmem>>, %arg2: memref<1x192xf32, #tpu.memory_space<vmem>>, %arg3: memref<6x32x32xbf16, #tpu.memory_space<vmem>>, %arg4: memref<2x1x32xf32, #tpu.memory_space<vmem>>, %arg5: memref<64x192xbf16, #tpu.memory_space<vmem>>, %arg6: memref<1x192xf32, #tpu.memory_space<vmem>>, %arg7: memref<6x32x32xbf16, #tpu.memory_space<vmem>>, %arg8: memref<2x1x32xf32, #tpu.memory_space<vmem>>, %arg9: memref<64x10xf32, #tpu.memory_space<vmem>>, %arg10: memref<1x10xf32, #tpu.memory_space<vmem>>, %arg11: memref<2x10xf32, #tpu.memory_space<vmem>>, %arg12: memref<6x8x2x32xf32, #tpu.memory_space<vmem>>, %arg13: memref<16x32xf32, #tpu.memory_space<vmem>>, %arg14: memref<16x32xf32, #tpu.memory_space<vmem>>) attributes {dimension_semantics = [], scalar_prefetch = 0 : i64, scratch_operands = 3 : i64, tpu.core_type = #tpu.core_type<tc>} {
    %c0 = arith.constant 0 : index
    %c0_0 = arith.constant 0 : index
    %0 = vector.load %arg0[%c0, %c0_0] : memref<16x16xf32, #tpu.memory_space<vmem>>, vector<16x16xf32>
    %1 = arith.truncf %0 : vector<16x16xf32> to vector<16x16xbf16>
    %c0_1 = arith.constant 0 : index
    %c0_2 = arith.constant 0 : index
    %2 = vector.load %arg1[%c0_1, %c0_2] : memref<16x192xbf16, #tpu.memory_space<vmem>>, vector<16x192xbf16>
    %cst = arith.constant dense<0.000000e+00> : vector<16x192xf32>
    %3 = tpu.matmul %1, %2, %cst {dimension_numbers = #tpu.dot_dimension_numbers<[1], [0], [0], [1], [0, 0, 1, 1], [], []>} : vector<16x16xbf16>, vector<16x192xbf16>, vector<16x192xf32> -> vector<16x192xf32>
    %c0_3 = arith.constant 0 : index
    %c0_4 = arith.constant 0 : index
    %4 = vector.load %arg2[%c0_3, %c0_4] : memref<1x192xf32, #tpu.memory_space<vmem>>, vector<1x192xf32>
    %5 = vector.broadcast %4 : vector<1x192xf32> to vector<16x192xf32>
    %6 = arith.addf %3, %5 : vector<16x192xf32>
    %7 = vector.extract_strided_slice %6 {offsets = [0, 0], sizes = [16, 32], strides = [1, 1]} : vector<16x192xf32> to vector<16x32xf32>
    %8 = vector.extract_strided_slice %7 {offsets = [0, 0], sizes = [2, 32], strides = [1, 1]} : vector<16x32xf32> to vector<2x32xf32>
    %c0_5 = arith.constant 0 : index
    %c0_6 = arith.constant 0 : index
    %c0_7 = arith.constant 0 : index
    %c0_8 = arith.constant 0 : index
    %9 = vector.load %arg12[%c0_5, %c0_6, %c0_7, %c0_8] : memref<6x8x2x32xf32, #tpu.memory_space<vmem>>, vector<1x1x2x32xf32>
    %10 = vector.shape_cast %9 : vector<1x1x2x32xf32> to vector<2x32xf32>
    %11 = vector.shape_cast %8 : vector<2x32xf32> to vector<1x1x2x32xf32>
    tpu.vector_store %arg12[%c0_5, %c0_6, %c0_7, %c0_8], %11 {strides = array<i32>} : memref<6x8x2x32xf32, #tpu.memory_space<vmem>>, vector<1x1x2x32xf32>,
    %12 = vector.extract_strided_slice %7 {offsets = [2, 0], sizes = [2, 32], strides = [1, 1]} : vector<16x32xf32> to vector<2x32xf32>
    %c0_9 = arith.constant 0 : index
    %c1 = arith.constant 1 : index
    %c0_10 = arith.constant 0 : index
    %c0_11 = arith.constant 0 : index
    %13 = vector.load %arg12[%c0_9, %c1, %c0_10, %c0_11] : memref<6x8x2x32xf32, #tpu.memory_space<vmem>>, vector<1x1x2x32xf32>
    %14 = vector.shape_cast %13 : vector<1x1x2x32xf32> to vector<2x32xf32>
    %15 = vector.shape_cast %12 : vector<2x32xf32> to vector<1x1x2x32xf32>
    tpu.vector_store %arg12[%c0_9, %c1, %c0_10, %c0_11], %15 {strides = array<i32>} : memref<6x8x2x32xf32, #tpu.memory_space<vmem>>, vector<1x1x2x32xf32>,
    %16 = vector.extract_strided_slice %7 {offsets = [4, 0], sizes = [2, 32], strides = [1, 1]} : vector<16x32xf32> to vector<2x32xf32>
    %c0_12 = arith.constant 0 : index
    %c2 = arith.constant 2 : index
    %c0_13 = arith.constant 0 : index
    %c0_14 = arith.constant 0 : index
    %17 = vector.load %arg12[%c0_12, %c2, %c0_13, %c0_14] : memref<6x8x2x32xf32, #tpu.memory_space<vmem>>, vector<1x1x2x32xf32>
    %18 = vector.shape_cast %17 : vector<1x1x2x32xf32> to vector<2x32xf32>
    %19 = vector.shape_cast %16 : vector<2x32xf32> to vector<1x1x2x32xf32>
    tpu.vector_store %arg12[%c0_12, %c2, %c0_13, %c0_14], %19 {strides = array<i32>} : memref<6x8x2x32xf32, #tpu.memory_space<vmem>>, vector<1x1x2x32xf32>,
    %20 = vector.extract_strided_slice %7 {offsets = [6, 0], sizes = [2, 32], strides = [1, 1]} : vector<16x32xf32> to vector<2x32xf32>
    %c0_15 = arith.constant 0 : index
    %c3 = arith.constant 3 : index
    %c0_16 = arith.constant 0 : index
    %c0_17 = arith.constant 0 : index
    %21 = vector.load %arg12[%c0_15, %c3, %c0_16, %c0_17] : memref<6x8x2x32xf32, #tpu.memory_space<vmem>>, vector<1x1x2x32xf32>
    %22 = vector.shape_cast %21 : vector<1x1x2x32xf32> to vector<2x32xf32>
    %23 = vector.shape_cast %20 : vector<2x32xf32> to vector<1x1x2x32xf32>
    tpu.vector_store %arg12[%c0_15, %c3, %c0_16, %c0_17], %23 {strides = array<i32>} : memref<6x8x2x32xf32, #tpu.memory_space<vmem>>, vector<1x1x2x32xf32>,
    %24 = vector.extract_strided_slice %7 {offsets = [8, 0], sizes = [2, 32], strides = [1, 1]} : vector<16x32xf32> to vector<2x32xf32>
    %c0_18 = arith.constant 0 : index
    %c4 = arith.constant 4 : index
    %c0_19 = arith.constant 0 : index
    %c0_20 = arith.constant 0 : index
    %25 = vector.load %arg12[%c0_18, %c4, %c0_19, %c0_20] : memref<6x8x2x32xf32, #tpu.memory_space<vmem>>, vector<1x1x2x32xf32>
    %26 = vector.shape_cast %25 : vector<1x1x2x32xf32> to vector<2x32xf32>
    %27 = vector.shape_cast %24 : vector<2x32xf32> to vector<1x1x2x32xf32>
    tpu.vector_store %arg12[%c0_18, %c4, %c0_19, %c0_20], %27 {strides = array<i32>} : memref<6x8x2x32xf32, #tpu.memory_space<vmem>>, vector<1x1x2x32xf32>,
    %28 = vector.extract_strided_slice %7 {offsets = [10, 0], sizes = [2, 32], strides = [1, 1]} : vector<16x32xf32> to vector<2x32xf32>
    %c0_21 = arith.constant 0 : index
    %c5 = arith.constant 5 : index
    %c0_22 = arith.constant 0 : index
    %c0_23 = arith.constant 0 : index
    %29 = vector.load %arg12[%c0_21, %c5, %c0_22, %c0_23] : memref<6x8x2x32xf32, #tpu.memory_space<vmem>>, vector<1x1x2x32xf32>
    %30 = vector.shape_cast %29 : vector<1x1x2x32xf32> to vector<2x32xf32>
    %31 = vector.shape_cast %28 : vector<2x32xf32> to vector<1x1x2x32xf32>
    tpu.vector_store %arg12[%c0_21, %c5, %c0_22, %c0_23], %31 {strides = array<i32>} : memref<6x8x2x32xf32, #tpu.memory_space<vmem>>, vector<1x1x2x32xf32>,
    %32 = vector.extract_strided_slice %7 {offsets = [12, 0], sizes = [2, 32], strides = [1, 1]} : vector<16x32xf32> to vector<2x32xf32>
    %c0_24 = arith.constant 0 : index
    %c6 = arith.constant 6 : index
    %c0_25 = arith.constant 0 : index
    %c0_26 = arith.constant 0 : index
    %33 = vector.load %arg12[%c0_24, %c6, %c0_25, %c0_26] : memref<6x8x2x32xf32, #tpu.memory_space<vmem>>, vector<1x1x2x32xf32>
    %34 = vector.shape_cast %33 : vector<1x1x2x32xf32> to vector<2x32xf32>
    %35 = vector.shape_cast %32 : vector<2x32xf32> to vector<1x1x2x32xf32>
    tpu.vector_store %arg12[%c0_24, %c6, %c0_25, %c0_26], %35 {strides = array<i32>} : memref<6x8x2x32xf32, #tpu.memory_space<vmem>>, vector<1x1x2x32xf32>,
    %36 = vector.extract_strided_slice %7 {offsets = [14, 0], sizes = [2, 32], strides = [1, 1]} : vector<16x32xf32> to vector<2x32xf32>
    %c0_27 = arith.constant 0 : index
    %c7 = arith.constant 7 : index
    %c0_28 = arith.constant 0 : index
    %c0_29 = arith.constant 0 : index
    %37 = vector.load %arg12[%c0_27, %c7, %c0_28, %c0_29] : memref<6x8x2x32xf32, #tpu.memory_space<vmem>>, vector<1x1x2x32xf32>
    %38 = vector.shape_cast %37 : vector<1x1x2x32xf32> to vector<2x32xf32>
    %39 = vector.shape_cast %36 : vector<2x32xf32> to vector<1x1x2x32xf32>
    tpu.vector_store %arg12[%c0_27, %c7, %c0_28, %c0_29], %39 {strides = array<i32>} : memref<6x8x2x32xf32, #tpu.memory_space<vmem>>, vector<1x1x2x32xf32>,
    %40 = vector.extract_strided_slice %6 {offsets = [0, 32], sizes = [16, 32], strides = [1, 1]} : vector<16x192xf32> to vector<16x32xf32>
    %41 = vector.extract_strided_slice %40 {offsets = [0, 0], sizes = [2, 32], strides = [1, 1]} : vector<16x32xf32> to vector<2x32xf32>
    %c1_30 = arith.constant 1 : index
    %c0_31 = arith.constant 0 : index
    %c0_32 = arith.constant 0 : index
    %c0_33 = arith.constant 0 : index
    %42 = vector.load %arg12[%c1_30, %c0_31, %c0_32, %c0_33] : memref<6x8x2x32xf32, #tpu.memory_space<vmem>>, vector<1x1x2x32xf32>
    %43 = vector.shape_cast %42 : vector<1x1x2x32xf32> to vector<2x32xf32>
    %44 = vector.shape_cast %41 : vector<2x32xf32> to vector<1x1x2x32xf32>
    tpu.vector_store %arg12[%c1_30, %c0_31, %c0_32, %c0_33], %44 {strides = array<i32>} : memref<6x8x2x32xf32, #tpu.memory_space<vmem>>, vector<1x1x2x32xf32>,
    %45 = vector.extract_strided_slice %40 {offsets = [2, 0], sizes = [2, 32], strides = [1, 1]} : vector<16x32xf32> to vector<2x32xf32>
    %c1_34 = arith.constant 1 : index
    %c1_35 = arith.constant 1 : index
    %c0_36 = arith.constant 0 : index
    %c0_37 = arith.constant 0 : index
    %46 = vector.load %arg12[%c1_34, %c1_35, %c0_36, %c0_37] : memref<6x8x2x32xf32, #tpu.memory_space<vmem>>, vector<1x1x2x32xf32>
    %47 = vector.shape_cast %46 : vector<1x1x2x32xf32> to vector<2x32xf32>
    %48 = vector.shape_cast %45 : vector<2x32xf32> to vector<1x1x2x32xf32>
    tpu.vector_store %arg12[%c1_34, %c1_35, %c0_36, %c0_37], %48 {strides = array<i32>} : memref<6x8x2x32xf32, #tpu.memory_space<vmem>>, vector<1x1x2x32xf32>,
    %49 = vector.extract_strided_slice %40 {offsets = [4, 0], sizes = [2, 32], strides = [1, 1]} : vector<16x32xf32> to vector<2x32xf32>
    %c1_38 = arith.constant 1 : index
    %c2_39 = arith.constant 2 : index
    %c0_40 = arith.constant 0 : index
    %c0_41 = arith.constant 0 : index
    %50 = vector.load %arg12[%c1_38, %c2_39, %c0_40, %c0_41] : memref<6x8x2x32xf32, #tpu.memory_space<vmem>>, vector<1x1x2x32xf32>
    %51 = vector.shape_cast %50 : vector<1x1x2x32xf32> to vector<2x32xf32>
    %52 = vector.shape_cast %49 : vector<2x32xf32> to vector<1x1x2x32xf32>
    tpu.vector_store %arg12[%c1_38, %c2_39, %c0_40, %c0_41], %52 {strides = array<i32>} : memref<6x8x2x32xf32, #tpu.memory_space<vmem>>, vector<1x1x2x32xf32>,
    %53 = vector.extract_strided_slice %40 {offsets = [6, 0], sizes = [2, 32], strides = [1, 1]} : vector<16x32xf32> to vector<2x32xf32>
    %c1_42 = arith.constant 1 : index
    %c3_43 = arith.constant 3 : index
    %c0_44 = arith.constant 0 : index
    %c0_45 = arith.constant 0 : index
    %54 = vector.load %arg12[%c1_42, %c3_43, %c0_44, %c0_45] : memref<6x8x2x32xf32, #tpu.memory_space<vmem>>, vector<1x1x2x32xf32>
    %55 = vector.shape_cast %54 : vector<1x1x2x32xf32> to vector<2x32xf32>
    %56 = vector.shape_cast %53 : vector<2x32xf32> to vector<1x1x2x32xf32>
    tpu.vector_store %arg12[%c1_42, %c3_43, %c0_44, %c0_45], %56 {strides = array<i32>} : memref<6x8x2x32xf32, #tpu.memory_space<vmem>>, vector<1x1x2x32xf32>,
    %57 = vector.extract_strided_slice %40 {offsets = [8, 0], sizes = [2, 32], strides = [1, 1]} : vector<16x32xf32> to vector<2x32xf32>
    %c1_46 = arith.constant 1 : index
    %c4_47 = arith.constant 4 : index
    %c0_48 = arith.constant 0 : index
    %c0_49 = arith.constant 0 : index
    %58 = vector.load %arg12[%c1_46, %c4_47, %c0_48, %c0_49] : memref<6x8x2x32xf32, #tpu.memory_space<vmem>>, vector<1x1x2x32xf32>
    %59 = vector.shape_cast %58 : vector<1x1x2x32xf32> to vector<2x32xf32>
    %60 = vector.shape_cast %57 : vector<2x32xf32> to vector<1x1x2x32xf32>
    tpu.vector_store %arg12[%c1_46, %c4_47, %c0_48, %c0_49], %60 {strides = array<i32>} : memref<6x8x2x32xf32, #tpu.memory_space<vmem>>, vector<1x1x2x32xf32>,
    %61 = vector.extract_strided_slice %40 {offsets = [10, 0], sizes = [2, 32], strides = [1, 1]} : vector<16x32xf32> to vector<2x32xf32>
    %c1_50 = arith.constant 1 : index
    %c5_51 = arith.constant 5 : index
    %c0_52 = arith.constant 0 : index
    %c0_53 = arith.constant 0 : index
    %62 = vector.load %arg12[%c1_50, %c5_51, %c0_52, %c0_53] : memref<6x8x2x32xf32, #tpu.memory_space<vmem>>, vector<1x1x2x32xf32>
    %63 = vector.shape_cast %62 : vector<1x1x2x32xf32> to vector<2x32xf32>
    %64 = vector.shape_cast %61 : vector<2x32xf32> to vector<1x1x2x32xf32>
    tpu.vector_store %arg12[%c1_50, %c5_51, %c0_52, %c0_53], %64 {strides = array<i32>} : memref<6x8x2x32xf32, #tpu.memory_space<vmem>>, vector<1x1x2x32xf32>,
    %65 = vector.extract_strided_slice %40 {offsets = [12, 0], sizes = [2, 32], strides = [1, 1]} : vector<16x32xf32> to vector<2x32xf32>
    %c1_54 = arith.constant 1 : index
    %c6_55 = arith.constant 6 : index
    %c0_56 = arith.constant 0 : index
    %c0_57 = arith.constant 0 : index
    %66 = vector.load %arg12[%c1_54, %c6_55, %c0_56, %c0_57] : memref<6x8x2x32xf32, #tpu.memory_space<vmem>>, vector<1x1x2x32xf32>
    %67 = vector.shape_cast %66 : vector<1x1x2x32xf32> to vector<2x32xf32>
    %68 = vector.shape_cast %65 : vector<2x32xf32> to vector<1x1x2x32xf32>
    tpu.vector_store %arg12[%c1_54, %c6_55, %c0_56, %c0_57], %68 {strides = array<i32>} : memref<6x8x2x32xf32, #tpu.memory_space<vmem>>, vector<1x1x2x32xf32>,
    %69 = vector.extract_strided_slice %40 {offsets = [14, 0], sizes = [2, 32], strides = [1, 1]} : vector<16x32xf32> to vector<2x32xf32>
    %c1_58 = arith.constant 1 : index
    %c7_59 = arith.constant 7 : index
    %c0_60 = arith.constant 0 : index
    %c0_61 = arith.constant 0 : index
    %70 = vector.load %arg12[%c1_58, %c7_59, %c0_60, %c0_61] : memref<6x8x2x32xf32, #tpu.memory_space<vmem>>, vector<1x1x2x32xf32>
    %71 = vector.shape_cast %70 : vector<1x1x2x32xf32> to vector<2x32xf32>
    %72 = vector.shape_cast %69 : vector<2x32xf32> to vector<1x1x2x32xf32>
    tpu.vector_store %arg12[%c1_58, %c7_59, %c0_60, %c0_61], %72 {strides = array<i32>} : memref<6x8x2x32xf32, #tpu.memory_space<vmem>>, vector<1x1x2x32xf32>,
    %73 = vector.extract_strided_slice %6 {offsets = [0, 64], sizes = [16, 32], strides = [1, 1]} : vector<16x192xf32> to vector<16x32xf32>
    %74 = vector.extract_strided_slice %73 {offsets = [0, 0], sizes = [2, 32], strides = [1, 1]} : vector<16x32xf32> to vector<2x32xf32>
    %c2_62 = arith.constant 2 : index
    %c0_63 = arith.constant 0 : index
    %c0_64 = arith.constant 0 : index
    %c0_65 = arith.constant 0 : index
    %75 = vector.load %arg12[%c2_62, %c0_63, %c0_64, %c0_65] : memref<6x8x2x32xf32, #tpu.memory_space<vmem>>, vector<1x1x2x32xf32>
    %76 = vector.shape_cast %75 : vector<1x1x2x32xf32> to vector<2x32xf32>
    %77 = vector.shape_cast %74 : vector<2x32xf32> to vector<1x1x2x32xf32>
    tpu.vector_store %arg12[%c2_62, %c0_63, %c0_64, %c0_65], %77 {strides = array<i32>} : memref<6x8x2x32xf32, #tpu.memory_space<vmem>>, vector<1x1x2x32xf32>,
    %78 = vector.extract_strided_slice %73 {offsets = [2, 0], sizes = [2, 32], strides = [1, 1]} : vector<16x32xf32> to vector<2x32xf32>
    %c2_66 = arith.constant 2 : index
    %c1_67 = arith.constant 1 : index
    %c0_68 = arith.constant 0 : index
    %c0_69 = arith.constant 0 : index
    %79 = vector.load %arg12[%c2_66, %c1_67, %c0_68, %c0_69] : memref<6x8x2x32xf32, #tpu.memory_space<vmem>>, vector<1x1x2x32xf32>
    %80 = vector.shape_cast %79 : vector<1x1x2x32xf32> to vector<2x32xf32>
    %81 = vector.shape_cast %78 : vector<2x32xf32> to vector<1x1x2x32xf32>
    tpu.vector_store %arg12[%c2_66, %c1_67, %c0_68, %c0_69], %81 {strides = array<i32>} : memref<6x8x2x32xf32, #tpu.memory_space<vmem>>, vector<1x1x2x32xf32>,
    %82 = vector.extract_strided_slice %73 {offsets = [4, 0], sizes = [2, 32], strides = [1, 1]} : vector<16x32xf32> to vector<2x32xf32>
    %c2_70 = arith.constant 2 : index
    %c2_71 = arith.constant 2 : index
    %c0_72 = arith.constant 0 : index
    %c0_73 = arith.constant 0 : index
    %83 = vector.load %arg12[%c2_70, %c2_71, %c0_72, %c0_73] : memref<6x8x2x32xf32, #tpu.memory_space<vmem>>, vector<1x1x2x32xf32>
    %84 = vector.shape_cast %83 : vector<1x1x2x32xf32> to vector<2x32xf32>
    %85 = vector.shape_cast %82 : vector<2x32xf32> to vector<1x1x2x32xf32>
    tpu.vector_store %arg12[%c2_70, %c2_71, %c0_72, %c0_73], %85 {strides = array<i32>} : memref<6x8x2x32xf32, #tpu.memory_space<vmem>>, vector<1x1x2x32xf32>,
    %86 = vector.extract_strided_slice %73 {offsets = [6, 0], sizes = [2, 32], strides = [1, 1]} : vector<16x32xf32> to vector<2x32xf32>
    %c2_74 = arith.constant 2 : index
    %c3_75 = arith.constant 3 : index
    %c0_76 = arith.constant 0 : index
    %c0_77 = arith.constant 0 : index
    %87 = vector.load %arg12[%c2_74, %c3_75, %c0_76, %c0_77] : memref<6x8x2x32xf32, #tpu.memory_space<vmem>>, vector<1x1x2x32xf32>
    %88 = vector.shape_cast %87 : vector<1x1x2x32xf32> to vector<2x32xf32>
    %89 = vector.shape_cast %86 : vector<2x32xf32> to vector<1x1x2x32xf32>
    tpu.vector_store %arg12[%c2_74, %c3_75, %c0_76, %c0_77], %89 {strides = array<i32>} : memref<6x8x2x32xf32, #tpu.memory_space<vmem>>, vector<1x1x2x32xf32>,
    %90 = vector.extract_strided_slice %73 {offsets = [8, 0], sizes = [2, 32], strides = [1, 1]} : vector<16x32xf32> to vector<2x32xf32>
    %c2_78 = arith.constant 2 : index
    %c4_79 = arith.constant 4 : index
    %c0_80 = arith.constant 0 : index
    %c0_81 = arith.constant 0 : index
    %91 = vector.load %arg12[%c2_78, %c4_79, %c0_80, %c0_81] : memref<6x8x2x32xf32, #tpu.memory_space<vmem>>, vector<1x1x2x32xf32>
    %92 = vector.shape_cast %91 : vector<1x1x2x32xf32> to vector<2x32xf32>
    %93 = vector.shape_cast %90 : vector<2x32xf32> to vector<1x1x2x32xf32>
    tpu.vector_store %arg12[%c2_78, %c4_79, %c0_80, %c0_81], %93 {strides = array<i32>} : memref<6x8x2x32xf32, #tpu.memory_space<vmem>>, vector<1x1x2x32xf32>,
    %94 = vector.extract_strided_slice %73 {offsets = [10, 0], sizes = [2, 32], strides = [1, 1]} : vector<16x32xf32> to vector<2x32xf32>
    %c2_82 = arith.constant 2 : index
    %c5_83 = arith.constant 5 : index
    %c0_84 = arith.constant 0 : index
    %c0_85 = arith.constant 0 : index
    %95 = vector.load %arg12[%c2_82, %c5_83, %c0_84, %c0_85] : memref<6x8x2x32xf32, #tpu.memory_space<vmem>>, vector<1x1x2x32xf32>
    %96 = vector.shape_cast %95 : vector<1x1x2x32xf32> to vector<2x32xf32>
    %97 = vector.shape_cast %94 : vector<2x32xf32> to vector<1x1x2x32xf32>
    tpu.vector_store %arg12[%c2_82, %c5_83, %c0_84, %c0_85], %97 {strides = array<i32>} : memref<6x8x2x32xf32, #tpu.memory_space<vmem>>, vector<1x1x2x32xf32>,
    %98 = vector.extract_strided_slice %73 {offsets = [12, 0], sizes = [2, 32], strides = [1, 1]} : vector<16x32xf32> to vector<2x32xf32>
    %c2_86 = arith.constant 2 : index
    %c6_87 = arith.constant 6 : index
    %c0_88 = arith.constant 0 : index
    %c0_89 = arith.constant 0 : index
    %99 = vector.load %arg12[%c2_86, %c6_87, %c0_88, %c0_89] : memref<6x8x2x32xf32, #tpu.memory_space<vmem>>, vector<1x1x2x32xf32>
    %100 = vector.shape_cast %99 : vector<1x1x2x32xf32> to vector<2x32xf32>
    %101 = vector.shape_cast %98 : vector<2x32xf32> to vector<1x1x2x32xf32>
    tpu.vector_store %arg12[%c2_86, %c6_87, %c0_88, %c0_89], %101 {strides = array<i32>} : memref<6x8x2x32xf32, #tpu.memory_space<vmem>>, vector<1x1x2x32xf32>,
    %102 = vector.extract_strided_slice %73 {offsets = [14, 0], sizes = [2, 32], strides = [1, 1]} : vector<16x32xf32> to vector<2x32xf32>
    %c2_90 = arith.constant 2 : index
    %c7_91 = arith.constant 7 : index
    %c0_92 = arith.constant 0 : index
    %c0_93 = arith.constant 0 : index
    %103 = vector.load %arg12[%c2_90, %c7_91, %c0_92, %c0_93] : memref<6x8x2x32xf32, #tpu.memory_space<vmem>>, vector<1x1x2x32xf32>
    %104 = vector.shape_cast %103 : vector<1x1x2x32xf32> to vector<2x32xf32>
    %105 = vector.shape_cast %102 : vector<2x32xf32> to vector<1x1x2x32xf32>
    tpu.vector_store %arg12[%c2_90, %c7_91, %c0_92, %c0_93], %105 {strides = array<i32>} : memref<6x8x2x32xf32, #tpu.memory_space<vmem>>, vector<1x1x2x32xf32>,
    %106 = vector.extract_strided_slice %6 {offsets = [0, 96], sizes = [16, 32], strides = [1, 1]} : vector<16x192xf32> to vector<16x32xf32>
    %107 = vector.extract_strided_slice %106 {offsets = [0, 0], sizes = [2, 32], strides = [1, 1]} : vector<16x32xf32> to vector<2x32xf32>
    %c3_94 = arith.constant 3 : index
    %c0_95 = arith.constant 0 : index
    %c0_96 = arith.constant 0 : index
    %c0_97 = arith.constant 0 : index
    %108 = vector.load %arg12[%c3_94, %c0_95, %c0_96, %c0_97] : memref<6x8x2x32xf32, #tpu.memory_space<vmem>>, vector<1x1x2x32xf32>
    %109 = vector.shape_cast %108 : vector<1x1x2x32xf32> to vector<2x32xf32>
    %110 = vector.shape_cast %107 : vector<2x32xf32> to vector<1x1x2x32xf32>
    tpu.vector_store %arg12[%c3_94, %c0_95, %c0_96, %c0_97], %110 {strides = array<i32>} : memref<6x8x2x32xf32, #tpu.memory_space<vmem>>, vector<1x1x2x32xf32>,
    %111 = vector.extract_strided_slice %106 {offsets = [2, 0], sizes = [2, 32], strides = [1, 1]} : vector<16x32xf32> to vector<2x32xf32>
    %c3_98 = arith.constant 3 : index
    %c1_99 = arith.constant 1 : index
    %c0_100 = arith.constant 0 : index
    %c0_101 = arith.constant 0 : index
    %112 = vector.load %arg12[%c3_98, %c1_99, %c0_100, %c0_101] : memref<6x8x2x32xf32, #tpu.memory_space<vmem>>, vector<1x1x2x32xf32>
    %113 = vector.shape_cast %112 : vector<1x1x2x32xf32> to vector<2x32xf32>
    %114 = vector.shape_cast %111 : vector<2x32xf32> to vector<1x1x2x32xf32>
    tpu.vector_store %arg12[%c3_98, %c1_99, %c0_100, %c0_101], %114 {strides = array<i32>} : memref<6x8x2x32xf32, #tpu.memory_space<vmem>>, vector<1x1x2x32xf32>,
    %115 = vector.extract_strided_slice %106 {offsets = [4, 0], sizes = [2, 32], strides = [1, 1]} : vector<16x32xf32> to vector<2x32xf32>
    %c3_102 = arith.constant 3 : index
    %c2_103 = arith.constant 2 : index
    %c0_104 = arith.constant 0 : index
    %c0_105 = arith.constant 0 : index
    %116 = vector.load %arg12[%c3_102, %c2_103, %c0_104, %c0_105] : memref<6x8x2x32xf32, #tpu.memory_space<vmem>>, vector<1x1x2x32xf32>
    %117 = vector.shape_cast %116 : vector<1x1x2x32xf32> to vector<2x32xf32>
    %118 = vector.shape_cast %115 : vector<2x32xf32> to vector<1x1x2x32xf32>
    tpu.vector_store %arg12[%c3_102, %c2_103, %c0_104, %c0_105], %118 {strides = array<i32>} : memref<6x8x2x32xf32, #tpu.memory_space<vmem>>, vector<1x1x2x32xf32>,
    %119 = vector.extract_strided_slice %106 {offsets = [6, 0], sizes = [2, 32], strides = [1, 1]} : vector<16x32xf32> to vector<2x32xf32>
    %c3_106 = arith.constant 3 : index
    %c3_107 = arith.constant 3 : index
    %c0_108 = arith.constant 0 : index
    %c0_109 = arith.constant 0 : index
    %120 = vector.load %arg12[%c3_106, %c3_107, %c0_108, %c0_109] : memref<6x8x2x32xf32, #tpu.memory_space<vmem>>, vector<1x1x2x32xf32>
    %121 = vector.shape_cast %120 : vector<1x1x2x32xf32> to vector<2x32xf32>
    %122 = vector.shape_cast %119 : vector<2x32xf32> to vector<1x1x2x32xf32>
    tpu.vector_store %arg12[%c3_106, %c3_107, %c0_108, %c0_109], %122 {strides = array<i32>} : memref<6x8x2x32xf32, #tpu.memory_space<vmem>>, vector<1x1x2x32xf32>,
    %123 = vector.extract_strided_slice %106 {offsets = [8, 0], sizes = [2, 32], strides = [1, 1]} : vector<16x32xf32> to vector<2x32xf32>
    %c3_110 = arith.constant 3 : index
    %c4_111 = arith.constant 4 : index
    %c0_112 = arith.constant 0 : index
    %c0_113 = arith.constant 0 : index
    %124 = vector.load %arg12[%c3_110, %c4_111, %c0_112, %c0_113] : memref<6x8x2x32xf32, #tpu.memory_space<vmem>>, vector<1x1x2x32xf32>
    %125 = vector.shape_cast %124 : vector<1x1x2x32xf32> to vector<2x32xf32>
    %126 = vector.shape_cast %123 : vector<2x32xf32> to vector<1x1x2x32xf32>
    tpu.vector_store %arg12[%c3_110, %c4_111, %c0_112, %c0_113], %126 {strides = array<i32>} : memref<6x8x2x32xf32, #tpu.memory_space<vmem>>, vector<1x1x2x32xf32>,
    %127 = vector.extract_strided_slice %106 {offsets = [10, 0], sizes = [2, 32], strides = [1, 1]} : vector<16x32xf32> to vector<2x32xf32>
    %c3_114 = arith.constant 3 : index
    %c5_115 = arith.constant 5 : index
    %c0_116 = arith.constant 0 : index
    %c0_117 = arith.constant 0 : index
    %128 = vector.load %arg12[%c3_114, %c5_115, %c0_116, %c0_117] : memref<6x8x2x32xf32, #tpu.memory_space<vmem>>, vector<1x1x2x32xf32>
    %129 = vector.shape_cast %128 : vector<1x1x2x32xf32> to vector<2x32xf32>
    %130 = vector.shape_cast %127 : vector<2x32xf32> to vector<1x1x2x32xf32>
    tpu.vector_store %arg12[%c3_114, %c5_115, %c0_116, %c0_117], %130 {strides = array<i32>} : memref<6x8x2x32xf32, #tpu.memory_space<vmem>>, vector<1x1x2x32xf32>,
    %131 = vector.extract_strided_slice %106 {offsets = [12, 0], sizes = [2, 32], strides = [1, 1]} : vector<16x32xf32> to vector<2x32xf32>
    %c3_118 = arith.constant 3 : index
    %c6_119 = arith.constant 6 : index
    %c0_120 = arith.constant 0 : index
    %c0_121 = arith.constant 0 : index
    %132 = vector.load %arg12[%c3_118, %c6_119, %c0_120, %c0_121] : memref<6x8x2x32xf32, #tpu.memory_space<vmem>>, vector<1x1x2x32xf32>
    %133 = vector.shape_cast %132 : vector<1x1x2x32xf32> to vector<2x32xf32>
    %134 = vector.shape_cast %131 : vector<2x32xf32> to vector<1x1x2x32xf32>
    tpu.vector_store %arg12[%c3_118, %c6_119, %c0_120, %c0_121], %134 {strides = array<i32>} : memref<6x8x2x32xf32, #tpu.memory_space<vmem>>, vector<1x1x2x32xf32>,
    %135 = vector.extract_strided_slice %106 {offsets = [14, 0], sizes = [2, 32], strides = [1, 1]} : vector<16x32xf32> to vector<2x32xf32>
    %c3_122 = arith.constant 3 : index
    %c7_123 = arith.constant 7 : index
    %c0_124 = arith.constant 0 : index
    %c0_125 = arith.constant 0 : index
    %136 = vector.load %arg12[%c3_122, %c7_123, %c0_124, %c0_125] : memref<6x8x2x32xf32, #tpu.memory_space<vmem>>, vector<1x1x2x32xf32>
    %137 = vector.shape_cast %136 : vector<1x1x2x32xf32> to vector<2x32xf32>
    %138 = vector.shape_cast %135 : vector<2x32xf32> to vector<1x1x2x32xf32>
    tpu.vector_store %arg12[%c3_122, %c7_123, %c0_124, %c0_125], %138 {strides = array<i32>} : memref<6x8x2x32xf32, #tpu.memory_space<vmem>>, vector<1x1x2x32xf32>,
    %139 = vector.extract_strided_slice %6 {offsets = [0, 128], sizes = [16, 32], strides = [1, 1]} : vector<16x192xf32> to vector<16x32xf32>
    %140 = vector.extract_strided_slice %139 {offsets = [0, 0], sizes = [2, 32], strides = [1, 1]} : vector<16x32xf32> to vector<2x32xf32>
    %c4_126 = arith.constant 4 : index
    %c0_127 = arith.constant 0 : index
    %c0_128 = arith.constant 0 : index
    %c0_129 = arith.constant 0 : index
    %141 = vector.load %arg12[%c4_126, %c0_127, %c0_128, %c0_129] : memref<6x8x2x32xf32, #tpu.memory_space<vmem>>, vector<1x1x2x32xf32>
    %142 = vector.shape_cast %141 : vector<1x1x2x32xf32> to vector<2x32xf32>
    %143 = vector.shape_cast %140 : vector<2x32xf32> to vector<1x1x2x32xf32>
    tpu.vector_store %arg12[%c4_126, %c0_127, %c0_128, %c0_129], %143 {strides = array<i32>} : memref<6x8x2x32xf32, #tpu.memory_space<vmem>>, vector<1x1x2x32xf32>,
    %144 = vector.extract_strided_slice %139 {offsets = [2, 0], sizes = [2, 32], strides = [1, 1]} : vector<16x32xf32> to vector<2x32xf32>
    %c4_130 = arith.constant 4 : index
    %c1_131 = arith.constant 1 : index
    %c0_132 = arith.constant 0 : index
    %c0_133 = arith.constant 0 : index
    %145 = vector.load %arg12[%c4_130, %c1_131, %c0_132, %c0_133] : memref<6x8x2x32xf32, #tpu.memory_space<vmem>>, vector<1x1x2x32xf32>
    %146 = vector.shape_cast %145 : vector<1x1x2x32xf32> to vector<2x32xf32>
    %147 = vector.shape_cast %144 : vector<2x32xf32> to vector<1x1x2x32xf32>
    tpu.vector_store %arg12[%c4_130, %c1_131, %c0_132, %c0_133], %147 {strides = array<i32>} : memref<6x8x2x32xf32, #tpu.memory_space<vmem>>, vector<1x1x2x32xf32>,
    %148 = vector.extract_strided_slice %139 {offsets = [4, 0], sizes = [2, 32], strides = [1, 1]} : vector<16x32xf32> to vector<2x32xf32>
    %c4_134 = arith.constant 4 : index
    %c2_135 = arith.constant 2 : index
    %c0_136 = arith.constant 0 : index
    %c0_137 = arith.constant 0 : index
    %149 = vector.load %arg12[%c4_134, %c2_135, %c0_136, %c0_137] : memref<6x8x2x32xf32, #tpu.memory_space<vmem>>, vector<1x1x2x32xf32>
    %150 = vector.shape_cast %149 : vector<1x1x2x32xf32> to vector<2x32xf32>
    %151 = vector.shape_cast %148 : vector<2x32xf32> to vector<1x1x2x32xf32>
    tpu.vector_store %arg12[%c4_134, %c2_135, %c0_136, %c0_137], %151 {strides = array<i32>} : memref<6x8x2x32xf32, #tpu.memory_space<vmem>>, vector<1x1x2x32xf32>,
    %152 = vector.extract_strided_slice %139 {offsets = [6, 0], sizes = [2, 32], strides = [1, 1]} : vector<16x32xf32> to vector<2x32xf32>
    %c4_138 = arith.constant 4 : index
    %c3_139 = arith.constant 3 : index
    %c0_140 = arith.constant 0 : index
    %c0_141 = arith.constant 0 : index
    %153 = vector.load %arg12[%c4_138, %c3_139, %c0_140, %c0_141] : memref<6x8x2x32xf32, #tpu.memory_space<vmem>>, vector<1x1x2x32xf32>
    %154 = vector.shape_cast %153 : vector<1x1x2x32xf32> to vector<2x32xf32>
    %155 = vector.shape_cast %152 : vector<2x32xf32> to vector<1x1x2x32xf32>
    tpu.vector_store %arg12[%c4_138, %c3_139, %c0_140, %c0_141], %155 {strides = array<i32>} : memref<6x8x2x32xf32, #tpu.memory_space<vmem>>, vector<1x1x2x32xf32>,
    %156 = vector.extract_strided_slice %139 {offsets = [8, 0], sizes = [2, 32], strides = [1, 1]} : vector<16x32xf32> to vector<2x32xf32>
    %c4_142 = arith.constant 4 : index
    %c4_143 = arith.constant 4 : index
    %c0_144 = arith.constant 0 : index
    %c0_145 = arith.constant 0 : index
    %157 = vector.load %arg12[%c4_142, %c4_143, %c0_144, %c0_145] : memref<6x8x2x32xf32, #tpu.memory_space<vmem>>, vector<1x1x2x32xf32>
    %158 = vector.shape_cast %157 : vector<1x1x2x32xf32> to vector<2x32xf32>
    %159 = vector.shape_cast %156 : vector<2x32xf32> to vector<1x1x2x32xf32>
    tpu.vector_store %arg12[%c4_142, %c4_143, %c0_144, %c0_145], %159 {strides = array<i32>} : memref<6x8x2x32xf32, #tpu.memory_space<vmem>>, vector<1x1x2x32xf32>,
    %160 = vector.extract_strided_slice %139 {offsets = [10, 0], sizes = [2, 32], strides = [1, 1]} : vector<16x32xf32> to vector<2x32xf32>
    %c4_146 = arith.constant 4 : index
    %c5_147 = arith.constant 5 : index
    %c0_148 = arith.constant 0 : index
    %c0_149 = arith.constant 0 : index
    %161 = vector.load %arg12[%c4_146, %c5_147, %c0_148, %c0_149] : memref<6x8x2x32xf32, #tpu.memory_space<vmem>>, vector<1x1x2x32xf32>
    %162 = vector.shape_cast %161 : vector<1x1x2x32xf32> to vector<2x32xf32>
    %163 = vector.shape_cast %160 : vector<2x32xf32> to vector<1x1x2x32xf32>
    tpu.vector_store %arg12[%c4_146, %c5_147, %c0_148, %c0_149], %163 {strides = array<i32>} : memref<6x8x2x32xf32, #tpu.memory_space<vmem>>, vector<1x1x2x32xf32>,
    %164 = vector.extract_strided_slice %139 {offsets = [12, 0], sizes = [2, 32], strides = [1, 1]} : vector<16x32xf32> to vector<2x32xf32>
    %c4_150 = arith.constant 4 : index
    %c6_151 = arith.constant 6 : index
    %c0_152 = arith.constant 0 : index
    %c0_153 = arith.constant 0 : index
    %165 = vector.load %arg12[%c4_150, %c6_151, %c0_152, %c0_153] : memref<6x8x2x32xf32, #tpu.memory_space<vmem>>, vector<1x1x2x32xf32>
    %166 = vector.shape_cast %165 : vector<1x1x2x32xf32> to vector<2x32xf32>
    %167 = vector.shape_cast %164 : vector<2x32xf32> to vector<1x1x2x32xf32>
    tpu.vector_store %arg12[%c4_150, %c6_151, %c0_152, %c0_153], %167 {strides = array<i32>} : memref<6x8x2x32xf32, #tpu.memory_space<vmem>>, vector<1x1x2x32xf32>,
    %168 = vector.extract_strided_slice %139 {offsets = [14, 0], sizes = [2, 32], strides = [1, 1]} : vector<16x32xf32> to vector<2x32xf32>
    %c4_154 = arith.constant 4 : index
    %c7_155 = arith.constant 7 : index
    %c0_156 = arith.constant 0 : index
    %c0_157 = arith.constant 0 : index
    %169 = vector.load %arg12[%c4_154, %c7_155, %c0_156, %c0_157] : memref<6x8x2x32xf32, #tpu.memory_space<vmem>>, vector<1x1x2x32xf32>
    %170 = vector.shape_cast %169 : vector<1x1x2x32xf32> to vector<2x32xf32>
    %171 = vector.shape_cast %168 : vector<2x32xf32> to vector<1x1x2x32xf32>
    tpu.vector_store %arg12[%c4_154, %c7_155, %c0_156, %c0_157], %171 {strides = array<i32>} : memref<6x8x2x32xf32, #tpu.memory_space<vmem>>, vector<1x1x2x32xf32>,
    %172 = vector.extract_strided_slice %6 {offsets = [0, 160], sizes = [16, 32], strides = [1, 1]} : vector<16x192xf32> to vector<16x32xf32>
    %173 = vector.extract_strided_slice %172 {offsets = [0, 0], sizes = [2, 32], strides = [1, 1]} : vector<16x32xf32> to vector<2x32xf32>
    %c5_158 = arith.constant 5 : index
    %c0_159 = arith.constant 0 : index
    %c0_160 = arith.constant 0 : index
    %c0_161 = arith.constant 0 : index
    %174 = vector.load %arg12[%c5_158, %c0_159, %c0_160, %c0_161] : memref<6x8x2x32xf32, #tpu.memory_space<vmem>>, vector<1x1x2x32xf32>
    %175 = vector.shape_cast %174 : vector<1x1x2x32xf32> to vector<2x32xf32>
    %176 = vector.shape_cast %173 : vector<2x32xf32> to vector<1x1x2x32xf32>
    tpu.vector_store %arg12[%c5_158, %c0_159, %c0_160, %c0_161], %176 {strides = array<i32>} : memref<6x8x2x32xf32, #tpu.memory_space<vmem>>, vector<1x1x2x32xf32>,
    %177 = vector.extract_strided_slice %172 {offsets = [2, 0], sizes = [2, 32], strides = [1, 1]} : vector<16x32xf32> to vector<2x32xf32>
    %c5_162 = arith.constant 5 : index
    %c1_163 = arith.constant 1 : index
    %c0_164 = arith.constant 0 : index
    %c0_165 = arith.constant 0 : index
    %178 = vector.load %arg12[%c5_162, %c1_163, %c0_164, %c0_165] : memref<6x8x2x32xf32, #tpu.memory_space<vmem>>, vector<1x1x2x32xf32>
    %179 = vector.shape_cast %178 : vector<1x1x2x32xf32> to vector<2x32xf32>
    %180 = vector.shape_cast %177 : vector<2x32xf32> to vector<1x1x2x32xf32>
    tpu.vector_store %arg12[%c5_162, %c1_163, %c0_164, %c0_165], %180 {strides = array<i32>} : memref<6x8x2x32xf32, #tpu.memory_space<vmem>>, vector<1x1x2x32xf32>,
    %181 = vector.extract_strided_slice %172 {offsets = [4, 0], sizes = [2, 32], strides = [1, 1]} : vector<16x32xf32> to vector<2x32xf32>
    %c5_166 = arith.constant 5 : index
    %c2_167 = arith.constant 2 : index
    %c0_168 = arith.constant 0 : index
    %c0_169 = arith.constant 0 : index
    %182 = vector.load %arg12[%c5_166, %c2_167, %c0_168, %c0_169] : memref<6x8x2x32xf32, #tpu.memory_space<vmem>>, vector<1x1x2x32xf32>
    %183 = vector.shape_cast %182 : vector<1x1x2x32xf32> to vector<2x32xf32>
    %184 = vector.shape_cast %181 : vector<2x32xf32> to vector<1x1x2x32xf32>
    tpu.vector_store %arg12[%c5_166, %c2_167, %c0_168, %c0_169], %184 {strides = array<i32>} : memref<6x8x2x32xf32, #tpu.memory_space<vmem>>, vector<1x1x2x32xf32>,
    %185 = vector.extract_strided_slice %172 {offsets = [6, 0], sizes = [2, 32], strides = [1, 1]} : vector<16x32xf32> to vector<2x32xf32>
    %c5_170 = arith.constant 5 : index
    %c3_171 = arith.constant 3 : index
    %c0_172 = arith.constant 0 : index
    %c0_173 = arith.constant 0 : index
    %186 = vector.load %arg12[%c5_170, %c3_171, %c0_172, %c0_173] : memref<6x8x2x32xf32, #tpu.memory_space<vmem>>, vector<1x1x2x32xf32>
    %187 = vector.shape_cast %186 : vector<1x1x2x32xf32> to vector<2x32xf32>
    %188 = vector.shape_cast %185 : vector<2x32xf32> to vector<1x1x2x32xf32>
    tpu.vector_store %arg12[%c5_170, %c3_171, %c0_172, %c0_173], %188 {strides = array<i32>} : memref<6x8x2x32xf32, #tpu.memory_space<vmem>>, vector<1x1x2x32xf32>,
    %189 = vector.extract_strided_slice %172 {offsets = [8, 0], sizes = [2, 32], strides = [1, 1]} : vector<16x32xf32> to vector<2x32xf32>
    %c5_174 = arith.constant 5 : index
    %c4_175 = arith.constant 4 : index
    %c0_176 = arith.constant 0 : index
    %c0_177 = arith.constant 0 : index
    %190 = vector.load %arg12[%c5_174, %c4_175, %c0_176, %c0_177] : memref<6x8x2x32xf32, #tpu.memory_space<vmem>>, vector<1x1x2x32xf32>
    %191 = vector.shape_cast %190 : vector<1x1x2x32xf32> to vector<2x32xf32>
    %192 = vector.shape_cast %189 : vector<2x32xf32> to vector<1x1x2x32xf32>
    tpu.vector_store %arg12[%c5_174, %c4_175, %c0_176, %c0_177], %192 {strides = array<i32>} : memref<6x8x2x32xf32, #tpu.memory_space<vmem>>, vector<1x1x2x32xf32>,
    %193 = vector.extract_strided_slice %172 {offsets = [10, 0], sizes = [2, 32], strides = [1, 1]} : vector<16x32xf32> to vector<2x32xf32>
    %c5_178 = arith.constant 5 : index
    %c5_179 = arith.constant 5 : index
    %c0_180 = arith.constant 0 : index
    %c0_181 = arith.constant 0 : index
    %194 = vector.load %arg12[%c5_178, %c5_179, %c0_180, %c0_181] : memref<6x8x2x32xf32, #tpu.memory_space<vmem>>, vector<1x1x2x32xf32>
    %195 = vector.shape_cast %194 : vector<1x1x2x32xf32> to vector<2x32xf32>
    %196 = vector.shape_cast %193 : vector<2x32xf32> to vector<1x1x2x32xf32>
    tpu.vector_store %arg12[%c5_178, %c5_179, %c0_180, %c0_181], %196 {strides = array<i32>} : memref<6x8x2x32xf32, #tpu.memory_space<vmem>>, vector<1x1x2x32xf32>,
    %197 = vector.extract_strided_slice %172 {offsets = [12, 0], sizes = [2, 32], strides = [1, 1]} : vector<16x32xf32> to vector<2x32xf32>
    %c5_182 = arith.constant 5 : index
    %c6_183 = arith.constant 6 : index
    %c0_184 = arith.constant 0 : index
    %c0_185 = arith.constant 0 : index
    %198 = vector.load %arg12[%c5_182, %c6_183, %c0_184, %c0_185] : memref<6x8x2x32xf32, #tpu.memory_space<vmem>>, vector<1x1x2x32xf32>
    %199 = vector.shape_cast %198 : vector<1x1x2x32xf32> to vector<2x32xf32>
    %200 = vector.shape_cast %197 : vector<2x32xf32> to vector<1x1x2x32xf32>
    tpu.vector_store %arg12[%c5_182, %c6_183, %c0_184, %c0_185], %200 {strides = array<i32>} : memref<6x8x2x32xf32, #tpu.memory_space<vmem>>, vector<1x1x2x32xf32>,
    %201 = vector.extract_strided_slice %172 {offsets = [14, 0], sizes = [2, 32], strides = [1, 1]} : vector<16x32xf32> to vector<2x32xf32>
    %c5_186 = arith.constant 5 : index
    %c7_187 = arith.constant 7 : index
    %c0_188 = arith.constant 0 : index
    %c0_189 = arith.constant 0 : index
    %202 = vector.load %arg12[%c5_186, %c7_187, %c0_188, %c0_189] : memref<6x8x2x32xf32, #tpu.memory_space<vmem>>, vector<1x1x2x32xf32>
    %203 = vector.shape_cast %202 : vector<1x1x2x32xf32> to vector<2x32xf32>
    %204 = vector.shape_cast %201 : vector<2x32xf32> to vector<1x1x2x32xf32>
    tpu.vector_store %arg12[%c5_186, %c7_187, %c0_188, %c0_189], %204 {strides = array<i32>} : memref<6x8x2x32xf32, #tpu.memory_space<vmem>>, vector<1x1x2x32xf32>,
    %c0_190 = arith.constant 0 : index
    %c0_191 = arith.constant 0 : index
    %c0_192 = arith.constant 0 : index
    %205 = vector.load %arg3[%c0_190, %c0_191, %c0_192] : memref<6x32x32xbf16, #tpu.memory_space<vmem>>, vector<1x32x32xbf16>
    %206 = vector.shape_cast %205 : vector<1x32x32xbf16> to vector<32x32xbf16>
    %c1_193 = arith.constant 1 : index
    %c0_194 = arith.constant 0 : index
    %c0_195 = arith.constant 0 : index
    %207 = vector.load %arg3[%c1_193, %c0_194, %c0_195] : memref<6x32x32xbf16, #tpu.memory_space<vmem>>, vector<1x32x32xbf16>
    %208 = vector.shape_cast %207 : vector<1x32x32xbf16> to vector<32x32xbf16>
    %c2_196 = arith.constant 2 : index
    %c0_197 = arith.constant 0 : index
    %c0_198 = arith.constant 0 : index
    %209 = vector.load %arg3[%c2_196, %c0_197, %c0_198] : memref<6x32x32xbf16, #tpu.memory_space<vmem>>, vector<1x32x32xbf16>
    %210 = vector.shape_cast %209 : vector<1x32x32xbf16> to vector<32x32xbf16>
    %c3_199 = arith.constant 3 : index
    %c0_200 = arith.constant 0 : index
    %c0_201 = arith.constant 0 : index
    %211 = vector.load %arg3[%c3_199, %c0_200, %c0_201] : memref<6x32x32xbf16, #tpu.memory_space<vmem>>, vector<1x32x32xbf16>
    %212 = vector.shape_cast %211 : vector<1x32x32xbf16> to vector<32x32xbf16>
    %c4_202 = arith.constant 4 : index
    %c0_203 = arith.constant 0 : index
    %c0_204 = arith.constant 0 : index
    %213 = vector.load %arg3[%c4_202, %c0_203, %c0_204] : memref<6x32x32xbf16, #tpu.memory_space<vmem>>, vector<1x32x32xbf16>
    %214 = vector.shape_cast %213 : vector<1x32x32xbf16> to vector<32x32xbf16>
    %c5_205 = arith.constant 5 : index
    %c0_206 = arith.constant 0 : index
    %c0_207 = arith.constant 0 : index
    %215 = vector.load %arg3[%c5_205, %c0_206, %c0_207] : memref<6x32x32xbf16, #tpu.memory_space<vmem>>, vector<1x32x32xbf16>
    %216 = vector.shape_cast %215 : vector<1x32x32xbf16> to vector<32x32xbf16>
    %c0_208 = arith.constant 0 : index
    %c0_209 = arith.constant 0 : index
    %c0_210 = arith.constant 0 : index
    %217 = vector.load %arg4[%c0_208, %c0_209, %c0_210] : memref<2x1x32xf32, #tpu.memory_space<vmem>>, vector<1x1x32xf32>
    %218 = vector.shape_cast %217 : vector<1x1x32xf32> to vector<1x32xf32>
    %219 = vector.shape_cast %218 : vector<1x32xf32> to vector<1x32xf32>
    %220 = vector.broadcast %219 : vector<1x32xf32> to vector<2x32xf32>
    %c1_211 = arith.constant 1 : index
    %c0_212 = arith.constant 0 : index
    %c0_213 = arith.constant 0 : index
    %221 = vector.load %arg4[%c1_211, %c0_212, %c0_213] : memref<2x1x32xf32, #tpu.memory_space<vmem>>, vector<1x1x32xf32>
    %222 = vector.shape_cast %221 : vector<1x1x32xf32> to vector<1x32xf32>
    %223 = vector.shape_cast %222 : vector<1x32xf32> to vector<1x32xf32>
    %224 = vector.broadcast %223 : vector<1x32xf32> to vector<2x32xf32>
    %cst_214 = arith.constant 0.000000e+00 : f32
    %225 = vector.broadcast %cst_214 : f32 to vector<2x32xf32>
    %cst_215 = arith.constant 0.000000e+00 : f32
    %226 = vector.broadcast %cst_215 : f32 to vector<2x32xf32>
    %c0_216 = arith.constant 0 : index
    %c0_217 = arith.constant 0 : index
    %c0_218 = arith.constant 0 : index
    %c0_219 = arith.constant 0 : index
    %227 = vector.load %arg12[%c0_216, %c0_217, %c0_218, %c0_219] : memref<6x8x2x32xf32, #tpu.memory_space<vmem>>, vector<1x1x2x32xf32>
    %228 = vector.shape_cast %227 : vector<1x1x2x32xf32> to vector<2x32xf32>
    %c1_220 = arith.constant 1 : index
    %c0_221 = arith.constant 0 : index
    %c0_222 = arith.constant 0 : index
    %c0_223 = arith.constant 0 : index
    %229 = vector.load %arg12[%c1_220, %c0_221, %c0_222, %c0_223] : memref<6x8x2x32xf32, #tpu.memory_space<vmem>>, vector<1x1x2x32xf32>
    %230 = vector.shape_cast %229 : vector<1x1x2x32xf32> to vector<2x32xf32>
    %c2_224 = arith.constant 2 : index
    %c0_225 = arith.constant 0 : index
    %c0_226 = arith.constant 0 : index
    %c0_227 = arith.constant 0 : index
    %231 = vector.load %arg12[%c2_224, %c0_225, %c0_226, %c0_227] : memref<6x8x2x32xf32, #tpu.memory_space<vmem>>, vector<1x1x2x32xf32>
    %232 = vector.shape_cast %231 : vector<1x1x2x32xf32> to vector<2x32xf32>
    %233 = arith.truncf %225 : vector<2x32xf32> to vector<2x32xbf16>
    %cst_228 = arith.constant dense<0.000000e+00> : vector<2x32xf32>
    %234 = tpu.matmul %233, %206, %cst_228 {dimension_numbers = #tpu.dot_dimension_numbers<[1], [0], [0], [1], [0, 0, 1, 1], [], []>} : vector<2x32xbf16>, vector<32x32xbf16>, vector<2x32xf32> -> vector<2x32xf32>
    %cst_229 = arith.constant dense<0.000000e+00> : vector<2x32xf32>
    %235 = tpu.matmul %233, %208, %cst_229 {dimension_numbers = #tpu.dot_dimension_numbers<[1], [0], [0], [1], [0, 0, 1, 1], [], []>} : vector<2x32xbf16>, vector<32x32xbf16>, vector<2x32xf32> -> vector<2x32xf32>
    %cst_230 = arith.constant dense<0.000000e+00> : vector<2x32xf32>
    %236 = tpu.matmul %233, %210, %cst_230 {dimension_numbers = #tpu.dot_dimension_numbers<[1], [0], [0], [1], [0, 0, 1, 1], [], []>} : vector<2x32xbf16>, vector<32x32xbf16>, vector<2x32xf32> -> vector<2x32xf32>
    %237 = arith.addf %236, %220 : vector<2x32xf32>
    %238 = arith.addf %228, %234 : vector<2x32xf32>
    %239 = arith.negf %238 : vector<2x32xf32>
    %240 = math.exp %239 : vector<2x32xf32>
    %cst_231 = arith.constant 1.000000e+00 : f32
    %241 = vector.broadcast %cst_231 : f32 to vector<2x32xf32>
    %242 = arith.addf %241, %240 : vector<2x32xf32>
    %243 = arith.divf %241, %242 : vector<2x32xf32>
    %244 = arith.addf %230, %235 : vector<2x32xf32>
    %245 = arith.negf %244 : vector<2x32xf32>
    %246 = math.exp %245 : vector<2x32xf32>
    %cst_232 = arith.constant 1.000000e+00 : f32
    %247 = vector.broadcast %cst_232 : f32 to vector<2x32xf32>
    %248 = arith.addf %247, %246 : vector<2x32xf32>
    %249 = arith.divf %247, %248 : vector<2x32xf32>
    %250 = arith.mulf %243, %237 : vector<2x32xf32>
    %251 = arith.addf %232, %250 : vector<2x32xf32>
    %252 = math.tanh %251 : vector<2x32xf32>
    %253 = arith.subf %225, %252 : vector<2x32xf32>
    %254 = arith.mulf %249, %253 : vector<2x32xf32>
    %255 = arith.addf %252, %254 : vector<2x32xf32>
    %c3_233 = arith.constant 3 : index
    %c7_234 = arith.constant 7 : index
    %c0_235 = arith.constant 0 : index
    %c0_236 = arith.constant 0 : index
    %256 = vector.load %arg12[%c3_233, %c7_234, %c0_235, %c0_236] : memref<6x8x2x32xf32, #tpu.memory_space<vmem>>, vector<1x1x2x32xf32>
    %257 = vector.shape_cast %256 : vector<1x1x2x32xf32> to vector<2x32xf32>
    %c4_237 = arith.constant 4 : index
    %c7_238 = arith.constant 7 : index
    %c0_239 = arith.constant 0 : index
    %c0_240 = arith.constant 0 : index
    %258 = vector.load %arg12[%c4_237, %c7_238, %c0_239, %c0_240] : memref<6x8x2x32xf32, #tpu.memory_space<vmem>>, vector<1x1x2x32xf32>
    %259 = vector.shape_cast %258 : vector<1x1x2x32xf32> to vector<2x32xf32>
    %c5_241 = arith.constant 5 : index
    %c7_242 = arith.constant 7 : index
    %c0_243 = arith.constant 0 : index
    %c0_244 = arith.constant 0 : index
    %260 = vector.load %arg12[%c5_241, %c7_242, %c0_243, %c0_244] : memref<6x8x2x32xf32, #tpu.memory_space<vmem>>, vector<1x1x2x32xf32>
    %261 = vector.shape_cast %260 : vector<1x1x2x32xf32> to vector<2x32xf32>
    %262 = arith.truncf %226 : vector<2x32xf32> to vector<2x32xbf16>
    %cst_245 = arith.constant dense<0.000000e+00> : vector<2x32xf32>
    %263 = tpu.matmul %262, %212, %cst_245 {dimension_numbers = #tpu.dot_dimension_numbers<[1], [0], [0], [1], [0, 0, 1, 1], [], []>} : vector<2x32xbf16>, vector<32x32xbf16>, vector<2x32xf32> -> vector<2x32xf32>
    %cst_246 = arith.constant dense<0.000000e+00> : vector<2x32xf32>
    %264 = tpu.matmul %262, %214, %cst_246 {dimension_numbers = #tpu.dot_dimension_numbers<[1], [0], [0], [1], [0, 0, 1, 1], [], []>} : vector<2x32xbf16>, vector<32x32xbf16>, vector<2x32xf32> -> vector<2x32xf32>
    %cst_247 = arith.constant dense<0.000000e+00> : vector<2x32xf32>
    %265 = tpu.matmul %262, %216, %cst_247 {dimension_numbers = #tpu.dot_dimension_numbers<[1], [0], [0], [1], [0, 0, 1, 1], [], []>} : vector<2x32xbf16>, vector<32x32xbf16>, vector<2x32xf32> -> vector<2x32xf32>
    %266 = arith.addf %265, %224 : vector<2x32xf32>
    %267 = arith.addf %257, %263 : vector<2x32xf32>
    %268 = arith.negf %267 : vector<2x32xf32>
    %269 = math.exp %268 : vector<2x32xf32>
    %cst_248 = arith.constant 1.000000e+00 : f32
    %270 = vector.broadcast %cst_248 : f32 to vector<2x32xf32>
    %271 = arith.addf %270, %269 : vector<2x32xf32>
    %272 = arith.divf %270, %271 : vector<2x32xf32>
    %273 = arith.addf %259, %264 : vector<2x32xf32>
    %274 = arith.negf %273 : vector<2x32xf32>
    %275 = math.exp %274 : vector<2x32xf32>
    %cst_249 = arith.constant 1.000000e+00 : f32
    %276 = vector.broadcast %cst_249 : f32 to vector<2x32xf32>
    %277 = arith.addf %276, %275 : vector<2x32xf32>
    %278 = arith.divf %276, %277 : vector<2x32xf32>
    %279 = arith.mulf %272, %266 : vector<2x32xf32>
    %280 = arith.addf %261, %279 : vector<2x32xf32>
    %281 = math.tanh %280 : vector<2x32xf32>
    %282 = arith.subf %226, %281 : vector<2x32xf32>
    %283 = arith.mulf %278, %282 : vector<2x32xf32>
    %284 = arith.addf %281, %283 : vector<2x32xf32>
    %c0_250 = arith.constant 0 : index
    %c0_251 = arith.constant 0 : index
    %285 = vector.load %arg13[%c0_250, %c0_251] : memref<16x32xf32, #tpu.memory_space<vmem>>, vector<2x32xf32>
    tpu.vector_store %arg13[%c0_250, %c0_251], %255 {strides = array<i32>} : memref<16x32xf32, #tpu.memory_space<vmem>>, vector<2x32xf32>,
    %c14 = arith.constant 14 : index
    %c0_252 = arith.constant 0 : index
    %286 = vector.load %arg14[%c14, %c0_252] : memref<16x32xf32, #tpu.memory_space<vmem>>, vector<2x32xf32>
    tpu.vector_store %arg14[%c14, %c0_252], %284 {strides = array<i32>} : memref<16x32xf32, #tpu.memory_space<vmem>>, vector<2x32xf32>,
    %c0_253 = arith.constant 0 : index
    %c1_254 = arith.constant 1 : index
    %c0_255 = arith.constant 0 : index
    %c0_256 = arith.constant 0 : index
    %287 = vector.load %arg12[%c0_253, %c1_254, %c0_255, %c0_256] : memref<6x8x2x32xf32, #tpu.memory_space<vmem>>, vector<1x1x2x32xf32>
    %288 = vector.shape_cast %287 : vector<1x1x2x32xf32> to vector<2x32xf32>
    %c1_257 = arith.constant 1 : index
    %c1_258 = arith.constant 1 : index
    %c0_259 = arith.constant 0 : index
    %c0_260 = arith.constant 0 : index
    %289 = vector.load %arg12[%c1_257, %c1_258, %c0_259, %c0_260] : memref<6x8x2x32xf32, #tpu.memory_space<vmem>>, vector<1x1x2x32xf32>
    %290 = vector.shape_cast %289 : vector<1x1x2x32xf32> to vector<2x32xf32>
    %c2_261 = arith.constant 2 : index
    %c1_262 = arith.constant 1 : index
    %c0_263 = arith.constant 0 : index
    %c0_264 = arith.constant 0 : index
    %291 = vector.load %arg12[%c2_261, %c1_262, %c0_263, %c0_264] : memref<6x8x2x32xf32, #tpu.memory_space<vmem>>, vector<1x1x2x32xf32>
    %292 = vector.shape_cast %291 : vector<1x1x2x32xf32> to vector<2x32xf32>
    %293 = arith.truncf %255 : vector<2x32xf32> to vector<2x32xbf16>
    %cst_265 = arith.constant dense<0.000000e+00> : vector<2x32xf32>
    %294 = tpu.matmul %293, %206, %cst_265 {dimension_numbers = #tpu.dot_dimension_numbers<[1], [0], [0], [1], [0, 0, 1, 1], [], []>} : vector<2x32xbf16>, vector<32x32xbf16>, vector<2x32xf32> -> vector<2x32xf32>
    %cst_266 = arith.constant dense<0.000000e+00> : vector<2x32xf32>
    %295 = tpu.matmul %293, %208, %cst_266 {dimension_numbers = #tpu.dot_dimension_numbers<[1], [0], [0], [1], [0, 0, 1, 1], [], []>} : vector<2x32xbf16>, vector<32x32xbf16>, vector<2x32xf32> -> vector<2x32xf32>
    %cst_267 = arith.constant dense<0.000000e+00> : vector<2x32xf32>
    %296 = tpu.matmul %293, %210, %cst_267 {dimension_numbers = #tpu.dot_dimension_numbers<[1], [0], [0], [1], [0, 0, 1, 1], [], []>} : vector<2x32xbf16>, vector<32x32xbf16>, vector<2x32xf32> -> vector<2x32xf32>
    %297 = arith.addf %296, %220 : vector<2x32xf32>
    %298 = arith.addf %288, %294 : vector<2x32xf32>
    %299 = arith.negf %298 : vector<2x32xf32>
    %300 = math.exp %299 : vector<2x32xf32>
    %cst_268 = arith.constant 1.000000e+00 : f32
    %301 = vector.broadcast %cst_268 : f32 to vector<2x32xf32>
    %302 = arith.addf %301, %300 : vector<2x32xf32>
    %303 = arith.divf %301, %302 : vector<2x32xf32>
    %304 = arith.addf %290, %295 : vector<2x32xf32>
    %305 = arith.negf %304 : vector<2x32xf32>
    %306 = math.exp %305 : vector<2x32xf32>
    %cst_269 = arith.constant 1.000000e+00 : f32
    %307 = vector.broadcast %cst_269 : f32 to vector<2x32xf32>
    %308 = arith.addf %307, %306 : vector<2x32xf32>
    %309 = arith.divf %307, %308 : vector<2x32xf32>
    %310 = arith.mulf %303, %297 : vector<2x32xf32>
    %311 = arith.addf %292, %310 : vector<2x32xf32>
    %312 = math.tanh %311 : vector<2x32xf32>
    %313 = arith.subf %255, %312 : vector<2x32xf32>
    %314 = arith.mulf %309, %313 : vector<2x32xf32>
    %315 = arith.addf %312, %314 : vector<2x32xf32>
    %c3_270 = arith.constant 3 : index
    %c6_271 = arith.constant 6 : index
    %c0_272 = arith.constant 0 : index
    %c0_273 = arith.constant 0 : index
    %316 = vector.load %arg12[%c3_270, %c6_271, %c0_272, %c0_273] : memref<6x8x2x32xf32, #tpu.memory_space<vmem>>, vector<1x1x2x32xf32>
    %317 = vector.shape_cast %316 : vector<1x1x2x32xf32> to vector<2x32xf32>
    %c4_274 = arith.constant 4 : index
    %c6_275 = arith.constant 6 : index
    %c0_276 = arith.constant 0 : index
    %c0_277 = arith.constant 0 : index
    %318 = vector.load %arg12[%c4_274, %c6_275, %c0_276, %c0_277] : memref<6x8x2x32xf32, #tpu.memory_space<vmem>>, vector<1x1x2x32xf32>
    %319 = vector.shape_cast %318 : vector<1x1x2x32xf32> to vector<2x32xf32>
    %c5_278 = arith.constant 5 : index
    %c6_279 = arith.constant 6 : index
    %c0_280 = arith.constant 0 : index
    %c0_281 = arith.constant 0 : index
    %320 = vector.load %arg12[%c5_278, %c6_279, %c0_280, %c0_281] : memref<6x8x2x32xf32, #tpu.memory_space<vmem>>, vector<1x1x2x32xf32>
    %321 = vector.shape_cast %320 : vector<1x1x2x32xf32> to vector<2x32xf32>
    %322 = arith.truncf %284 : vector<2x32xf32> to vector<2x32xbf16>
    %cst_282 = arith.constant dense<0.000000e+00> : vector<2x32xf32>
    %323 = tpu.matmul %322, %212, %cst_282 {dimension_numbers = #tpu.dot_dimension_numbers<[1], [0], [0], [1], [0, 0, 1, 1], [], []>} : vector<2x32xbf16>, vector<32x32xbf16>, vector<2x32xf32> -> vector<2x32xf32>
    %cst_283 = arith.constant dense<0.000000e+00> : vector<2x32xf32>
    %324 = tpu.matmul %322, %214, %cst_283 {dimension_numbers = #tpu.dot_dimension_numbers<[1], [0], [0], [1], [0, 0, 1, 1], [], []>} : vector<2x32xbf16>, vector<32x32xbf16>, vector<2x32xf32> -> vector<2x32xf32>
    %cst_284 = arith.constant dense<0.000000e+00> : vector<2x32xf32>
    %325 = tpu.matmul %322, %216, %cst_284 {dimension_numbers = #tpu.dot_dimension_numbers<[1], [0], [0], [1], [0, 0, 1, 1], [], []>} : vector<2x32xbf16>, vector<32x32xbf16>, vector<2x32xf32> -> vector<2x32xf32>
    %326 = arith.addf %325, %224 : vector<2x32xf32>
    %327 = arith.addf %317, %323 : vector<2x32xf32>
    %328 = arith.negf %327 : vector<2x32xf32>
    %329 = math.exp %328 : vector<2x32xf32>
    %cst_285 = arith.constant 1.000000e+00 : f32
    %330 = vector.broadcast %cst_285 : f32 to vector<2x32xf32>
    %331 = arith.addf %330, %329 : vector<2x32xf32>
    %332 = arith.divf %330, %331 : vector<2x32xf32>
    %333 = arith.addf %319, %324 : vector<2x32xf32>
    %334 = arith.negf %333 : vector<2x32xf32>
    %335 = math.exp %334 : vector<2x32xf32>
    %cst_286 = arith.constant 1.000000e+00 : f32
    %336 = vector.broadcast %cst_286 : f32 to vector<2x32xf32>
    %337 = arith.addf %336, %335 : vector<2x32xf32>
    %338 = arith.divf %336, %337 : vector<2x32xf32>
    %339 = arith.mulf %332, %326 : vector<2x32xf32>
    %340 = arith.addf %321, %339 : vector<2x32xf32>
    %341 = math.tanh %340 : vector<2x32xf32>
    %342 = arith.subf %284, %341 : vector<2x32xf32>
    %343 = arith.mulf %338, %342 : vector<2x32xf32>
    %344 = arith.addf %341, %343 : vector<2x32xf32>
    %c2_287 = arith.constant 2 : index
    %c0_288 = arith.constant 0 : index
    %345 = vector.load %arg13[%c2_287, %c0_288] : memref<16x32xf32, #tpu.memory_space<vmem>>, vector<2x32xf32>
    tpu.vector_store %arg13[%c2_287, %c0_288], %315 {strides = array<i32>} : memref<16x32xf32, #tpu.memory_space<vmem>>, vector<2x32xf32>,
    %c12 = arith.constant 12 : index
    %c0_289 = arith.constant 0 : index
    %346 = vector.load %arg14[%c12, %c0_289] : memref<16x32xf32, #tpu.memory_space<vmem>>, vector<2x32xf32>
    tpu.vector_store %arg14[%c12, %c0_289], %344 {strides = array<i32>} : memref<16x32xf32, #tpu.memory_space<vmem>>, vector<2x32xf32>,
    %c0_290 = arith.constant 0 : index
    %c2_291 = arith.constant 2 : index
    %c0_292 = arith.constant 0 : index
    %c0_293 = arith.constant 0 : index
    %347 = vector.load %arg12[%c0_290, %c2_291, %c0_292, %c0_293] : memref<6x8x2x32xf32, #tpu.memory_space<vmem>>, vector<1x1x2x32xf32>
    %348 = vector.shape_cast %347 : vector<1x1x2x32xf32> to vector<2x32xf32>
    %c1_294 = arith.constant 1 : index
    %c2_295 = arith.constant 2 : index
    %c0_296 = arith.constant 0 : index
    %c0_297 = arith.constant 0 : index
    %349 = vector.load %arg12[%c1_294, %c2_295, %c0_296, %c0_297] : memref<6x8x2x32xf32, #tpu.memory_space<vmem>>, vector<1x1x2x32xf32>
    %350 = vector.shape_cast %349 : vector<1x1x2x32xf32> to vector<2x32xf32>
    %c2_298 = arith.constant 2 : index
    %c2_299 = arith.constant 2 : index
    %c0_300 = arith.constant 0 : index
    %c0_301 = arith.constant 0 : index
    %351 = vector.load %arg12[%c2_298, %c2_299, %c0_300, %c0_301] : memref<6x8x2x32xf32, #tpu.memory_space<vmem>>, vector<1x1x2x32xf32>
    %352 = vector.shape_cast %351 : vector<1x1x2x32xf32> to vector<2x32xf32>
    %353 = arith.truncf %315 : vector<2x32xf32> to vector<2x32xbf16>
    %cst_302 = arith.constant dense<0.000000e+00> : vector<2x32xf32>
    %354 = tpu.matmul %353, %206, %cst_302 {dimension_numbers = #tpu.dot_dimension_numbers<[1], [0], [0], [1], [0, 0, 1, 1], [], []>} : vector<2x32xbf16>, vector<32x32xbf16>, vector<2x32xf32> -> vector<2x32xf32>
    %cst_303 = arith.constant dense<0.000000e+00> : vector<2x32xf32>
    %355 = tpu.matmul %353, %208, %cst_303 {dimension_numbers = #tpu.dot_dimension_numbers<[1], [0], [0], [1], [0, 0, 1, 1], [], []>} : vector<2x32xbf16>, vector<32x32xbf16>, vector<2x32xf32> -> vector<2x32xf32>
    %cst_304 = arith.constant dense<0.000000e+00> : vector<2x32xf32>
    %356 = tpu.matmul %353, %210, %cst_304 {dimension_numbers = #tpu.dot_dimension_numbers<[1], [0], [0], [1], [0, 0, 1, 1], [], []>} : vector<2x32xbf16>, vector<32x32xbf16>, vector<2x32xf32> -> vector<2x32xf32>
    %357 = arith.addf %356, %220 : vector<2x32xf32>
    %358 = arith.addf %348, %354 : vector<2x32xf32>
    %359 = arith.negf %358 : vector<2x32xf32>
    %360 = math.exp %359 : vector<2x32xf32>
    %cst_305 = arith.constant 1.000000e+00 : f32
    %361 = vector.broadcast %cst_305 : f32 to vector<2x32xf32>
    %362 = arith.addf %361, %360 : vector<2x32xf32>
    %363 = arith.divf %361, %362 : vector<2x32xf32>
    %364 = arith.addf %350, %355 : vector<2x32xf32>
    %365 = arith.negf %364 : vector<2x32xf32>
    %366 = math.exp %365 : vector<2x32xf32>
    %cst_306 = arith.constant 1.000000e+00 : f32
    %367 = vector.broadcast %cst_306 : f32 to vector<2x32xf32>
    %368 = arith.addf %367, %366 : vector<2x32xf32>
    %369 = arith.divf %367, %368 : vector<2x32xf32>
    %370 = arith.mulf %363, %357 : vector<2x32xf32>
    %371 = arith.addf %352, %370 : vector<2x32xf32>
    %372 = math.tanh %371 : vector<2x32xf32>
    %373 = arith.subf %315, %372 : vector<2x32xf32>
    %374 = arith.mulf %369, %373 : vector<2x32xf32>
    %375 = arith.addf %372, %374 : vector<2x32xf32>
    %c3_307 = arith.constant 3 : index
    %c5_308 = arith.constant 5 : index
    %c0_309 = arith.constant 0 : index
    %c0_310 = arith.constant 0 : index
    %376 = vector.load %arg12[%c3_307, %c5_308, %c0_309, %c0_310] : memref<6x8x2x32xf32, #tpu.memory_space<vmem>>, vector<1x1x2x32xf32>
    %377 = vector.shape_cast %376 : vector<1x1x2x32xf32> to vector<2x32xf32>
    %c4_311 = arith.constant 4 : index
    %c5_312 = arith.constant 5 : index
    %c0_313 = arith.constant 0 : index
    %c0_314 = arith.constant 0 : index
    %378 = vector.load %arg12[%c4_311, %c5_312, %c0_313, %c0_314] : memref<6x8x2x32xf32, #tpu.memory_space<vmem>>, vector<1x1x2x32xf32>
    %379 = vector.shape_cast %378 : vector<1x1x2x32xf32> to vector<2x32xf32>
    %c5_315 = arith.constant 5 : index
    %c5_316 = arith.constant 5 : index
    %c0_317 = arith.constant 0 : index
    %c0_318 = arith.constant 0 : index
    %380 = vector.load %arg12[%c5_315, %c5_316, %c0_317, %c0_318] : memref<6x8x2x32xf32, #tpu.memory_space<vmem>>, vector<1x1x2x32xf32>
    %381 = vector.shape_cast %380 : vector<1x1x2x32xf32> to vector<2x32xf32>
    %382 = arith.truncf %344 : vector<2x32xf32> to vector<2x32xbf16>
    %cst_319 = arith.constant dense<0.000000e+00> : vector<2x32xf32>
    %383 = tpu.matmul %382, %212, %cst_319 {dimension_numbers = #tpu.dot_dimension_numbers<[1], [0], [0], [1], [0, 0, 1, 1], [], []>} : vector<2x32xbf16>, vector<32x32xbf16>, vector<2x32xf32> -> vector<2x32xf32>
    %cst_320 = arith.constant dense<0.000000e+00> : vector<2x32xf32>
    %384 = tpu.matmul %382, %214, %cst_320 {dimension_numbers = #tpu.dot_dimension_numbers<[1], [0], [0], [1], [0, 0, 1, 1], [], []>} : vector<2x32xbf16>, vector<32x32xbf16>, vector<2x32xf32> -> vector<2x32xf32>
    %cst_321 = arith.constant dense<0.000000e+00> : vector<2x32xf32>
    %385 = tpu.matmul %382, %216, %cst_321 {dimension_numbers = #tpu.dot_dimension_numbers<[1], [0], [0], [1], [0, 0, 1, 1], [], []>} : vector<2x32xbf16>, vector<32x32xbf16>, vector<2x32xf32> -> vector<2x32xf32>
    %386 = arith.addf %385, %224 : vector<2x32xf32>
    %387 = arith.addf %377, %383 : vector<2x32xf32>
    %388 = arith.negf %387 : vector<2x32xf32>
    %389 = math.exp %388 : vector<2x32xf32>
    %cst_322 = arith.constant 1.000000e+00 : f32
    %390 = vector.broadcast %cst_322 : f32 to vector<2x32xf32>
    %391 = arith.addf %390, %389 : vector<2x32xf32>
    %392 = arith.divf %390, %391 : vector<2x32xf32>
    %393 = arith.addf %379, %384 : vector<2x32xf32>
    %394 = arith.negf %393 : vector<2x32xf32>
    %395 = math.exp %394 : vector<2x32xf32>
    %cst_323 = arith.constant 1.000000e+00 : f32
    %396 = vector.broadcast %cst_323 : f32 to vector<2x32xf32>
    %397 = arith.addf %396, %395 : vector<2x32xf32>
    %398 = arith.divf %396, %397 : vector<2x32xf32>
    %399 = arith.mulf %392, %386 : vector<2x32xf32>
    %400 = arith.addf %381, %399 : vector<2x32xf32>
    %401 = math.tanh %400 : vector<2x32xf32>
    %402 = arith.subf %344, %401 : vector<2x32xf32>
    %403 = arith.mulf %398, %402 : vector<2x32xf32>
    %404 = arith.addf %401, %403 : vector<2x32xf32>
    %c4_324 = arith.constant 4 : index
    %c0_325 = arith.constant 0 : index
    %405 = vector.load %arg13[%c4_324, %c0_325] : memref<16x32xf32, #tpu.memory_space<vmem>>, vector<2x32xf32>
    tpu.vector_store %arg13[%c4_324, %c0_325], %375 {strides = array<i32>} : memref<16x32xf32, #tpu.memory_space<vmem>>, vector<2x32xf32>,
    %c10 = arith.constant 10 : index
    %c0_326 = arith.constant 0 : index
    %406 = vector.load %arg14[%c10, %c0_326] : memref<16x32xf32, #tpu.memory_space<vmem>>, vector<2x32xf32>
    tpu.vector_store %arg14[%c10, %c0_326], %404 {strides = array<i32>} : memref<16x32xf32, #tpu.memory_space<vmem>>, vector<2x32xf32>,
    %c0_327 = arith.constant 0 : index
    %c3_328 = arith.constant 3 : index
    %c0_329 = arith.constant 0 : index
    %c0_330 = arith.constant 0 : index
    %407 = vector.load %arg12[%c0_327, %c3_328, %c0_329, %c0_330] : memref<6x8x2x32xf32, #tpu.memory_space<vmem>>, vector<1x1x2x32xf32>
    %408 = vector.shape_cast %407 : vector<1x1x2x32xf32> to vector<2x32xf32>
    %c1_331 = arith.constant 1 : index
    %c3_332 = arith.constant 3 : index
    %c0_333 = arith.constant 0 : index
    %c0_334 = arith.constant 0 : index
    %409 = vector.load %arg12[%c1_331, %c3_332, %c0_333, %c0_334] : memref<6x8x2x32xf32, #tpu.memory_space<vmem>>, vector<1x1x2x32xf32>
    %410 = vector.shape_cast %409 : vector<1x1x2x32xf32> to vector<2x32xf32>
    %c2_335 = arith.constant 2 : index
    %c3_336 = arith.constant 3 : index
    %c0_337 = arith.constant 0 : index
    %c0_338 = arith.constant 0 : index
    %411 = vector.load %arg12[%c2_335, %c3_336, %c0_337, %c0_338] : memref<6x8x2x32xf32, #tpu.memory_space<vmem>>, vector<1x1x2x32xf32>
    %412 = vector.shape_cast %411 : vector<1x1x2x32xf32> to vector<2x32xf32>
    %413 = arith.truncf %375 : vector<2x32xf32> to vector<2x32xbf16>
    %cst_339 = arith.constant dense<0.000000e+00> : vector<2x32xf32>
    %414 = tpu.matmul %413, %206, %cst_339 {dimension_numbers = #tpu.dot_dimension_numbers<[1], [0], [0], [1], [0, 0, 1, 1], [], []>} : vector<2x32xbf16>, vector<32x32xbf16>, vector<2x32xf32> -> vector<2x32xf32>
    %cst_340 = arith.constant dense<0.000000e+00> : vector<2x32xf32>
    %415 = tpu.matmul %413, %208, %cst_340 {dimension_numbers = #tpu.dot_dimension_numbers<[1], [0], [0], [1], [0, 0, 1, 1], [], []>} : vector<2x32xbf16>, vector<32x32xbf16>, vector<2x32xf32> -> vector<2x32xf32>
    %cst_341 = arith.constant dense<0.000000e+00> : vector<2x32xf32>
    %416 = tpu.matmul %413, %210, %cst_341 {dimension_numbers = #tpu.dot_dimension_numbers<[1], [0], [0], [1], [0, 0, 1, 1], [], []>} : vector<2x32xbf16>, vector<32x32xbf16>, vector<2x32xf32> -> vector<2x32xf32>
    %417 = arith.addf %416, %220 : vector<2x32xf32>
    %418 = arith.addf %408, %414 : vector<2x32xf32>
    %419 = arith.negf %418 : vector<2x32xf32>
    %420 = math.exp %419 : vector<2x32xf32>
    %cst_342 = arith.constant 1.000000e+00 : f32
    %421 = vector.broadcast %cst_342 : f32 to vector<2x32xf32>
    %422 = arith.addf %421, %420 : vector<2x32xf32>
    %423 = arith.divf %421, %422 : vector<2x32xf32>
    %424 = arith.addf %410, %415 : vector<2x32xf32>
    %425 = arith.negf %424 : vector<2x32xf32>
    %426 = math.exp %425 : vector<2x32xf32>
    %cst_343 = arith.constant 1.000000e+00 : f32
    %427 = vector.broadcast %cst_343 : f32 to vector<2x32xf32>
    %428 = arith.addf %427, %426 : vector<2x32xf32>
    %429 = arith.divf %427, %428 : vector<2x32xf32>
    %430 = arith.mulf %423, %417 : vector<2x32xf32>
    %431 = arith.addf %412, %430 : vector<2x32xf32>
    %432 = math.tanh %431 : vector<2x32xf32>
    %433 = arith.subf %375, %432 : vector<2x32xf32>
    %434 = arith.mulf %429, %433 : vector<2x32xf32>
    %435 = arith.addf %432, %434 : vector<2x32xf32>
    %c3_344 = arith.constant 3 : index
    %c4_345 = arith.constant 4 : index
    %c0_346 = arith.constant 0 : index
    %c0_347 = arith.constant 0 : index
    %436 = vector.load %arg12[%c3_344, %c4_345, %c0_346, %c0_347] : memref<6x8x2x32xf32, #tpu.memory_space<vmem>>, vector<1x1x2x32xf32>
    %437 = vector.shape_cast %436 : vector<1x1x2x32xf32> to vector<2x32xf32>
    %c4_348 = arith.constant 4 : index
    %c4_349 = arith.constant 4 : index
    %c0_350 = arith.constant 0 : index
    %c0_351 = arith.constant 0 : index
    %438 = vector.load %arg12[%c4_348, %c4_349, %c0_350, %c0_351] : memref<6x8x2x32xf32, #tpu.memory_space<vmem>>, vector<1x1x2x32xf32>
    %439 = vector.shape_cast %438 : vector<1x1x2x32xf32> to vector<2x32xf32>
    %c5_352 = arith.constant 5 : index
    %c4_353 = arith.constant 4 : index
    %c0_354 = arith.constant 0 : index
    %c0_355 = arith.constant 0 : index
    %440 = vector.load %arg12[%c5_352, %c4_353, %c0_354, %c0_355] : memref<6x8x2x32xf32, #tpu.memory_space<vmem>>, vector<1x1x2x32xf32>
    %441 = vector.shape_cast %440 : vector<1x1x2x32xf32> to vector<2x32xf32>
    %442 = arith.truncf %404 : vector<2x32xf32> to vector<2x32xbf16>
    %cst_356 = arith.constant dense<0.000000e+00> : vector<2x32xf32>
    %443 = tpu.matmul %442, %212, %cst_356 {dimension_numbers = #tpu.dot_dimension_numbers<[1], [0], [0], [1], [0, 0, 1, 1], [], []>} : vector<2x32xbf16>, vector<32x32xbf16>, vector<2x32xf32> -> vector<2x32xf32>
    %cst_357 = arith.constant dense<0.000000e+00> : vector<2x32xf32>
    %444 = tpu.matmul %442, %214, %cst_357 {dimension_numbers = #tpu.dot_dimension_numbers<[1], [0], [0], [1], [0, 0, 1, 1], [], []>} : vector<2x32xbf16>, vector<32x32xbf16>, vector<2x32xf32> -> vector<2x32xf32>
    %cst_358 = arith.constant dense<0.000000e+00> : vector<2x32xf32>
    %445 = tpu.matmul %442, %216, %cst_358 {dimension_numbers = #tpu.dot_dimension_numbers<[1], [0], [0], [1], [0, 0, 1, 1], [], []>} : vector<2x32xbf16>, vector<32x32xbf16>, vector<2x32xf32> -> vector<2x32xf32>
    %446 = arith.addf %445, %224 : vector<2x32xf32>
    %447 = arith.addf %437, %443 : vector<2x32xf32>
    %448 = arith.negf %447 : vector<2x32xf32>
    %449 = math.exp %448 : vector<2x32xf32>
    %cst_359 = arith.constant 1.000000e+00 : f32
    %450 = vector.broadcast %cst_359 : f32 to vector<2x32xf32>
    %451 = arith.addf %450, %449 : vector<2x32xf32>
    %452 = arith.divf %450, %451 : vector<2x32xf32>
    %453 = arith.addf %439, %444 : vector<2x32xf32>
    %454 = arith.negf %453 : vector<2x32xf32>
    %455 = math.exp %454 : vector<2x32xf32>
    %cst_360 = arith.constant 1.000000e+00 : f32
    %456 = vector.broadcast %cst_360 : f32 to vector<2x32xf32>
    %457 = arith.addf %456, %455 : vector<2x32xf32>
    %458 = arith.divf %456, %457 : vector<2x32xf32>
    %459 = arith.mulf %452, %446 : vector<2x32xf32>
    %460 = arith.addf %441, %459 : vector<2x32xf32>
    %461 = math.tanh %460 : vector<2x32xf32>
    %462 = arith.subf %404, %461 : vector<2x32xf32>
    %463 = arith.mulf %458, %462 : vector<2x32xf32>
    %464 = arith.addf %461, %463 : vector<2x32xf32>
    %c6_361 = arith.constant 6 : index
    %c0_362 = arith.constant 0 : index
    %465 = vector.load %arg13[%c6_361, %c0_362] : memref<16x32xf32, #tpu.memory_space<vmem>>, vector<2x32xf32>
    tpu.vector_store %arg13[%c6_361, %c0_362], %435 {strides = array<i32>} : memref<16x32xf32, #tpu.memory_space<vmem>>, vector<2x32xf32>,
    %c8 = arith.constant 8 : index
    %c0_363 = arith.constant 0 : index
    %466 = vector.load %arg14[%c8, %c0_363] : memref<16x32xf32, #tpu.memory_space<vmem>>, vector<2x32xf32>
    tpu.vector_store %arg14[%c8, %c0_363], %464 {strides = array<i32>} : memref<16x32xf32, #tpu.memory_space<vmem>>, vector<2x32xf32>,
    %c0_364 = arith.constant 0 : index
    %c4_365 = arith.constant 4 : index
    %c0_366 = arith.constant 0 : index
    %c0_367 = arith.constant 0 : index
    %467 = vector.load %arg12[%c0_364, %c4_365, %c0_366, %c0_367] : memref<6x8x2x32xf32, #tpu.memory_space<vmem>>, vector<1x1x2x32xf32>
    %468 = vector.shape_cast %467 : vector<1x1x2x32xf32> to vector<2x32xf32>
    %c1_368 = arith.constant 1 : index
    %c4_369 = arith.constant 4 : index
    %c0_370 = arith.constant 0 : index
    %c0_371 = arith.constant 0 : index
    %469 = vector.load %arg12[%c1_368, %c4_369, %c0_370, %c0_371] : memref<6x8x2x32xf32, #tpu.memory_space<vmem>>, vector<1x1x2x32xf32>
    %470 = vector.shape_cast %469 : vector<1x1x2x32xf32> to vector<2x32xf32>
    %c2_372 = arith.constant 2 : index
    %c4_373 = arith.constant 4 : index
    %c0_374 = arith.constant 0 : index
    %c0_375 = arith.constant 0 : index
    %471 = vector.load %arg12[%c2_372, %c4_373, %c0_374, %c0_375] : memref<6x8x2x32xf32, #tpu.memory_space<vmem>>, vector<1x1x2x32xf32>
    %472 = vector.shape_cast %471 : vector<1x1x2x32xf32> to vector<2x32xf32>
    %473 = arith.truncf %435 : vector<2x32xf32> to vector<2x32xbf16>
    %cst_376 = arith.constant dense<0.000000e+00> : vector<2x32xf32>
    %474 = tpu.matmul %473, %206, %cst_376 {dimension_numbers = #tpu.dot_dimension_numbers<[1], [0], [0], [1], [0, 0, 1, 1], [], []>} : vector<2x32xbf16>, vector<32x32xbf16>, vector<2x32xf32> -> vector<2x32xf32>
    %cst_377 = arith.constant dense<0.000000e+00> : vector<2x32xf32>
    %475 = tpu.matmul %473, %208, %cst_377 {dimension_numbers = #tpu.dot_dimension_numbers<[1], [0], [0], [1], [0, 0, 1, 1], [], []>} : vector<2x32xbf16>, vector<32x32xbf16>, vector<2x32xf32> -> vector<2x32xf32>
    %cst_378 = arith.constant dense<0.000000e+00> : vector<2x32xf32>
    %476 = tpu.matmul %473, %210, %cst_378 {dimension_numbers = #tpu.dot_dimension_numbers<[1], [0], [0], [1], [0, 0, 1, 1], [], []>} : vector<2x32xbf16>, vector<32x32xbf16>, vector<2x32xf32> -> vector<2x32xf32>
    %477 = arith.addf %476, %220 : vector<2x32xf32>
    %478 = arith.addf %468, %474 : vector<2x32xf32>
    %479 = arith.negf %478 : vector<2x32xf32>
    %480 = math.exp %479 : vector<2x32xf32>
    %cst_379 = arith.constant 1.000000e+00 : f32
    %481 = vector.broadcast %cst_379 : f32 to vector<2x32xf32>
    %482 = arith.addf %481, %480 : vector<2x32xf32>
    %483 = arith.divf %481, %482 : vector<2x32xf32>
    %484 = arith.addf %470, %475 : vector<2x32xf32>
    %485 = arith.negf %484 : vector<2x32xf32>
    %486 = math.exp %485 : vector<2x32xf32>
    %cst_380 = arith.constant 1.000000e+00 : f32
    %487 = vector.broadcast %cst_380 : f32 to vector<2x32xf32>
    %488 = arith.addf %487, %486 : vector<2x32xf32>
    %489 = arith.divf %487, %488 : vector<2x32xf32>
    %490 = arith.mulf %483, %477 : vector<2x32xf32>
    %491 = arith.addf %472, %490 : vector<2x32xf32>
    %492 = math.tanh %491 : vector<2x32xf32>
    %493 = arith.subf %435, %492 : vector<2x32xf32>
    %494 = arith.mulf %489, %493 : vector<2x32xf32>
    %495 = arith.addf %492, %494 : vector<2x32xf32>
    %c3_381 = arith.constant 3 : index
    %c3_382 = arith.constant 3 : index
    %c0_383 = arith.constant 0 : index
    %c0_384 = arith.constant 0 : index
    %496 = vector.load %arg12[%c3_381, %c3_382, %c0_383, %c0_384] : memref<6x8x2x32xf32, #tpu.memory_space<vmem>>, vector<1x1x2x32xf32>
    %497 = vector.shape_cast %496 : vector<1x1x2x32xf32> to vector<2x32xf32>
    %c4_385 = arith.constant 4 : index
    %c3_386 = arith.constant 3 : index
    %c0_387 = arith.constant 0 : index
    %c0_388 = arith.constant 0 : index
    %498 = vector.load %arg12[%c4_385, %c3_386, %c0_387, %c0_388] : memref<6x8x2x32xf32, #tpu.memory_space<vmem>>, vector<1x1x2x32xf32>
    %499 = vector.shape_cast %498 : vector<1x1x2x32xf32> to vector<2x32xf32>
    %c5_389 = arith.constant 5 : index
    %c3_390 = arith.constant 3 : index
    %c0_391 = arith.constant 0 : index
    %c0_392 = arith.constant 0 : index
    %500 = vector.load %arg12[%c5_389, %c3_390, %c0_391, %c0_392] : memref<6x8x2x32xf32, #tpu.memory_space<vmem>>, vector<1x1x2x32xf32>
    %501 = vector.shape_cast %500 : vector<1x1x2x32xf32> to vector<2x32xf32>
    %502 = arith.truncf %464 : vector<2x32xf32> to vector<2x32xbf16>
    %cst_393 = arith.constant dense<0.000000e+00> : vector<2x32xf32>
    %503 = tpu.matmul %502, %212, %cst_393 {dimension_numbers = #tpu.dot_dimension_numbers<[1], [0], [0], [1], [0, 0, 1, 1], [], []>} : vector<2x32xbf16>, vector<32x32xbf16>, vector<2x32xf32> -> vector<2x32xf32>
    %cst_394 = arith.constant dense<0.000000e+00> : vector<2x32xf32>
    %504 = tpu.matmul %502, %214, %cst_394 {dimension_numbers = #tpu.dot_dimension_numbers<[1], [0], [0], [1], [0, 0, 1, 1], [], []>} : vector<2x32xbf16>, vector<32x32xbf16>, vector<2x32xf32> -> vector<2x32xf32>
    %cst_395 = arith.constant dense<0.000000e+00> : vector<2x32xf32>
    %505 = tpu.matmul %502, %216, %cst_395 {dimension_numbers = #tpu.dot_dimension_numbers<[1], [0], [0], [1], [0, 0, 1, 1], [], []>} : vector<2x32xbf16>, vector<32x32xbf16>, vector<2x32xf32> -> vector<2x32xf32>
    %506 = arith.addf %505, %224 : vector<2x32xf32>
    %507 = arith.addf %497, %503 : vector<2x32xf32>
    %508 = arith.negf %507 : vector<2x32xf32>
    %509 = math.exp %508 : vector<2x32xf32>
    %cst_396 = arith.constant 1.000000e+00 : f32
    %510 = vector.broadcast %cst_396 : f32 to vector<2x32xf32>
    %511 = arith.addf %510, %509 : vector<2x32xf32>
    %512 = arith.divf %510, %511 : vector<2x32xf32>
    %513 = arith.addf %499, %504 : vector<2x32xf32>
    %514 = arith.negf %513 : vector<2x32xf32>
    %515 = math.exp %514 : vector<2x32xf32>
    %cst_397 = arith.constant 1.000000e+00 : f32
    %516 = vector.broadcast %cst_397 : f32 to vector<2x32xf32>
    %517 = arith.addf %516, %515 : vector<2x32xf32>
    %518 = arith.divf %516, %517 : vector<2x32xf32>
    %519 = arith.mulf %512, %506 : vector<2x32xf32>
    %520 = arith.addf %501, %519 : vector<2x32xf32>
    %521 = math.tanh %520 : vector<2x32xf32>
    %522 = arith.subf %464, %521 : vector<2x32xf32>
    %523 = arith.mulf %518, %522 : vector<2x32xf32>
    %524 = arith.addf %521, %523 : vector<2x32xf32>
    %c8_398 = arith.constant 8 : index
    %c0_399 = arith.constant 0 : index
    %525 = vector.load %arg13[%c8_398, %c0_399] : memref<16x32xf32, #tpu.memory_space<vmem>>, vector<2x32xf32>
    tpu.vector_store %arg13[%c8_398, %c0_399], %495 {strides = array<i32>} : memref<16x32xf32, #tpu.memory_space<vmem>>, vector<2x32xf32>,
    %c6_400 = arith.constant 6 : index
    %c0_401 = arith.constant 0 : index
    %526 = vector.load %arg14[%c6_400, %c0_401] : memref<16x32xf32, #tpu.memory_space<vmem>>, vector<2x32xf32>
    tpu.vector_store %arg14[%c6_400, %c0_401], %524 {strides = array<i32>} : memref<16x32xf32, #tpu.memory_space<vmem>>, vector<2x32xf32>,
    %c0_402 = arith.constant 0 : index
    %c5_403 = arith.constant 5 : index
    %c0_404 = arith.constant 0 : index
    %c0_405 = arith.constant 0 : index
    %527 = vector.load %arg12[%c0_402, %c5_403, %c0_404, %c0_405] : memref<6x8x2x32xf32, #tpu.memory_space<vmem>>, vector<1x1x2x32xf32>
    %528 = vector.shape_cast %527 : vector<1x1x2x32xf32> to vector<2x32xf32>
    %c1_406 = arith.constant 1 : index
    %c5_407 = arith.constant 5 : index
    %c0_408 = arith.constant 0 : index
    %c0_409 = arith.constant 0 : index
    %529 = vector.load %arg12[%c1_406, %c5_407, %c0_408, %c0_409] : memref<6x8x2x32xf32, #tpu.memory_space<vmem>>, vector<1x1x2x32xf32>
    %530 = vector.shape_cast %529 : vector<1x1x2x32xf32> to vector<2x32xf32>
    %c2_410 = arith.constant 2 : index
    %c5_411 = arith.constant 5 : index
    %c0_412 = arith.constant 0 : index
    %c0_413 = arith.constant 0 : index
    %531 = vector.load %arg12[%c2_410, %c5_411, %c0_412, %c0_413] : memref<6x8x2x32xf32, #tpu.memory_space<vmem>>, vector<1x1x2x32xf32>
    %532 = vector.shape_cast %531 : vector<1x1x2x32xf32> to vector<2x32xf32>
    %533 = arith.truncf %495 : vector<2x32xf32> to vector<2x32xbf16>
    %cst_414 = arith.constant dense<0.000000e+00> : vector<2x32xf32>
    %534 = tpu.matmul %533, %206, %cst_414 {dimension_numbers = #tpu.dot_dimension_numbers<[1], [0], [0], [1], [0, 0, 1, 1], [], []>} : vector<2x32xbf16>, vector<32x32xbf16>, vector<2x32xf32> -> vector<2x32xf32>
    %cst_415 = arith.constant dense<0.000000e+00> : vector<2x32xf32>
    %535 = tpu.matmul %533, %208, %cst_415 {dimension_numbers = #tpu.dot_dimension_numbers<[1], [0], [0], [1], [0, 0, 1, 1], [], []>} : vector<2x32xbf16>, vector<32x32xbf16>, vector<2x32xf32> -> vector<2x32xf32>
    %cst_416 = arith.constant dense<0.000000e+00> : vector<2x32xf32>
    %536 = tpu.matmul %533, %210, %cst_416 {dimension_numbers = #tpu.dot_dimension_numbers<[1], [0], [0], [1], [0, 0, 1, 1], [], []>} : vector<2x32xbf16>, vector<32x32xbf16>, vector<2x32xf32> -> vector<2x32xf32>
    %537 = arith.addf %536, %220 : vector<2x32xf32>
    %538 = arith.addf %528, %534 : vector<2x32xf32>
    %539 = arith.negf %538 : vector<2x32xf32>
    %540 = math.exp %539 : vector<2x32xf32>
    %cst_417 = arith.constant 1.000000e+00 : f32
    %541 = vector.broadcast %cst_417 : f32 to vector<2x32xf32>
    %542 = arith.addf %541, %540 : vector<2x32xf32>
    %543 = arith.divf %541, %542 : vector<2x32xf32>
    %544 = arith.addf %530, %535 : vector<2x32xf32>
    %545 = arith.negf %544 : vector<2x32xf32>
    %546 = math.exp %545 : vector<2x32xf32>
    %cst_418 = arith.constant 1.000000e+00 : f32
    %547 = vector.broadcast %cst_418 : f32 to vector<2x32xf32>
    %548 = arith.addf %547, %546 : vector<2x32xf32>
    %549 = arith.divf %547, %548 : vector<2x32xf32>
    %550 = arith.mulf %543, %537 : vector<2x32xf32>
    %551 = arith.addf %532, %550 : vector<2x32xf32>
    %552 = math.tanh %551 : vector<2x32xf32>
    %553 = arith.subf %495, %552 : vector<2x32xf32>
    %554 = arith.mulf %549, %553 : vector<2x32xf32>
    %555 = arith.addf %552, %554 : vector<2x32xf32>
    %c3_419 = arith.constant 3 : index
    %c2_420 = arith.constant 2 : index
    %c0_421 = arith.constant 0 : index
    %c0_422 = arith.constant 0 : index
    %556 = vector.load %arg12[%c3_419, %c2_420, %c0_421, %c0_422] : memref<6x8x2x32xf32, #tpu.memory_space<vmem>>, vector<1x1x2x32xf32>
    %557 = vector.shape_cast %556 : vector<1x1x2x32xf32> to vector<2x32xf32>
    %c4_423 = arith.constant 4 : index
    %c2_424 = arith.constant 2 : index
    %c0_425 = arith.constant 0 : index
    %c0_426 = arith.constant 0 : index
    %558 = vector.load %arg12[%c4_423, %c2_424, %c0_425, %c0_426] : memref<6x8x2x32xf32, #tpu.memory_space<vmem>>, vector<1x1x2x32xf32>
    %559 = vector.shape_cast %558 : vector<1x1x2x32xf32> to vector<2x32xf32>
    %c5_427 = arith.constant 5 : index
    %c2_428 = arith.constant 2 : index
    %c0_429 = arith.constant 0 : index
    %c0_430 = arith.constant 0 : index
    %560 = vector.load %arg12[%c5_427, %c2_428, %c0_429, %c0_430] : memref<6x8x2x32xf32, #tpu.memory_space<vmem>>, vector<1x1x2x32xf32>
    %561 = vector.shape_cast %560 : vector<1x1x2x32xf32> to vector<2x32xf32>
    %562 = arith.truncf %524 : vector<2x32xf32> to vector<2x32xbf16>
    %cst_431 = arith.constant dense<0.000000e+00> : vector<2x32xf32>
    %563 = tpu.matmul %562, %212, %cst_431 {dimension_numbers = #tpu.dot_dimension_numbers<[1], [0], [0], [1], [0, 0, 1, 1], [], []>} : vector<2x32xbf16>, vector<32x32xbf16>, vector<2x32xf32> -> vector<2x32xf32>
    %cst_432 = arith.constant dense<0.000000e+00> : vector<2x32xf32>
    %564 = tpu.matmul %562, %214, %cst_432 {dimension_numbers = #tpu.dot_dimension_numbers<[1], [0], [0], [1], [0, 0, 1, 1], [], []>} : vector<2x32xbf16>, vector<32x32xbf16>, vector<2x32xf32> -> vector<2x32xf32>
    %cst_433 = arith.constant dense<0.000000e+00> : vector<2x32xf32>
    %565 = tpu.matmul %562, %216, %cst_433 {dimension_numbers = #tpu.dot_dimension_numbers<[1], [0], [0], [1], [0, 0, 1, 1], [], []>} : vector<2x32xbf16>, vector<32x32xbf16>, vector<2x32xf32> -> vector<2x32xf32>
    %566 = arith.addf %565, %224 : vector<2x32xf32>
    %567 = arith.addf %557, %563 : vector<2x32xf32>
    %568 = arith.negf %567 : vector<2x32xf32>
    %569 = math.exp %568 : vector<2x32xf32>
    %cst_434 = arith.constant 1.000000e+00 : f32
    %570 = vector.broadcast %cst_434 : f32 to vector<2x32xf32>
    %571 = arith.addf %570, %569 : vector<2x32xf32>
    %572 = arith.divf %570, %571 : vector<2x32xf32>
    %573 = arith.addf %559, %564 : vector<2x32xf32>
    %574 = arith.negf %573 : vector<2x32xf32>
    %575 = math.exp %574 : vector<2x32xf32>
    %cst_435 = arith.constant 1.000000e+00 : f32
    %576 = vector.broadcast %cst_435 : f32 to vector<2x32xf32>
    %577 = arith.addf %576, %575 : vector<2x32xf32>
    %578 = arith.divf %576, %577 : vector<2x32xf32>
    %579 = arith.mulf %572, %566 : vector<2x32xf32>
    %580 = arith.addf %561, %579 : vector<2x32xf32>
    %581 = math.tanh %580 : vector<2x32xf32>
    %582 = arith.subf %524, %581 : vector<2x32xf32>
    %583 = arith.mulf %578, %582 : vector<2x32xf32>
    %584 = arith.addf %581, %583 : vector<2x32xf32>
    %c10_436 = arith.constant 10 : index
    %c0_437 = arith.constant 0 : index
    %585 = vector.load %arg13[%c10_436, %c0_437] : memref<16x32xf32, #tpu.memory_space<vmem>>, vector<2x32xf32>
    tpu.vector_store %arg13[%c10_436, %c0_437], %555 {strides = array<i32>} : memref<16x32xf32, #tpu.memory_space<vmem>>, vector<2x32xf32>,
    %c4_438 = arith.constant 4 : index
    %c0_439 = arith.constant 0 : index
    %586 = vector.load %arg14[%c4_438, %c0_439] : memref<16x32xf32, #tpu.memory_space<vmem>>, vector<2x32xf32>
    tpu.vector_store %arg14[%c4_438, %c0_439], %584 {strides = array<i32>} : memref<16x32xf32, #tpu.memory_space<vmem>>, vector<2x32xf32>,
    %c0_440 = arith.constant 0 : index
    %c6_441 = arith.constant 6 : index
    %c0_442 = arith.constant 0 : index
    %c0_443 = arith.constant 0 : index
    %587 = vector.load %arg12[%c0_440, %c6_441, %c0_442, %c0_443] : memref<6x8x2x32xf32, #tpu.memory_space<vmem>>, vector<1x1x2x32xf32>
    %588 = vector.shape_cast %587 : vector<1x1x2x32xf32> to vector<2x32xf32>
    %c1_444 = arith.constant 1 : index
    %c6_445 = arith.constant 6 : index
    %c0_446 = arith.constant 0 : index
    %c0_447 = arith.constant 0 : index
    %589 = vector.load %arg12[%c1_444, %c6_445, %c0_446, %c0_447] : memref<6x8x2x32xf32, #tpu.memory_space<vmem>>, vector<1x1x2x32xf32>
    %590 = vector.shape_cast %589 : vector<1x1x2x32xf32> to vector<2x32xf32>
    %c2_448 = arith.constant 2 : index
    %c6_449 = arith.constant 6 : index
    %c0_450 = arith.constant 0 : index
    %c0_451 = arith.constant 0 : index
    %591 = vector.load %arg12[%c2_448, %c6_449, %c0_450, %c0_451] : memref<6x8x2x32xf32, #tpu.memory_space<vmem>>, vector<1x1x2x32xf32>
    %592 = vector.shape_cast %591 : vector<1x1x2x32xf32> to vector<2x32xf32>
    %593 = arith.truncf %555 : vector<2x32xf32> to vector<2x32xbf16>
    %cst_452 = arith.constant dense<0.000000e+00> : vector<2x32xf32>
    %594 = tpu.matmul %593, %206, %cst_452 {dimension_numbers = #tpu.dot_dimension_numbers<[1], [0], [0], [1], [0, 0, 1, 1], [], []>} : vector<2x32xbf16>, vector<32x32xbf16>, vector<2x32xf32> -> vector<2x32xf32>
    %cst_453 = arith.constant dense<0.000000e+00> : vector<2x32xf32>
    %595 = tpu.matmul %593, %208, %cst_453 {dimension_numbers = #tpu.dot_dimension_numbers<[1], [0], [0], [1], [0, 0, 1, 1], [], []>} : vector<2x32xbf16>, vector<32x32xbf16>, vector<2x32xf32> -> vector<2x32xf32>
    %cst_454 = arith.constant dense<0.000000e+00> : vector<2x32xf32>
    %596 = tpu.matmul %593, %210, %cst_454 {dimension_numbers = #tpu.dot_dimension_numbers<[1], [0], [0], [1], [0, 0, 1, 1], [], []>} : vector<2x32xbf16>, vector<32x32xbf16>, vector<2x32xf32> -> vector<2x32xf32>
    %597 = arith.addf %596, %220 : vector<2x32xf32>
    %598 = arith.addf %588, %594 : vector<2x32xf32>
    %599 = arith.negf %598 : vector<2x32xf32>
    %600 = math.exp %599 : vector<2x32xf32>
    %cst_455 = arith.constant 1.000000e+00 : f32
    %601 = vector.broadcast %cst_455 : f32 to vector<2x32xf32>
    %602 = arith.addf %601, %600 : vector<2x32xf32>
    %603 = arith.divf %601, %602 : vector<2x32xf32>
    %604 = arith.addf %590, %595 : vector<2x32xf32>
    %605 = arith.negf %604 : vector<2x32xf32>
    %606 = math.exp %605 : vector<2x32xf32>
    %cst_456 = arith.constant 1.000000e+00 : f32
    %607 = vector.broadcast %cst_456 : f32 to vector<2x32xf32>
    %608 = arith.addf %607, %606 : vector<2x32xf32>
    %609 = arith.divf %607, %608 : vector<2x32xf32>
    %610 = arith.mulf %603, %597 : vector<2x32xf32>
    %611 = arith.addf %592, %610 : vector<2x32xf32>
    %612 = math.tanh %611 : vector<2x32xf32>
    %613 = arith.subf %555, %612 : vector<2x32xf32>
    %614 = arith.mulf %609, %613 : vector<2x32xf32>
    %615 = arith.addf %612, %614 : vector<2x32xf32>
    %c3_457 = arith.constant 3 : index
    %c1_458 = arith.constant 1 : index
    %c0_459 = arith.constant 0 : index
    %c0_460 = arith.constant 0 : index
    %616 = vector.load %arg12[%c3_457, %c1_458, %c0_459, %c0_460] : memref<6x8x2x32xf32, #tpu.memory_space<vmem>>, vector<1x1x2x32xf32>
    %617 = vector.shape_cast %616 : vector<1x1x2x32xf32> to vector<2x32xf32>
    %c4_461 = arith.constant 4 : index
    %c1_462 = arith.constant 1 : index
    %c0_463 = arith.constant 0 : index
    %c0_464 = arith.constant 0 : index
    %618 = vector.load %arg12[%c4_461, %c1_462, %c0_463, %c0_464] : memref<6x8x2x32xf32, #tpu.memory_space<vmem>>, vector<1x1x2x32xf32>
    %619 = vector.shape_cast %618 : vector<1x1x2x32xf32> to vector<2x32xf32>
    %c5_465 = arith.constant 5 : index
    %c1_466 = arith.constant 1 : index
    %c0_467 = arith.constant 0 : index
    %c0_468 = arith.constant 0 : index
    %620 = vector.load %arg12[%c5_465, %c1_466, %c0_467, %c0_468] : memref<6x8x2x32xf32, #tpu.memory_space<vmem>>, vector<1x1x2x32xf32>
    %621 = vector.shape_cast %620 : vector<1x1x2x32xf32> to vector<2x32xf32>
    %622 = arith.truncf %584 : vector<2x32xf32> to vector<2x32xbf16>
    %cst_469 = arith.constant dense<0.000000e+00> : vector<2x32xf32>
    %623 = tpu.matmul %622, %212, %cst_469 {dimension_numbers = #tpu.dot_dimension_numbers<[1], [0], [0], [1], [0, 0, 1, 1], [], []>} : vector<2x32xbf16>, vector<32x32xbf16>, vector<2x32xf32> -> vector<2x32xf32>
    %cst_470 = arith.constant dense<0.000000e+00> : vector<2x32xf32>
    %624 = tpu.matmul %622, %214, %cst_470 {dimension_numbers = #tpu.dot_dimension_numbers<[1], [0], [0], [1], [0, 0, 1, 1], [], []>} : vector<2x32xbf16>, vector<32x32xbf16>, vector<2x32xf32> -> vector<2x32xf32>
    %cst_471 = arith.constant dense<0.000000e+00> : vector<2x32xf32>
    %625 = tpu.matmul %622, %216, %cst_471 {dimension_numbers = #tpu.dot_dimension_numbers<[1], [0], [0], [1], [0, 0, 1, 1], [], []>} : vector<2x32xbf16>, vector<32x32xbf16>, vector<2x32xf32> -> vector<2x32xf32>
    %626 = arith.addf %625, %224 : vector<2x32xf32>
    %627 = arith.addf %617, %623 : vector<2x32xf32>
    %628 = arith.negf %627 : vector<2x32xf32>
    %629 = math.exp %628 : vector<2x32xf32>
    %cst_472 = arith.constant 1.000000e+00 : f32
    %630 = vector.broadcast %cst_472 : f32 to vector<2x32xf32>
    %631 = arith.addf %630, %629 : vector<2x32xf32>
    %632 = arith.divf %630, %631 : vector<2x32xf32>
    %633 = arith.addf %619, %624 : vector<2x32xf32>
    %634 = arith.negf %633 : vector<2x32xf32>
    %635 = math.exp %634 : vector<2x32xf32>
    %cst_473 = arith.constant 1.000000e+00 : f32
    %636 = vector.broadcast %cst_473 : f32 to vector<2x32xf32>
    %637 = arith.addf %636, %635 : vector<2x32xf32>
    %638 = arith.divf %636, %637 : vector<2x32xf32>
    %639 = arith.mulf %632, %626 : vector<2x32xf32>
    %640 = arith.addf %621, %639 : vector<2x32xf32>
    %641 = math.tanh %640 : vector<2x32xf32>
    %642 = arith.subf %584, %641 : vector<2x32xf32>
    %643 = arith.mulf %638, %642 : vector<2x32xf32>
    %644 = arith.addf %641, %643 : vector<2x32xf32>
    %c12_474 = arith.constant 12 : index
    %c0_475 = arith.constant 0 : index
    %645 = vector.load %arg13[%c12_474, %c0_475] : memref<16x32xf32, #tpu.memory_space<vmem>>, vector<2x32xf32>
    tpu.vector_store %arg13[%c12_474, %c0_475], %615 {strides = array<i32>} : memref<16x32xf32, #tpu.memory_space<vmem>>, vector<2x32xf32>,
    %c2_476 = arith.constant 2 : index
    %c0_477 = arith.constant 0 : index
    %646 = vector.load %arg14[%c2_476, %c0_477] : memref<16x32xf32, #tpu.memory_space<vmem>>, vector<2x32xf32>
    tpu.vector_store %arg14[%c2_476, %c0_477], %644 {strides = array<i32>} : memref<16x32xf32, #tpu.memory_space<vmem>>, vector<2x32xf32>,
    %c0_478 = arith.constant 0 : index
    %c7_479 = arith.constant 7 : index
    %c0_480 = arith.constant 0 : index
    %c0_481 = arith.constant 0 : index
    %647 = vector.load %arg12[%c0_478, %c7_479, %c0_480, %c0_481] : memref<6x8x2x32xf32, #tpu.memory_space<vmem>>, vector<1x1x2x32xf32>
    %648 = vector.shape_cast %647 : vector<1x1x2x32xf32> to vector<2x32xf32>
    %c1_482 = arith.constant 1 : index
    %c7_483 = arith.constant 7 : index
    %c0_484 = arith.constant 0 : index
    %c0_485 = arith.constant 0 : index
    %649 = vector.load %arg12[%c1_482, %c7_483, %c0_484, %c0_485] : memref<6x8x2x32xf32, #tpu.memory_space<vmem>>, vector<1x1x2x32xf32>
    %650 = vector.shape_cast %649 : vector<1x1x2x32xf32> to vector<2x32xf32>
    %c2_486 = arith.constant 2 : index
    %c7_487 = arith.constant 7 : index
    %c0_488 = arith.constant 0 : index
    %c0_489 = arith.constant 0 : index
    %651 = vector.load %arg12[%c2_486, %c7_487, %c0_488, %c0_489] : memref<6x8x2x32xf32, #tpu.memory_space<vmem>>, vector<1x1x2x32xf32>
    %652 = vector.shape_cast %651 : vector<1x1x2x32xf32> to vector<2x32xf32>
    %653 = arith.truncf %615 : vector<2x32xf32> to vector<2x32xbf16>
    %cst_490 = arith.constant dense<0.000000e+00> : vector<2x32xf32>
    %654 = tpu.matmul %653, %206, %cst_490 {dimension_numbers = #tpu.dot_dimension_numbers<[1], [0], [0], [1], [0, 0, 1, 1], [], []>} : vector<2x32xbf16>, vector<32x32xbf16>, vector<2x32xf32> -> vector<2x32xf32>
    %cst_491 = arith.constant dense<0.000000e+00> : vector<2x32xf32>
    %655 = tpu.matmul %653, %208, %cst_491 {dimension_numbers = #tpu.dot_dimension_numbers<[1], [0], [0], [1], [0, 0, 1, 1], [], []>} : vector<2x32xbf16>, vector<32x32xbf16>, vector<2x32xf32> -> vector<2x32xf32>
    %cst_492 = arith.constant dense<0.000000e+00> : vector<2x32xf32>
    %656 = tpu.matmul %653, %210, %cst_492 {dimension_numbers = #tpu.dot_dimension_numbers<[1], [0], [0], [1], [0, 0, 1, 1], [], []>} : vector<2x32xbf16>, vector<32x32xbf16>, vector<2x32xf32> -> vector<2x32xf32>
    %657 = arith.addf %656, %220 : vector<2x32xf32>
    %658 = arith.addf %648, %654 : vector<2x32xf32>
    %659 = arith.negf %658 : vector<2x32xf32>
    %660 = math.exp %659 : vector<2x32xf32>
    %cst_493 = arith.constant 1.000000e+00 : f32
    %661 = vector.broadcast %cst_493 : f32 to vector<2x32xf32>
    %662 = arith.addf %661, %660 : vector<2x32xf32>
    %663 = arith.divf %661, %662 : vector<2x32xf32>
    %664 = arith.addf %650, %655 : vector<2x32xf32>
    %665 = arith.negf %664 : vector<2x32xf32>
    %666 = math.exp %665 : vector<2x32xf32>
    %cst_494 = arith.constant 1.000000e+00 : f32
    %667 = vector.broadcast %cst_494 : f32 to vector<2x32xf32>
    %668 = arith.addf %667, %666 : vector<2x32xf32>
    %669 = arith.divf %667, %668 : vector<2x32xf32>
    %670 = arith.mulf %663, %657 : vector<2x32xf32>
    %671 = arith.addf %652, %670 : vector<2x32xf32>
    %672 = math.tanh %671 : vector<2x32xf32>
    %673 = arith.subf %615, %672 : vector<2x32xf32>
    %674 = arith.mulf %669, %673 : vector<2x32xf32>
    %675 = arith.addf %672, %674 : vector<2x32xf32>
    %c3_495 = arith.constant 3 : index
    %c0_496 = arith.constant 0 : index
    %c0_497 = arith.constant 0 : index
    %c0_498 = arith.constant 0 : index
    %676 = vector.load %arg12[%c3_495, %c0_496, %c0_497, %c0_498] : memref<6x8x2x32xf32, #tpu.memory_space<vmem>>, vector<1x1x2x32xf32>
    %677 = vector.shape_cast %676 : vector<1x1x2x32xf32> to vector<2x32xf32>
    %c4_499 = arith.constant 4 : index
    %c0_500 = arith.constant 0 : index
    %c0_501 = arith.constant 0 : index
    %c0_502 = arith.constant 0 : index
    %678 = vector.load %arg12[%c4_499, %c0_500, %c0_501, %c0_502] : memref<6x8x2x32xf32, #tpu.memory_space<vmem>>, vector<1x1x2x32xf32>
    %679 = vector.shape_cast %678 : vector<1x1x2x32xf32> to vector<2x32xf32>
    %c5_503 = arith.constant 5 : index
    %c0_504 = arith.constant 0 : index
    %c0_505 = arith.constant 0 : index
    %c0_506 = arith.constant 0 : index
    %680 = vector.load %arg12[%c5_503, %c0_504, %c0_505, %c0_506] : memref<6x8x2x32xf32, #tpu.memory_space<vmem>>, vector<1x1x2x32xf32>
    %681 = vector.shape_cast %680 : vector<1x1x2x32xf32> to vector<2x32xf32>
    %682 = arith.truncf %644 : vector<2x32xf32> to vector<2x32xbf16>
    %cst_507 = arith.constant dense<0.000000e+00> : vector<2x32xf32>
    %683 = tpu.matmul %682, %212, %cst_507 {dimension_numbers = #tpu.dot_dimension_numbers<[1], [0], [0], [1], [0, 0, 1, 1], [], []>} : vector<2x32xbf16>, vector<32x32xbf16>, vector<2x32xf32> -> vector<2x32xf32>
    %cst_508 = arith.constant dense<0.000000e+00> : vector<2x32xf32>
    %684 = tpu.matmul %682, %214, %cst_508 {dimension_numbers = #tpu.dot_dimension_numbers<[1], [0], [0], [1], [0, 0, 1, 1], [], []>} : vector<2x32xbf16>, vector<32x32xbf16>, vector<2x32xf32> -> vector<2x32xf32>
    %cst_509 = arith.constant dense<0.000000e+00> : vector<2x32xf32>
    %685 = tpu.matmul %682, %216, %cst_509 {dimension_numbers = #tpu.dot_dimension_numbers<[1], [0], [0], [1], [0, 0, 1, 1], [], []>} : vector<2x32xbf16>, vector<32x32xbf16>, vector<2x32xf32> -> vector<2x32xf32>
    %686 = arith.addf %685, %224 : vector<2x32xf32>
    %687 = arith.addf %677, %683 : vector<2x32xf32>
    %688 = arith.negf %687 : vector<2x32xf32>
    %689 = math.exp %688 : vector<2x32xf32>
    %cst_510 = arith.constant 1.000000e+00 : f32
    %690 = vector.broadcast %cst_510 : f32 to vector<2x32xf32>
    %691 = arith.addf %690, %689 : vector<2x32xf32>
    %692 = arith.divf %690, %691 : vector<2x32xf32>
    %693 = arith.addf %679, %684 : vector<2x32xf32>
    %694 = arith.negf %693 : vector<2x32xf32>
    %695 = math.exp %694 : vector<2x32xf32>
    %cst_511 = arith.constant 1.000000e+00 : f32
    %696 = vector.broadcast %cst_511 : f32 to vector<2x32xf32>
    %697 = arith.addf %696, %695 : vector<2x32xf32>
    %698 = arith.divf %696, %697 : vector<2x32xf32>
    %699 = arith.mulf %692, %686 : vector<2x32xf32>
    %700 = arith.addf %681, %699 : vector<2x32xf32>
    %701 = math.tanh %700 : vector<2x32xf32>
    %702 = arith.subf %644, %701 : vector<2x32xf32>
    %703 = arith.mulf %698, %702 : vector<2x32xf32>
    %704 = arith.addf %701, %703 : vector<2x32xf32>
    %c14_512 = arith.constant 14 : index
    %c0_513 = arith.constant 0 : index
    %705 = vector.load %arg13[%c14_512, %c0_513] : memref<16x32xf32, #tpu.memory_space<vmem>>, vector<2x32xf32>
    tpu.vector_store %arg13[%c14_512, %c0_513], %675 {strides = array<i32>} : memref<16x32xf32, #tpu.memory_space<vmem>>, vector<2x32xf32>,
    %c0_514 = arith.constant 0 : index
    %c0_515 = arith.constant 0 : index
    %706 = vector.load %arg14[%c0_514, %c0_515] : memref<16x32xf32, #tpu.memory_space<vmem>>, vector<2x32xf32>
    tpu.vector_store %arg14[%c0_514, %c0_515], %704 {strides = array<i32>} : memref<16x32xf32, #tpu.memory_space<vmem>>, vector<2x32xf32>,
    %c0_516 = arith.constant 0 : index
    %c0_517 = arith.constant 0 : index
    %707 = vector.load %arg13[%c0_516, %c0_517] : memref<16x32xf32, #tpu.memory_space<vmem>>, vector<16x32xf32>
    %708 = arith.truncf %707 : vector<16x32xf32> to vector<16x32xbf16>
    %c0_518 = arith.constant 0 : index
    %c0_519 = arith.constant 0 : index
    %709 = vector.load %arg5[%c0_518, %c0_519] : memref<64x192xbf16, #tpu.memory_space<vmem>>, vector<32x192xbf16>
    %cst_520 = arith.constant dense<0.000000e+00> : vector<16x192xf32>
    %710 = tpu.matmul %708, %709, %cst_520 {dimension_numbers = #tpu.dot_dimension_numbers<[1], [0], [0], [1], [0, 0, 1, 1], [], []>} : vector<16x32xbf16>, vector<32x192xbf16>, vector<16x192xf32> -> vector<16x192xf32>
    %c0_521 = arith.constant 0 : index
    %c0_522 = arith.constant 0 : index
    %711 = vector.load %arg14[%c0_521, %c0_522] : memref<16x32xf32, #tpu.memory_space<vmem>>, vector<16x32xf32>
    %712 = arith.truncf %711 : vector<16x32xf32> to vector<16x32xbf16>
    %c32 = arith.constant 32 : index
    %c0_523 = arith.constant 0 : index
    %713 = vector.load %arg5[%c32, %c0_523] : memref<64x192xbf16, #tpu.memory_space<vmem>>, vector<32x192xbf16>
    %cst_524 = arith.constant dense<0.000000e+00> : vector<16x192xf32>
    %714 = tpu.matmul %712, %713, %cst_524 {dimension_numbers = #tpu.dot_dimension_numbers<[1], [0], [0], [1], [0, 0, 1, 1], [], []>} : vector<16x32xbf16>, vector<32x192xbf16>, vector<16x192xf32> -> vector<16x192xf32>
    %715 = arith.addf %710, %714 : vector<16x192xf32>
    %c0_525 = arith.constant 0 : index
    %c0_526 = arith.constant 0 : index
    %716 = vector.load %arg6[%c0_525, %c0_526] : memref<1x192xf32, #tpu.memory_space<vmem>>, vector<1x192xf32>
    %717 = vector.broadcast %716 : vector<1x192xf32> to vector<16x192xf32>
    %718 = arith.addf %715, %717 : vector<16x192xf32>
    %719 = vector.extract_strided_slice %718 {offsets = [0, 0], sizes = [16, 32], strides = [1, 1]} : vector<16x192xf32> to vector<16x32xf32>
    %720 = vector.extract_strided_slice %719 {offsets = [0, 0], sizes = [2, 32], strides = [1, 1]} : vector<16x32xf32> to vector<2x32xf32>
    %c0_527 = arith.constant 0 : index
    %c0_528 = arith.constant 0 : index
    %c0_529 = arith.constant 0 : index
    %c0_530 = arith.constant 0 : index
    %721 = vector.load %arg12[%c0_527, %c0_528, %c0_529, %c0_530] : memref<6x8x2x32xf32, #tpu.memory_space<vmem>>, vector<1x1x2x32xf32>
    %722 = vector.shape_cast %721 : vector<1x1x2x32xf32> to vector<2x32xf32>
    %723 = vector.shape_cast %720 : vector<2x32xf32> to vector<1x1x2x32xf32>
    tpu.vector_store %arg12[%c0_527, %c0_528, %c0_529, %c0_530], %723 {strides = array<i32>} : memref<6x8x2x32xf32, #tpu.memory_space<vmem>>, vector<1x1x2x32xf32>,
    %724 = vector.extract_strided_slice %719 {offsets = [2, 0], sizes = [2, 32], strides = [1, 1]} : vector<16x32xf32> to vector<2x32xf32>
    %c0_531 = arith.constant 0 : index
    %c1_532 = arith.constant 1 : index
    %c0_533 = arith.constant 0 : index
    %c0_534 = arith.constant 0 : index
    %725 = vector.load %arg12[%c0_531, %c1_532, %c0_533, %c0_534] : memref<6x8x2x32xf32, #tpu.memory_space<vmem>>, vector<1x1x2x32xf32>
    %726 = vector.shape_cast %725 : vector<1x1x2x32xf32> to vector<2x32xf32>
    %727 = vector.shape_cast %724 : vector<2x32xf32> to vector<1x1x2x32xf32>
    tpu.vector_store %arg12[%c0_531, %c1_532, %c0_533, %c0_534], %727 {strides = array<i32>} : memref<6x8x2x32xf32, #tpu.memory_space<vmem>>, vector<1x1x2x32xf32>,
    %728 = vector.extract_strided_slice %719 {offsets = [4, 0], sizes = [2, 32], strides = [1, 1]} : vector<16x32xf32> to vector<2x32xf32>
    %c0_535 = arith.constant 0 : index
    %c2_536 = arith.constant 2 : index
    %c0_537 = arith.constant 0 : index
    %c0_538 = arith.constant 0 : index
    %729 = vector.load %arg12[%c0_535, %c2_536, %c0_537, %c0_538] : memref<6x8x2x32xf32, #tpu.memory_space<vmem>>, vector<1x1x2x32xf32>
    %730 = vector.shape_cast %729 : vector<1x1x2x32xf32> to vector<2x32xf32>
    %731 = vector.shape_cast %728 : vector<2x32xf32> to vector<1x1x2x32xf32>
    tpu.vector_store %arg12[%c0_535, %c2_536, %c0_537, %c0_538], %731 {strides = array<i32>} : memref<6x8x2x32xf32, #tpu.memory_space<vmem>>, vector<1x1x2x32xf32>,
    %732 = vector.extract_strided_slice %719 {offsets = [6, 0], sizes = [2, 32], strides = [1, 1]} : vector<16x32xf32> to vector<2x32xf32>
    %c0_539 = arith.constant 0 : index
    %c3_540 = arith.constant 3 : index
    %c0_541 = arith.constant 0 : index
    %c0_542 = arith.constant 0 : index
    %733 = vector.load %arg12[%c0_539, %c3_540, %c0_541, %c0_542] : memref<6x8x2x32xf32, #tpu.memory_space<vmem>>, vector<1x1x2x32xf32>
    %734 = vector.shape_cast %733 : vector<1x1x2x32xf32> to vector<2x32xf32>
    %735 = vector.shape_cast %732 : vector<2x32xf32> to vector<1x1x2x32xf32>
    tpu.vector_store %arg12[%c0_539, %c3_540, %c0_541, %c0_542], %735 {strides = array<i32>} : memref<6x8x2x32xf32, #tpu.memory_space<vmem>>, vector<1x1x2x32xf32>,
    %736 = vector.extract_strided_slice %719 {offsets = [8, 0], sizes = [2, 32], strides = [1, 1]} : vector<16x32xf32> to vector<2x32xf32>
    %c0_543 = arith.constant 0 : index
    %c4_544 = arith.constant 4 : index
    %c0_545 = arith.constant 0 : index
    %c0_546 = arith.constant 0 : index
    %737 = vector.load %arg12[%c0_543, %c4_544, %c0_545, %c0_546] : memref<6x8x2x32xf32, #tpu.memory_space<vmem>>, vector<1x1x2x32xf32>
    %738 = vector.shape_cast %737 : vector<1x1x2x32xf32> to vector<2x32xf32>
    %739 = vector.shape_cast %736 : vector<2x32xf32> to vector<1x1x2x32xf32>
    tpu.vector_store %arg12[%c0_543, %c4_544, %c0_545, %c0_546], %739 {strides = array<i32>} : memref<6x8x2x32xf32, #tpu.memory_space<vmem>>, vector<1x1x2x32xf32>,
    %740 = vector.extract_strided_slice %719 {offsets = [10, 0], sizes = [2, 32], strides = [1, 1]} : vector<16x32xf32> to vector<2x32xf32>
    %c0_547 = arith.constant 0 : index
    %c5_548 = arith.constant 5 : index
    %c0_549 = arith.constant 0 : index
    %c0_550 = arith.constant 0 : index
    %741 = vector.load %arg12[%c0_547, %c5_548, %c0_549, %c0_550] : memref<6x8x2x32xf32, #tpu.memory_space<vmem>>, vector<1x1x2x32xf32>
    %742 = vector.shape_cast %741 : vector<1x1x2x32xf32> to vector<2x32xf32>
    %743 = vector.shape_cast %740 : vector<2x32xf32> to vector<1x1x2x32xf32>
    tpu.vector_store %arg12[%c0_547, %c5_548, %c0_549, %c0_550], %743 {strides = array<i32>} : memref<6x8x2x32xf32, #tpu.memory_space<vmem>>, vector<1x1x2x32xf32>,
    %744 = vector.extract_strided_slice %719 {offsets = [12, 0], sizes = [2, 32], strides = [1, 1]} : vector<16x32xf32> to vector<2x32xf32>
    %c0_551 = arith.constant 0 : index
    %c6_552 = arith.constant 6 : index
    %c0_553 = arith.constant 0 : index
    %c0_554 = arith.constant 0 : index
    %745 = vector.load %arg12[%c0_551, %c6_552, %c0_553, %c0_554] : memref<6x8x2x32xf32, #tpu.memory_space<vmem>>, vector<1x1x2x32xf32>
    %746 = vector.shape_cast %745 : vector<1x1x2x32xf32> to vector<2x32xf32>
    %747 = vector.shape_cast %744 : vector<2x32xf32> to vector<1x1x2x32xf32>
    tpu.vector_store %arg12[%c0_551, %c6_552, %c0_553, %c0_554], %747 {strides = array<i32>} : memref<6x8x2x32xf32, #tpu.memory_space<vmem>>, vector<1x1x2x32xf32>,
    %748 = vector.extract_strided_slice %719 {offsets = [14, 0], sizes = [2, 32], strides = [1, 1]} : vector<16x32xf32> to vector<2x32xf32>
    %c0_555 = arith.constant 0 : index
    %c7_556 = arith.constant 7 : index
    %c0_557 = arith.constant 0 : index
    %c0_558 = arith.constant 0 : index
    %749 = vector.load %arg12[%c0_555, %c7_556, %c0_557, %c0_558] : memref<6x8x2x32xf32, #tpu.memory_space<vmem>>, vector<1x1x2x32xf32>
    %750 = vector.shape_cast %749 : vector<1x1x2x32xf32> to vector<2x32xf32>
    %751 = vector.shape_cast %748 : vector<2x32xf32> to vector<1x1x2x32xf32>
    tpu.vector_store %arg12[%c0_555, %c7_556, %c0_557, %c0_558], %751 {strides = array<i32>} : memref<6x8x2x32xf32, #tpu.memory_space<vmem>>, vector<1x1x2x32xf32>,
    %752 = vector.extract_strided_slice %718 {offsets = [0, 32], sizes = [16, 32], strides = [1, 1]} : vector<16x192xf32> to vector<16x32xf32>
    %753 = vector.extract_strided_slice %752 {offsets = [0, 0], sizes = [2, 32], strides = [1, 1]} : vector<16x32xf32> to vector<2x32xf32>
    %c1_559 = arith.constant 1 : index
    %c0_560 = arith.constant 0 : index
    %c0_561 = arith.constant 0 : index
    %c0_562 = arith.constant 0 : index
    %754 = vector.load %arg12[%c1_559, %c0_560, %c0_561, %c0_562] : memref<6x8x2x32xf32, #tpu.memory_space<vmem>>, vector<1x1x2x32xf32>
    %755 = vector.shape_cast %754 : vector<1x1x2x32xf32> to vector<2x32xf32>
    %756 = vector.shape_cast %753 : vector<2x32xf32> to vector<1x1x2x32xf32>
    tpu.vector_store %arg12[%c1_559, %c0_560, %c0_561, %c0_562], %756 {strides = array<i32>} : memref<6x8x2x32xf32, #tpu.memory_space<vmem>>, vector<1x1x2x32xf32>,
    %757 = vector.extract_strided_slice %752 {offsets = [2, 0], sizes = [2, 32], strides = [1, 1]} : vector<16x32xf32> to vector<2x32xf32>
    %c1_563 = arith.constant 1 : index
    %c1_564 = arith.constant 1 : index
    %c0_565 = arith.constant 0 : index
    %c0_566 = arith.constant 0 : index
    %758 = vector.load %arg12[%c1_563, %c1_564, %c0_565, %c0_566] : memref<6x8x2x32xf32, #tpu.memory_space<vmem>>, vector<1x1x2x32xf32>
    %759 = vector.shape_cast %758 : vector<1x1x2x32xf32> to vector<2x32xf32>
    %760 = vector.shape_cast %757 : vector<2x32xf32> to vector<1x1x2x32xf32>
    tpu.vector_store %arg12[%c1_563, %c1_564, %c0_565, %c0_566], %760 {strides = array<i32>} : memref<6x8x2x32xf32, #tpu.memory_space<vmem>>, vector<1x1x2x32xf32>,
    %761 = vector.extract_strided_slice %752 {offsets = [4, 0], sizes = [2, 32], strides = [1, 1]} : vector<16x32xf32> to vector<2x32xf32>
    %c1_567 = arith.constant 1 : index
    %c2_568 = arith.constant 2 : index
    %c0_569 = arith.constant 0 : index
    %c0_570 = arith.constant 0 : index
    %762 = vector.load %arg12[%c1_567, %c2_568, %c0_569, %c0_570] : memref<6x8x2x32xf32, #tpu.memory_space<vmem>>, vector<1x1x2x32xf32>
    %763 = vector.shape_cast %762 : vector<1x1x2x32xf32> to vector<2x32xf32>
    %764 = vector.shape_cast %761 : vector<2x32xf32> to vector<1x1x2x32xf32>
    tpu.vector_store %arg12[%c1_567, %c2_568, %c0_569, %c0_570], %764 {strides = array<i32>} : memref<6x8x2x32xf32, #tpu.memory_space<vmem>>, vector<1x1x2x32xf32>,
    %765 = vector.extract_strided_slice %752 {offsets = [6, 0], sizes = [2, 32], strides = [1, 1]} : vector<16x32xf32> to vector<2x32xf32>
    %c1_571 = arith.constant 1 : index
    %c3_572 = arith.constant 3 : index
    %c0_573 = arith.constant 0 : index
    %c0_574 = arith.constant 0 : index
    %766 = vector.load %arg12[%c1_571, %c3_572, %c0_573, %c0_574] : memref<6x8x2x32xf32, #tpu.memory_space<vmem>>, vector<1x1x2x32xf32>
    %767 = vector.shape_cast %766 : vector<1x1x2x32xf32> to vector<2x32xf32>
    %768 = vector.shape_cast %765 : vector<2x32xf32> to vector<1x1x2x32xf32>
    tpu.vector_store %arg12[%c1_571, %c3_572, %c0_573, %c0_574], %768 {strides = array<i32>} : memref<6x8x2x32xf32, #tpu.memory_space<vmem>>, vector<1x1x2x32xf32>,
    %769 = vector.extract_strided_slice %752 {offsets = [8, 0], sizes = [2, 32], strides = [1, 1]} : vector<16x32xf32> to vector<2x32xf32>
    %c1_575 = arith.constant 1 : index
    %c4_576 = arith.constant 4 : index
    %c0_577 = arith.constant 0 : index
    %c0_578 = arith.constant 0 : index
    %770 = vector.load %arg12[%c1_575, %c4_576, %c0_577, %c0_578] : memref<6x8x2x32xf32, #tpu.memory_space<vmem>>, vector<1x1x2x32xf32>
    %771 = vector.shape_cast %770 : vector<1x1x2x32xf32> to vector<2x32xf32>
    %772 = vector.shape_cast %769 : vector<2x32xf32> to vector<1x1x2x32xf32>
    tpu.vector_store %arg12[%c1_575, %c4_576, %c0_577, %c0_578], %772 {strides = array<i32>} : memref<6x8x2x32xf32, #tpu.memory_space<vmem>>, vector<1x1x2x32xf32>,
    %773 = vector.extract_strided_slice %752 {offsets = [10, 0], sizes = [2, 32], strides = [1, 1]} : vector<16x32xf32> to vector<2x32xf32>
    %c1_579 = arith.constant 1 : index
    %c5_580 = arith.constant 5 : index
    %c0_581 = arith.constant 0 : index
    %c0_582 = arith.constant 0 : index
    %774 = vector.load %arg12[%c1_579, %c5_580, %c0_581, %c0_582] : memref<6x8x2x32xf32, #tpu.memory_space<vmem>>, vector<1x1x2x32xf32>
    %775 = vector.shape_cast %774 : vector<1x1x2x32xf32> to vector<2x32xf32>
    %776 = vector.shape_cast %773 : vector<2x32xf32> to vector<1x1x2x32xf32>
    tpu.vector_store %arg12[%c1_579, %c5_580, %c0_581, %c0_582], %776 {strides = array<i32>} : memref<6x8x2x32xf32, #tpu.memory_space<vmem>>, vector<1x1x2x32xf32>,
    %777 = vector.extract_strided_slice %752 {offsets = [12, 0], sizes = [2, 32], strides = [1, 1]} : vector<16x32xf32> to vector<2x32xf32>
    %c1_583 = arith.constant 1 : index
    %c6_584 = arith.constant 6 : index
    %c0_585 = arith.constant 0 : index
    %c0_586 = arith.constant 0 : index
    %778 = vector.load %arg12[%c1_583, %c6_584, %c0_585, %c0_586] : memref<6x8x2x32xf32, #tpu.memory_space<vmem>>, vector<1x1x2x32xf32>
    %779 = vector.shape_cast %778 : vector<1x1x2x32xf32> to vector<2x32xf32>
    %780 = vector.shape_cast %777 : vector<2x32xf32> to vector<1x1x2x32xf32>
    tpu.vector_store %arg12[%c1_583, %c6_584, %c0_585, %c0_586], %780 {strides = array<i32>} : memref<6x8x2x32xf32, #tpu.memory_space<vmem>>, vector<1x1x2x32xf32>,
    %781 = vector.extract_strided_slice %752 {offsets = [14, 0], sizes = [2, 32], strides = [1, 1]} : vector<16x32xf32> to vector<2x32xf32>
    %c1_587 = arith.constant 1 : index
    %c7_588 = arith.constant 7 : index
    %c0_589 = arith.constant 0 : index
    %c0_590 = arith.constant 0 : index
    %782 = vector.load %arg12[%c1_587, %c7_588, %c0_589, %c0_590] : memref<6x8x2x32xf32, #tpu.memory_space<vmem>>, vector<1x1x2x32xf32>
    %783 = vector.shape_cast %782 : vector<1x1x2x32xf32> to vector<2x32xf32>
    %784 = vector.shape_cast %781 : vector<2x32xf32> to vector<1x1x2x32xf32>
    tpu.vector_store %arg12[%c1_587, %c7_588, %c0_589, %c0_590], %784 {strides = array<i32>} : memref<6x8x2x32xf32, #tpu.memory_space<vmem>>, vector<1x1x2x32xf32>,
    %785 = vector.extract_strided_slice %718 {offsets = [0, 64], sizes = [16, 32], strides = [1, 1]} : vector<16x192xf32> to vector<16x32xf32>
    %786 = vector.extract_strided_slice %785 {offsets = [0, 0], sizes = [2, 32], strides = [1, 1]} : vector<16x32xf32> to vector<2x32xf32>
    %c2_591 = arith.constant 2 : index
    %c0_592 = arith.constant 0 : index
    %c0_593 = arith.constant 0 : index
    %c0_594 = arith.constant 0 : index
    %787 = vector.load %arg12[%c2_591, %c0_592, %c0_593, %c0_594] : memref<6x8x2x32xf32, #tpu.memory_space<vmem>>, vector<1x1x2x32xf32>
    %788 = vector.shape_cast %787 : vector<1x1x2x32xf32> to vector<2x32xf32>
    %789 = vector.shape_cast %786 : vector<2x32xf32> to vector<1x1x2x32xf32>
    tpu.vector_store %arg12[%c2_591, %c0_592, %c0_593, %c0_594], %789 {strides = array<i32>} : memref<6x8x2x32xf32, #tpu.memory_space<vmem>>, vector<1x1x2x32xf32>,
    %790 = vector.extract_strided_slice %785 {offsets = [2, 0], sizes = [2, 32], strides = [1, 1]} : vector<16x32xf32> to vector<2x32xf32>
    %c2_595 = arith.constant 2 : index
    %c1_596 = arith.constant 1 : index
    %c0_597 = arith.constant 0 : index
    %c0_598 = arith.constant 0 : index
    %791 = vector.load %arg12[%c2_595, %c1_596, %c0_597, %c0_598] : memref<6x8x2x32xf32, #tpu.memory_space<vmem>>, vector<1x1x2x32xf32>
    %792 = vector.shape_cast %791 : vector<1x1x2x32xf32> to vector<2x32xf32>
    %793 = vector.shape_cast %790 : vector<2x32xf32> to vector<1x1x2x32xf32>
    tpu.vector_store %arg12[%c2_595, %c1_596, %c0_597, %c0_598], %793 {strides = array<i32>} : memref<6x8x2x32xf32, #tpu.memory_space<vmem>>, vector<1x1x2x32xf32>,
    %794 = vector.extract_strided_slice %785 {offsets = [4, 0], sizes = [2, 32], strides = [1, 1]} : vector<16x32xf32> to vector<2x32xf32>
    %c2_599 = arith.constant 2 : index
    %c2_600 = arith.constant 2 : index
    %c0_601 = arith.constant 0 : index
    %c0_602 = arith.constant 0 : index
    %795 = vector.load %arg12[%c2_599, %c2_600, %c0_601, %c0_602] : memref<6x8x2x32xf32, #tpu.memory_space<vmem>>, vector<1x1x2x32xf32>
    %796 = vector.shape_cast %795 : vector<1x1x2x32xf32> to vector<2x32xf32>
    %797 = vector.shape_cast %794 : vector<2x32xf32> to vector<1x1x2x32xf32>
    tpu.vector_store %arg12[%c2_599, %c2_600, %c0_601, %c0_602], %797 {strides = array<i32>} : memref<6x8x2x32xf32, #tpu.memory_space<vmem>>, vector<1x1x2x32xf32>,
    %798 = vector.extract_strided_slice %785 {offsets = [6, 0], sizes = [2, 32], strides = [1, 1]} : vector<16x32xf32> to vector<2x32xf32>
    %c2_603 = arith.constant 2 : index
    %c3_604 = arith.constant 3 : index
    %c0_605 = arith.constant 0 : index
    %c0_606 = arith.constant 0 : index
    %799 = vector.load %arg12[%c2_603, %c3_604, %c0_605, %c0_606] : memref<6x8x2x32xf32, #tpu.memory_space<vmem>>, vector<1x1x2x32xf32>
    %800 = vector.shape_cast %799 : vector<1x1x2x32xf32> to vector<2x32xf32>
    %801 = vector.shape_cast %798 : vector<2x32xf32> to vector<1x1x2x32xf32>
    tpu.vector_store %arg12[%c2_603, %c3_604, %c0_605, %c0_606], %801 {strides = array<i32>} : memref<6x8x2x32xf32, #tpu.memory_space<vmem>>, vector<1x1x2x32xf32>,
    %802 = vector.extract_strided_slice %785 {offsets = [8, 0], sizes = [2, 32], strides = [1, 1]} : vector<16x32xf32> to vector<2x32xf32>
    %c2_607 = arith.constant 2 : index
    %c4_608 = arith.constant 4 : index
    %c0_609 = arith.constant 0 : index
    %c0_610 = arith.constant 0 : index
    %803 = vector.load %arg12[%c2_607, %c4_608, %c0_609, %c0_610] : memref<6x8x2x32xf32, #tpu.memory_space<vmem>>, vector<1x1x2x32xf32>
    %804 = vector.shape_cast %803 : vector<1x1x2x32xf32> to vector<2x32xf32>
    %805 = vector.shape_cast %802 : vector<2x32xf32> to vector<1x1x2x32xf32>
    tpu.vector_store %arg12[%c2_607, %c4_608, %c0_609, %c0_610], %805 {strides = array<i32>} : memref<6x8x2x32xf32, #tpu.memory_space<vmem>>, vector<1x1x2x32xf32>,
    %806 = vector.extract_strided_slice %785 {offsets = [10, 0], sizes = [2, 32], strides = [1, 1]} : vector<16x32xf32> to vector<2x32xf32>
    %c2_611 = arith.constant 2 : index
    %c5_612 = arith.constant 5 : index
    %c0_613 = arith.constant 0 : index
    %c0_614 = arith.constant 0 : index
    %807 = vector.load %arg12[%c2_611, %c5_612, %c0_613, %c0_614] : memref<6x8x2x32xf32, #tpu.memory_space<vmem>>, vector<1x1x2x32xf32>
    %808 = vector.shape_cast %807 : vector<1x1x2x32xf32> to vector<2x32xf32>
    %809 = vector.shape_cast %806 : vector<2x32xf32> to vector<1x1x2x32xf32>
    tpu.vector_store %arg12[%c2_611, %c5_612, %c0_613, %c0_614], %809 {strides = array<i32>} : memref<6x8x2x32xf32, #tpu.memory_space<vmem>>, vector<1x1x2x32xf32>,
    %810 = vector.extract_strided_slice %785 {offsets = [12, 0], sizes = [2, 32], strides = [1, 1]} : vector<16x32xf32> to vector<2x32xf32>
    %c2_615 = arith.constant 2 : index
    %c6_616 = arith.constant 6 : index
    %c0_617 = arith.constant 0 : index
    %c0_618 = arith.constant 0 : index
    %811 = vector.load %arg12[%c2_615, %c6_616, %c0_617, %c0_618] : memref<6x8x2x32xf32, #tpu.memory_space<vmem>>, vector<1x1x2x32xf32>
    %812 = vector.shape_cast %811 : vector<1x1x2x32xf32> to vector<2x32xf32>
    %813 = vector.shape_cast %810 : vector<2x32xf32> to vector<1x1x2x32xf32>
    tpu.vector_store %arg12[%c2_615, %c6_616, %c0_617, %c0_618], %813 {strides = array<i32>} : memref<6x8x2x32xf32, #tpu.memory_space<vmem>>, vector<1x1x2x32xf32>,
    %814 = vector.extract_strided_slice %785 {offsets = [14, 0], sizes = [2, 32], strides = [1, 1]} : vector<16x32xf32> to vector<2x32xf32>
    %c2_619 = arith.constant 2 : index
    %c7_620 = arith.constant 7 : index
    %c0_621 = arith.constant 0 : index
    %c0_622 = arith.constant 0 : index
    %815 = vector.load %arg12[%c2_619, %c7_620, %c0_621, %c0_622] : memref<6x8x2x32xf32, #tpu.memory_space<vmem>>, vector<1x1x2x32xf32>
    %816 = vector.shape_cast %815 : vector<1x1x2x32xf32> to vector<2x32xf32>
    %817 = vector.shape_cast %814 : vector<2x32xf32> to vector<1x1x2x32xf32>
    tpu.vector_store %arg12[%c2_619, %c7_620, %c0_621, %c0_622], %817 {strides = array<i32>} : memref<6x8x2x32xf32, #tpu.memory_space<vmem>>, vector<1x1x2x32xf32>,
    %818 = vector.extract_strided_slice %718 {offsets = [0, 96], sizes = [16, 32], strides = [1, 1]} : vector<16x192xf32> to vector<16x32xf32>
    %819 = vector.extract_strided_slice %818 {offsets = [0, 0], sizes = [2, 32], strides = [1, 1]} : vector<16x32xf32> to vector<2x32xf32>
    %c3_623 = arith.constant 3 : index
    %c0_624 = arith.constant 0 : index
    %c0_625 = arith.constant 0 : index
    %c0_626 = arith.constant 0 : index
    %820 = vector.load %arg12[%c3_623, %c0_624, %c0_625, %c0_626] : memref<6x8x2x32xf32, #tpu.memory_space<vmem>>, vector<1x1x2x32xf32>
    %821 = vector.shape_cast %820 : vector<1x1x2x32xf32> to vector<2x32xf32>
    %822 = vector.shape_cast %819 : vector<2x32xf32> to vector<1x1x2x32xf32>
    tpu.vector_store %arg12[%c3_623, %c0_624, %c0_625, %c0_626], %822 {strides = array<i32>} : memref<6x8x2x32xf32, #tpu.memory_space<vmem>>, vector<1x1x2x32xf32>,
    %823 = vector.extract_strided_slice %818 {offsets = [2, 0], sizes = [2, 32], strides = [1, 1]} : vector<16x32xf32> to vector<2x32xf32>
    %c3_627 = arith.constant 3 : index
    %c1_628 = arith.constant 1 : index
    %c0_629 = arith.constant 0 : index
    %c0_630 = arith.constant 0 : index
    %824 = vector.load %arg12[%c3_627, %c1_628, %c0_629, %c0_630] : memref<6x8x2x32xf32, #tpu.memory_space<vmem>>, vector<1x1x2x32xf32>
    %825 = vector.shape_cast %824 : vector<1x1x2x32xf32> to vector<2x32xf32>
    %826 = vector.shape_cast %823 : vector<2x32xf32> to vector<1x1x2x32xf32>
    tpu.vector_store %arg12[%c3_627, %c1_628, %c0_629, %c0_630], %826 {strides = array<i32>} : memref<6x8x2x32xf32, #tpu.memory_space<vmem>>, vector<1x1x2x32xf32>,
    %827 = vector.extract_strided_slice %818 {offsets = [4, 0], sizes = [2, 32], strides = [1, 1]} : vector<16x32xf32> to vector<2x32xf32>
    %c3_631 = arith.constant 3 : index
    %c2_632 = arith.constant 2 : index
    %c0_633 = arith.constant 0 : index
    %c0_634 = arith.constant 0 : index
    %828 = vector.load %arg12[%c3_631, %c2_632, %c0_633, %c0_634] : memref<6x8x2x32xf32, #tpu.memory_space<vmem>>, vector<1x1x2x32xf32>
    %829 = vector.shape_cast %828 : vector<1x1x2x32xf32> to vector<2x32xf32>
    %830 = vector.shape_cast %827 : vector<2x32xf32> to vector<1x1x2x32xf32>
    tpu.vector_store %arg12[%c3_631, %c2_632, %c0_633, %c0_634], %830 {strides = array<i32>} : memref<6x8x2x32xf32, #tpu.memory_space<vmem>>, vector<1x1x2x32xf32>,
    %831 = vector.extract_strided_slice %818 {offsets = [6, 0], sizes = [2, 32], strides = [1, 1]} : vector<16x32xf32> to vector<2x32xf32>
    %c3_635 = arith.constant 3 : index
    %c3_636 = arith.constant 3 : index
    %c0_637 = arith.constant 0 : index
    %c0_638 = arith.constant 0 : index
    %832 = vector.load %arg12[%c3_635, %c3_636, %c0_637, %c0_638] : memref<6x8x2x32xf32, #tpu.memory_space<vmem>>, vector<1x1x2x32xf32>
    %833 = vector.shape_cast %832 : vector<1x1x2x32xf32> to vector<2x32xf32>
    %834 = vector.shape_cast %831 : vector<2x32xf32> to vector<1x1x2x32xf32>
    tpu.vector_store %arg12[%c3_635, %c3_636, %c0_637, %c0_638], %834 {strides = array<i32>} : memref<6x8x2x32xf32, #tpu.memory_space<vmem>>, vector<1x1x2x32xf32>,
    %835 = vector.extract_strided_slice %818 {offsets = [8, 0], sizes = [2, 32], strides = [1, 1]} : vector<16x32xf32> to vector<2x32xf32>
    %c3_639 = arith.constant 3 : index
    %c4_640 = arith.constant 4 : index
    %c0_641 = arith.constant 0 : index
    %c0_642 = arith.constant 0 : index
    %836 = vector.load %arg12[%c3_639, %c4_640, %c0_641, %c0_642] : memref<6x8x2x32xf32, #tpu.memory_space<vmem>>, vector<1x1x2x32xf32>
    %837 = vector.shape_cast %836 : vector<1x1x2x32xf32> to vector<2x32xf32>
    %838 = vector.shape_cast %835 : vector<2x32xf32> to vector<1x1x2x32xf32>
    tpu.vector_store %arg12[%c3_639, %c4_640, %c0_641, %c0_642], %838 {strides = array<i32>} : memref<6x8x2x32xf32, #tpu.memory_space<vmem>>, vector<1x1x2x32xf32>,
    %839 = vector.extract_strided_slice %818 {offsets = [10, 0], sizes = [2, 32], strides = [1, 1]} : vector<16x32xf32> to vector<2x32xf32>
    %c3_643 = arith.constant 3 : index
    %c5_644 = arith.constant 5 : index
    %c0_645 = arith.constant 0 : index
    %c0_646 = arith.constant 0 : index
    %840 = vector.load %arg12[%c3_643, %c5_644, %c0_645, %c0_646] : memref<6x8x2x32xf32, #tpu.memory_space<vmem>>, vector<1x1x2x32xf32>
    %841 = vector.shape_cast %840 : vector<1x1x2x32xf32> to vector<2x32xf32>
    %842 = vector.shape_cast %839 : vector<2x32xf32> to vector<1x1x2x32xf32>
    tpu.vector_store %arg12[%c3_643, %c5_644, %c0_645, %c0_646], %842 {strides = array<i32>} : memref<6x8x2x32xf32, #tpu.memory_space<vmem>>, vector<1x1x2x32xf32>,
    %843 = vector.extract_strided_slice %818 {offsets = [12, 0], sizes = [2, 32], strides = [1, 1]} : vector<16x32xf32> to vector<2x32xf32>
    %c3_647 = arith.constant 3 : index
    %c6_648 = arith.constant 6 : index
    %c0_649 = arith.constant 0 : index
    %c0_650 = arith.constant 0 : index
    %844 = vector.load %arg12[%c3_647, %c6_648, %c0_649, %c0_650] : memref<6x8x2x32xf32, #tpu.memory_space<vmem>>, vector<1x1x2x32xf32>
    %845 = vector.shape_cast %844 : vector<1x1x2x32xf32> to vector<2x32xf32>
    %846 = vector.shape_cast %843 : vector<2x32xf32> to vector<1x1x2x32xf32>
    tpu.vector_store %arg12[%c3_647, %c6_648, %c0_649, %c0_650], %846 {strides = array<i32>} : memref<6x8x2x32xf32, #tpu.memory_space<vmem>>, vector<1x1x2x32xf32>,
    %847 = vector.extract_strided_slice %818 {offsets = [14, 0], sizes = [2, 32], strides = [1, 1]} : vector<16x32xf32> to vector<2x32xf32>
    %c3_651 = arith.constant 3 : index
    %c7_652 = arith.constant 7 : index
    %c0_653 = arith.constant 0 : index
    %c0_654 = arith.constant 0 : index
    %848 = vector.load %arg12[%c3_651, %c7_652, %c0_653, %c0_654] : memref<6x8x2x32xf32, #tpu.memory_space<vmem>>, vector<1x1x2x32xf32>
    %849 = vector.shape_cast %848 : vector<1x1x2x32xf32> to vector<2x32xf32>
    %850 = vector.shape_cast %847 : vector<2x32xf32> to vector<1x1x2x32xf32>
    tpu.vector_store %arg12[%c3_651, %c7_652, %c0_653, %c0_654], %850 {strides = array<i32>} : memref<6x8x2x32xf32, #tpu.memory_space<vmem>>, vector<1x1x2x32xf32>,
    %851 = vector.extract_strided_slice %718 {offsets = [0, 128], sizes = [16, 32], strides = [1, 1]} : vector<16x192xf32> to vector<16x32xf32>
    %852 = vector.extract_strided_slice %851 {offsets = [0, 0], sizes = [2, 32], strides = [1, 1]} : vector<16x32xf32> to vector<2x32xf32>
    %c4_655 = arith.constant 4 : index
    %c0_656 = arith.constant 0 : index
    %c0_657 = arith.constant 0 : index
    %c0_658 = arith.constant 0 : index
    %853 = vector.load %arg12[%c4_655, %c0_656, %c0_657, %c0_658] : memref<6x8x2x32xf32, #tpu.memory_space<vmem>>, vector<1x1x2x32xf32>
    %854 = vector.shape_cast %853 : vector<1x1x2x32xf32> to vector<2x32xf32>
    %855 = vector.shape_cast %852 : vector<2x32xf32> to vector<1x1x2x32xf32>
    tpu.vector_store %arg12[%c4_655, %c0_656, %c0_657, %c0_658], %855 {strides = array<i32>} : memref<6x8x2x32xf32, #tpu.memory_space<vmem>>, vector<1x1x2x32xf32>,
    %856 = vector.extract_strided_slice %851 {offsets = [2, 0], sizes = [2, 32], strides = [1, 1]} : vector<16x32xf32> to vector<2x32xf32>
    %c4_659 = arith.constant 4 : index
    %c1_660 = arith.constant 1 : index
    %c0_661 = arith.constant 0 : index
    %c0_662 = arith.constant 0 : index
    %857 = vector.load %arg12[%c4_659, %c1_660, %c0_661, %c0_662] : memref<6x8x2x32xf32, #tpu.memory_space<vmem>>, vector<1x1x2x32xf32>
    %858 = vector.shape_cast %857 : vector<1x1x2x32xf32> to vector<2x32xf32>
    %859 = vector.shape_cast %856 : vector<2x32xf32> to vector<1x1x2x32xf32>
    tpu.vector_store %arg12[%c4_659, %c1_660, %c0_661, %c0_662], %859 {strides = array<i32>} : memref<6x8x2x32xf32, #tpu.memory_space<vmem>>, vector<1x1x2x32xf32>,
    %860 = vector.extract_strided_slice %851 {offsets = [4, 0], sizes = [2, 32], strides = [1, 1]} : vector<16x32xf32> to vector<2x32xf32>
    %c4_663 = arith.constant 4 : index
    %c2_664 = arith.constant 2 : index
    %c0_665 = arith.constant 0 : index
    %c0_666 = arith.constant 0 : index
    %861 = vector.load %arg12[%c4_663, %c2_664, %c0_665, %c0_666] : memref<6x8x2x32xf32, #tpu.memory_space<vmem>>, vector<1x1x2x32xf32>
    %862 = vector.shape_cast %861 : vector<1x1x2x32xf32> to vector<2x32xf32>
    %863 = vector.shape_cast %860 : vector<2x32xf32> to vector<1x1x2x32xf32>
    tpu.vector_store %arg12[%c4_663, %c2_664, %c0_665, %c0_666], %863 {strides = array<i32>} : memref<6x8x2x32xf32, #tpu.memory_space<vmem>>, vector<1x1x2x32xf32>,
    %864 = vector.extract_strided_slice %851 {offsets = [6, 0], sizes = [2, 32], strides = [1, 1]} : vector<16x32xf32> to vector<2x32xf32>
    %c4_667 = arith.constant 4 : index
    %c3_668 = arith.constant 3 : index
    %c0_669 = arith.constant 0 : index
    %c0_670 = arith.constant 0 : index
    %865 = vector.load %arg12[%c4_667, %c3_668, %c0_669, %c0_670] : memref<6x8x2x32xf32, #tpu.memory_space<vmem>>, vector<1x1x2x32xf32>
    %866 = vector.shape_cast %865 : vector<1x1x2x32xf32> to vector<2x32xf32>
    %867 = vector.shape_cast %864 : vector<2x32xf32> to vector<1x1x2x32xf32>
    tpu.vector_store %arg12[%c4_667, %c3_668, %c0_669, %c0_670], %867 {strides = array<i32>} : memref<6x8x2x32xf32, #tpu.memory_space<vmem>>, vector<1x1x2x32xf32>,
    %868 = vector.extract_strided_slice %851 {offsets = [8, 0], sizes = [2, 32], strides = [1, 1]} : vector<16x32xf32> to vector<2x32xf32>
    %c4_671 = arith.constant 4 : index
    %c4_672 = arith.constant 4 : index
    %c0_673 = arith.constant 0 : index
    %c0_674 = arith.constant 0 : index
    %869 = vector.load %arg12[%c4_671, %c4_672, %c0_673, %c0_674] : memref<6x8x2x32xf32, #tpu.memory_space<vmem>>, vector<1x1x2x32xf32>
    %870 = vector.shape_cast %869 : vector<1x1x2x32xf32> to vector<2x32xf32>
    %871 = vector.shape_cast %868 : vector<2x32xf32> to vector<1x1x2x32xf32>
    tpu.vector_store %arg12[%c4_671, %c4_672, %c0_673, %c0_674], %871 {strides = array<i32>} : memref<6x8x2x32xf32, #tpu.memory_space<vmem>>, vector<1x1x2x32xf32>,
    %872 = vector.extract_strided_slice %851 {offsets = [10, 0], sizes = [2, 32], strides = [1, 1]} : vector<16x32xf32> to vector<2x32xf32>
    %c4_675 = arith.constant 4 : index
    %c5_676 = arith.constant 5 : index
    %c0_677 = arith.constant 0 : index
    %c0_678 = arith.constant 0 : index
    %873 = vector.load %arg12[%c4_675, %c5_676, %c0_677, %c0_678] : memref<6x8x2x32xf32, #tpu.memory_space<vmem>>, vector<1x1x2x32xf32>
    %874 = vector.shape_cast %873 : vector<1x1x2x32xf32> to vector<2x32xf32>
    %875 = vector.shape_cast %872 : vector<2x32xf32> to vector<1x1x2x32xf32>
    tpu.vector_store %arg12[%c4_675, %c5_676, %c0_677, %c0_678], %875 {strides = array<i32>} : memref<6x8x2x32xf32, #tpu.memory_space<vmem>>, vector<1x1x2x32xf32>,
    %876 = vector.extract_strided_slice %851 {offsets = [12, 0], sizes = [2, 32], strides = [1, 1]} : vector<16x32xf32> to vector<2x32xf32>
    %c4_679 = arith.constant 4 : index
    %c6_680 = arith.constant 6 : index
    %c0_681 = arith.constant 0 : index
    %c0_682 = arith.constant 0 : index
    %877 = vector.load %arg12[%c4_679, %c6_680, %c0_681, %c0_682] : memref<6x8x2x32xf32, #tpu.memory_space<vmem>>, vector<1x1x2x32xf32>
    %878 = vector.shape_cast %877 : vector<1x1x2x32xf32> to vector<2x32xf32>
    %879 = vector.shape_cast %876 : vector<2x32xf32> to vector<1x1x2x32xf32>
    tpu.vector_store %arg12[%c4_679, %c6_680, %c0_681, %c0_682], %879 {strides = array<i32>} : memref<6x8x2x32xf32, #tpu.memory_space<vmem>>, vector<1x1x2x32xf32>,
    %880 = vector.extract_strided_slice %851 {offsets = [14, 0], sizes = [2, 32], strides = [1, 1]} : vector<16x32xf32> to vector<2x32xf32>
    %c4_683 = arith.constant 4 : index
    %c7_684 = arith.constant 7 : index
    %c0_685 = arith.constant 0 : index
    %c0_686 = arith.constant 0 : index
    %881 = vector.load %arg12[%c4_683, %c7_684, %c0_685, %c0_686] : memref<6x8x2x32xf32, #tpu.memory_space<vmem>>, vector<1x1x2x32xf32>
    %882 = vector.shape_cast %881 : vector<1x1x2x32xf32> to vector<2x32xf32>
    %883 = vector.shape_cast %880 : vector<2x32xf32> to vector<1x1x2x32xf32>
    tpu.vector_store %arg12[%c4_683, %c7_684, %c0_685, %c0_686], %883 {strides = array<i32>} : memref<6x8x2x32xf32, #tpu.memory_space<vmem>>, vector<1x1x2x32xf32>,
    %884 = vector.extract_strided_slice %718 {offsets = [0, 160], sizes = [16, 32], strides = [1, 1]} : vector<16x192xf32> to vector<16x32xf32>
    %885 = vector.extract_strided_slice %884 {offsets = [0, 0], sizes = [2, 32], strides = [1, 1]} : vector<16x32xf32> to vector<2x32xf32>
    %c5_687 = arith.constant 5 : index
    %c0_688 = arith.constant 0 : index
    %c0_689 = arith.constant 0 : index
    %c0_690 = arith.constant 0 : index
    %886 = vector.load %arg12[%c5_687, %c0_688, %c0_689, %c0_690] : memref<6x8x2x32xf32, #tpu.memory_space<vmem>>, vector<1x1x2x32xf32>
    %887 = vector.shape_cast %886 : vector<1x1x2x32xf32> to vector<2x32xf32>
    %888 = vector.shape_cast %885 : vector<2x32xf32> to vector<1x1x2x32xf32>
    tpu.vector_store %arg12[%c5_687, %c0_688, %c0_689, %c0_690], %888 {strides = array<i32>} : memref<6x8x2x32xf32, #tpu.memory_space<vmem>>, vector<1x1x2x32xf32>,
    %889 = vector.extract_strided_slice %884 {offsets = [2, 0], sizes = [2, 32], strides = [1, 1]} : vector<16x32xf32> to vector<2x32xf32>
    %c5_691 = arith.constant 5 : index
    %c1_692 = arith.constant 1 : index
    %c0_693 = arith.constant 0 : index
    %c0_694 = arith.constant 0 : index
    %890 = vector.load %arg12[%c5_691, %c1_692, %c0_693, %c0_694] : memref<6x8x2x32xf32, #tpu.memory_space<vmem>>, vector<1x1x2x32xf32>
    %891 = vector.shape_cast %890 : vector<1x1x2x32xf32> to vector<2x32xf32>
    %892 = vector.shape_cast %889 : vector<2x32xf32> to vector<1x1x2x32xf32>
    tpu.vector_store %arg12[%c5_691, %c1_692, %c0_693, %c0_694], %892 {strides = array<i32>} : memref<6x8x2x32xf32, #tpu.memory_space<vmem>>, vector<1x1x2x32xf32>,
    %893 = vector.extract_strided_slice %884 {offsets = [4, 0], sizes = [2, 32], strides = [1, 1]} : vector<16x32xf32> to vector<2x32xf32>
    %c5_695 = arith.constant 5 : index
    %c2_696 = arith.constant 2 : index
    %c0_697 = arith.constant 0 : index
    %c0_698 = arith.constant 0 : index
    %894 = vector.load %arg12[%c5_695, %c2_696, %c0_697, %c0_698] : memref<6x8x2x32xf32, #tpu.memory_space<vmem>>, vector<1x1x2x32xf32>
    %895 = vector.shape_cast %894 : vector<1x1x2x32xf32> to vector<2x32xf32>
    %896 = vector.shape_cast %893 : vector<2x32xf32> to vector<1x1x2x32xf32>
    tpu.vector_store %arg12[%c5_695, %c2_696, %c0_697, %c0_698], %896 {strides = array<i32>} : memref<6x8x2x32xf32, #tpu.memory_space<vmem>>, vector<1x1x2x32xf32>,
    %897 = vector.extract_strided_slice %884 {offsets = [6, 0], sizes = [2, 32], strides = [1, 1]} : vector<16x32xf32> to vector<2x32xf32>
    %c5_699 = arith.constant 5 : index
    %c3_700 = arith.constant 3 : index
    %c0_701 = arith.constant 0 : index
    %c0_702 = arith.constant 0 : index
    %898 = vector.load %arg12[%c5_699, %c3_700, %c0_701, %c0_702] : memref<6x8x2x32xf32, #tpu.memory_space<vmem>>, vector<1x1x2x32xf32>
    %899 = vector.shape_cast %898 : vector<1x1x2x32xf32> to vector<2x32xf32>
    %900 = vector.shape_cast %897 : vector<2x32xf32> to vector<1x1x2x32xf32>
    tpu.vector_store %arg12[%c5_699, %c3_700, %c0_701, %c0_702], %900 {strides = array<i32>} : memref<6x8x2x32xf32, #tpu.memory_space<vmem>>, vector<1x1x2x32xf32>,
    %901 = vector.extract_strided_slice %884 {offsets = [8, 0], sizes = [2, 32], strides = [1, 1]} : vector<16x32xf32> to vector<2x32xf32>
    %c5_703 = arith.constant 5 : index
    %c4_704 = arith.constant 4 : index
    %c0_705 = arith.constant 0 : index
    %c0_706 = arith.constant 0 : index
    %902 = vector.load %arg12[%c5_703, %c4_704, %c0_705, %c0_706] : memref<6x8x2x32xf32, #tpu.memory_space<vmem>>, vector<1x1x2x32xf32>
    %903 = vector.shape_cast %902 : vector<1x1x2x32xf32> to vector<2x32xf32>
    %904 = vector.shape_cast %901 : vector<2x32xf32> to vector<1x1x2x32xf32>
    tpu.vector_store %arg12[%c5_703, %c4_704, %c0_705, %c0_706], %904 {strides = array<i32>} : memref<6x8x2x32xf32, #tpu.memory_space<vmem>>, vector<1x1x2x32xf32>,
    %905 = vector.extract_strided_slice %884 {offsets = [10, 0], sizes = [2, 32], strides = [1, 1]} : vector<16x32xf32> to vector<2x32xf32>
    %c5_707 = arith.constant 5 : index
    %c5_708 = arith.constant 5 : index
    %c0_709 = arith.constant 0 : index
    %c0_710 = arith.constant 0 : index
    %906 = vector.load %arg12[%c5_707, %c5_708, %c0_709, %c0_710] : memref<6x8x2x32xf32, #tpu.memory_space<vmem>>, vector<1x1x2x32xf32>
    %907 = vector.shape_cast %906 : vector<1x1x2x32xf32> to vector<2x32xf32>
    %908 = vector.shape_cast %905 : vector<2x32xf32> to vector<1x1x2x32xf32>
    tpu.vector_store %arg12[%c5_707, %c5_708, %c0_709, %c0_710], %908 {strides = array<i32>} : memref<6x8x2x32xf32, #tpu.memory_space<vmem>>, vector<1x1x2x32xf32>,
    %909 = vector.extract_strided_slice %884 {offsets = [12, 0], sizes = [2, 32], strides = [1, 1]} : vector<16x32xf32> to vector<2x32xf32>
    %c5_711 = arith.constant 5 : index
    %c6_712 = arith.constant 6 : index
    %c0_713 = arith.constant 0 : index
    %c0_714 = arith.constant 0 : index
    %910 = vector.load %arg12[%c5_711, %c6_712, %c0_713, %c0_714] : memref<6x8x2x32xf32, #tpu.memory_space<vmem>>, vector<1x1x2x32xf32>
    %911 = vector.shape_cast %910 : vector<1x1x2x32xf32> to vector<2x32xf32>
    %912 = vector.shape_cast %909 : vector<2x32xf32> to vector<1x1x2x32xf32>
    tpu.vector_store %arg12[%c5_711, %c6_712, %c0_713, %c0_714], %912 {strides = array<i32>} : memref<6x8x2x32xf32, #tpu.memory_space<vmem>>, vector<1x1x2x32xf32>,
    %913 = vector.extract_strided_slice %884 {offsets = [14, 0], sizes = [2, 32], strides = [1, 1]} : vector<16x32xf32> to vector<2x32xf32>
    %c5_715 = arith.constant 5 : index
    %c7_716 = arith.constant 7 : index
    %c0_717 = arith.constant 0 : index
    %c0_718 = arith.constant 0 : index
    %914 = vector.load %arg12[%c5_715, %c7_716, %c0_717, %c0_718] : memref<6x8x2x32xf32, #tpu.memory_space<vmem>>, vector<1x1x2x32xf32>
    %915 = vector.shape_cast %914 : vector<1x1x2x32xf32> to vector<2x32xf32>
    %916 = vector.shape_cast %913 : vector<2x32xf32> to vector<1x1x2x32xf32>
    tpu.vector_store %arg12[%c5_715, %c7_716, %c0_717, %c0_718], %916 {strides = array<i32>} : memref<6x8x2x32xf32, #tpu.memory_space<vmem>>, vector<1x1x2x32xf32>,
    %c0_719 = arith.constant 0 : index
    %c0_720 = arith.constant 0 : index
    %c0_721 = arith.constant 0 : index
    %917 = vector.load %arg7[%c0_719, %c0_720, %c0_721] : memref<6x32x32xbf16, #tpu.memory_space<vmem>>, vector<1x32x32xbf16>
    %918 = vector.shape_cast %917 : vector<1x32x32xbf16> to vector<32x32xbf16>
    %c1_722 = arith.constant 1 : index
    %c0_723 = arith.constant 0 : index
    %c0_724 = arith.constant 0 : index
    %919 = vector.load %arg7[%c1_722, %c0_723, %c0_724] : memref<6x32x32xbf16, #tpu.memory_space<vmem>>, vector<1x32x32xbf16>
    %920 = vector.shape_cast %919 : vector<1x32x32xbf16> to vector<32x32xbf16>
    %c2_725 = arith.constant 2 : index
    %c0_726 = arith.constant 0 : index
    %c0_727 = arith.constant 0 : index
    %921 = vector.load %arg7[%c2_725, %c0_726, %c0_727] : memref<6x32x32xbf16, #tpu.memory_space<vmem>>, vector<1x32x32xbf16>
    %922 = vector.shape_cast %921 : vector<1x32x32xbf16> to vector<32x32xbf16>
    %c3_728 = arith.constant 3 : index
    %c0_729 = arith.constant 0 : index
    %c0_730 = arith.constant 0 : index
    %923 = vector.load %arg7[%c3_728, %c0_729, %c0_730] : memref<6x32x32xbf16, #tpu.memory_space<vmem>>, vector<1x32x32xbf16>
    %924 = vector.shape_cast %923 : vector<1x32x32xbf16> to vector<32x32xbf16>
    %c4_731 = arith.constant 4 : index
    %c0_732 = arith.constant 0 : index
    %c0_733 = arith.constant 0 : index
    %925 = vector.load %arg7[%c4_731, %c0_732, %c0_733] : memref<6x32x32xbf16, #tpu.memory_space<vmem>>, vector<1x32x32xbf16>
    %926 = vector.shape_cast %925 : vector<1x32x32xbf16> to vector<32x32xbf16>
    %c5_734 = arith.constant 5 : index
    %c0_735 = arith.constant 0 : index
    %c0_736 = arith.constant 0 : index
    %927 = vector.load %arg7[%c5_734, %c0_735, %c0_736] : memref<6x32x32xbf16, #tpu.memory_space<vmem>>, vector<1x32x32xbf16>
    %928 = vector.shape_cast %927 : vector<1x32x32xbf16> to vector<32x32xbf16>
    %c0_737 = arith.constant 0 : index
    %c0_738 = arith.constant 0 : index
    %c0_739 = arith.constant 0 : index
    %929 = vector.load %arg8[%c0_737, %c0_738, %c0_739] : memref<2x1x32xf32, #tpu.memory_space<vmem>>, vector<1x1x32xf32>
    %930 = vector.shape_cast %929 : vector<1x1x32xf32> to vector<1x32xf32>
    %931 = vector.shape_cast %930 : vector<1x32xf32> to vector<1x32xf32>
    %932 = vector.broadcast %931 : vector<1x32xf32> to vector<2x32xf32>
    %c1_740 = arith.constant 1 : index
    %c0_741 = arith.constant 0 : index
    %c0_742 = arith.constant 0 : index
    %933 = vector.load %arg8[%c1_740, %c0_741, %c0_742] : memref<2x1x32xf32, #tpu.memory_space<vmem>>, vector<1x1x32xf32>
    %934 = vector.shape_cast %933 : vector<1x1x32xf32> to vector<1x32xf32>
    %935 = vector.shape_cast %934 : vector<1x32xf32> to vector<1x32xf32>
    %936 = vector.broadcast %935 : vector<1x32xf32> to vector<2x32xf32>
    %cst_743 = arith.constant 0.000000e+00 : f32
    %937 = vector.broadcast %cst_743 : f32 to vector<2x32xf32>
    %cst_744 = arith.constant 0.000000e+00 : f32
    %938 = vector.broadcast %cst_744 : f32 to vector<2x32xf32>
    %c3_745 = arith.constant 3 : index
    %c7_746 = arith.constant 7 : index
    %c0_747 = arith.constant 0 : index
    %c0_748 = arith.constant 0 : index
    %939 = vector.load %arg12[%c3_745, %c7_746, %c0_747, %c0_748] : memref<6x8x2x32xf32, #tpu.memory_space<vmem>>, vector<1x1x2x32xf32>
    %940 = vector.shape_cast %939 : vector<1x1x2x32xf32> to vector<2x32xf32>
    %c4_749 = arith.constant 4 : index
    %c7_750 = arith.constant 7 : index
    %c0_751 = arith.constant 0 : index
    %c0_752 = arith.constant 0 : index
    %941 = vector.load %arg12[%c4_749, %c7_750, %c0_751, %c0_752] : memref<6x8x2x32xf32, #tpu.memory_space<vmem>>, vector<1x1x2x32xf32>
    %942 = vector.shape_cast %941 : vector<1x1x2x32xf32> to vector<2x32xf32>
    %c5_753 = arith.constant 5 : index
    %c7_754 = arith.constant 7 : index
    %c0_755 = arith.constant 0 : index
    %c0_756 = arith.constant 0 : index
    %943 = vector.load %arg12[%c5_753, %c7_754, %c0_755, %c0_756] : memref<6x8x2x32xf32, #tpu.memory_space<vmem>>, vector<1x1x2x32xf32>
    %944 = vector.shape_cast %943 : vector<1x1x2x32xf32> to vector<2x32xf32>
    %945 = arith.truncf %938 : vector<2x32xf32> to vector<2x32xbf16>
    %cst_757 = arith.constant dense<0.000000e+00> : vector<2x32xf32>
    %946 = tpu.matmul %945, %924, %cst_757 {dimension_numbers = #tpu.dot_dimension_numbers<[1], [0], [0], [1], [0, 0, 1, 1], [], []>} : vector<2x32xbf16>, vector<32x32xbf16>, vector<2x32xf32> -> vector<2x32xf32>
    %cst_758 = arith.constant dense<0.000000e+00> : vector<2x32xf32>
    %947 = tpu.matmul %945, %926, %cst_758 {dimension_numbers = #tpu.dot_dimension_numbers<[1], [0], [0], [1], [0, 0, 1, 1], [], []>} : vector<2x32xbf16>, vector<32x32xbf16>, vector<2x32xf32> -> vector<2x32xf32>
    %cst_759 = arith.constant dense<0.000000e+00> : vector<2x32xf32>
    %948 = tpu.matmul %945, %928, %cst_759 {dimension_numbers = #tpu.dot_dimension_numbers<[1], [0], [0], [1], [0, 0, 1, 1], [], []>} : vector<2x32xbf16>, vector<32x32xbf16>, vector<2x32xf32> -> vector<2x32xf32>
    %949 = arith.addf %948, %936 : vector<2x32xf32>
    %950 = arith.addf %940, %946 : vector<2x32xf32>
    %951 = arith.negf %950 : vector<2x32xf32>
    %952 = math.exp %951 : vector<2x32xf32>
    %cst_760 = arith.constant 1.000000e+00 : f32
    %953 = vector.broadcast %cst_760 : f32 to vector<2x32xf32>
    %954 = arith.addf %953, %952 : vector<2x32xf32>
    %955 = arith.divf %953, %954 : vector<2x32xf32>
    %956 = arith.addf %942, %947 : vector<2x32xf32>
    %957 = arith.negf %956 : vector<2x32xf32>
    %958 = math.exp %957 : vector<2x32xf32>
    %cst_761 = arith.constant 1.000000e+00 : f32
    %959 = vector.broadcast %cst_761 : f32 to vector<2x32xf32>
    %960 = arith.addf %959, %958 : vector<2x32xf32>
    %961 = arith.divf %959, %960 : vector<2x32xf32>
    %962 = arith.mulf %955, %949 : vector<2x32xf32>
    %963 = arith.addf %944, %962 : vector<2x32xf32>
    %964 = math.tanh %963 : vector<2x32xf32>
    %965 = arith.subf %938, %964 : vector<2x32xf32>
    %966 = arith.mulf %961, %965 : vector<2x32xf32>
    %967 = arith.addf %964, %966 : vector<2x32xf32>
    %c0_762 = arith.constant 0 : index
    %c0_763 = arith.constant 0 : index
    %c0_764 = arith.constant 0 : index
    %c0_765 = arith.constant 0 : index
    %968 = vector.load %arg12[%c0_762, %c0_763, %c0_764, %c0_765] : memref<6x8x2x32xf32, #tpu.memory_space<vmem>>, vector<1x1x2x32xf32>
    %969 = vector.shape_cast %968 : vector<1x1x2x32xf32> to vector<2x32xf32>
    %c1_766 = arith.constant 1 : index
    %c0_767 = arith.constant 0 : index
    %c0_768 = arith.constant 0 : index
    %c0_769 = arith.constant 0 : index
    %970 = vector.load %arg12[%c1_766, %c0_767, %c0_768, %c0_769] : memref<6x8x2x32xf32, #tpu.memory_space<vmem>>, vector<1x1x2x32xf32>
    %971 = vector.shape_cast %970 : vector<1x1x2x32xf32> to vector<2x32xf32>
    %c2_770 = arith.constant 2 : index
    %c0_771 = arith.constant 0 : index
    %c0_772 = arith.constant 0 : index
    %c0_773 = arith.constant 0 : index
    %972 = vector.load %arg12[%c2_770, %c0_771, %c0_772, %c0_773] : memref<6x8x2x32xf32, #tpu.memory_space<vmem>>, vector<1x1x2x32xf32>
    %973 = vector.shape_cast %972 : vector<1x1x2x32xf32> to vector<2x32xf32>
    %974 = arith.truncf %937 : vector<2x32xf32> to vector<2x32xbf16>
    %cst_774 = arith.constant dense<0.000000e+00> : vector<2x32xf32>
    %975 = tpu.matmul %974, %918, %cst_774 {dimension_numbers = #tpu.dot_dimension_numbers<[1], [0], [0], [1], [0, 0, 1, 1], [], []>} : vector<2x32xbf16>, vector<32x32xbf16>, vector<2x32xf32> -> vector<2x32xf32>
    %cst_775 = arith.constant dense<0.000000e+00> : vector<2x32xf32>
    %976 = tpu.matmul %974, %920, %cst_775 {dimension_numbers = #tpu.dot_dimension_numbers<[1], [0], [0], [1], [0, 0, 1, 1], [], []>} : vector<2x32xbf16>, vector<32x32xbf16>, vector<2x32xf32> -> vector<2x32xf32>
    %cst_776 = arith.constant dense<0.000000e+00> : vector<2x32xf32>
    %977 = tpu.matmul %974, %922, %cst_776 {dimension_numbers = #tpu.dot_dimension_numbers<[1], [0], [0], [1], [0, 0, 1, 1], [], []>} : vector<2x32xbf16>, vector<32x32xbf16>, vector<2x32xf32> -> vector<2x32xf32>
    %978 = arith.addf %977, %932 : vector<2x32xf32>
    %979 = arith.addf %969, %975 : vector<2x32xf32>
    %980 = arith.negf %979 : vector<2x32xf32>
    %981 = math.exp %980 : vector<2x32xf32>
    %cst_777 = arith.constant 1.000000e+00 : f32
    %982 = vector.broadcast %cst_777 : f32 to vector<2x32xf32>
    %983 = arith.addf %982, %981 : vector<2x32xf32>
    %984 = arith.divf %982, %983 : vector<2x32xf32>
    %985 = arith.addf %971, %976 : vector<2x32xf32>
    %986 = arith.negf %985 : vector<2x32xf32>
    %987 = math.exp %986 : vector<2x32xf32>
    %cst_778 = arith.constant 1.000000e+00 : f32
    %988 = vector.broadcast %cst_778 : f32 to vector<2x32xf32>
    %989 = arith.addf %988, %987 : vector<2x32xf32>
    %990 = arith.divf %988, %989 : vector<2x32xf32>
    %991 = arith.mulf %984, %978 : vector<2x32xf32>
    %992 = arith.addf %973, %991 : vector<2x32xf32>
    %993 = math.tanh %992 : vector<2x32xf32>
    %994 = arith.subf %937, %993 : vector<2x32xf32>
    %995 = arith.mulf %990, %994 : vector<2x32xf32>
    %996 = arith.addf %993, %995 : vector<2x32xf32>
    %c0_779 = arith.constant 0 : index
    %c1_780 = arith.constant 1 : index
    %c0_781 = arith.constant 0 : index
    %c0_782 = arith.constant 0 : index
    %997 = vector.load %arg12[%c0_779, %c1_780, %c0_781, %c0_782] : memref<6x8x2x32xf32, #tpu.memory_space<vmem>>, vector<1x1x2x32xf32>
    %998 = vector.shape_cast %997 : vector<1x1x2x32xf32> to vector<2x32xf32>
    %c1_783 = arith.constant 1 : index
    %c1_784 = arith.constant 1 : index
    %c0_785 = arith.constant 0 : index
    %c0_786 = arith.constant 0 : index
    %999 = vector.load %arg12[%c1_783, %c1_784, %c0_785, %c0_786] : memref<6x8x2x32xf32, #tpu.memory_space<vmem>>, vector<1x1x2x32xf32>
    %1000 = vector.shape_cast %999 : vector<1x1x2x32xf32> to vector<2x32xf32>
    %c2_787 = arith.constant 2 : index
    %c1_788 = arith.constant 1 : index
    %c0_789 = arith.constant 0 : index
    %c0_790 = arith.constant 0 : index
    %1001 = vector.load %arg12[%c2_787, %c1_788, %c0_789, %c0_790] : memref<6x8x2x32xf32, #tpu.memory_space<vmem>>, vector<1x1x2x32xf32>
    %1002 = vector.shape_cast %1001 : vector<1x1x2x32xf32> to vector<2x32xf32>
    %1003 = arith.truncf %996 : vector<2x32xf32> to vector<2x32xbf16>
    %cst_791 = arith.constant dense<0.000000e+00> : vector<2x32xf32>
    %1004 = tpu.matmul %1003, %918, %cst_791 {dimension_numbers = #tpu.dot_dimension_numbers<[1], [0], [0], [1], [0, 0, 1, 1], [], []>} : vector<2x32xbf16>, vector<32x32xbf16>, vector<2x32xf32> -> vector<2x32xf32>
    %cst_792 = arith.constant dense<0.000000e+00> : vector<2x32xf32>
    %1005 = tpu.matmul %1003, %920, %cst_792 {dimension_numbers = #tpu.dot_dimension_numbers<[1], [0], [0], [1], [0, 0, 1, 1], [], []>} : vector<2x32xbf16>, vector<32x32xbf16>, vector<2x32xf32> -> vector<2x32xf32>
    %cst_793 = arith.constant dense<0.000000e+00> : vector<2x32xf32>
    %1006 = tpu.matmul %1003, %922, %cst_793 {dimension_numbers = #tpu.dot_dimension_numbers<[1], [0], [0], [1], [0, 0, 1, 1], [], []>} : vector<2x32xbf16>, vector<32x32xbf16>, vector<2x32xf32> -> vector<2x32xf32>
    %1007 = arith.addf %1006, %932 : vector<2x32xf32>
    %1008 = arith.addf %998, %1004 : vector<2x32xf32>
    %1009 = arith.negf %1008 : vector<2x32xf32>
    %1010 = math.exp %1009 : vector<2x32xf32>
    %cst_794 = arith.constant 1.000000e+00 : f32
    %1011 = vector.broadcast %cst_794 : f32 to vector<2x32xf32>
    %1012 = arith.addf %1011, %1010 : vector<2x32xf32>
    %1013 = arith.divf %1011, %1012 : vector<2x32xf32>
    %1014 = arith.addf %1000, %1005 : vector<2x32xf32>
    %1015 = arith.negf %1014 : vector<2x32xf32>
    %1016 = math.exp %1015 : vector<2x32xf32>
    %cst_795 = arith.constant 1.000000e+00 : f32
    %1017 = vector.broadcast %cst_795 : f32 to vector<2x32xf32>
    %1018 = arith.addf %1017, %1016 : vector<2x32xf32>
    %1019 = arith.divf %1017, %1018 : vector<2x32xf32>
    %1020 = arith.mulf %1013, %1007 : vector<2x32xf32>
    %1021 = arith.addf %1002, %1020 : vector<2x32xf32>
    %1022 = math.tanh %1021 : vector<2x32xf32>
    %1023 = arith.subf %996, %1022 : vector<2x32xf32>
    %1024 = arith.mulf %1019, %1023 : vector<2x32xf32>
    %1025 = arith.addf %1022, %1024 : vector<2x32xf32>
    %c0_796 = arith.constant 0 : index
    %c2_797 = arith.constant 2 : index
    %c0_798 = arith.constant 0 : index
    %c0_799 = arith.constant 0 : index
    %1026 = vector.load %arg12[%c0_796, %c2_797, %c0_798, %c0_799] : memref<6x8x2x32xf32, #tpu.memory_space<vmem>>, vector<1x1x2x32xf32>
    %1027 = vector.shape_cast %1026 : vector<1x1x2x32xf32> to vector<2x32xf32>
    %c1_800 = arith.constant 1 : index
    %c2_801 = arith.constant 2 : index
    %c0_802 = arith.constant 0 : index
    %c0_803 = arith.constant 0 : index
    %1028 = vector.load %arg12[%c1_800, %c2_801, %c0_802, %c0_803] : memref<6x8x2x32xf32, #tpu.memory_space<vmem>>, vector<1x1x2x32xf32>
    %1029 = vector.shape_cast %1028 : vector<1x1x2x32xf32> to vector<2x32xf32>
    %c2_804 = arith.constant 2 : index
    %c2_805 = arith.constant 2 : index
    %c0_806 = arith.constant 0 : index
    %c0_807 = arith.constant 0 : index
    %1030 = vector.load %arg12[%c2_804, %c2_805, %c0_806, %c0_807] : memref<6x8x2x32xf32, #tpu.memory_space<vmem>>, vector<1x1x2x32xf32>
    %1031 = vector.shape_cast %1030 : vector<1x1x2x32xf32> to vector<2x32xf32>
    %1032 = arith.truncf %1025 : vector<2x32xf32> to vector<2x32xbf16>
    %cst_808 = arith.constant dense<0.000000e+00> : vector<2x32xf32>
    %1033 = tpu.matmul %1032, %918, %cst_808 {dimension_numbers = #tpu.dot_dimension_numbers<[1], [0], [0], [1], [0, 0, 1, 1], [], []>} : vector<2x32xbf16>, vector<32x32xbf16>, vector<2x32xf32> -> vector<2x32xf32>
    %cst_809 = arith.constant dense<0.000000e+00> : vector<2x32xf32>
    %1034 = tpu.matmul %1032, %920, %cst_809 {dimension_numbers = #tpu.dot_dimension_numbers<[1], [0], [0], [1], [0, 0, 1, 1], [], []>} : vector<2x32xbf16>, vector<32x32xbf16>, vector<2x32xf32> -> vector<2x32xf32>
    %cst_810 = arith.constant dense<0.000000e+00> : vector<2x32xf32>
    %1035 = tpu.matmul %1032, %922, %cst_810 {dimension_numbers = #tpu.dot_dimension_numbers<[1], [0], [0], [1], [0, 0, 1, 1], [], []>} : vector<2x32xbf16>, vector<32x32xbf16>, vector<2x32xf32> -> vector<2x32xf32>
    %1036 = arith.addf %1035, %932 : vector<2x32xf32>
    %1037 = arith.addf %1027, %1033 : vector<2x32xf32>
    %1038 = arith.negf %1037 : vector<2x32xf32>
    %1039 = math.exp %1038 : vector<2x32xf32>
    %cst_811 = arith.constant 1.000000e+00 : f32
    %1040 = vector.broadcast %cst_811 : f32 to vector<2x32xf32>
    %1041 = arith.addf %1040, %1039 : vector<2x32xf32>
    %1042 = arith.divf %1040, %1041 : vector<2x32xf32>
    %1043 = arith.addf %1029, %1034 : vector<2x32xf32>
    %1044 = arith.negf %1043 : vector<2x32xf32>
    %1045 = math.exp %1044 : vector<2x32xf32>
    %cst_812 = arith.constant 1.000000e+00 : f32
    %1046 = vector.broadcast %cst_812 : f32 to vector<2x32xf32>
    %1047 = arith.addf %1046, %1045 : vector<2x32xf32>
    %1048 = arith.divf %1046, %1047 : vector<2x32xf32>
    %1049 = arith.mulf %1042, %1036 : vector<2x32xf32>
    %1050 = arith.addf %1031, %1049 : vector<2x32xf32>
    %1051 = math.tanh %1050 : vector<2x32xf32>
    %1052 = arith.subf %1025, %1051 : vector<2x32xf32>
    %1053 = arith.mulf %1048, %1052 : vector<2x32xf32>
    %1054 = arith.addf %1051, %1053 : vector<2x32xf32>
    %c0_813 = arith.constant 0 : index
    %c3_814 = arith.constant 3 : index
    %c0_815 = arith.constant 0 : index
    %c0_816 = arith.constant 0 : index
    %1055 = vector.load %arg12[%c0_813, %c3_814, %c0_815, %c0_816] : memref<6x8x2x32xf32, #tpu.memory_space<vmem>>, vector<1x1x2x32xf32>
    %1056 = vector.shape_cast %1055 : vector<1x1x2x32xf32> to vector<2x32xf32>
    %c1_817 = arith.constant 1 : index
    %c3_818 = arith.constant 3 : index
    %c0_819 = arith.constant 0 : index
    %c0_820 = arith.constant 0 : index
    %1057 = vector.load %arg12[%c1_817, %c3_818, %c0_819, %c0_820] : memref<6x8x2x32xf32, #tpu.memory_space<vmem>>, vector<1x1x2x32xf32>
    %1058 = vector.shape_cast %1057 : vector<1x1x2x32xf32> to vector<2x32xf32>
    %c2_821 = arith.constant 2 : index
    %c3_822 = arith.constant 3 : index
    %c0_823 = arith.constant 0 : index
    %c0_824 = arith.constant 0 : index
    %1059 = vector.load %arg12[%c2_821, %c3_822, %c0_823, %c0_824] : memref<6x8x2x32xf32, #tpu.memory_space<vmem>>, vector<1x1x2x32xf32>
    %1060 = vector.shape_cast %1059 : vector<1x1x2x32xf32> to vector<2x32xf32>
    %1061 = arith.truncf %1054 : vector<2x32xf32> to vector<2x32xbf16>
    %cst_825 = arith.constant dense<0.000000e+00> : vector<2x32xf32>
    %1062 = tpu.matmul %1061, %918, %cst_825 {dimension_numbers = #tpu.dot_dimension_numbers<[1], [0], [0], [1], [0, 0, 1, 1], [], []>} : vector<2x32xbf16>, vector<32x32xbf16>, vector<2x32xf32> -> vector<2x32xf32>
    %cst_826 = arith.constant dense<0.000000e+00> : vector<2x32xf32>
    %1063 = tpu.matmul %1061, %920, %cst_826 {dimension_numbers = #tpu.dot_dimension_numbers<[1], [0], [0], [1], [0, 0, 1, 1], [], []>} : vector<2x32xbf16>, vector<32x32xbf16>, vector<2x32xf32> -> vector<2x32xf32>
    %cst_827 = arith.constant dense<0.000000e+00> : vector<2x32xf32>
    %1064 = tpu.matmul %1061, %922, %cst_827 {dimension_numbers = #tpu.dot_dimension_numbers<[1], [0], [0], [1], [0, 0, 1, 1], [], []>} : vector<2x32xbf16>, vector<32x32xbf16>, vector<2x32xf32> -> vector<2x32xf32>
    %1065 = arith.addf %1064, %932 : vector<2x32xf32>
    %1066 = arith.addf %1056, %1062 : vector<2x32xf32>
    %1067 = arith.negf %1066 : vector<2x32xf32>
    %1068 = math.exp %1067 : vector<2x32xf32>
    %cst_828 = arith.constant 1.000000e+00 : f32
    %1069 = vector.broadcast %cst_828 : f32 to vector<2x32xf32>
    %1070 = arith.addf %1069, %1068 : vector<2x32xf32>
    %1071 = arith.divf %1069, %1070 : vector<2x32xf32>
    %1072 = arith.addf %1058, %1063 : vector<2x32xf32>
    %1073 = arith.negf %1072 : vector<2x32xf32>
    %1074 = math.exp %1073 : vector<2x32xf32>
    %cst_829 = arith.constant 1.000000e+00 : f32
    %1075 = vector.broadcast %cst_829 : f32 to vector<2x32xf32>
    %1076 = arith.addf %1075, %1074 : vector<2x32xf32>
    %1077 = arith.divf %1075, %1076 : vector<2x32xf32>
    %1078 = arith.mulf %1071, %1065 : vector<2x32xf32>
    %1079 = arith.addf %1060, %1078 : vector<2x32xf32>
    %1080 = math.tanh %1079 : vector<2x32xf32>
    %1081 = arith.subf %1054, %1080 : vector<2x32xf32>
    %1082 = arith.mulf %1077, %1081 : vector<2x32xf32>
    %1083 = arith.addf %1080, %1082 : vector<2x32xf32>
    %c0_830 = arith.constant 0 : index
    %c4_831 = arith.constant 4 : index
    %c0_832 = arith.constant 0 : index
    %c0_833 = arith.constant 0 : index
    %1084 = vector.load %arg12[%c0_830, %c4_831, %c0_832, %c0_833] : memref<6x8x2x32xf32, #tpu.memory_space<vmem>>, vector<1x1x2x32xf32>
    %1085 = vector.shape_cast %1084 : vector<1x1x2x32xf32> to vector<2x32xf32>
    %c1_834 = arith.constant 1 : index
    %c4_835 = arith.constant 4 : index
    %c0_836 = arith.constant 0 : index
    %c0_837 = arith.constant 0 : index
    %1086 = vector.load %arg12[%c1_834, %c4_835, %c0_836, %c0_837] : memref<6x8x2x32xf32, #tpu.memory_space<vmem>>, vector<1x1x2x32xf32>
    %1087 = vector.shape_cast %1086 : vector<1x1x2x32xf32> to vector<2x32xf32>
    %c2_838 = arith.constant 2 : index
    %c4_839 = arith.constant 4 : index
    %c0_840 = arith.constant 0 : index
    %c0_841 = arith.constant 0 : index
    %1088 = vector.load %arg12[%c2_838, %c4_839, %c0_840, %c0_841] : memref<6x8x2x32xf32, #tpu.memory_space<vmem>>, vector<1x1x2x32xf32>
    %1089 = vector.shape_cast %1088 : vector<1x1x2x32xf32> to vector<2x32xf32>
    %1090 = arith.truncf %1083 : vector<2x32xf32> to vector<2x32xbf16>
    %cst_842 = arith.constant dense<0.000000e+00> : vector<2x32xf32>
    %1091 = tpu.matmul %1090, %918, %cst_842 {dimension_numbers = #tpu.dot_dimension_numbers<[1], [0], [0], [1], [0, 0, 1, 1], [], []>} : vector<2x32xbf16>, vector<32x32xbf16>, vector<2x32xf32> -> vector<2x32xf32>
    %cst_843 = arith.constant dense<0.000000e+00> : vector<2x32xf32>
    %1092 = tpu.matmul %1090, %920, %cst_843 {dimension_numbers = #tpu.dot_dimension_numbers<[1], [0], [0], [1], [0, 0, 1, 1], [], []>} : vector<2x32xbf16>, vector<32x32xbf16>, vector<2x32xf32> -> vector<2x32xf32>
    %cst_844 = arith.constant dense<0.000000e+00> : vector<2x32xf32>
    %1093 = tpu.matmul %1090, %922, %cst_844 {dimension_numbers = #tpu.dot_dimension_numbers<[1], [0], [0], [1], [0, 0, 1, 1], [], []>} : vector<2x32xbf16>, vector<32x32xbf16>, vector<2x32xf32> -> vector<2x32xf32>
    %1094 = arith.addf %1093, %932 : vector<2x32xf32>
    %1095 = arith.addf %1085, %1091 : vector<2x32xf32>
    %1096 = arith.negf %1095 : vector<2x32xf32>
    %1097 = math.exp %1096 : vector<2x32xf32>
    %cst_845 = arith.constant 1.000000e+00 : f32
    %1098 = vector.broadcast %cst_845 : f32 to vector<2x32xf32>
    %1099 = arith.addf %1098, %1097 : vector<2x32xf32>
    %1100 = arith.divf %1098, %1099 : vector<2x32xf32>
    %1101 = arith.addf %1087, %1092 : vector<2x32xf32>
    %1102 = arith.negf %1101 : vector<2x32xf32>
    %1103 = math.exp %1102 : vector<2x32xf32>
    %cst_846 = arith.constant 1.000000e+00 : f32
    %1104 = vector.broadcast %cst_846 : f32 to vector<2x32xf32>
    %1105 = arith.addf %1104, %1103 : vector<2x32xf32>
    %1106 = arith.divf %1104, %1105 : vector<2x32xf32>
    %1107 = arith.mulf %1100, %1094 : vector<2x32xf32>
    %1108 = arith.addf %1089, %1107 : vector<2x32xf32>
    %1109 = math.tanh %1108 : vector<2x32xf32>
    %1110 = arith.subf %1083, %1109 : vector<2x32xf32>
    %1111 = arith.mulf %1106, %1110 : vector<2x32xf32>
    %1112 = arith.addf %1109, %1111 : vector<2x32xf32>
    %c0_847 = arith.constant 0 : index
    %c5_848 = arith.constant 5 : index
    %c0_849 = arith.constant 0 : index
    %c0_850 = arith.constant 0 : index
    %1113 = vector.load %arg12[%c0_847, %c5_848, %c0_849, %c0_850] : memref<6x8x2x32xf32, #tpu.memory_space<vmem>>, vector<1x1x2x32xf32>
    %1114 = vector.shape_cast %1113 : vector<1x1x2x32xf32> to vector<2x32xf32>
    %c1_851 = arith.constant 1 : index
    %c5_852 = arith.constant 5 : index
    %c0_853 = arith.constant 0 : index
    %c0_854 = arith.constant 0 : index
    %1115 = vector.load %arg12[%c1_851, %c5_852, %c0_853, %c0_854] : memref<6x8x2x32xf32, #tpu.memory_space<vmem>>, vector<1x1x2x32xf32>
    %1116 = vector.shape_cast %1115 : vector<1x1x2x32xf32> to vector<2x32xf32>
    %c2_855 = arith.constant 2 : index
    %c5_856 = arith.constant 5 : index
    %c0_857 = arith.constant 0 : index
    %c0_858 = arith.constant 0 : index
    %1117 = vector.load %arg12[%c2_855, %c5_856, %c0_857, %c0_858] : memref<6x8x2x32xf32, #tpu.memory_space<vmem>>, vector<1x1x2x32xf32>
    %1118 = vector.shape_cast %1117 : vector<1x1x2x32xf32> to vector<2x32xf32>
    %1119 = arith.truncf %1112 : vector<2x32xf32> to vector<2x32xbf16>
    %cst_859 = arith.constant dense<0.000000e+00> : vector<2x32xf32>
    %1120 = tpu.matmul %1119, %918, %cst_859 {dimension_numbers = #tpu.dot_dimension_numbers<[1], [0], [0], [1], [0, 0, 1, 1], [], []>} : vector<2x32xbf16>, vector<32x32xbf16>, vector<2x32xf32> -> vector<2x32xf32>
    %cst_860 = arith.constant dense<0.000000e+00> : vector<2x32xf32>
    %1121 = tpu.matmul %1119, %920, %cst_860 {dimension_numbers = #tpu.dot_dimension_numbers<[1], [0], [0], [1], [0, 0, 1, 1], [], []>} : vector<2x32xbf16>, vector<32x32xbf16>, vector<2x32xf32> -> vector<2x32xf32>
    %cst_861 = arith.constant dense<0.000000e+00> : vector<2x32xf32>
    %1122 = tpu.matmul %1119, %922, %cst_861 {dimension_numbers = #tpu.dot_dimension_numbers<[1], [0], [0], [1], [0, 0, 1, 1], [], []>} : vector<2x32xbf16>, vector<32x32xbf16>, vector<2x32xf32> -> vector<2x32xf32>
    %1123 = arith.addf %1122, %932 : vector<2x32xf32>
    %1124 = arith.addf %1114, %1120 : vector<2x32xf32>
    %1125 = arith.negf %1124 : vector<2x32xf32>
    %1126 = math.exp %1125 : vector<2x32xf32>
    %cst_862 = arith.constant 1.000000e+00 : f32
    %1127 = vector.broadcast %cst_862 : f32 to vector<2x32xf32>
    %1128 = arith.addf %1127, %1126 : vector<2x32xf32>
    %1129 = arith.divf %1127, %1128 : vector<2x32xf32>
    %1130 = arith.addf %1116, %1121 : vector<2x32xf32>
    %1131 = arith.negf %1130 : vector<2x32xf32>
    %1132 = math.exp %1131 : vector<2x32xf32>
    %cst_863 = arith.constant 1.000000e+00 : f32
    %1133 = vector.broadcast %cst_863 : f32 to vector<2x32xf32>
    %1134 = arith.addf %1133, %1132 : vector<2x32xf32>
    %1135 = arith.divf %1133, %1134 : vector<2x32xf32>
    %1136 = arith.mulf %1129, %1123 : vector<2x32xf32>
    %1137 = arith.addf %1118, %1136 : vector<2x32xf32>
    %1138 = math.tanh %1137 : vector<2x32xf32>
    %1139 = arith.subf %1112, %1138 : vector<2x32xf32>
    %1140 = arith.mulf %1135, %1139 : vector<2x32xf32>
    %1141 = arith.addf %1138, %1140 : vector<2x32xf32>
    %c0_864 = arith.constant 0 : index
    %c6_865 = arith.constant 6 : index
    %c0_866 = arith.constant 0 : index
    %c0_867 = arith.constant 0 : index
    %1142 = vector.load %arg12[%c0_864, %c6_865, %c0_866, %c0_867] : memref<6x8x2x32xf32, #tpu.memory_space<vmem>>, vector<1x1x2x32xf32>
    %1143 = vector.shape_cast %1142 : vector<1x1x2x32xf32> to vector<2x32xf32>
    %c1_868 = arith.constant 1 : index
    %c6_869 = arith.constant 6 : index
    %c0_870 = arith.constant 0 : index
    %c0_871 = arith.constant 0 : index
    %1144 = vector.load %arg12[%c1_868, %c6_869, %c0_870, %c0_871] : memref<6x8x2x32xf32, #tpu.memory_space<vmem>>, vector<1x1x2x32xf32>
    %1145 = vector.shape_cast %1144 : vector<1x1x2x32xf32> to vector<2x32xf32>
    %c2_872 = arith.constant 2 : index
    %c6_873 = arith.constant 6 : index
    %c0_874 = arith.constant 0 : index
    %c0_875 = arith.constant 0 : index
    %1146 = vector.load %arg12[%c2_872, %c6_873, %c0_874, %c0_875] : memref<6x8x2x32xf32, #tpu.memory_space<vmem>>, vector<1x1x2x32xf32>
    %1147 = vector.shape_cast %1146 : vector<1x1x2x32xf32> to vector<2x32xf32>
    %1148 = arith.truncf %1141 : vector<2x32xf32> to vector<2x32xbf16>
    %cst_876 = arith.constant dense<0.000000e+00> : vector<2x32xf32>
    %1149 = tpu.matmul %1148, %918, %cst_876 {dimension_numbers = #tpu.dot_dimension_numbers<[1], [0], [0], [1], [0, 0, 1, 1], [], []>} : vector<2x32xbf16>, vector<32x32xbf16>, vector<2x32xf32> -> vector<2x32xf32>
    %cst_877 = arith.constant dense<0.000000e+00> : vector<2x32xf32>
    %1150 = tpu.matmul %1148, %920, %cst_877 {dimension_numbers = #tpu.dot_dimension_numbers<[1], [0], [0], [1], [0, 0, 1, 1], [], []>} : vector<2x32xbf16>, vector<32x32xbf16>, vector<2x32xf32> -> vector<2x32xf32>
    %cst_878 = arith.constant dense<0.000000e+00> : vector<2x32xf32>
    %1151 = tpu.matmul %1148, %922, %cst_878 {dimension_numbers = #tpu.dot_dimension_numbers<[1], [0], [0], [1], [0, 0, 1, 1], [], []>} : vector<2x32xbf16>, vector<32x32xbf16>, vector<2x32xf32> -> vector<2x32xf32>
    %1152 = arith.addf %1151, %932 : vector<2x32xf32>
    %1153 = arith.addf %1143, %1149 : vector<2x32xf32>
    %1154 = arith.negf %1153 : vector<2x32xf32>
    %1155 = math.exp %1154 : vector<2x32xf32>
    %cst_879 = arith.constant 1.000000e+00 : f32
    %1156 = vector.broadcast %cst_879 : f32 to vector<2x32xf32>
    %1157 = arith.addf %1156, %1155 : vector<2x32xf32>
    %1158 = arith.divf %1156, %1157 : vector<2x32xf32>
    %1159 = arith.addf %1145, %1150 : vector<2x32xf32>
    %1160 = arith.negf %1159 : vector<2x32xf32>
    %1161 = math.exp %1160 : vector<2x32xf32>
    %cst_880 = arith.constant 1.000000e+00 : f32
    %1162 = vector.broadcast %cst_880 : f32 to vector<2x32xf32>
    %1163 = arith.addf %1162, %1161 : vector<2x32xf32>
    %1164 = arith.divf %1162, %1163 : vector<2x32xf32>
    %1165 = arith.mulf %1158, %1152 : vector<2x32xf32>
    %1166 = arith.addf %1147, %1165 : vector<2x32xf32>
    %1167 = math.tanh %1166 : vector<2x32xf32>
    %1168 = arith.subf %1141, %1167 : vector<2x32xf32>
    %1169 = arith.mulf %1164, %1168 : vector<2x32xf32>
    %1170 = arith.addf %1167, %1169 : vector<2x32xf32>
    %c0_881 = arith.constant 0 : index
    %c7_882 = arith.constant 7 : index
    %c0_883 = arith.constant 0 : index
    %c0_884 = arith.constant 0 : index
    %1171 = vector.load %arg12[%c0_881, %c7_882, %c0_883, %c0_884] : memref<6x8x2x32xf32, #tpu.memory_space<vmem>>, vector<1x1x2x32xf32>
    %1172 = vector.shape_cast %1171 : vector<1x1x2x32xf32> to vector<2x32xf32>
    %c1_885 = arith.constant 1 : index
    %c7_886 = arith.constant 7 : index
    %c0_887 = arith.constant 0 : index
    %c0_888 = arith.constant 0 : index
    %1173 = vector.load %arg12[%c1_885, %c7_886, %c0_887, %c0_888] : memref<6x8x2x32xf32, #tpu.memory_space<vmem>>, vector<1x1x2x32xf32>
    %1174 = vector.shape_cast %1173 : vector<1x1x2x32xf32> to vector<2x32xf32>
    %c2_889 = arith.constant 2 : index
    %c7_890 = arith.constant 7 : index
    %c0_891 = arith.constant 0 : index
    %c0_892 = arith.constant 0 : index
    %1175 = vector.load %arg12[%c2_889, %c7_890, %c0_891, %c0_892] : memref<6x8x2x32xf32, #tpu.memory_space<vmem>>, vector<1x1x2x32xf32>
    %1176 = vector.shape_cast %1175 : vector<1x1x2x32xf32> to vector<2x32xf32>
    %1177 = arith.truncf %1170 : vector<2x32xf32> to vector<2x32xbf16>
    %cst_893 = arith.constant dense<0.000000e+00> : vector<2x32xf32>
    %1178 = tpu.matmul %1177, %918, %cst_893 {dimension_numbers = #tpu.dot_dimension_numbers<[1], [0], [0], [1], [0, 0, 1, 1], [], []>} : vector<2x32xbf16>, vector<32x32xbf16>, vector<2x32xf32> -> vector<2x32xf32>
    %cst_894 = arith.constant dense<0.000000e+00> : vector<2x32xf32>
    %1179 = tpu.matmul %1177, %920, %cst_894 {dimension_numbers = #tpu.dot_dimension_numbers<[1], [0], [0], [1], [0, 0, 1, 1], [], []>} : vector<2x32xbf16>, vector<32x32xbf16>, vector<2x32xf32> -> vector<2x32xf32>
    %cst_895 = arith.constant dense<0.000000e+00> : vector<2x32xf32>
    %1180 = tpu.matmul %1177, %922, %cst_895 {dimension_numbers = #tpu.dot_dimension_numbers<[1], [0], [0], [1], [0, 0, 1, 1], [], []>} : vector<2x32xbf16>, vector<32x32xbf16>, vector<2x32xf32> -> vector<2x32xf32>
    %1181 = arith.addf %1180, %932 : vector<2x32xf32>
    %1182 = arith.addf %1172, %1178 : vector<2x32xf32>
    %1183 = arith.negf %1182 : vector<2x32xf32>
    %1184 = math.exp %1183 : vector<2x32xf32>
    %cst_896 = arith.constant 1.000000e+00 : f32
    %1185 = vector.broadcast %cst_896 : f32 to vector<2x32xf32>
    %1186 = arith.addf %1185, %1184 : vector<2x32xf32>
    %1187 = arith.divf %1185, %1186 : vector<2x32xf32>
    %1188 = arith.addf %1174, %1179 : vector<2x32xf32>
    %1189 = arith.negf %1188 : vector<2x32xf32>
    %1190 = math.exp %1189 : vector<2x32xf32>
    %cst_897 = arith.constant 1.000000e+00 : f32
    %1191 = vector.broadcast %cst_897 : f32 to vector<2x32xf32>
    %1192 = arith.addf %1191, %1190 : vector<2x32xf32>
    %1193 = arith.divf %1191, %1192 : vector<2x32xf32>
    %1194 = arith.mulf %1187, %1181 : vector<2x32xf32>
    %1195 = arith.addf %1176, %1194 : vector<2x32xf32>
    %1196 = math.tanh %1195 : vector<2x32xf32>
    %1197 = arith.subf %1170, %1196 : vector<2x32xf32>
    %1198 = arith.mulf %1193, %1197 : vector<2x32xf32>
    %1199 = arith.addf %1196, %1198 : vector<2x32xf32>
    %c0_898 = arith.constant 0 : index
    %c0_899 = arith.constant 0 : index
    %1200 = vector.load %arg9[%c0_898, %c0_899] : memref<64x10xf32, #tpu.memory_space<vmem>>, vector<32x10xf32>
    %cst_900 = arith.constant dense<0.000000e+00> : vector<2x10xf32>
    %1201 = tpu.matmul %1199, %1200, %cst_900 {dimension_numbers = #tpu.dot_dimension_numbers<[1], [0], [0], [1], [0, 0, 1, 1], [], []>} : vector<2x32xf32>, vector<32x10xf32>, vector<2x10xf32> -> vector<2x10xf32>
    %c32_901 = arith.constant 32 : index
    %c0_902 = arith.constant 0 : index
    %1202 = vector.load %arg9[%c32_901, %c0_902] : memref<64x10xf32, #tpu.memory_space<vmem>>, vector<32x10xf32>
    %cst_903 = arith.constant dense<0.000000e+00> : vector<2x10xf32>
    %1203 = tpu.matmul %967, %1202, %cst_903 {dimension_numbers = #tpu.dot_dimension_numbers<[1], [0], [0], [1], [0, 0, 1, 1], [], []>} : vector<2x32xf32>, vector<32x10xf32>, vector<2x10xf32> -> vector<2x10xf32>
    %1204 = arith.addf %1201, %1203 : vector<2x10xf32>
    %c0_904 = arith.constant 0 : index
    %c0_905 = arith.constant 0 : index
    %1205 = vector.load %arg10[%c0_904, %c0_905] : memref<1x10xf32, #tpu.memory_space<vmem>>, vector<1x10xf32>
    %1206 = vector.broadcast %1205 : vector<1x10xf32> to vector<2x10xf32>
    %1207 = arith.addf %1204, %1206 : vector<2x10xf32>
    %c0_906 = arith.constant 0 : index
    %c0_907 = arith.constant 0 : index
    %1208 = vector.load %arg11[%c0_906, %c0_907] : memref<2x10xf32, #tpu.memory_space<vmem>>, vector<2x10xf32>
    tpu.vector_store %arg11[%c0_906, %c0_907], %1207 {strides = array<i32>} : memref<2x10xf32, #tpu.memory_space<vmem>>, vector<2x10xf32>,
    return
  }
}

</mosaic_0001>

<llo_original>
// kernel: tpu_custom_call.1
$region0: #{tpu_custom_call.1}
  #allocation0 [shape = 'u32[]', space=smem, size = 0x4, offset = 0x4, fixed_abs, tag = 'smem constant byte address 0x4 - core index']
  #allocation1 [shape = 'u32[144,128]{1,0:T(1,128)}', space=vmem, size = 0x12000, scoped, tag = 'internal scratch']
  #allocation2 [shape = 'f32[6,8,2,32]{3,2,1,0:T(2,128)}', space=vmem, size = 0xc000, scoped, tag = 'scratch operand']
  #allocation3 [shape = 'f32[16,32]{1,0:T(8,128)}', space=vmem, size = 0x2000, scoped, tag = 'scratch operand']
  #allocation4 [shape = 'f32[16,32]{1,0:T(8,128)}', space=vmem, size = 0x2000, scoped, tag = 'scratch operand']
  %s0 = inlined_call_operand.hbm [shape: f32[16,16], index: 0, kind: input, shape index: {}]
  %s1 = inlined_call_operand.hbm [shape: bf16[16,192], index: 1, kind: input, shape index: {}]
  %s2 = inlined_call_operand.vmem [shape: f32[1,192], index: 2, kind: input, shape index: {}]
  %s3 = inlined_call_operand.hbm [shape: bf16[6,32,32], index: 3, kind: input, shape index: {}]
  %s4 = inlined_call_operand.hbm [shape: f32[2,1,32], index: 4, kind: input, shape index: {}]
  %s5 = inlined_call_operand.hbm [shape: bf16[64,192], index: 5, kind: input, shape index: {}]
  %s6 = inlined_call_operand.hbm [shape: f32[1,192], index: 6, kind: input, shape index: {}]
  %s7 = inlined_call_operand.vmem [shape: bf16[6,32,32], index: 7, kind: input, shape index: {}]
  %s8 = inlined_call_operand.hbm [shape: f32[2,1,32], index: 8, kind: input, shape index: {}]
  %s9 = inlined_call_operand.vmem [shape: f32[64,10], index: 9, kind: input, shape index: {}]
  %s10 = inlined_call_operand.vmem [shape: f32[1,10], index: 10, kind: input, shape index: {}]
  %s11 = inlined_call_operand.hbm [shape: f32[2,10], index: 11, kind: output, shape index: {}]
  %s12 = sld [smem:[#allocation0]]
  $region82: #{tpu_custom_call.1} parent=0
    _
  %s14 = ssub.s32 1, %s12
  %s15 = scalar_select 0, %s14, %s12
  $region1: #{tpu_custom_call.1} parent=0
    #allocation5 [shape = 'u8[8192]{0}', space=vmem, size = 0x2000, scoped, tag = 'input window, operand 0, single buffered']
    #allocation6 [shape = 's32[1]{0}', space=sflag, size = 0x4, scoped, tag = 'scoped memory for tpu_custom_call.1']
    #allocation7 [shape = 's32[1]{0}', space=sflag, size = 0x4, scoped, tag = 'scoped memory for tpu_custom_call.1']
    #allocation8 [shape = 'u8[8192]{0}', space=vmem, size = 0x2000, scoped, tag = 'input window, operand 1, single buffered']
    #allocation9 [shape = 's32[1]{0}', space=sflag, size = 0x4, scoped, tag = 'scoped memory for tpu_custom_call.1']
    #allocation10 [shape = 'u8[49152]{0}', space=vmem, size = 0xc000, scoped, tag = 'input window, operand 3, single buffered']
    #allocation11 [shape = 'u8[1024]{0}', space=vmem, size = 0x400, scoped, tag = 'input window, operand 4, single buffered']
    #allocation12 [shape = 's32[1]{0}', space=sflag, size = 0x4, scoped, tag = 'scoped memory for tpu_custom_call.1']
    #allocation13 [shape = 'u8[32768]{0}', space=vmem, size = 0x8000, scoped, tag = 'input window, operand 5, single buffered']
    #allocation14 [shape = 'u8[1024]{0}', space=vmem, size = 0x400, scoped, tag = 'input window, operand 6, single buffered']
    #allocation15 [shape = 's32[1]{0}', space=sflag, size = 0x4, scoped, tag = 'scoped memory for tpu_custom_call.1']
    #allocation16 [shape = 'u8[1024]{0}', space=vmem, size = 0x400, scoped, tag = 'input window, operand 8, single buffered']
    #allocation17 [shape = 'u8[1024]{0}', space=vmem, size = 0x400, scoped, tag = 'output window, operand 0, single buffered']
    %16 = vsyncpa [#allocation6], 0
    %17 = vsyncpa [#allocation9], 0
    %18 = vsyncpa [#allocation12], 0
    %19 = vsyncpa [#allocation15], 0
    %20 = vsyncpa [#allocation7], 0
    // Predicated region
    $region2: #{tpu_custom_call.1} parent=1 // pred_check
      _
    $region3: #{tpu_custom_call.1} parent=1 // pred_check_branch
      %22 = sbr.rel (0) target = $region5
    $region4: #{tpu_custom_call.1} parent=1 // pred_region
      %s24 = ssub.s32 256, 256
      %25 = vsyncadd [#allocation6], %s24
      %s26 = sshll.u32 [#allocation5], 4
      %s27 = int_to_ptr.vmem [resolvable:$true] %s26
      %32 = dma.hbm_to_vmem [thread:$0]  %s0, 256, %s27, [#allocation6], 128, 128, 8
    $region5: #{tpu_custom_call.1} parent=1 // pred_fallthru
      _
    // Predicated region
    $region6: #{tpu_custom_call.1} parent=1 // pred_check
      _
    $region7: #{tpu_custom_call.1} parent=1 // pred_check_branch
      %34 = sbr.rel (0) target = $region9
    $region8: #{tpu_custom_call.1} parent=1 // pred_region
      %s36 = ssub.s32 256, 256
      %37 = vsyncadd [#allocation9], %s36
      %s38 = sshll.u32 [#allocation8], 4
      %s39 = int_to_ptr.vmem [resolvable:$true] %s38
      %44 = dma.hbm_to_vmem [thread:$0]  %s1, 256, %s39, [#allocation9], 128, 128, 8
    $region9: #{tpu_custom_call.1} parent=1 // pred_fallthru
      _
    // Predicated region
    $region10: #{tpu_custom_call.1} parent=1 // pred_check
      _
    $region11: #{tpu_custom_call.1} parent=1 // pred_check_branch
      %46 = sbr.rel (0) target = $region13
    $region12: #{tpu_custom_call.1} parent=1 // pred_region
      _
    $region13: #{tpu_custom_call.1} parent=1 // pred_fallthru
      _
    // Predicated region
    $region14: #{tpu_custom_call.1} parent=1 // pred_check
      _
    $region15: #{tpu_custom_call.1} parent=1 // pred_check_branch
      %48 = sbr.rel (0) target = $region17
    $region16: #{tpu_custom_call.1} parent=1 // pred_region
      %s50 = ssub.s32 1536, 1536
      %51 = vsyncadd [#allocation9], %s50
      %s52 = sshll.u32 [#allocation10], 4
      %s53 = int_to_ptr.vmem [resolvable:$true] %s52
      %58 = dma.hbm_to_vmem [thread:$0]  %s3, 1536, %s53, [#allocation9], 64, 64, 4
    $region17: #{tpu_custom_call.1} parent=1 // pred_fallthru
      _
    // Predicated region
    $region18: #{tpu_custom_call.1} parent=1 // pred_check
      _
    $region19: #{tpu_custom_call.1} parent=1 // pred_check_branch
      %60 = sbr.rel (0) target = $region21
    $region20: #{tpu_custom_call.1} parent=1 // pred_region
      %s62 = ssub.s32 32, 32
      %63 = vsyncadd [#allocation12], %s62
      %s64 = sshll.u32 [#allocation11], 4
      %s65 = int_to_ptr.vmem [resolvable:$true] %s64
      %70 = dma.hbm_to_vmem [thread:$0]  %s4, 32, %s65, [#allocation12], 16, 16, 1
    $region21: #{tpu_custom_call.1} parent=1 // pred_fallthru
      _
    // Predicated region
    $region22: #{tpu_custom_call.1} parent=1 // pred_check
      _
    $region23: #{tpu_custom_call.1} parent=1 // pred_check_branch
      %72 = sbr.rel (0) target = $region25
    $region24: #{tpu_custom_call.1} parent=1 // pred_region
      %s74 = ssub.s32 1024, 1024
      %75 = vsyncadd [#allocation12], %s74
      %s76 = sshll.u32 [#allocation13], 4
      %s77 = int_to_ptr.vmem [resolvable:$true] %s76
      %82 = dma.hbm_to_vmem [thread:$0]  %s5, 1024, %s77, [#allocation12], 128, 128, 8
    $region25: #{tpu_custom_call.1} parent=1 // pred_fallthru
      _
    // Predicated region
    $region26: #{tpu_custom_call.1} parent=1 // pred_check
      _
    $region27: #{tpu_custom_call.1} parent=1 // pred_check_branch
      %84 = sbr.rel (0) target = $region29
    $region28: #{tpu_custom_call.1} parent=1 // pred_region
      %s86 = ssub.s32 32, 32
      %87 = vsyncadd [#allocation15], %s86
      %s89 = sshll.u32 [#allocation14], 4
      %s90 = int_to_ptr.vmem [resolvable:$true] %s89
      %92 = dma.hbm_to_vmem [thread:$0]  %s6, 32, %s90, [#allocation15]
    $region29: #{tpu_custom_call.1} parent=1 // pred_fallthru
      _
    // Predicated region
    $region30: #{tpu_custom_call.1} parent=1 // pred_check
      _
    $region31: #{tpu_custom_call.1} parent=1 // pred_check_branch
      %94 = sbr.rel (0) target = $region33
    $region32: #{tpu_custom_call.1} parent=1 // pred_region
      _
    $region33: #{tpu_custom_call.1} parent=1 // pred_fallthru
      _
    // Predicated region
    $region34: #{tpu_custom_call.1} parent=1 // pred_check
      _
    $region35: #{tpu_custom_call.1} parent=1 // pred_check_branch
      %96 = sbr.rel (0) target = $region37
    $region36: #{tpu_custom_call.1} parent=1 // pred_region
      %s98 = ssub.s32 32, 32
      %99 = vsyncadd [#allocation15], %s98
      %s100 = sshll.u32 [#allocation16], 4
      %s101 = int_to_ptr.vmem [resolvable:$true] %s100
      %106 = dma.hbm_to_vmem [thread:$0]  %s8, 32, %s101, [#allocation15], 16, 16, 1
    $region37: #{tpu_custom_call.1} parent=1 // pred_fallthru
      _
    // Predicated region
    $region38: #{tpu_custom_call.1} parent=1 // pred_check
      _
    $region39: #{tpu_custom_call.1} parent=1 // pred_check_branch
      %108 = sbr.rel (0) target = $region41
    $region40: #{tpu_custom_call.1} parent=1 // pred_region
      _
    $region41: #{tpu_custom_call.1} parent=1 // pred_fallthru
      _
    // Predicated region
    $region42: #{tpu_custom_call.1} parent=1 // pred_check
      _
    $region43: #{tpu_custom_call.1} parent=1 // pred_check_branch
      %110 = sbr.rel (0) target = $region45
    $region44: #{tpu_custom_call.1} parent=1 // pred_region
      _
    $region45: #{tpu_custom_call.1} parent=1 // pred_fallthru
      _
    // Predicated region
    $region46: #{tpu_custom_call.1} parent=1 // pred_check
      _
    $region47: #{tpu_custom_call.1} parent=1 // pred_check_branch
      %112 = sbr.rel (0) target = $region49
    $region48: #{tpu_custom_call.1} parent=1 // pred_region
      %113 = dma.done [#allocation6], 256
    $region49: #{tpu_custom_call.1} parent=1 // pred_fallthru
      _
    // Predicated region
    $region50: #{tpu_custom_call.1} parent=1 // pred_check
      _
    $region51: #{tpu_custom_call.1} parent=1 // pred_check_branch
      %115 = sbr.rel (0) target = $region53
    $region52: #{tpu_custom_call.1} parent=1 // pred_region
      %116 = dma.done [#allocation9], 256
    $region53: #{tpu_custom_call.1} parent=1 // pred_fallthru
      _
    // Predicated region
    $region54: #{tpu_custom_call.1} parent=1 // pred_check
      _
    $region55: #{tpu_custom_call.1} parent=1 // pred_check_branch
      %118 = sbr.rel (0) target = $region57
    $region56: #{tpu_custom_call.1} parent=1 // pred_region
      %119 = dma.done [#allocation9], 1536
    $region57: #{tpu_custom_call.1} parent=1 // pred_fallthru
      _
    // Predicated region
    $region58: #{tpu_custom_call.1} parent=1 // pred_check
      _
    $region59: #{tpu_custom_call.1} parent=1 // pred_check_branch
      %121 = sbr.rel (0) target = $region61
    $region60: #{tpu_custom_call.1} parent=1 // pred_region
      %122 = dma.done [#allocation12], 32
    $region61: #{tpu_custom_call.1} parent=1 // pred_fallthru
      _
    // Predicated region
    $region62: #{tpu_custom_call.1} parent=1 // pred_check
      _
    $region63: #{tpu_custom_call.1} parent=1 // pred_check_branch
      %124 = sbr.rel (0) target = $region65
    $region64: #{tpu_custom_call.1} parent=1 // pred_region
      %125 = dma.done [#allocation12], 1024
    $region65: #{tpu_custom_call.1} parent=1 // pred_fallthru
      _
    // Predicated region
    $region66: #{tpu_custom_call.1} parent=1 // pred_check
      _
    $region67: #{tpu_custom_call.1} parent=1 // pred_check_branch
      %127 = sbr.rel (0) target = $region69
    $region68: #{tpu_custom_call.1} parent=1 // pred_region
      %128 = dma.done [#allocation15], 32
    $region69: #{tpu_custom_call.1} parent=1 // pred_fallthru
      _
    // Predicated region
    $region70: #{tpu_custom_call.1} parent=1 // pred_check
      _
    $region71: #{tpu_custom_call.1} parent=1 // pred_check_branch
      %130 = sbr.rel (0) target = $region73
    $region72: #{tpu_custom_call.1} parent=1 // pred_region
      %131 = dma.done [#allocation15], 32
    $region73: #{tpu_custom_call.1} parent=1 // pred_fallthru
      _
    %v133 = vld [vmem:[#allocation5] sm:$0xff]
    %v134 = vld [vmem:[#allocation5 + $0x8] sm:$0xff]
    %v135 = vpack.c.bf16 %v134, %v133
    %v136 = vld [vmem:[#allocation8] sm:$0xff]
    %v137 = vld [vmem:[#allocation8 + $0x8] sm:$0xff]
    %v138 = vld [vmem:[%s2] sm:$0x3]
    %v140 = vlaneseq
    %v141 = vshrl.u32 %v140, 7
    %v142 = vsub.s32 0, %v141
    %v143 = vrot.slane %v138, %v142
    %v144 = vlaneseq
    %v145 = vshrl.u32 %v144, 7
    %v146 = vsub.s32 1, %v145
    %v147 = vrot.slane %v138, %v146
    %v152 = vunpack.c.l.b16 %v136
    %v153 = vunpack.c.h.b16 %v136
    %v154 = vunpack.c.l.b16 %v137
    %v155 = vunpack.c.h.b16 %v137
    %v156 = vpack.c.b16 %v154, %v152
    %v157 = vpack.c.b16 %v155, %v153
    %vm160 = vcmask 130048
    %v162 = vsel %vm160, %v135, 0
    %164 = vmatprep.subr.bf16.mxu0 %v157
    %165 = vmatpush1.bf16.msra.mxu0 %v156
    %166 = vmatprep.subr.bf16.mxu0 0
    %167 = vmatpush1.bf16.msra.mxu0 0
    %168 = vmatprep.subr.bf16.mxu0 0
    %169 = vmatpush1.bf16.msra.mxu0 0
    %170 = vmatprep.subr.bf16.mxu0 0
    %171 = vmatpush1.bf16.msra.mxu0 0
    %172 = vmatprep.subr.bf16.mxu0 0
    %173 = vmatpush1.bf16.msra.mxu0 0
    %174 = vmatprep.subr.bf16.mxu0 0
    %175 = vmatpush1.bf16.msra.mxu0 0
    %176 = vmatprep.subr.bf16.mxu0 0
    %177 = vmatpush1.bf16.msra.mxu0 0
    %178 = vmatprep.subr.bf16.mxu0 0
    %179 = vmatpush1.bf16.msra.mxu0 0
    %180 = vmatprep.subr.bf16.mxu0 0
    %181 = vmatpush1.bf16.msra.mxu0 0
    %182 = vmatprep.subr.bf16.mxu0 0
    %183 = vmatpush1.bf16.msra.mxu0 0
    %184 = vmatprep.subr.bf16.mxu0 0
    %185 = vmatpush1.bf16.msra.mxu0 0
    %186 = vmatprep.subr.bf16.mxu0 0
    %187 = vmatpush1.bf16.msra.mxu0 0
    %188 = vmatprep.subr.bf16.mxu0 0
    %189 = vmatpush1.bf16.msra.mxu0 0
    %190 = vmatprep.subr.bf16.mxu0 0
    %191 = vmatpush1.bf16.msra.mxu0 0
    %192 = vmatprep.subr.bf16.mxu0 0
    %193 = vmatpush1.bf16.msra.mxu0 0
    %194 = vmatprep.subr.bf16.mxu0 0
    %195 = vmatpush1.bf16.msra.mxu0 0
    %196 = vmatprep.mubr.bf16.mxu0 0
    %197 = vmatmul.mubr.bf16.gmra.mrb[0].mxu0 %v162
    %v198 = vpop.f32.mrb[0].mxu0
    %v199 = vadd.f32 %v143, %v198
    %v200 = vpop.f32.mrb[0].mxu0
    %v201 = vadd.f32 %v147, %v200
    %v202 = vpop.f32.mrb[0].mxu0
    %v203 = vadd.f32 %v143, %v202
    %v204 = vpop.f32.mrb[0].mxu0
    %v205 = vadd.f32 %v147, %v204
    %206 = vdwg.mxu0
    %vm207 = vcmask 254976
    %208 = vst.msk [vmem:[#allocation2] sm:$0x3] %vm207, %v199
    %s209 = scalar_lea.vmem [#allocation2], 2
    %vm210 = vcmask 257026
    %211 = vst.msk [vmem:[%s209 - $0x2] sm:$0xc] %vm210, %v199
    %s212 = scalar_lea.vmem [#allocation2], 4
    %vm213 = vcmask 259076
    %214 = vst.msk [vmem:[%s212 - $0x4] sm:$0x30] %vm213, %v199
    %s215 = scalar_lea.vmem [#allocation2], 6
    %vm216 = vcmask 261126
    %217 = vst.msk [vmem:[%s215 - $0x6] sm:$0xc0] %vm216, %v199
    %s218 = scalar_lea.vmem [#allocation2], 8
    %219 = vst.msk [vmem:[%s218] sm:$0x3] %vm207, %v203
    %s220 = scalar_lea.vmem [#allocation2], 10
    %221 = vst.msk [vmem:[%s220 - $0x2] sm:$0xc] %vm210, %v203
    %s222 = scalar_lea.vmem [#allocation2], 12
    %223 = vst.msk [vmem:[%s222 - $0x4] sm:$0x30] %vm213, %v203
    %s224 = scalar_lea.vmem [#allocation2], 14
    %225 = vst.msk [vmem:[%s224 - $0x6] sm:$0xc0] %vm216, %v203
    %227 = vrot.lane.b32.xlu0 %v199, 96
    %v228 = vpop.permute.xlu0 %227
    %s230 = scalar_lea.vmem [#allocation2], 16
    %231 = vst.msk [vmem:[%s230] sm:$0x3] %vm207, %v228
    %s232 = scalar_lea.vmem [#allocation2], 18
    %233 = vst.msk [vmem:[%s232 - $0x2] sm:$0xc] %vm210, %v228
    %s234 = scalar_lea.vmem [#allocation2], 20
    %235 = vst.msk [vmem:[%s234 - $0x4] sm:$0x30] %vm213, %v228
    %s236 = scalar_lea.vmem [#allocation2], 22
    %237 = vst.msk [vmem:[%s236 - $0x6] sm:$0xc0] %vm216, %v228
    %239 = vrot.lane.b32.xlu0 %v203, 96
    %v240 = vpop.permute.xlu0 %239
    %s242 = scalar_lea.vmem [#allocation2], 24
    %243 = vst.msk [vmem:[%s242] sm:$0x3] %vm207, %v240
    %s244 = scalar_lea.vmem [#allocation2], 26
    %245 = vst.msk [vmem:[%s244 - $0x2] sm:$0xc] %vm210, %v240
    %s246 = scalar_lea.vmem [#allocation2], 28
    %247 = vst.msk [vmem:[%s246 - $0x4] sm:$0x30] %vm213, %v240
    %s248 = scalar_lea.vmem [#allocation2], 30
    %249 = vst.msk [vmem:[%s248 - $0x6] sm:$0xc0] %vm216, %v240
    %250 = vrot.lane.b32.xlu0 %v199, 64
    %v251 = vpop.permute.xlu0 %250
    %s253 = scalar_lea.vmem [#allocation2], 32
    %254 = vst.msk [vmem:[%s253] sm:$0x3] %vm207, %v251
    %s255 = scalar_lea.vmem [#allocation2], 34
    %256 = vst.msk [vmem:[%s255 - $0x2] sm:$0xc] %vm210, %v251
    %s257 = scalar_lea.vmem [#allocation2], 36
    %258 = vst.msk [vmem:[%s257 - $0x4] sm:$0x30] %vm213, %v251
    %s259 = scalar_lea.vmem [#allocation2], 38
    %260 = vst.msk [vmem:[%s259 - $0x6] sm:$0xc0] %vm216, %v251
    %261 = vrot.lane.b32.xlu0 %v203, 64
    %v262 = vpop.permute.xlu0 %261
    %s264 = scalar_lea.vmem [#allocation2], 40
    %265 = vst.msk [vmem:[%s264] sm:$0x3] %vm207, %v262
    %s266 = scalar_lea.vmem [#allocation2], 42
    %267 = vst.msk [vmem:[%s266 - $0x2] sm:$0xc] %vm210, %v262
    %s268 = scalar_lea.vmem [#allocation2], 44
    %269 = vst.msk [vmem:[%s268 - $0x4] sm:$0x30] %vm213, %v262
    %s270 = scalar_lea.vmem [#allocation2], 46
    %271 = vst.msk [vmem:[%s270 - $0x6] sm:$0xc0] %vm216, %v262
    %272 = vrot.lane.b32.xlu0 %v199, 32
    %v273 = vpop.permute.xlu0 %272
    %s275 = scalar_lea.vmem [#allocation2], 48
    %276 = vst.msk [vmem:[%s275] sm:$0x3] %vm207, %v273
    %s277 = scalar_lea.vmem [#allocation2], 50
    %278 = vst.msk [vmem:[%s277 - $0x2] sm:$0xc] %vm210, %v273
    %s279 = scalar_lea.vmem [#allocation2], 52
    %280 = vst.msk [vmem:[%s279 - $0x4] sm:$0x30] %vm213, %v273
    %s281 = scalar_lea.vmem [#allocation2], 54
    %282 = vst.msk [vmem:[%s281 - $0x6] sm:$0xc0] %vm216, %v273
    %283 = vrot.lane.b32.xlu0 %v203, 32
    %v284 = vpop.permute.xlu0 %283
    %s286 = scalar_lea.vmem [#allocation2], 56
    %287 = vst.msk [vmem:[%s286] sm:$0x3] %vm207, %v284
    %s288 = scalar_lea.vmem [#allocation2], 58
    %289 = vst.msk [vmem:[%s288 - $0x2] sm:$0xc] %vm210, %v284
    %s290 = scalar_lea.vmem [#allocation2], 60
    %291 = vst.msk [vmem:[%s290 - $0x4] sm:$0x30] %vm213, %v284
    %s292 = scalar_lea.vmem [#allocation2], 62
    %293 = vst.msk [vmem:[%s292 - $0x6] sm:$0xc0] %vm216, %v284
    %s294 = scalar_lea.vmem [#allocation2], 64
    %295 = vst.msk [vmem:[%s294] sm:$0x3] %vm207, %v201
    %s296 = scalar_lea.vmem [#allocation2], 66
    %297 = vst.msk [vmem:[%s296 - $0x2] sm:$0xc] %vm210, %v201
    %s298 = scalar_lea.vmem [#allocation2], 68
    %299 = vst.msk [vmem:[%s298 - $0x4] sm:$0x30] %vm213, %v201
    %s300 = scalar_lea.vmem [#allocation2], 70
    %301 = vst.msk [vmem:[%s300 - $0x6] sm:$0xc0] %vm216, %v201
    %s302 = scalar_lea.vmem [#allocation2], 72
    %303 = vst.msk [vmem:[%s302] sm:$0x3] %vm207, %v205
    %s304 = scalar_lea.vmem [#allocation2], 74
    %305 = vst.msk [vmem:[%s304 - $0x2] sm:$0xc] %vm210, %v205
    %s306 = scalar_lea.vmem [#allocation2], 76
    %307 = vst.msk [vmem:[%s306 - $0x4] sm:$0x30] %vm213, %v205
    %s308 = scalar_lea.vmem [#allocation2], 78
    %309 = vst.msk [vmem:[%s308 - $0x6] sm:$0xc0] %vm216, %v205
    %311 = vrot.lane.b32.xlu0 %v201, 96
    %v312 = vpop.permute.xlu0 %311
    %s314 = scalar_lea.vmem [#allocation2], 80
    %315 = vst.msk [vmem:[%s314] sm:$0x3] %vm207, %v312
    %s316 = scalar_lea.vmem [#allocation2], 82
    %317 = vst.msk [vmem:[%s316 - $0x2] sm:$0xc] %vm210, %v312
    %s318 = scalar_lea.vmem [#allocation2], 84
    %319 = vst.msk [vmem:[%s318 - $0x4] sm:$0x30] %vm213, %v312
    %s320 = scalar_lea.vmem [#allocation2], 86
    %321 = vst.msk [vmem:[%s320 - $0x6] sm:$0xc0] %vm216, %v312
    %323 = vrot.lane.b32.xlu0 %v205, 96
    %v324 = vpop.permute.xlu0 %323
    %s326 = scalar_lea.vmem [#allocation2], 88
    %327 = vst.msk [vmem:[%s326] sm:$0x3] %vm207, %v324
    %s328 = scalar_lea.vmem [#allocation2], 90
    %329 = vst.msk [vmem:[%s328 - $0x2] sm:$0xc] %vm210, %v324
    %s330 = scalar_lea.vmem [#allocation2], 92
    %331 = vst.msk [vmem:[%s330 - $0x4] sm:$0x30] %vm213, %v324
    %s332 = scalar_lea.vmem [#allocation2], 94
    %333 = vst.msk [vmem:[%s332 - $0x6] sm:$0xc0] %vm216, %v324
    %v334 = vld [vmem:[#allocation10] sm:$0xf]
    %v335 = vld [vmem:[#allocation10 + $0x4] sm:$0xf]
    %v336 = vld [vmem:[#allocation10 + $0x8] sm:$0xf]
    %v337 = vld [vmem:[#allocation10 + $0xc] sm:$0xf]
    %s338 = scalar_lea.vmem [#allocation10], 16
    %v339 = vld [vmem:[%s338] sm:$0xf]
    %v340 = vld [vmem:[%s338 + $0x4] sm:$0xf]
    %v341 = vld [vmem:[%s338 + $0x8] sm:$0xf]
    %v342 = vld [vmem:[%s338 + $0xc] sm:$0xf]
    %s343 = scalar_lea.vmem [#allocation10], 32
    %v344 = vld [vmem:[%s343] sm:$0xf]
    %v345 = vld [vmem:[%s343 + $0x4] sm:$0xf]
    %v346 = vld [vmem:[%s343 + $0x8] sm:$0xf]
    %v347 = vld [vmem:[%s343 + $0xc] sm:$0xf]
    %s348 = scalar_lea.vmem [#allocation10], 48
    %v349 = vld [vmem:[%s348] sm:$0xf]
    %v350 = vld [vmem:[%s348 + $0x4] sm:$0xf]
    %v351 = vld [vmem:[%s348 + $0x8] sm:$0xf]
    %v352 = vld [vmem:[%s348 + $0xc] sm:$0xf]
    %s353 = scalar_lea.vmem [#allocation10], 64
    %v354 = vld [vmem:[%s353] sm:$0xf]
    %v355 = vld [vmem:[%s353 + $0x4] sm:$0xf]
    %v356 = vld [vmem:[%s353 + $0x8] sm:$0xf]
    %v357 = vld [vmem:[%s353 + $0xc] sm:$0xf]
    %s358 = scalar_lea.vmem [#allocation10], 80
    %v359 = vld [vmem:[%s358] sm:$0xf]
    %v360 = vld [vmem:[%s358 + $0x4] sm:$0xf]
    %v361 = vld [vmem:[%s358 + $0x8] sm:$0xf]
    %v362 = vld [vmem:[%s358 + $0xc] sm:$0xf]
    %v363 = vld [vmem:[#allocation11] sm:$0x1]
    %v365 = vlaneseq
    %v366 = vshrl.u32 %v365, 7
    %v367 = vsub.s32 0, %v366
    %v368 = vrot.slane %v363, %v367
    %s370 = scalar_lea.vmem [#allocation11], 1
    %v371 = vld [vmem:[%s370] sm:$0x1]
    %v373 = vlaneseq
    %v374 = vshrl.u32 %v373, 7
    %v375 = vsub.s32 0, %v374
    %v376 = vrot.slane %v371, %v375
    %v378 = vld [vmem:[#allocation2] sm:$0x3]
    %v379 = vld [vmem:[%s230] sm:$0x3]
    %v380 = vld [vmem:[%s253] sm:$0x3]
    %v385 = vunpack.c.l.b16 %v334
    %v386 = vunpack.c.l.b16 %v335
    %v387 = vunpack.c.l.b16 %v336
    %v388 = vunpack.c.l.b16 %v337
    %v389 = vpack.c.b16 %v386, %v385
    %v390 = vpack.c.b16 %v388, %v387
    %vm393 = vcmask 261120
    %v395 = vsel %vm393, 0, 0
    %397 = vmatprep.subr.bf16.mxu0 0
    %398 = vmatpush1.bf16.msra.mxu0 %v389
    %399 = vmatprep.subr.bf16.mxu0 0
    %400 = vmatpush1.bf16.msra.mxu0 %v390
    %401 = vmatprep.subr.bf16.mxu0 0
    %402 = vmatpush1.bf16.msra.mxu0 0
    %403 = vmatprep.subr.bf16.mxu0 0
    %404 = vmatpush1.bf16.msra.mxu0 0
    %405 = vmatprep.subr.bf16.mxu0 0
    %406 = vmatpush1.bf16.msra.mxu0 0
    %407 = vmatprep.subr.bf16.mxu0 0
    %408 = vmatpush1.bf16.msra.mxu0 0
    %409 = vmatprep.subr.bf16.mxu0 0
    %410 = vmatpush1.bf16.msra.mxu0 0
    %411 = vmatprep.subr.bf16.mxu0 0
    %412 = vmatpush1.bf16.msra.mxu0 0
    %413 = vmatprep.subr.bf16.mxu0 0
    %414 = vmatpush1.bf16.msra.mxu0 0
    %415 = vmatprep.subr.bf16.mxu0 0
    %416 = vmatpush1.bf16.msra.mxu0 0
    %417 = vmatprep.subr.bf16.mxu0 0
    %418 = vmatpush1.bf16.msra.mxu0 0
    %419 = vmatprep.subr.bf16.mxu0 0
    %420 = vmatpush1.bf16.msra.mxu0 0
    %421 = vmatprep.subr.bf16.mxu0 0
    %422 = vmatpush1.bf16.msra.mxu0 0
    %423 = vmatprep.subr.bf16.mxu0 0
    %424 = vmatpush1.bf16.msra.mxu0 0
    %425 = vmatprep.subr.bf16.mxu0 0
    %426 = vmatpush1.bf16.msra.mxu0 0
    %427 = vmatprep.subr.bf16.mxu0 0
    %428 = vmatpush1.bf16.msra.mxu0 0
    %429 = vmatprep.mubr.bf16.mxu0 0
    %430 = vmatmul.mubr.bf16.gmra.mrb[0].mxu0 %v395
    %v431 = vpop.f32.mrb[0].mxu0
    %v432 = vadd.f32 0.0, %v431
    %v433 = vpop.f32.mrb[0].mxu0
    %v434 = vpop.f32.mrb[0].mxu0
    %v435 = vpop.f32.mrb[0].mxu0
    %436 = vdwg.mxu0
    %v441 = vunpack.c.l.b16 %v339
    %v442 = vunpack.c.l.b16 %v340
    %v443 = vunpack.c.l.b16 %v341
    %v444 = vunpack.c.l.b16 %v342
    %v445 = vpack.c.b16 %v442, %v441
    %v446 = vpack.c.b16 %v444, %v443
    %449 = vmatprep.subr.bf16.mxu0 0
    %450 = vmatpush1.bf16.msra.mxu0 %v445
    %451 = vmatprep.subr.bf16.mxu0 0
    %452 = vmatpush1.bf16.msra.mxu0 %v446
    %453 = vmatprep.subr.bf16.mxu0 0
    %454 = vmatpush1.bf16.msra.mxu0 0
    %455 = vmatprep.subr.bf16.mxu0 0
    %456 = vmatpush1.bf16.msra.mxu0 0
    %457 = vmatprep.subr.bf16.mxu0 0
    %458 = vmatpush1.bf16.msra.mxu0 0
    %459 = vmatprep.subr.bf16.mxu0 0
    %460 = vmatpush1.bf16.msra.mxu0 0
    %461 = vmatprep.subr.bf16.mxu0 0
    %462 = vmatpush1.bf16.msra.mxu0 0
    %463 = vmatprep.subr.bf16.mxu0 0
    %464 = vmatpush1.bf16.msra.mxu0 0
    %465 = vmatprep.subr.bf16.mxu0 0
    %466 = vmatpush1.bf16.msra.mxu0 0
    %467 = vmatprep.subr.bf16.mxu0 0
    %468 = vmatpush1.bf16.msra.mxu0 0
    %469 = vmatprep.subr.bf16.mxu0 0
    %470 = vmatpush1.bf16.msra.mxu0 0
    %471 = vmatprep.subr.bf16.mxu0 0
    %472 = vmatpush1.bf16.msra.mxu0 0
    %473 = vmatprep.subr.bf16.mxu0 0
    %474 = vmatpush1.bf16.msra.mxu0 0
    %475 = vmatprep.subr.bf16.mxu0 0
    %476 = vmatpush1.bf16.msra.mxu0 0
    %477 = vmatprep.subr.bf16.mxu0 0
    %478 = vmatpush1.bf16.msra.mxu0 0
    %479 = vmatprep.subr.bf16.mxu0 0
    %480 = vmatpush1.bf16.msra.mxu0 0
    %481 = vmatprep.mubr.bf16.mxu0 0
    %482 = vmatmul.mubr.bf16.gmra.mrb[0].mxu0 %v395
    %v483 = vpop.f32.mrb[0].mxu0
    %v484 = vadd.f32 0.0, %v483
    %v485 = vpop.f32.mrb[0].mxu0
    %v486 = vpop.f32.mrb[0].mxu0
    %v487 = vpop.f32.mrb[0].mxu0
    %488 = vdwg.mxu0
    %v493 = vunpack.c.l.b16 %v344
    %v494 = vunpack.c.l.b16 %v345
    %v495 = vunpack.c.l.b16 %v346
    %v496 = vunpack.c.l.b16 %v347
    %v497 = vpack.c.b16 %v494, %v493
    %v498 = vpack.c.b16 %v496, %v495
    %501 = vmatprep.subr.bf16.mxu0 0
    %502 = vmatpush1.bf16.msra.mxu0 %v497
    %503 = vmatprep.subr.bf16.mxu0 0
    %504 = vmatpush1.bf16.msra.mxu0 %v498
    %505 = vmatprep.subr.bf16.mxu0 0
    %506 = vmatpush1.bf16.msra.mxu0 0
    %507 = vmatprep.subr.bf16.mxu0 0
    %508 = vmatpush1.bf16.msra.mxu0 0
    %509 = vmatprep.subr.bf16.mxu0 0
    %510 = vmatpush1.bf16.msra.mxu0 0
    %511 = vmatprep.subr.bf16.mxu0 0
    %512 = vmatpush1.bf16.msra.mxu0 0
    %513 = vmatprep.subr.bf16.mxu0 0
    %514 = vmatpush1.bf16.msra.mxu0 0
    %515 = vmatprep.subr.bf16.mxu0 0
    %516 = vmatpush1.bf16.msra.mxu0 0
    %517 = vmatprep.subr.bf16.mxu0 0
    %518 = vmatpush1.bf16.msra.mxu0 0
    %519 = vmatprep.subr.bf16.mxu0 0
    %520 = vmatpush1.bf16.msra.mxu0 0
    %521 = vmatprep.subr.bf16.mxu0 0
    %522 = vmatpush1.bf16.msra.mxu0 0
    %523 = vmatprep.subr.bf16.mxu0 0
    %524 = vmatpush1.bf16.msra.mxu0 0
    %525 = vmatprep.subr.bf16.mxu0 0
    %526 = vmatpush1.bf16.msra.mxu0 0
    %527 = vmatprep.subr.bf16.mxu0 0
    %528 = vmatpush1.bf16.msra.mxu0 0
    %529 = vmatprep.subr.bf16.mxu0 0
    %530 = vmatpush1.bf16.msra.mxu0 0
    %531 = vmatprep.subr.bf16.mxu0 0
    %532 = vmatpush1.bf16.msra.mxu0 0
    %533 = vmatprep.mubr.bf16.mxu0 0
    %534 = vmatmul.mubr.bf16.gmra.mrb[0].mxu0 %v395
    %v535 = vpop.f32.mrb[0].mxu0
    %v536 = vadd.f32 %v368, %v535
    %v537 = vpop.f32.mrb[0].mxu0
    %v538 = vpop.f32.mrb[0].mxu0
    %v539 = vpop.f32.mrb[0].mxu0
    %540 = vdwg.mxu0
    %v541 = vadd.f32 %v378, %v432
    %v542 = vxor.u32 %v541, 2147483648
    %v543 = vmul.f32 %v542, 1.442695
    %v544 = vpow.pop %v543
    %v545 = vadd.f32 %v544, 1.0
    %v546 = vrcp.pop %v545
    %v547 = vmul.f32 1.0, %v546
    %v548 = vadd.f32 %v379, %v484
    %v549 = vxor.u32 %v548, 2147483648
    %v550 = vmul.f32 %v549, 1.442695
    %v551 = vpow.pop %v550
    %v552 = vadd.f32 %v551, 1.0
    %v553 = vrcp.pop %v552
    %v554 = vmul.f32 1.0, %v553
    %v555 = vmul.f32 %v547, %v536
    %v556 = vadd.f32 %v380, %v555
    %v557 = vtanh.pop %v556
    %v558 = vsub.f32 0.0, %v557
    %v559 = vmul.f32 %v554, %v558
    %v560 = vadd.f32 %v557, %v559
    %v561 = vld [vmem:[%s292] sm:$0x3]
    %v562 = vld [vmem:[%s308] sm:$0x3]
    %v563 = vld [vmem:[%s332] sm:$0x3]
    %v568 = vunpack.c.l.b16 %v349
    %v569 = vunpack.c.l.b16 %v350
    %v570 = vunpack.c.l.b16 %v351
    %v571 = vunpack.c.l.b16 %v352
    %v572 = vpack.c.b16 %v569, %v568
    %v573 = vpack.c.b16 %v571, %v570
    %576 = vmatprep.subr.bf16.mxu0 0
    %577 = vmatpush1.bf16.msra.mxu0 %v572
    %578 = vmatprep.subr.bf16.mxu0 0
    %579 = vmatpush1.bf16.msra.mxu0 %v573
    %580 = vmatprep.subr.bf16.mxu0 0
    %581 = vmatpush1.bf16.msra.mxu0 0
    %582 = vmatprep.subr.bf16.mxu0 0
    %583 = vmatpush1.bf16.msra.mxu0 0
    %584 = vmatprep.subr.bf16.mxu0 0
    %585 = vmatpush1.bf16.msra.mxu0 0
    %586 = vmatprep.subr.bf16.mxu0 0
    %587 = vmatpush1.bf16.msra.mxu0 0
    %588 = vmatprep.subr.bf16.mxu0 0
    %589 = vmatpush1.bf16.msra.mxu0 0
    %590 = vmatprep.subr.bf16.mxu0 0
    %591 = vmatpush1.bf16.msra.mxu0 0
    %592 = vmatprep.subr.bf16.mxu0 0
    %593 = vmatpush1.bf16.msra.mxu0 0
    %594 = vmatprep.subr.bf16.mxu0 0
    %595 = vmatpush1.bf16.msra.mxu0 0
    %596 = vmatprep.subr.bf16.mxu0 0
    %597 = vmatpush1.bf16.msra.mxu0 0
    %598 = vmatprep.subr.bf16.mxu0 0
    %599 = vmatpush1.bf16.msra.mxu0 0
    %600 = vmatprep.subr.bf16.mxu0 0
    %601 = vmatpush1.bf16.msra.mxu0 0
    %602 = vmatprep.subr.bf16.mxu0 0
    %603 = vmatpush1.bf16.msra.mxu0 0
    %604 = vmatprep.subr.bf16.mxu0 0
    %605 = vmatpush1.bf16.msra.mxu0 0
    %606 = vmatprep.subr.bf16.mxu0 0
    %607 = vmatpush1.bf16.msra.mxu0 0
    %608 = vmatprep.mubr.bf16.mxu0 0
    %609 = vmatmul.mubr.bf16.gmra.mrb[0].mxu0 %v395
    %v610 = vpop.f32.mrb[0].mxu0
    %v611 = vadd.f32 0.0, %v610
    %v612 = vpop.f32.mrb[0].mxu0
    %v613 = vpop.f32.mrb[0].mxu0
    %v614 = vpop.f32.mrb[0].mxu0
    %615 = vdwg.mxu0
    %v620 = vunpack.c.l.b16 %v354
    %v621 = vunpack.c.l.b16 %v355
    %v622 = vunpack.c.l.b16 %v356
    %v623 = vunpack.c.l.b16 %v357
    %v624 = vpack.c.b16 %v621, %v620
    %v625 = vpack.c.b16 %v623, %v622
    %628 = vmatprep.subr.bf16.mxu0 0
    %629 = vmatpush1.bf16.msra.mxu0 %v624
    %630 = vmatprep.subr.bf16.mxu0 0
    %631 = vmatpush1.bf16.msra.mxu0 %v625
    %632 = vmatprep.subr.bf16.mxu0 0
    %633 = vmatpush1.bf16.msra.mxu0 0
    %634 = vmatprep.subr.bf16.mxu0 0
    %635 = vmatpush1.bf16.msra.mxu0 0
    %636 = vmatprep.subr.bf16.mxu0 0
    %637 = vmatpush1.bf16.msra.mxu0 0
    %638 = vmatprep.subr.bf16.mxu0 0
    %639 = vmatpush1.bf16.msra.mxu0 0
    %640 = vmatprep.subr.bf16.mxu0 0
    %641 = vmatpush1.bf16.msra.mxu0 0
    %642 = vmatprep.subr.bf16.mxu0 0
    %643 = vmatpush1.bf16.msra.mxu0 0
    %644 = vmatprep.subr.bf16.mxu0 0
    %645 = vmatpush1.bf16.msra.mxu0 0
    %646 = vmatprep.subr.bf16.mxu0 0
    %647 = vmatpush1.bf16.msra.mxu0 0
    %648 = vmatprep.subr.bf16.mxu0 0
    %649 = vmatpush1.bf16.msra.mxu0 0
    %650 = vmatprep.subr.bf16.mxu0 0
    %651 = vmatpush1.bf16.msra.mxu0 0
    %652 = vmatprep.subr.bf16.mxu0 0
    %653 = vmatpush1.bf16.msra.mxu0 0
    %654 = vmatprep.subr.bf16.mxu0 0
    %655 = vmatpush1.bf16.msra.mxu0 0
    %656 = vmatprep.subr.bf16.mxu0 0
    %657 = vmatpush1.bf16.msra.mxu0 0
    %658 = vmatprep.subr.bf16.mxu0 0
    %659 = vmatpush1.bf16.msra.mxu0 0
    %660 = vmatprep.mubr.bf16.mxu0 0
    %661 = vmatmul.mubr.bf16.gmra.mrb[0].mxu0 %v395
    %v662 = vpop.f32.mrb[0].mxu0
    %v663 = vadd.f32 0.0, %v662
    %v664 = vpop.f32.mrb[0].mxu0
    %v665 = vpop.f32.mrb[0].mxu0
    %v666 = vpop.f32.mrb[0].mxu0
    %667 = vdwg.mxu0
    %v672 = vunpack.c.l.b16 %v359
    %v673 = vunpack.c.l.b16 %v360
    %v674 = vunpack.c.l.b16 %v361
    %v675 = vunpack.c.l.b16 %v362
    %v676 = vpack.c.b16 %v673, %v672
    %v677 = vpack.c.b16 %v675, %v674
    %680 = vmatprep.subr.bf16.mxu0 0
    %681 = vmatpush1.bf16.msra.mxu0 %v676
    %682 = vmatprep.subr.bf16.mxu0 0
    %683 = vmatpush1.bf16.msra.mxu0 %v677
    %684 = vmatprep.subr.bf16.mxu0 0
    %685 = vmatpush1.bf16.msra.mxu0 0
    %686 = vmatprep.subr.bf16.mxu0 0
    %687 = vmatpush1.bf16.msra.mxu0 0
    %688 = vmatprep.subr.bf16.mxu0 0
    %689 = vmatpush1.bf16.msra.mxu0 0
    %690 = vmatprep.subr.bf16.mxu0 0
    %691 = vmatpush1.bf16.msra.mxu0 0
    %692 = vmatprep.subr.bf16.mxu0 0
    %693 = vmatpush1.bf16.msra.mxu0 0
    %694 = vmatprep.subr.bf16.mxu0 0
    %695 = vmatpush1.bf16.msra.mxu0 0
    %696 = vmatprep.subr.bf16.mxu0 0
    %697 = vmatpush1.bf16.msra.mxu0 0
    %698 = vmatprep.subr.bf16.mxu0 0
    %699 = vmatpush1.bf16.msra.mxu0 0
    %700 = vmatprep.subr.bf16.mxu0 0
    %701 = vmatpush1.bf16.msra.mxu0 0
    %702 = vmatprep.subr.bf16.mxu0 0
    %703 = vmatpush1.bf16.msra.mxu0 0
    %704 = vmatprep.subr.bf16.mxu0 0
    %705 = vmatpush1.bf16.msra.mxu0 0
    %706 = vmatprep.subr.bf16.mxu0 0
    %707 = vmatpush1.bf16.msra.mxu0 0
    %708 = vmatprep.subr.bf16.mxu0 0
    %709 = vmatpush1.bf16.msra.mxu0 0
    %710 = vmatprep.subr.bf16.mxu0 0
    %711 = vmatpush1.bf16.msra.mxu0 0
    %712 = vmatprep.mubr.bf16.mxu0 0
    %713 = vmatmul.mubr.bf16.gmra.mrb[0].mxu0 %v395
    %v714 = vpop.f32.mrb[0].mxu0
    %v715 = vadd.f32 %v376, %v714
    %v716 = vpop.f32.mrb[0].mxu0
    %v717 = vpop.f32.mrb[0].mxu0
    %v718 = vpop.f32.mrb[0].mxu0
    %719 = vdwg.mxu0
    %v720 = vadd.f32 %v561, %v611
    %v721 = vxor.u32 %v720, 2147483648
    %v722 = vmul.f32 %v721, 1.442695
    %v723 = vpow.pop %v722
    %v724 = vadd.f32 %v723, 1.0
    %v725 = vrcp.pop %v724
    %v726 = vmul.f32 1.0, %v725
    %v727 = vadd.f32 %v562, %v663
    %v728 = vxor.u32 %v727, 2147483648
    %v729 = vmul.f32 %v728, 1.442695
    %v730 = vpow.pop %v729
    %v731 = vadd.f32 %v730, 1.0
    %v732 = vrcp.pop %v731
    %v733 = vmul.f32 1.0, %v732
    %v734 = vmul.f32 %v726, %v715
    %v735 = vadd.f32 %v563, %v734
    %v736 = vtanh.pop %v735
    %v737 = vsub.f32 0.0, %v736
    %v738 = vmul.f32 %v733, %v737
    %v739 = vadd.f32 %v736, %v738
    %740 = vst.msk [vmem:[#allocation3] sm:$0x3] %vm207, %v560
    %741 = vst.msk [vmem:[#allocation4 + $0xe] sm:$0x3] %vm207, %v739
    %v742 = vld [vmem:[%s209] sm:$0x3]
    %v743 = vld [vmem:[%s232] sm:$0x3]
    %v744 = vld [vmem:[%s255] sm:$0x3]
    %v745 = vpack.c.bf16 %v560, %v560
    %v747 = vsel %vm393, %v745, 0
    %749 = vmatprep.subr.bf16.mxu0 0
    %750 = vmatpush1.bf16.msra.mxu0 %v389
    %751 = vmatprep.subr.bf16.mxu0 0
    %752 = vmatpush1.bf16.msra.mxu0 %v390
    %753 = vmatprep.subr.bf16.mxu0 0
    %754 = vmatpush1.bf16.msra.mxu0 0
    %755 = vmatprep.subr.bf16.mxu0 0
    %756 = vmatpush1.bf16.msra.mxu0 0
    %757 = vmatprep.subr.bf16.mxu0 0
    %758 = vmatpush1.bf16.msra.mxu0 0
    %759 = vmatprep.subr.bf16.mxu0 0
    %760 = vmatpush1.bf16.msra.mxu0 0
    %761 = vmatprep.subr.bf16.mxu0 0
    %762 = vmatpush1.bf16.msra.mxu0 0
    %763 = vmatprep.subr.bf16.mxu0 0
    %764 = vmatpush1.bf16.msra.mxu0 0
    %765 = vmatprep.subr.bf16.mxu0 0
    %766 = vmatpush1.bf16.msra.mxu0 0
    %767 = vmatprep.subr.bf16.mxu0 0
    %768 = vmatpush1.bf16.msra.mxu0 0
    %769 = vmatprep.subr.bf16.mxu0 0
    %770 = vmatpush1.bf16.msra.mxu0 0
    %771 = vmatprep.subr.bf16.mxu0 0
    %772 = vmatpush1.bf16.msra.mxu0 0
    %773 = vmatprep.subr.bf16.mxu0 0
    %774 = vmatpush1.bf16.msra.mxu0 0
    %775 = vmatprep.subr.bf16.mxu0 0
    %776 = vmatpush1.bf16.msra.mxu0 0
    %777 = vmatprep.subr.bf16.mxu0 0
    %778 = vmatpush1.bf16.msra.mxu0 0
    %779 = vmatprep.subr.bf16.mxu0 0
    %780 = vmatpush1.bf16.msra.mxu0 0
    %781 = vmatprep.mubr.bf16.mxu0 0
    %782 = vmatmul.mubr.bf16.gmra.mrb[0].mxu0 %v747
    %v783 = vpop.f32.mrb[0].mxu0
    %v784 = vadd.f32 0.0, %v783
    %v785 = vpop.f32.mrb[0].mxu0
    %v786 = vpop.f32.mrb[0].mxu0
    %v787 = vpop.f32.mrb[0].mxu0
    %788 = vdwg.mxu0
    %789 = vmatprep.subr.bf16.mxu0 0
    %790 = vmatpush1.bf16.msra.mxu0 %v445
    %791 = vmatprep.subr.bf16.mxu0 0
    %792 = vmatpush1.bf16.msra.mxu0 %v446
    %793 = vmatprep.subr.bf16.mxu0 0
    %794 = vmatpush1.bf16.msra.mxu0 0
    %795 = vmatprep.subr.bf16.mxu0 0
    %796 = vmatpush1.bf16.msra.mxu0 0
    %797 = vmatprep.subr.bf16.mxu0 0
    %798 = vmatpush1.bf16.msra.mxu0 0
    %799 = vmatprep.subr.bf16.mxu0 0
    %800 = vmatpush1.bf16.msra.mxu0 0
    %801 = vmatprep.subr.bf16.mxu0 0
    %802 = vmatpush1.bf16.msra.mxu0 0
    %803 = vmatprep.subr.bf16.mxu0 0
    %804 = vmatpush1.bf16.msra.mxu0 0
    %805 = vmatprep.subr.bf16.mxu0 0
    %806 = vmatpush1.bf16.msra.mxu0 0
    %807 = vmatprep.subr.bf16.mxu0 0
    %808 = vmatpush1.bf16.msra.mxu0 0
    %809 = vmatprep.subr.bf16.mxu0 0
    %810 = vmatpush1.bf16.msra.mxu0 0
    %811 = vmatprep.subr.bf16.mxu0 0
    %812 = vmatpush1.bf16.msra.mxu0 0
    %813 = vmatprep.subr.bf16.mxu0 0
    %814 = vmatpush1.bf16.msra.mxu0 0
    %815 = vmatprep.subr.bf16.mxu0 0
    %816 = vmatpush1.bf16.msra.mxu0 0
    %817 = vmatprep.subr.bf16.mxu0 0
    %818 = vmatpush1.bf16.msra.mxu0 0
    %819 = vmatprep.subr.bf16.mxu0 0
    %820 = vmatpush1.bf16.msra.mxu0 0
    %821 = vmatprep.mubr.bf16.mxu0 0
    %822 = vmatmul.mubr.bf16.gmra.mrb[0].mxu0 %v747
    %v823 = vpop.f32.mrb[0].mxu0
    %v824 = vadd.f32 0.0, %v823
    %v825 = vpop.f32.mrb[0].mxu0
    %v826 = vpop.f32.mrb[0].mxu0
    %v827 = vpop.f32.mrb[0].mxu0
    %828 = vdwg.mxu0
    %829 = vmatprep.subr.bf16.mxu0 0
    %830 = vmatpush1.bf16.msra.mxu0 %v497
    %831 = vmatprep.subr.bf16.mxu0 0
    %832 = vmatpush1.bf16.msra.mxu0 %v498
    %833 = vmatprep.subr.bf16.mxu0 0
    %834 = vmatpush1.bf16.msra.mxu0 0
    %835 = vmatprep.subr.bf16.mxu0 0
    %836 = vmatpush1.bf16.msra.mxu0 0
    %837 = vmatprep.subr.bf16.mxu0 0
    %838 = vmatpush1.bf16.msra.mxu0 0
    %839 = vmatprep.subr.bf16.mxu0 0
    %840 = vmatpush1.bf16.msra.mxu0 0
    %841 = vmatprep.subr.bf16.mxu0 0
    %842 = vmatpush1.bf16.msra.mxu0 0
    %843 = vmatprep.subr.bf16.mxu0 0
    %844 = vmatpush1.bf16.msra.mxu0 0
    %845 = vmatprep.subr.bf16.mxu0 0
    %846 = vmatpush1.bf16.msra.mxu0 0
    %847 = vmatprep.subr.bf16.mxu0 0
    %848 = vmatpush1.bf16.msra.mxu0 0
    %849 = vmatprep.subr.bf16.mxu0 0
    %850 = vmatpush1.bf16.msra.mxu0 0
    %851 = vmatprep.subr.bf16.mxu0 0
    %852 = vmatpush1.bf16.msra.mxu0 0
    %853 = vmatprep.subr.bf16.mxu0 0
    %854 = vmatpush1.bf16.msra.mxu0 0
    %855 = vmatprep.subr.bf16.mxu0 0
    %856 = vmatpush1.bf16.msra.mxu0 0
    %857 = vmatprep.subr.bf16.mxu0 0
    %858 = vmatpush1.bf16.msra.mxu0 0
    %859 = vmatprep.subr.bf16.mxu0 0
    %860 = vmatpush1.bf16.msra.mxu0 0
    %861 = vmatprep.mubr.bf16.mxu0 0
    %862 = vmatmul.mubr.bf16.gmra.mrb[0].mxu0 %v747
    %v863 = vpop.f32.mrb[0].mxu0
    %v864 = vadd.f32 %v368, %v863
    %v865 = vpop.f32.mrb[0].mxu0
    %v866 = vpop.f32.mrb[0].mxu0
    %v867 = vpop.f32.mrb[0].mxu0
    %868 = vdwg.mxu0
    %v869 = vadd.f32 %v742, %v784
    %v870 = vxor.u32 %v869, 2147483648
    %v871 = vmul.f32 %v870, 1.442695
    %v872 = vpow.pop %v871
    %v873 = vadd.f32 %v872, 1.0
    %v874 = vrcp.pop %v873
    %v875 = vmul.f32 1.0, %v874
    %v876 = vadd.f32 %v743, %v824
    %v877 = vxor.u32 %v876, 2147483648
    %v878 = vmul.f32 %v877, 1.442695
    %v879 = vpow.pop %v878
    %v880 = vadd.f32 %v879, 1.0
    %v881 = vrcp.pop %v880
    %v882 = vmul.f32 1.0, %v881
    %v883 = vmul.f32 %v875, %v864
    %v884 = vadd.f32 %v744, %v883
    %v885 = vtanh.pop %v884
    %v886 = vsub.f32 %v560, %v885
    %v887 = vmul.f32 %v882, %v886
    %v888 = vadd.f32 %v885, %v887
    %v889 = vld [vmem:[%s290] sm:$0x3]
    %v890 = vld [vmem:[%s306] sm:$0x3]
    %v891 = vld [vmem:[%s330] sm:$0x3]
    %v892 = vpack.c.bf16 %v739, %v739
    %v894 = vsel %vm393, %v892, 0
    %896 = vmatprep.subr.bf16.mxu0 0
    %897 = vmatpush1.bf16.msra.mxu0 %v572
    %898 = vmatprep.subr.bf16.mxu0 0
    %899 = vmatpush1.bf16.msra.mxu0 %v573
    %900 = vmatprep.subr.bf16.mxu0 0
    %901 = vmatpush1.bf16.msra.mxu0 0
    %902 = vmatprep.subr.bf16.mxu0 0
    %903 = vmatpush1.bf16.msra.mxu0 0
    %904 = vmatprep.subr.bf16.mxu0 0
    %905 = vmatpush1.bf16.msra.mxu0 0
    %906 = vmatprep.subr.bf16.mxu0 0
    %907 = vmatpush1.bf16.msra.mxu0 0
    %908 = vmatprep.subr.bf16.mxu0 0
    %909 = vmatpush1.bf16.msra.mxu0 0
    %910 = vmatprep.subr.bf16.mxu0 0
    %911 = vmatpush1.bf16.msra.mxu0 0
    %912 = vmatprep.subr.bf16.mxu0 0
    %913 = vmatpush1.bf16.msra.mxu0 0
    %914 = vmatprep.subr.bf16.mxu0 0
    %915 = vmatpush1.bf16.msra.mxu0 0
    %916 = vmatprep.subr.bf16.mxu0 0
    %917 = vmatpush1.bf16.msra.mxu0 0
    %918 = vmatprep.subr.bf16.mxu0 0
    %919 = vmatpush1.bf16.msra.mxu0 0
    %920 = vmatprep.subr.bf16.mxu0 0
    %921 = vmatpush1.bf16.msra.mxu0 0
    %922 = vmatprep.subr.bf16.mxu0 0
    %923 = vmatpush1.bf16.msra.mxu0 0
    %924 = vmatprep.subr.bf16.mxu0 0
    %925 = vmatpush1.bf16.msra.mxu0 0
    %926 = vmatprep.subr.bf16.mxu0 0
    %927 = vmatpush1.bf16.msra.mxu0 0
    %928 = vmatprep.mubr.bf16.mxu0 0
    %929 = vmatmul.mubr.bf16.gmra.mrb[0].mxu0 %v894
    %v930 = vpop.f32.mrb[0].mxu0
    %v931 = vadd.f32 0.0, %v930
    %v932 = vpop.f32.mrb[0].mxu0
    %v933 = vpop.f32.mrb[0].mxu0
    %v934 = vpop.f32.mrb[0].mxu0
    %935 = vdwg.mxu0
    %936 = vmatprep.subr.bf16.mxu0 0
    %937 = vmatpush1.bf16.msra.mxu0 %v624
    %938 = vmatprep.subr.bf16.mxu0 0
    %939 = vmatpush1.bf16.msra.mxu0 %v625
    %940 = vmatprep.subr.bf16.mxu0 0
    %941 = vmatpush1.bf16.msra.mxu0 0
    %942 = vmatprep.subr.bf16.mxu0 0
    %943 = vmatpush1.bf16.msra.mxu0 0
    %944 = vmatprep.subr.bf16.mxu0 0
    %945 = vmatpush1.bf16.msra.mxu0 0
    %946 = vmatprep.subr.bf16.mxu0 0
    %947 = vmatpush1.bf16.msra.mxu0 0
    %948 = vmatprep.subr.bf16.mxu0 0
    %949 = vmatpush1.bf16.msra.mxu0 0
    %950 = vmatprep.subr.bf16.mxu0 0
    %951 = vmatpush1.bf16.msra.mxu0 0
    %952 = vmatprep.subr.bf16.mxu0 0
    %953 = vmatpush1.bf16.msra.mxu0 0
    %954 = vmatprep.subr.bf16.mxu0 0
    %955 = vmatpush1.bf16.msra.mxu0 0
    %956 = vmatprep.subr.bf16.mxu0 0
    %957 = vmatpush1.bf16.msra.mxu0 0
    %958 = vmatprep.subr.bf16.mxu0 0
    %959 = vmatpush1.bf16.msra.mxu0 0
    %960 = vmatprep.subr.bf16.mxu0 0
    %961 = vmatpush1.bf16.msra.mxu0 0
    %962 = vmatprep.subr.bf16.mxu0 0
    %963 = vmatpush1.bf16.msra.mxu0 0
    %964 = vmatprep.subr.bf16.mxu0 0
    %965 = vmatpush1.bf16.msra.mxu0 0
    %966 = vmatprep.subr.bf16.mxu0 0
    %967 = vmatpush1.bf16.msra.mxu0 0
    %968 = vmatprep.mubr.bf16.mxu0 0
    %969 = vmatmul.mubr.bf16.gmra.mrb[0].mxu0 %v894
    %v970 = vpop.f32.mrb[0].mxu0
    %v971 = vadd.f32 0.0, %v970
    %v972 = vpop.f32.mrb[0].mxu0
    %v973 = vpop.f32.mrb[0].mxu0
    %v974 = vpop.f32.mrb[0].mxu0
    %975 = vdwg.mxu0
    %976 = vmatprep.subr.bf16.mxu0 0
    %977 = vmatpush1.bf16.msra.mxu0 %v676
    %978 = vmatprep.subr.bf16.mxu0 0
    %979 = vmatpush1.bf16.msra.mxu0 %v677
    %980 = vmatprep.subr.bf16.mxu0 0
    %981 = vmatpush1.bf16.msra.mxu0 0
    %982 = vmatprep.subr.bf16.mxu0 0
    %983 = vmatpush1.bf16.msra.mxu0 0
    %984 = vmatprep.subr.bf16.mxu0 0
    %985 = vmatpush1.bf16.msra.mxu0 0
    %986 = vmatprep.subr.bf16.mxu0 0
    %987 = vmatpush1.bf16.msra.mxu0 0
    %988 = vmatprep.subr.bf16.mxu0 0
    %989 = vmatpush1.bf16.msra.mxu0 0
    %990 = vmatprep.subr.bf16.mxu0 0
    %991 = vmatpush1.bf16.msra.mxu0 0
    %992 = vmatprep.subr.bf16.mxu0 0
    %993 = vmatpush1.bf16.msra.mxu0 0
    %994 = vmatprep.subr.bf16.mxu0 0
    %995 = vmatpush1.bf16.msra.mxu0 0
    %996 = vmatprep.subr.bf16.mxu0 0
    %997 = vmatpush1.bf16.msra.mxu0 0
    %998 = vmatprep.subr.bf16.mxu0 0
    %999 = vmatpush1.bf16.msra.mxu0 0
    %1000 = vmatprep.subr.bf16.mxu0 0
    %1001 = vmatpush1.bf16.msra.mxu0 0
    %1002 = vmatprep.subr.bf16.mxu0 0
    %1003 = vmatpush1.bf16.msra.mxu0 0
    %1004 = vmatprep.subr.bf16.mxu0 0
    %1005 = vmatpush1.bf16.msra.mxu0 0
    %1006 = vmatprep.subr.bf16.mxu0 0
    %1007 = vmatpush1.bf16.msra.mxu0 0
    %1008 = vmatprep.mubr.bf16.mxu0 0
    %1009 = vmatmul.mubr.bf16.gmra.mrb[0].mxu0 %v894
    %v1010 = vpop.f32.mrb[0].mxu0
    %v1011 = vadd.f32 %v376, %v1010
    %v1012 = vpop.f32.mrb[0].mxu0
    %v1013 = vpop.f32.mrb[0].mxu0
    %v1014 = vpop.f32.mrb[0].mxu0
    %1015 = vdwg.mxu0
    %v1016 = vadd.f32 %v889, %v931
    %v1017 = vxor.u32 %v1016, 2147483648
    %v1018 = vmul.f32 %v1017, 1.442695
    %v1019 = vpow.pop %v1018
    %v1020 = vadd.f32 %v1019, 1.0
    %v1021 = vrcp.pop %v1020
    %v1022 = vmul.f32 1.0, %v1021
    %v1023 = vadd.f32 %v890, %v971
    %v1024 = vxor.u32 %v1023, 2147483648
    %v1025 = vmul.f32 %v1024, 1.442695
    %v1026 = vpow.pop %v1025
    %v1027 = vadd.f32 %v1026, 1.0
    %v1028 = vrcp.pop %v1027
    %v1029 = vmul.f32 1.0, %v1028
    %v1030 = vmul.f32 %v1022, %v1011
    %v1031 = vadd.f32 %v891, %v1030
    %v1032 = vtanh.pop %v1031
    %v1033 = vsub.f32 %v739, %v1032
    %v1034 = vmul.f32 %v1029, %v1033
    %v1035 = vadd.f32 %v1032, %v1034
    %1036 = vst.msk [vmem:[#allocation3 + $0x2] sm:$0x3] %vm207, %v888
    %1037 = vst.msk [vmem:[#allocation4 + $0xc] sm:$0x3] %vm207, %v1035
    %v1038 = vld [vmem:[%s212] sm:$0x3]
    %v1039 = vld [vmem:[%s234] sm:$0x3]
    %v1040 = vld [vmem:[%s257] sm:$0x3]
    %v1041 = vpack.c.bf16 %v888, %v888
    %v1043 = vsel %vm393, %v1041, 0
    %1045 = vmatprep.subr.bf16.mxu0 0
    %1046 = vmatpush1.bf16.msra.mxu0 %v389
    %1047 = vmatprep.subr.bf16.mxu0 0
    %1048 = vmatpush1.bf16.msra.mxu0 %v390
    %1049 = vmatprep.subr.bf16.mxu0 0
    %1050 = vmatpush1.bf16.msra.mxu0 0
    %1051 = vmatprep.subr.bf16.mxu0 0
    %1052 = vmatpush1.bf16.msra.mxu0 0
    %1053 = vmatprep.subr.bf16.mxu0 0
    %1054 = vmatpush1.bf16.msra.mxu0 0
    %1055 = vmatprep.subr.bf16.mxu0 0
    %1056 = vmatpush1.bf16.msra.mxu0 0
    %1057 = vmatprep.subr.bf16.mxu0 0
    %1058 = vmatpush1.bf16.msra.mxu0 0
    %1059 = vmatprep.subr.bf16.mxu0 0
    %1060 = vmatpush1.bf16.msra.mxu0 0
    %1061 = vmatprep.subr.bf16.mxu0 0
    %1062 = vmatpush1.bf16.msra.mxu0 0
    %1063 = vmatprep.subr.bf16.mxu0 0
    %1064 = vmatpush1.bf16.msra.mxu0 0
    %1065 = vmatprep.subr.bf16.mxu0 0
    %1066 = vmatpush1.bf16.msra.mxu0 0
    %1067 = vmatprep.subr.bf16.mxu0 0
    %1068 = vmatpush1.bf16.msra.mxu0 0
    %1069 = vmatprep.subr.bf16.mxu0 0
    %1070 = vmatpush1.bf16.msra.mxu0 0
    %1071 = vmatprep.subr.bf16.mxu0 0
    %1072 = vmatpush1.bf16.msra.mxu0 0
    %1073 = vmatprep.subr.bf16.mxu0 0
    %1074 = vmatpush1.bf16.msra.mxu0 0
    %1075 = vmatprep.subr.bf16.mxu0 0
    %1076 = vmatpush1.bf16.msra.mxu0 0
    %1077 = vmatprep.mubr.bf16.mxu0 0
    %1078 = vmatmul.mubr.bf16.gmra.mrb[0].mxu0 %v1043
    %v1079 = vpop.f32.mrb[0].mxu0
    %v1080 = vadd.f32 0.0, %v1079
    %v1081 = vpop.f32.mrb[0].mxu0
    %v1082 = vpop.f32.mrb[0].mxu0
    %v1083 = vpop.f32.mrb[0].mxu0
    %1084 = vdwg.mxu0
    %1085 = vmatprep.subr.bf16.mxu0 0
    %1086 = vmatpush1.bf16.msra.mxu0 %v445
    %1087 = vmatprep.subr.bf16.mxu0 0
    %1088 = vmatpush1.bf16.msra.mxu0 %v446
    %1089 = vmatprep.subr.bf16.mxu0 0
    %1090 = vmatpush1.bf16.msra.mxu0 0
    %1091 = vmatprep.subr.bf16.mxu0 0
    %1092 = vmatpush1.bf16.msra.mxu0 0
    %1093 = vmatprep.subr.bf16.mxu0 0
    %1094 = vmatpush1.bf16.msra.mxu0 0
    %1095 = vmatprep.subr.bf16.mxu0 0
    %1096 = vmatpush1.bf16.msra.mxu0 0
    %1097 = vmatprep.subr.bf16.mxu0 0
    %1098 = vmatpush1.bf16.msra.mxu0 0
    %1099 = vmatprep.subr.bf16.mxu0 0
    %1100 = vmatpush1.bf16.msra.mxu0 0
    %1101 = vmatprep.subr.bf16.mxu0 0
    %1102 = vmatpush1.bf16.msra.mxu0 0
    %1103 = vmatprep.subr.bf16.mxu0 0
    %1104 = vmatpush1.bf16.msra.mxu0 0
    %1105 = vmatprep.subr.bf16.mxu0 0
    %1106 = vmatpush1.bf16.msra.mxu0 0
    %1107 = vmatprep.subr.bf16.mxu0 0
    %1108 = vmatpush1.bf16.msra.mxu0 0
    %1109 = vmatprep.subr.bf16.mxu0 0
    %1110 = vmatpush1.bf16.msra.mxu0 0
    %1111 = vmatprep.subr.bf16.mxu0 0
    %1112 = vmatpush1.bf16.msra.mxu0 0
    %1113 = vmatprep.subr.bf16.mxu0 0
    %1114 = vmatpush1.bf16.msra.mxu0 0
    %1115 = vmatprep.subr.bf16.mxu0 0
    %1116 = vmatpush1.bf16.msra.mxu0 0
    %1117 = vmatprep.mubr.bf16.mxu0 0
    %1118 = vmatmul.mubr.bf16.gmra.mrb[0].mxu0 %v1043
    %v1119 = vpop.f32.mrb[0].mxu0
    %v1120 = vadd.f32 0.0, %v1119
    %v1121 = vpop.f32.mrb[0].mxu0
    %v1122 = vpop.f32.mrb[0].mxu0
    %v1123 = vpop.f32.mrb[0].mxu0
    %1124 = vdwg.mxu0
    %1125 = vmatprep.subr.bf16.mxu0 0
    %1126 = vmatpush1.bf16.msra.mxu0 %v497
    %1127 = vmatprep.subr.bf16.mxu0 0
    %1128 = vmatpush1.bf16.msra.mxu0 %v498
    %1129 = vmatprep.subr.bf16.mxu0 0
    %1130 = vmatpush1.bf16.msra.mxu0 0
    %1131 = vmatprep.subr.bf16.mxu0 0
    %1132 = vmatpush1.bf16.msra.mxu0 0
    %1133 = vmatprep.subr.bf16.mxu0 0
    %1134 = vmatpush1.bf16.msra.mxu0 0
    %1135 = vmatprep.subr.bf16.mxu0 0
    %1136 = vmatpush1.bf16.msra.mxu0 0
    %1137 = vmatprep.subr.bf16.mxu0 0
    %1138 = vmatpush1.bf16.msra.mxu0 0
    %1139 = vmatprep.subr.bf16.mxu0 0
    %1140 = vmatpush1.bf16.msra.mxu0 0
    %1141 = vmatprep.subr.bf16.mxu0 0
    %1142 = vmatpush1.bf16.msra.mxu0 0
    %1143 = vmatprep.subr.bf16.mxu0 0
    %1144 = vmatpush1.bf16.msra.mxu0 0
    %1145 = vmatprep.subr.bf16.mxu0 0
    %1146 = vmatpush1.bf16.msra.mxu0 0
    %1147 = vmatprep.subr.bf16.mxu0 0
    %1148 = vmatpush1.bf16.msra.mxu0 0
    %1149 = vmatprep.subr.bf16.mxu0 0
    %1150 = vmatpush1.bf16.msra.mxu0 0
    %1151 = vmatprep.subr.bf16.mxu0 0
    %1152 = vmatpush1.bf16.msra.mxu0 0
    %1153 = vmatprep.subr.bf16.mxu0 0
    %1154 = vmatpush1.bf16.msra.mxu0 0
    %1155 = vmatprep.subr.bf16.mxu0 0
    %1156 = vmatpush1.bf16.msra.mxu0 0
    %1157 = vmatprep.mubr.bf16.mxu0 0
    %1158 = vmatmul.mubr.bf16.gmra.mrb[0].mxu0 %v1043
    %v1159 = vpop.f32.mrb[0].mxu0
    %v1160 = vadd.f32 %v368, %v1159
    %v1161 = vpop.f32.mrb[0].mxu0
    %v1162 = vpop.f32.mrb[0].mxu0
    %v1163 = vpop.f32.mrb[0].mxu0
    %1164 = vdwg.mxu0
    %v1165 = vadd.f32 %v1038, %v1080
    %v1166 = vxor.u32 %v1165, 2147483648
    %v1167 = vmul.f32 %v1166, 1.442695
    %v1168 = vpow.pop %v1167
    %v1169 = vadd.f32 %v1168, 1.0
    %v1170 = vrcp.pop %v1169
    %v1171 = vmul.f32 1.0, %v1170
    %v1172 = vadd.f32 %v1039, %v1120
    %v1173 = vxor.u32 %v1172, 2147483648
    %v1174 = vmul.f32 %v1173, 1.442695
    %v1175 = vpow.pop %v1174
    %v1176 = vadd.f32 %v1175, 1.0
    %v1177 = vrcp.pop %v1176
    %v1178 = vmul.f32 1.0, %v1177
    %v1179 = vmul.f32 %v1171, %v1160
    %v1180 = vadd.f32 %v1040, %v1179
    %v1181 = vtanh.pop %v1180
    %v1182 = vsub.f32 %v888, %v1181
    %v1183 = vmul.f32 %v1178, %v1182
    %v1184 = vadd.f32 %v1181, %v1183
    %v1185 = vld [vmem:[%s288] sm:$0x3]
    %v1186 = vld [vmem:[%s304] sm:$0x3]
    %v1187 = vld [vmem:[%s328] sm:$0x3]
    %v1188 = vpack.c.bf16 %v1035, %v1035
    %v1190 = vsel %vm393, %v1188, 0
    %1192 = vmatprep.subr.bf16.mxu0 0
    %1193 = vmatpush1.bf16.msra.mxu0 %v572
    %1194 = vmatprep.subr.bf16.mxu0 0
    %1195 = vmatpush1.bf16.msra.mxu0 %v573
    %1196 = vmatprep.subr.bf16.mxu0 0
    %1197 = vmatpush1.bf16.msra.mxu0 0
    %1198 = vmatprep.subr.bf16.mxu0 0
    %1199 = vmatpush1.bf16.msra.mxu0 0
    %1200 = vmatprep.subr.bf16.mxu0 0
    %1201 = vmatpush1.bf16.msra.mxu0 0
    %1202 = vmatprep.subr.bf16.mxu0 0
    %1203 = vmatpush1.bf16.msra.mxu0 0
    %1204 = vmatprep.subr.bf16.mxu0 0
    %1205 = vmatpush1.bf16.msra.mxu0 0
    %1206 = vmatprep.subr.bf16.mxu0 0
    %1207 = vmatpush1.bf16.msra.mxu0 0
    %1208 = vmatprep.subr.bf16.mxu0 0
    %1209 = vmatpush1.bf16.msra.mxu0 0
    %1210 = vmatprep.subr.bf16.mxu0 0
    %1211 = vmatpush1.bf16.msra.mxu0 0
    %1212 = vmatprep.subr.bf16.mxu0 0
    %1213 = vmatpush1.bf16.msra.mxu0 0
    %1214 = vmatprep.subr.bf16.mxu0 0
    %1215 = vmatpush1.bf16.msra.mxu0 0
    %1216 = vmatprep.subr.bf16.mxu0 0
    %1217 = vmatpush1.bf16.msra.mxu0 0
    %1218 = vmatprep.subr.bf16.mxu0 0
    %1219 = vmatpush1.bf16.msra.mxu0 0
    %1220 = vmatprep.subr.bf16.mxu0 0
    %1221 = vmatpush1.bf16.msra.mxu0 0
    %1222 = vmatprep.subr.bf16.mxu0 0
    %1223 = vmatpush1.bf16.msra.mxu0 0
    %1224 = vmatprep.mubr.bf16.mxu0 0
    %1225 = vmatmul.mubr.bf16.gmra.mrb[0].mxu0 %v1190
    %v1226 = vpop.f32.mrb[0].mxu0
    %v1227 = vadd.f32 0.0, %v1226
    %v1228 = vpop.f32.mrb[0].mxu0
    %v1229 = vpop.f32.mrb[0].mxu0
    %v1230 = vpop.f32.mrb[0].mxu0
    %1231 = vdwg.mxu0
    %1232 = vmatprep.subr.bf16.mxu0 0
    %1233 = vmatpush1.bf16.msra.mxu0 %v624
    %1234 = vmatprep.subr.bf16.mxu0 0
    %1235 = vmatpush1.bf16.msra.mxu0 %v625
    %1236 = vmatprep.subr.bf16.mxu0 0
    %1237 = vmatpush1.bf16.msra.mxu0 0
    %1238 = vmatprep.subr.bf16.mxu0 0
    %1239 = vmatpush1.bf16.msra.mxu0 0
    %1240 = vmatprep.subr.bf16.mxu0 0
    %1241 = vmatpush1.bf16.msra.mxu0 0
    %1242 = vmatprep.subr.bf16.mxu0 0
    %1243 = vmatpush1.bf16.msra.mxu0 0
    %1244 = vmatprep.subr.bf16.mxu0 0
    %1245 = vmatpush1.bf16.msra.mxu0 0
    %1246 = vmatprep.subr.bf16.mxu0 0
    %1247 = vmatpush1.bf16.msra.mxu0 0
    %1248 = vmatprep.subr.bf16.mxu0 0
    %1249 = vmatpush1.bf16.msra.mxu0 0
    %1250 = vmatprep.subr.bf16.mxu0 0
    %1251 = vmatpush1.bf16.msra.mxu0 0
    %1252 = vmatprep.subr.bf16.mxu0 0
    %1253 = vmatpush1.bf16.msra.mxu0 0
    %1254 = vmatprep.subr.bf16.mxu0 0
    %1255 = vmatpush1.bf16.msra.mxu0 0
    %1256 = vmatprep.subr.bf16.mxu0 0
    %1257 = vmatpush1.bf16.msra.mxu0 0
    %1258 = vmatprep.subr.bf16.mxu0 0
    %1259 = vmatpush1.bf16.msra.mxu0 0
    %1260 = vmatprep.subr.bf16.mxu0 0
    %1261 = vmatpush1.bf16.msra.mxu0 0
    %1262 = vmatprep.subr.bf16.mxu0 0
    %1263 = vmatpush1.bf16.msra.mxu0 0
    %1264 = vmatprep.mubr.bf16.mxu0 0
    %1265 = vmatmul.mubr.bf16.gmra.mrb[0].mxu0 %v1190
    %v1266 = vpop.f32.mrb[0].mxu0
    %v1267 = vadd.f32 0.0, %v1266
    %v1268 = vpop.f32.mrb[0].mxu0
    %v1269 = vpop.f32.mrb[0].mxu0
    %v1270 = vpop.f32.mrb[0].mxu0
    %1271 = vdwg.mxu0
    %1272 = vmatprep.subr.bf16.mxu0 0
    %1273 = vmatpush1.bf16.msra.mxu0 %v676
    %1274 = vmatprep.subr.bf16.mxu0 0
    %1275 = vmatpush1.bf16.msra.mxu0 %v677
    %1276 = vmatprep.subr.bf16.mxu0 0
    %1277 = vmatpush1.bf16.msra.mxu0 0
    %1278 = vmatprep.subr.bf16.mxu0 0
    %1279 = vmatpush1.bf16.msra.mxu0 0
    %1280 = vmatprep.subr.bf16.mxu0 0
    %1281 = vmatpush1.bf16.msra.mxu0 0
    %1282 = vmatprep.subr.bf16.mxu0 0
    %1283 = vmatpush1.bf16.msra.mxu0 0
    %1284 = vmatprep.subr.bf16.mxu0 0
    %1285 = vmatpush1.bf16.msra.mxu0 0
    %1286 = vmatprep.subr.bf16.mxu0 0
    %1287 = vmatpush1.bf16.msra.mxu0 0
    %1288 = vmatprep.subr.bf16.mxu0 0
    %1289 = vmatpush1.bf16.msra.mxu0 0
    %1290 = vmatprep.subr.bf16.mxu0 0
    %1291 = vmatpush1.bf16.msra.mxu0 0
    %1292 = vmatprep.subr.bf16.mxu0 0
    %1293 = vmatpush1.bf16.msra.mxu0 0
    %1294 = vmatprep.subr.bf16.mxu0 0
    %1295 = vmatpush1.bf16.msra.mxu0 0
    %1296 = vmatprep.subr.bf16.mxu0 0
    %1297 = vmatpush1.bf16.msra.mxu0 0
    %1298 = vmatprep.subr.bf16.mxu0 0
    %1299 = vmatpush1.bf16.msra.mxu0 0
    %1300 = vmatprep.subr.bf16.mxu0 0
    %1301 = vmatpush1.bf16.msra.mxu0 0
    %1302 = vmatprep.subr.bf16.mxu0 0
    %1303 = vmatpush1.bf16.msra.mxu0 0
    %1304 = vmatprep.mubr.bf16.mxu0 0
    %1305 = vmatmul.mubr.bf16.gmra.mrb[0].mxu0 %v1190
    %v1306 = vpop.f32.mrb[0].mxu0
    %v1307 = vadd.f32 %v376, %v1306
    %v1308 = vpop.f32.mrb[0].mxu0
    %v1309 = vpop.f32.mrb[0].mxu0
    %v1310 = vpop.f32.mrb[0].mxu0
    %1311 = vdwg.mxu0
    %v1312 = vadd.f32 %v1185, %v1227
    %v1313 = vxor.u32 %v1312, 2147483648
    %v1314 = vmul.f32 %v1313, 1.442695
    %v1315 = vpow.pop %v1314
    %v1316 = vadd.f32 %v1315, 1.0
    %v1317 = vrcp.pop %v1316
    %v1318 = vmul.f32 1.0, %v1317
    %v1319 = vadd.f32 %v1186, %v1267
    %v1320 = vxor.u32 %v1319, 2147483648
    %v1321 = vmul.f32 %v1320, 1.442695
    %v1322 = vpow.pop %v1321
    %v1323 = vadd.f32 %v1322, 1.0
    %v1324 = vrcp.pop %v1323
    %v1325 = vmul.f32 1.0, %v1324
    %v1326 = vmul.f32 %v1318, %v1307
    %v1327 = vadd.f32 %v1187, %v1326
    %v1328 = vtanh.pop %v1327
    %v1329 = vsub.f32 %v1035, %v1328
    %v1330 = vmul.f32 %v1325, %v1329
    %v1331 = vadd.f32 %v1328, %v1330
    %1332 = vst.msk [vmem:[#allocation3 + $0x4] sm:$0x3] %vm207, %v1184
    %1333 = vst.msk [vmem:[#allocation4 + $0xa] sm:$0x3] %vm207, %v1331
    %v1334 = vld [vmem:[%s215] sm:$0x3]
    %v1335 = vld [vmem:[%s236] sm:$0x3]
    %v1336 = vld [vmem:[%s259] sm:$0x3]
    %v1337 = vpack.c.bf16 %v1184, %v1184
    %v1339 = vsel %vm393, %v1337, 0
    %1341 = vmatprep.subr.bf16.mxu0 0
    %1342 = vmatpush1.bf16.msra.mxu0 %v389
    %1343 = vmatprep.subr.bf16.mxu0 0
    %1344 = vmatpush1.bf16.msra.mxu0 %v390
    %1345 = vmatprep.subr.bf16.mxu0 0
    %1346 = vmatpush1.bf16.msra.mxu0 0
    %1347 = vmatprep.subr.bf16.mxu0 0
    %1348 = vmatpush1.bf16.msra.mxu0 0
    %1349 = vmatprep.subr.bf16.mxu0 0
    %1350 = vmatpush1.bf16.msra.mxu0 0
    %1351 = vmatprep.subr.bf16.mxu0 0
    %1352 = vmatpush1.bf16.msra.mxu0 0
    %1353 = vmatprep.subr.bf16.mxu0 0
    %1354 = vmatpush1.bf16.msra.mxu0 0
    %1355 = vmatprep.subr.bf16.mxu0 0
    %1356 = vmatpush1.bf16.msra.mxu0 0
    %1357 = vmatprep.subr.bf16.mxu0 0
    %1358 = vmatpush1.bf16.msra.mxu0 0
    %1359 = vmatprep.subr.bf16.mxu0 0
    %1360 = vmatpush1.bf16.msra.mxu0 0
    %1361 = vmatprep.subr.bf16.mxu0 0
    %1362 = vmatpush1.bf16.msra.mxu0 0
    %1363 = vmatprep.subr.bf16.mxu0 0
    %1364 = vmatpush1.bf16.msra.mxu0 0
    %1365 = vmatprep.subr.bf16.mxu0 0
    %1366 = vmatpush1.bf16.msra.mxu0 0
    %1367 = vmatprep.subr.bf16.mxu0 0
    %1368 = vmatpush1.bf16.msra.mxu0 0
    %1369 = vmatprep.subr.bf16.mxu0 0
    %1370 = vmatpush1.bf16.msra.mxu0 0
    %1371 = vmatprep.subr.bf16.mxu0 0
    %1372 = vmatpush1.bf16.msra.mxu0 0
    %1373 = vmatprep.mubr.bf16.mxu0 0
    %1374 = vmatmul.mubr.bf16.gmra.mrb[0].mxu0 %v1339
    %v1375 = vpop.f32.mrb[0].mxu0
    %v1376 = vadd.f32 0.0, %v1375
    %v1377 = vpop.f32.mrb[0].mxu0
    %v1378 = vpop.f32.mrb[0].mxu0
    %v1379 = vpop.f32.mrb[0].mxu0
    %1380 = vdwg.mxu0
    %1381 = vmatprep.subr.bf16.mxu0 0
    %1382 = vmatpush1.bf16.msra.mxu0 %v445
    %1383 = vmatprep.subr.bf16.mxu0 0
    %1384 = vmatpush1.bf16.msra.mxu0 %v446
    %1385 = vmatprep.subr.bf16.mxu0 0
    %1386 = vmatpush1.bf16.msra.mxu0 0
    %1387 = vmatprep.subr.bf16.mxu0 0
    %1388 = vmatpush1.bf16.msra.mxu0 0
    %1389 = vmatprep.subr.bf16.mxu0 0
    %1390 = vmatpush1.bf16.msra.mxu0 0
    %1391 = vmatprep.subr.bf16.mxu0 0
    %1392 = vmatpush1.bf16.msra.mxu0 0
    %1393 = vmatprep.subr.bf16.mxu0 0
    %1394 = vmatpush1.bf16.msra.mxu0 0
    %1395 = vmatprep.subr.bf16.mxu0 0
    %1396 = vmatpush1.bf16.msra.mxu0 0
    %1397 = vmatprep.subr.bf16.mxu0 0
    %1398 = vmatpush1.bf16.msra.mxu0 0
    %1399 = vmatprep.subr.bf16.mxu0 0
    %1400 = vmatpush1.bf16.msra.mxu0 0
    %1401 = vmatprep.subr.bf16.mxu0 0
    %1402 = vmatpush1.bf16.msra.mxu0 0
    %1403 = vmatprep.subr.bf16.mxu0 0
    %1404 = vmatpush1.bf16.msra.mxu0 0
    %1405 = vmatprep.subr.bf16.mxu0 0
    %1406 = vmatpush1.bf16.msra.mxu0 0
    %1407 = vmatprep.subr.bf16.mxu0 0
    %1408 = vmatpush1.bf16.msra.mxu0 0
    %1409 = vmatprep.subr.bf16.mxu0 0
    %1410 = vmatpush1.bf16.msra.mxu0 0
    %1411 = vmatprep.subr.bf16.mxu0 0
    %1412 = vmatpush1.bf16.msra.mxu0 0
    %1413 = vmatprep.mubr.bf16.mxu0 0
    %1414 = vmatmul.mubr.bf16.gmra.mrb[0].mxu0 %v1339
    %v1415 = vpop.f32.mrb[0].mxu0
    %v1416 = vadd.f32 0.0, %v1415
    %v1417 = vpop.f32.mrb[0].mxu0
    %v1418 = vpop.f32.mrb[0].mxu0
    %v1419 = vpop.f32.mrb[0].mxu0
    %1420 = vdwg.mxu0
    %1421 = vmatprep.subr.bf16.mxu0 0
    %1422 = vmatpush1.bf16.msra.mxu0 %v497
    %1423 = vmatprep.subr.bf16.mxu0 0
    %1424 = vmatpush1.bf16.msra.mxu0 %v498
    %1425 = vmatprep.subr.bf16.mxu0 0
    %1426 = vmatpush1.bf16.msra.mxu0 0
    %1427 = vmatprep.subr.bf16.mxu0 0
    %1428 = vmatpush1.bf16.msra.mxu0 0
    %1429 = vmatprep.subr.bf16.mxu0 0
    %1430 = vmatpush1.bf16.msra.mxu0 0
    %1431 = vmatprep.subr.bf16.mxu0 0
    %1432 = vmatpush1.bf16.msra.mxu0 0
    %1433 = vmatprep.subr.bf16.mxu0 0
    %1434 = vmatpush1.bf16.msra.mxu0 0
    %1435 = vmatprep.subr.bf16.mxu0 0
    %1436 = vmatpush1.bf16.msra.mxu0 0
    %1437 = vmatprep.subr.bf16.mxu0 0
    %1438 = vmatpush1.bf16.msra.mxu0 0
    %1439 = vmatprep.subr.bf16.mxu0 0
    %1440 = vmatpush1.bf16.msra.mxu0 0
    %1441 = vmatprep.subr.bf16.mxu0 0
    %1442 = vmatpush1.bf16.msra.mxu0 0
    %1443 = vmatprep.subr.bf16.mxu0 0
    %1444 = vmatpush1.bf16.msra.mxu0 0
    %1445 = vmatprep.subr.bf16.mxu0 0
    %1446 = vmatpush1.bf16.msra.mxu0 0
    %1447 = vmatprep.subr.bf16.mxu0 0
    %1448 = vmatpush1.bf16.msra.mxu0 0
    %1449 = vmatprep.subr.bf16.mxu0 0
    %1450 = vmatpush1.bf16.msra.mxu0 0
    %1451 = vmatprep.subr.bf16.mxu0 0
    %1452 = vmatpush1.bf16.msra.mxu0 0
    %1453 = vmatprep.mubr.bf16.mxu0 0
    %1454 = vmatmul.mubr.bf16.gmra.mrb[0].mxu0 %v1339
    %v1455 = vpop.f32.mrb[0].mxu0
    %v1456 = vadd.f32 %v368, %v1455
    %v1457 = vpop.f32.mrb[0].mxu0
    %v1458 = vpop.f32.mrb[0].mxu0
    %v1459 = vpop.f32.mrb[0].mxu0
    %1460 = vdwg.mxu0
    %v1461 = vadd.f32 %v1334, %v1376
    %v1462 = vxor.u32 %v1461, 2147483648
    %v1463 = vmul.f32 %v1462, 1.442695
    %v1464 = vpow.pop %v1463
    %v1465 = vadd.f32 %v1464, 1.0
    %v1466 = vrcp.pop %v1465
    %v1467 = vmul.f32 1.0, %v1466
    %v1468 = vadd.f32 %v1335, %v1416
    %v1469 = vxor.u32 %v1468, 2147483648
    %v1470 = vmul.f32 %v1469, 1.442695
    %v1471 = vpow.pop %v1470
    %v1472 = vadd.f32 %v1471, 1.0
    %v1473 = vrcp.pop %v1472
    %v1474 = vmul.f32 1.0, %v1473
    %v1475 = vmul.f32 %v1467, %v1456
    %v1476 = vadd.f32 %v1336, %v1475
    %v1477 = vtanh.pop %v1476
    %v1478 = vsub.f32 %v1184, %v1477
    %v1479 = vmul.f32 %v1474, %v1478
    %v1480 = vadd.f32 %v1477, %v1479
    %v1481 = vld [vmem:[%s286] sm:$0x3]
    %v1482 = vld [vmem:[%s302] sm:$0x3]
    %v1483 = vld [vmem:[%s326] sm:$0x3]
    %v1484 = vpack.c.bf16 %v1331, %v1331
    %v1486 = vsel %vm393, %v1484, 0
    %1488 = vmatprep.subr.bf16.mxu0 0
    %1489 = vmatpush1.bf16.msra.mxu0 %v572
    %1490 = vmatprep.subr.bf16.mxu0 0
    %1491 = vmatpush1.bf16.msra.mxu0 %v573
    %1492 = vmatprep.subr.bf16.mxu0 0
    %1493 = vmatpush1.bf16.msra.mxu0 0
    %1494 = vmatprep.subr.bf16.mxu0 0
    %1495 = vmatpush1.bf16.msra.mxu0 0
    %1496 = vmatprep.subr.bf16.mxu0 0
    %1497 = vmatpush1.bf16.msra.mxu0 0
    %1498 = vmatprep.subr.bf16.mxu0 0
    %1499 = vmatpush1.bf16.msra.mxu0 0
    %1500 = vmatprep.subr.bf16.mxu0 0
    %1501 = vmatpush1.bf16.msra.mxu0 0
    %1502 = vmatprep.subr.bf16.mxu0 0
    %1503 = vmatpush1.bf16.msra.mxu0 0
    %1504 = vmatprep.subr.bf16.mxu0 0
    %1505 = vmatpush1.bf16.msra.mxu0 0
    %1506 = vmatprep.subr.bf16.mxu0 0
    %1507 = vmatpush1.bf16.msra.mxu0 0
    %1508 = vmatprep.subr.bf16.mxu0 0
    %1509 = vmatpush1.bf16.msra.mxu0 0
    %1510 = vmatprep.subr.bf16.mxu0 0
    %1511 = vmatpush1.bf16.msra.mxu0 0
    %1512 = vmatprep.subr.bf16.mxu0 0
    %1513 = vmatpush1.bf16.msra.mxu0 0
    %1514 = vmatprep.subr.bf16.mxu0 0
    %1515 = vmatpush1.bf16.msra.mxu0 0
    %1516 = vmatprep.subr.bf16.mxu0 0
    %1517 = vmatpush1.bf16.msra.mxu0 0
    %1518 = vmatprep.subr.bf16.mxu0 0
    %1519 = vmatpush1.bf16.msra.mxu0 0
    %1520 = vmatprep.mubr.bf16.mxu0 0
    %1521 = vmatmul.mubr.bf16.gmra.mrb[0].mxu0 %v1486
    %v1522 = vpop.f32.mrb[0].mxu0
    %v1523 = vadd.f32 0.0, %v1522
    %v1524 = vpop.f32.mrb[0].mxu0
    %v1525 = vpop.f32.mrb[0].mxu0
    %v1526 = vpop.f32.mrb[0].mxu0
    %1527 = vdwg.mxu0
    %1528 = vmatprep.subr.bf16.mxu0 0
    %1529 = vmatpush1.bf16.msra.mxu0 %v624
    %1530 = vmatprep.subr.bf16.mxu0 0
    %1531 = vmatpush1.bf16.msra.mxu0 %v625
    %1532 = vmatprep.subr.bf16.mxu0 0
    %1533 = vmatpush1.bf16.msra.mxu0 0
    %1534 = vmatprep.subr.bf16.mxu0 0
    %1535 = vmatpush1.bf16.msra.mxu0 0
    %1536 = vmatprep.subr.bf16.mxu0 0
    %1537 = vmatpush1.bf16.msra.mxu0 0
    %1538 = vmatprep.subr.bf16.mxu0 0
    %1539 = vmatpush1.bf16.msra.mxu0 0
    %1540 = vmatprep.subr.bf16.mxu0 0
    %1541 = vmatpush1.bf16.msra.mxu0 0
    %1542 = vmatprep.subr.bf16.mxu0 0
    %1543 = vmatpush1.bf16.msra.mxu0 0
    %1544 = vmatprep.subr.bf16.mxu0 0
    %1545 = vmatpush1.bf16.msra.mxu0 0
    %1546 = vmatprep.subr.bf16.mxu0 0
    %1547 = vmatpush1.bf16.msra.mxu0 0
    %1548 = vmatprep.subr.bf16.mxu0 0
    %1549 = vmatpush1.bf16.msra.mxu0 0
    %1550 = vmatprep.subr.bf16.mxu0 0
    %1551 = vmatpush1.bf16.msra.mxu0 0
    %1552 = vmatprep.subr.bf16.mxu0 0
    %1553 = vmatpush1.bf16.msra.mxu0 0
    %1554 = vmatprep.subr.bf16.mxu0 0
    %1555 = vmatpush1.bf16.msra.mxu0 0
    %1556 = vmatprep.subr.bf16.mxu0 0
    %1557 = vmatpush1.bf16.msra.mxu0 0
    %1558 = vmatprep.subr.bf16.mxu0 0
    %1559 = vmatpush1.bf16.msra.mxu0 0
    %1560 = vmatprep.mubr.bf16.mxu0 0
    %1561 = vmatmul.mubr.bf16.gmra.mrb[0].mxu0 %v1486
    %v1562 = vpop.f32.mrb[0].mxu0
    %v1563 = vadd.f32 0.0, %v1562
    %v1564 = vpop.f32.mrb[0].mxu0
    %v1565 = vpop.f32.mrb[0].mxu0
    %v1566 = vpop.f32.mrb[0].mxu0
    %1567 = vdwg.mxu0
    %1568 = vmatprep.subr.bf16.mxu0 0
    %1569 = vmatpush1.bf16.msra.mxu0 %v676
    %1570 = vmatprep.subr.bf16.mxu0 0
    %1571 = vmatpush1.bf16.msra.mxu0 %v677
    %1572 = vmatprep.subr.bf16.mxu0 0
    %1573 = vmatpush1.bf16.msra.mxu0 0
    %1574 = vmatprep.subr.bf16.mxu0 0
    %1575 = vmatpush1.bf16.msra.mxu0 0
    %1576 = vmatprep.subr.bf16.mxu0 0
    %1577 = vmatpush1.bf16.msra.mxu0 0
    %1578 = vmatprep.subr.bf16.mxu0 0
    %1579 = vmatpush1.bf16.msra.mxu0 0
    %1580 = vmatprep.subr.bf16.mxu0 0
    %1581 = vmatpush1.bf16.msra.mxu0 0
    %1582 = vmatprep.subr.bf16.mxu0 0
    %1583 = vmatpush1.bf16.msra.mxu0 0
    %1584 = vmatprep.subr.bf16.mxu0 0
    %1585 = vmatpush1.bf16.msra.mxu0 0
    %1586 = vmatprep.subr.bf16.mxu0 0
    %1587 = vmatpush1.bf16.msra.mxu0 0
    %1588 = vmatprep.subr.bf16.mxu0 0
    %1589 = vmatpush1.bf16.msra.mxu0 0
    %1590 = vmatprep.subr.bf16.mxu0 0
    %1591 = vmatpush1.bf16.msra.mxu0 0
    %1592 = vmatprep.subr.bf16.mxu0 0
    %1593 = vmatpush1.bf16.msra.mxu0 0
    %1594 = vmatprep.subr.bf16.mxu0 0
    %1595 = vmatpush1.bf16.msra.mxu0 0
    %1596 = vmatprep.subr.bf16.mxu0 0
    %1597 = vmatpush1.bf16.msra.mxu0 0
    %1598 = vmatprep.subr.bf16.mxu0 0
    %1599 = vmatpush1.bf16.msra.mxu0 0
    %1600 = vmatprep.mubr.bf16.mxu0 0
    %1601 = vmatmul.mubr.bf16.gmra.mrb[0].mxu0 %v1486
    %v1602 = vpop.f32.mrb[0].mxu0
    %v1603 = vadd.f32 %v376, %v1602
    %v1604 = vpop.f32.mrb[0].mxu0
    %v1605 = vpop.f32.mrb[0].mxu0
    %v1606 = vpop.f32.mrb[0].mxu0
    %1607 = vdwg.mxu0
    %v1608 = vadd.f32 %v1481, %v1523
    %v1609 = vxor.u32 %v1608, 2147483648
    %v1610 = vmul.f32 %v1609, 1.442695
    %v1611 = vpow.pop %v1610
    %v1612 = vadd.f32 %v1611, 1.0
    %v1613 = vrcp.pop %v1612
    %v1614 = vmul.f32 1.0, %v1613
    %v1615 = vadd.f32 %v1482, %v1563
    %v1616 = vxor.u32 %v1615, 2147483648
    %v1617 = vmul.f32 %v1616, 1.442695
    %v1618 = vpow.pop %v1617
    %v1619 = vadd.f32 %v1618, 1.0
    %v1620 = vrcp.pop %v1619
    %v1621 = vmul.f32 1.0, %v1620
    %v1622 = vmul.f32 %v1614, %v1603
    %v1623 = vadd.f32 %v1483, %v1622
    %v1624 = vtanh.pop %v1623
    %v1625 = vsub.f32 %v1331, %v1624
    %v1626 = vmul.f32 %v1621, %v1625
    %v1627 = vadd.f32 %v1624, %v1626
    %1628 = vst.msk [vmem:[#allocation3 + $0x6] sm:$0x3] %vm207, %v1480
    %1629 = vst.msk [vmem:[#allocation4 + $0x8] sm:$0x3] %vm207, %v1627
    %v1630 = vld [vmem:[%s218] sm:$0x3]
    %v1631 = vld [vmem:[%s242] sm:$0x3]
    %v1632 = vld [vmem:[%s264] sm:$0x3]
    %v1633 = vpack.c.bf16 %v1480, %v1480
    %v1635 = vsel %vm393, %v1633, 0
    %1637 = vmatprep.subr.bf16.mxu0 0
    %1638 = vmatpush1.bf16.msra.mxu0 %v389
    %1639 = vmatprep.subr.bf16.mxu0 0
    %1640 = vmatpush1.bf16.msra.mxu0 %v390
    %1641 = vmatprep.subr.bf16.mxu0 0
    %1642 = vmatpush1.bf16.msra.mxu0 0
    %1643 = vmatprep.subr.bf16.mxu0 0
    %1644 = vmatpush1.bf16.msra.mxu0 0
    %1645 = vmatprep.subr.bf16.mxu0 0
    %1646 = vmatpush1.bf16.msra.mxu0 0
    %1647 = vmatprep.subr.bf16.mxu0 0
    %1648 = vmatpush1.bf16.msra.mxu0 0
    %1649 = vmatprep.subr.bf16.mxu0 0
    %1650 = vmatpush1.bf16.msra.mxu0 0
    %1651 = vmatprep.subr.bf16.mxu0 0
    %1652 = vmatpush1.bf16.msra.mxu0 0
    %1653 = vmatprep.subr.bf16.mxu0 0
    %1654 = vmatpush1.bf16.msra.mxu0 0
    %1655 = vmatprep.subr.bf16.mxu0 0
    %1656 = vmatpush1.bf16.msra.mxu0 0
    %1657 = vmatprep.subr.bf16.mxu0 0
    %1658 = vmatpush1.bf16.msra.mxu0 0
    %1659 = vmatprep.subr.bf16.mxu0 0
    %1660 = vmatpush1.bf16.msra.mxu0 0
    %1661 = vmatprep.subr.bf16.mxu0 0
    %1662 = vmatpush1.bf16.msra.mxu0 0
    %1663 = vmatprep.subr.bf16.mxu0 0
    %1664 = vmatpush1.bf16.msra.mxu0 0
    %1665 = vmatprep.subr.bf16.mxu0 0
    %1666 = vmatpush1.bf16.msra.mxu0 0
    %1667 = vmatprep.subr.bf16.mxu0 0
    %1668 = vmatpush1.bf16.msra.mxu0 0
    %1669 = vmatprep.mubr.bf16.mxu0 0
    %1670 = vmatmul.mubr.bf16.gmra.mrb[0].mxu0 %v1635
    %v1671 = vpop.f32.mrb[0].mxu0
    %v1672 = vadd.f32 0.0, %v1671
    %v1673 = vpop.f32.mrb[0].mxu0
    %v1674 = vpop.f32.mrb[0].mxu0
    %v1675 = vpop.f32.mrb[0].mxu0
    %1676 = vdwg.mxu0
    %1677 = vmatprep.subr.bf16.mxu0 0
    %1678 = vmatpush1.bf16.msra.mxu0 %v445
    %1679 = vmatprep.subr.bf16.mxu0 0
    %1680 = vmatpush1.bf16.msra.mxu0 %v446
    %1681 = vmatprep.subr.bf16.mxu0 0
    %1682 = vmatpush1.bf16.msra.mxu0 0
    %1683 = vmatprep.subr.bf16.mxu0 0
    %1684 = vmatpush1.bf16.msra.mxu0 0
    %1685 = vmatprep.subr.bf16.mxu0 0
    %1686 = vmatpush1.bf16.msra.mxu0 0
    %1687 = vmatprep.subr.bf16.mxu0 0
    %1688 = vmatpush1.bf16.msra.mxu0 0
    %1689 = vmatprep.subr.bf16.mxu0 0
    %1690 = vmatpush1.bf16.msra.mxu0 0
    %1691 = vmatprep.subr.bf16.mxu0 0
    %1692 = vmatpush1.bf16.msra.mxu0 0
    %1693 = vmatprep.subr.bf16.mxu0 0
    %1694 = vmatpush1.bf16.msra.mxu0 0
    %1695 = vmatprep.subr.bf16.mxu0 0
    %1696 = vmatpush1.bf16.msra.mxu0 0
    %1697 = vmatprep.subr.bf16.mxu0 0
    %1698 = vmatpush1.bf16.msra.mxu0 0
    %1699 = vmatprep.subr.bf16.mxu0 0
    %1700 = vmatpush1.bf16.msra.mxu0 0
    %1701 = vmatprep.subr.bf16.mxu0 0
    %1702 = vmatpush1.bf16.msra.mxu0 0
    %1703 = vmatprep.subr.bf16.mxu0 0
    %1704 = vmatpush1.bf16.msra.mxu0 0
    %1705 = vmatprep.subr.bf16.mxu0 0
    %1706 = vmatpush1.bf16.msra.mxu0 0
    %1707 = vmatprep.subr.bf16.mxu0 0
    %1708 = vmatpush1.bf16.msra.mxu0 0
    %1709 = vmatprep.mubr.bf16.mxu0 0
    %1710 = vmatmul.mubr.bf16.gmra.mrb[0].mxu0 %v1635
    %v1711 = vpop.f32.mrb[0].mxu0
    %v1712 = vadd.f32 0.0, %v1711
    %v1713 = vpop.f32.mrb[0].mxu0
    %v1714 = vpop.f32.mrb[0].mxu0
    %v1715 = vpop.f32.mrb[0].mxu0
    %1716 = vdwg.mxu0
    %1717 = vmatprep.subr.bf16.mxu0 0
    %1718 = vmatpush1.bf16.msra.mxu0 %v497
    %1719 = vmatprep.subr.bf16.mxu0 0
    %1720 = vmatpush1.bf16.msra.mxu0 %v498
    %1721 = vmatprep.subr.bf16.mxu0 0
    %1722 = vmatpush1.bf16.msra.mxu0 0
    %1723 = vmatprep.subr.bf16.mxu0 0
    %1724 = vmatpush1.bf16.msra.mxu0 0
    %1725 = vmatprep.subr.bf16.mxu0 0
    %1726 = vmatpush1.bf16.msra.mxu0 0
    %1727 = vmatprep.subr.bf16.mxu0 0
    %1728 = vmatpush1.bf16.msra.mxu0 0
    %1729 = vmatprep.subr.bf16.mxu0 0
    %1730 = vmatpush1.bf16.msra.mxu0 0
    %1731 = vmatprep.subr.bf16.mxu0 0
    %1732 = vmatpush1.bf16.msra.mxu0 0
    %1733 = vmatprep.subr.bf16.mxu0 0
    %1734 = vmatpush1.bf16.msra.mxu0 0
    %1735 = vmatprep.subr.bf16.mxu0 0
    %1736 = vmatpush1.bf16.msra.mxu0 0
    %1737 = vmatprep.subr.bf16.mxu0 0
    %1738 = vmatpush1.bf16.msra.mxu0 0
    %1739 = vmatprep.subr.bf16.mxu0 0
    %1740 = vmatpush1.bf16.msra.mxu0 0
    %1741 = vmatprep.subr.bf16.mxu0 0
    %1742 = vmatpush1.bf16.msra.mxu0 0
    %1743 = vmatprep.subr.bf16.mxu0 0
    %1744 = vmatpush1.bf16.msra.mxu0 0
    %1745 = vmatprep.subr.bf16.mxu0 0
    %1746 = vmatpush1.bf16.msra.mxu0 0
    %1747 = vmatprep.subr.bf16.mxu0 0
    %1748 = vmatpush1.bf16.msra.mxu0 0
    %1749 = vmatprep.mubr.bf16.mxu0 0
    %1750 = vmatmul.mubr.bf16.gmra.mrb[0].mxu0 %v1635
    %v1751 = vpop.f32.mrb[0].mxu0
    %v1752 = vadd.f32 %v368, %v1751
    %v1753 = vpop.f32.mrb[0].mxu0
    %v1754 = vpop.f32.mrb[0].mxu0
    %v1755 = vpop.f32.mrb[0].mxu0
    %1756 = vdwg.mxu0
    %v1757 = vadd.f32 %v1630, %v1672
    %v1758 = vxor.u32 %v1757, 2147483648
    %v1759 = vmul.f32 %v1758, 1.442695
    %v1760 = vpow.pop %v1759
    %v1761 = vadd.f32 %v1760, 1.0
    %v1762 = vrcp.pop %v1761
    %v1763 = vmul.f32 1.0, %v1762
    %v1764 = vadd.f32 %v1631, %v1712
    %v1765 = vxor.u32 %v1764, 2147483648
    %v1766 = vmul.f32 %v1765, 1.442695
    %v1767 = vpow.pop %v1766
    %v1768 = vadd.f32 %v1767, 1.0
    %v1769 = vrcp.pop %v1768
    %v1770 = vmul.f32 1.0, %v1769
    %v1771 = vmul.f32 %v1763, %v1752
    %v1772 = vadd.f32 %v1632, %v1771
    %v1773 = vtanh.pop %v1772
    %v1774 = vsub.f32 %v1480, %v1773
    %v1775 = vmul.f32 %v1770, %v1774
    %v1776 = vadd.f32 %v1773, %v1775
    %v1777 = vld [vmem:[%s281] sm:$0x3]
    %v1778 = vld [vmem:[%s300] sm:$0x3]
    %v1779 = vld [vmem:[%s320] sm:$0x3]
    %v1780 = vpack.c.bf16 %v1627, %v1627
    %v1782 = vsel %vm393, %v1780, 0
    %1784 = vmatprep.subr.bf16.mxu0 0
    %1785 = vmatpush1.bf16.msra.mxu0 %v572
    %1786 = vmatprep.subr.bf16.mxu0 0
    %1787 = vmatpush1.bf16.msra.mxu0 %v573
    %1788 = vmatprep.subr.bf16.mxu0 0
    %1789 = vmatpush1.bf16.msra.mxu0 0
    %1790 = vmatprep.subr.bf16.mxu0 0
    %1791 = vmatpush1.bf16.msra.mxu0 0
    %1792 = vmatprep.subr.bf16.mxu0 0
    %1793 = vmatpush1.bf16.msra.mxu0 0
    %1794 = vmatprep.subr.bf16.mxu0 0
    %1795 = vmatpush1.bf16.msra.mxu0 0
    %1796 = vmatprep.subr.bf16.mxu0 0
    %1797 = vmatpush1.bf16.msra.mxu0 0
    %1798 = vmatprep.subr.bf16.mxu0 0
    %1799 = vmatpush1.bf16.msra.mxu0 0
    %1800 = vmatprep.subr.bf16.mxu0 0
    %1801 = vmatpush1.bf16.msra.mxu0 0
    %1802 = vmatprep.subr.bf16.mxu0 0
    %1803 = vmatpush1.bf16.msra.mxu0 0
    %1804 = vmatprep.subr.bf16.mxu0 0
    %1805 = vmatpush1.bf16.msra.mxu0 0
    %1806 = vmatprep.subr.bf16.mxu0 0
    %1807 = vmatpush1.bf16.msra.mxu0 0
    %1808 = vmatprep.subr.bf16.mxu0 0
    %1809 = vmatpush1.bf16.msra.mxu0 0
    %1810 = vmatprep.subr.bf16.mxu0 0
    %1811 = vmatpush1.bf16.msra.mxu0 0
    %1812 = vmatprep.subr.bf16.mxu0 0
    %1813 = vmatpush1.bf16.msra.mxu0 0
    %1814 = vmatprep.subr.bf16.mxu0 0
    %1815 = vmatpush1.bf16.msra.mxu0 0
    %1816 = vmatprep.mubr.bf16.mxu0 0
    %1817 = vmatmul.mubr.bf16.gmra.mrb[0].mxu0 %v1782
    %v1818 = vpop.f32.mrb[0].mxu0
    %v1819 = vadd.f32 0.0, %v1818
    %v1820 = vpop.f32.mrb[0].mxu0
    %v1821 = vpop.f32.mrb[0].mxu0
    %v1822 = vpop.f32.mrb[0].mxu0
    %1823 = vdwg.mxu0
    %1824 = vmatprep.subr.bf16.mxu0 0
    %1825 = vmatpush1.bf16.msra.mxu0 %v624
    %1826 = vmatprep.subr.bf16.mxu0 0
    %1827 = vmatpush1.bf16.msra.mxu0 %v625
    %1828 = vmatprep.subr.bf16.mxu0 0
    %1829 = vmatpush1.bf16.msra.mxu0 0
    %1830 = vmatprep.subr.bf16.mxu0 0
    %1831 = vmatpush1.bf16.msra.mxu0 0
    %1832 = vmatprep.subr.bf16.mxu0 0
    %1833 = vmatpush1.bf16.msra.mxu0 0
    %1834 = vmatprep.subr.bf16.mxu0 0
    %1835 = vmatpush1.bf16.msra.mxu0 0
    %1836 = vmatprep.subr.bf16.mxu0 0
    %1837 = vmatpush1.bf16.msra.mxu0 0
    %1838 = vmatprep.subr.bf16.mxu0 0
    %1839 = vmatpush1.bf16.msra.mxu0 0
    %1840 = vmatprep.subr.bf16.mxu0 0
    %1841 = vmatpush1.bf16.msra.mxu0 0
    %1842 = vmatprep.subr.bf16.mxu0 0
    %1843 = vmatpush1.bf16.msra.mxu0 0
    %1844 = vmatprep.subr.bf16.mxu0 0
    %1845 = vmatpush1.bf16.msra.mxu0 0
    %1846 = vmatprep.subr.bf16.mxu0 0
    %1847 = vmatpush1.bf16.msra.mxu0 0
    %1848 = vmatprep.subr.bf16.mxu0 0
    %1849 = vmatpush1.bf16.msra.mxu0 0
    %1850 = vmatprep.subr.bf16.mxu0 0
    %1851 = vmatpush1.bf16.msra.mxu0 0
    %1852 = vmatprep.subr.bf16.mxu0 0
    %1853 = vmatpush1.bf16.msra.mxu0 0
    %1854 = vmatprep.subr.bf16.mxu0 0
    %1855 = vmatpush1.bf16.msra.mxu0 0
    %1856 = vmatprep.mubr.bf16.mxu0 0
    %1857 = vmatmul.mubr.bf16.gmra.mrb[0].mxu0 %v1782
    %v1858 = vpop.f32.mrb[0].mxu0
    %v1859 = vadd.f32 0.0, %v1858
    %v1860 = vpop.f32.mrb[0].mxu0
    %v1861 = vpop.f32.mrb[0].mxu0
    %v1862 = vpop.f32.mrb[0].mxu0
    %1863 = vdwg.mxu0
    %1864 = vmatprep.subr.bf16.mxu0 0
    %1865 = vmatpush1.bf16.msra.mxu0 %v676
    %1866 = vmatprep.subr.bf16.mxu0 0
    %1867 = vmatpush1.bf16.msra.mxu0 %v677
    %1868 = vmatprep.subr.bf16.mxu0 0
    %1869 = vmatpush1.bf16.msra.mxu0 0
    %1870 = vmatprep.subr.bf16.mxu0 0
    %1871 = vmatpush1.bf16.msra.mxu0 0
    %1872 = vmatprep.subr.bf16.mxu0 0
    %1873 = vmatpush1.bf16.msra.mxu0 0
    %1874 = vmatprep.subr.bf16.mxu0 0
    %1875 = vmatpush1.bf16.msra.mxu0 0
    %1876 = vmatprep.subr.bf16.mxu0 0
    %1877 = vmatpush1.bf16.msra.mxu0 0
    %1878 = vmatprep.subr.bf16.mxu0 0
    %1879 = vmatpush1.bf16.msra.mxu0 0
    %1880 = vmatprep.subr.bf16.mxu0 0
    %1881 = vmatpush1.bf16.msra.mxu0 0
    %1882 = vmatprep.subr.bf16.mxu0 0
    %1883 = vmatpush1.bf16.msra.mxu0 0
    %1884 = vmatprep.subr.bf16.mxu0 0
    %1885 = vmatpush1.bf16.msra.mxu0 0
    %1886 = vmatprep.subr.bf16.mxu0 0
    %1887 = vmatpush1.bf16.msra.mxu0 0
    %1888 = vmatprep.subr.bf16.mxu0 0
    %1889 = vmatpush1.bf16.msra.mxu0 0
    %1890 = vmatprep.subr.bf16.mxu0 0
    %1891 = vmatpush1.bf16.msra.mxu0 0
    %1892 = vmatprep.subr.bf16.mxu0 0
    %1893 = vmatpush1.bf16.msra.mxu0 0
    %1894 = vmatprep.subr.bf16.mxu0 0
    %1895 = vmatpush1.bf16.msra.mxu0 0
    %1896 = vmatprep.mubr.bf16.mxu0 0
    %1897 = vmatmul.mubr.bf16.gmra.mrb[0].mxu0 %v1782
    %v1898 = vpop.f32.mrb[0].mxu0
    %v1899 = vadd.f32 %v376, %v1898
    %v1900 = vpop.f32.mrb[0].mxu0
    %v1901 = vpop.f32.mrb[0].mxu0
    %v1902 = vpop.f32.mrb[0].mxu0
    %1903 = vdwg.mxu0
    %v1904 = vadd.f32 %v1777, %v1819
    %v1905 = vxor.u32 %v1904, 2147483648
    %v1906 = vmul.f32 %v1905, 1.442695
    %v1907 = vpow.pop %v1906
    %v1908 = vadd.f32 %v1907, 1.0
    %v1909 = vrcp.pop %v1908
    %v1910 = vmul.f32 1.0, %v1909
    %v1911 = vadd.f32 %v1778, %v1859
    %v1912 = vxor.u32 %v1911, 2147483648
    %v1913 = vmul.f32 %v1912, 1.442695
    %v1914 = vpow.pop %v1913
    %v1915 = vadd.f32 %v1914, 1.0
    %v1916 = vrcp.pop %v1915
    %v1917 = vmul.f32 1.0, %v1916
    %v1918 = vmul.f32 %v1910, %v1899
    %v1919 = vadd.f32 %v1779, %v1918
    %v1920 = vtanh.pop %v1919
    %v1921 = vsub.f32 %v1627, %v1920
    %v1922 = vmul.f32 %v1917, %v1921
    %v1923 = vadd.f32 %v1920, %v1922
    %1924 = vst.msk [vmem:[#allocation3 + $0x8] sm:$0x3] %vm207, %v1776
    %1925 = vst.msk [vmem:[#allocation4 + $0x6] sm:$0x3] %vm207, %v1923
    %v1926 = vld [vmem:[%s220] sm:$0x3]
    %v1927 = vld [vmem:[%s244] sm:$0x3]
    %v1928 = vld [vmem:[%s266] sm:$0x3]
    %v1929 = vpack.c.bf16 %v1776, %v1776
    %v1931 = vsel %vm393, %v1929, 0
    %1933 = vmatprep.subr.bf16.mxu0 0
    %1934 = vmatpush1.bf16.msra.mxu0 %v389
    %1935 = vmatprep.subr.bf16.mxu0 0
    %1936 = vmatpush1.bf16.msra.mxu0 %v390
    %1937 = vmatprep.subr.bf16.mxu0 0
    %1938 = vmatpush1.bf16.msra.mxu0 0
    %1939 = vmatprep.subr.bf16.mxu0 0
    %1940 = vmatpush1.bf16.msra.mxu0 0
    %1941 = vmatprep.subr.bf16.mxu0 0
    %1942 = vmatpush1.bf16.msra.mxu0 0
    %1943 = vmatprep.subr.bf16.mxu0 0
    %1944 = vmatpush1.bf16.msra.mxu0 0
    %1945 = vmatprep.subr.bf16.mxu0 0
    %1946 = vmatpush1.bf16.msra.mxu0 0
    %1947 = vmatprep.subr.bf16.mxu0 0
    %1948 = vmatpush1.bf16.msra.mxu0 0
    %1949 = vmatprep.subr.bf16.mxu0 0
    %1950 = vmatpush1.bf16.msra.mxu0 0
    %1951 = vmatprep.subr.bf16.mxu0 0
    %1952 = vmatpush1.bf16.msra.mxu0 0
    %1953 = vmatprep.subr.bf16.mxu0 0
    %1954 = vmatpush1.bf16.msra.mxu0 0
    %1955 = vmatprep.subr.bf16.mxu0 0
    %1956 = vmatpush1.bf16.msra.mxu0 0
    %1957 = vmatprep.subr.bf16.mxu0 0
    %1958 = vmatpush1.bf16.msra.mxu0 0
    %1959 = vmatprep.subr.bf16.mxu0 0
    %1960 = vmatpush1.bf16.msra.mxu0 0
    %1961 = vmatprep.subr.bf16.mxu0 0
    %1962 = vmatpush1.bf16.msra.mxu0 0
    %1963 = vmatprep.subr.bf16.mxu0 0
    %1964 = vmatpush1.bf16.msra.mxu0 0
    %1965 = vmatprep.mubr.bf16.mxu0 0
    %1966 = vmatmul.mubr.bf16.gmra.mrb[0].mxu0 %v1931
    %v1967 = vpop.f32.mrb[0].mxu0
    %v1968 = vadd.f32 0.0, %v1967
    %v1969 = vpop.f32.mrb[0].mxu0
    %v1970 = vpop.f32.mrb[0].mxu0
    %v1971 = vpop.f32.mrb[0].mxu0
    %1972 = vdwg.mxu0
    %1973 = vmatprep.subr.bf16.mxu0 0
    %1974 = vmatpush1.bf16.msra.mxu0 %v445
    %1975 = vmatprep.subr.bf16.mxu0 0
    %1976 = vmatpush1.bf16.msra.mxu0 %v446
    %1977 = vmatprep.subr.bf16.mxu0 0
    %1978 = vmatpush1.bf16.msra.mxu0 0
    %1979 = vmatprep.subr.bf16.mxu0 0
    %1980 = vmatpush1.bf16.msra.mxu0 0
    %1981 = vmatprep.subr.bf16.mxu0 0
    %1982 = vmatpush1.bf16.msra.mxu0 0
    %1983 = vmatprep.subr.bf16.mxu0 0
    %1984 = vmatpush1.bf16.msra.mxu0 0
    %1985 = vmatprep.subr.bf16.mxu0 0
    %1986 = vmatpush1.bf16.msra.mxu0 0
    %1987 = vmatprep.subr.bf16.mxu0 0
    %1988 = vmatpush1.bf16.msra.mxu0 0
    %1989 = vmatprep.subr.bf16.mxu0 0
    %1990 = vmatpush1.bf16.msra.mxu0 0
    %1991 = vmatprep.subr.bf16.mxu0 0
    %1992 = vmatpush1.bf16.msra.mxu0 0
    %1993 = vmatprep.subr.bf16.mxu0 0
    %1994 = vmatpush1.bf16.msra.mxu0 0
    %1995 = vmatprep.subr.bf16.mxu0 0
    %1996 = vmatpush1.bf16.msra.mxu0 0
    %1997 = vmatprep.subr.bf16.mxu0 0
    %1998 = vmatpush1.bf16.msra.mxu0 0
    %1999 = vmatprep.subr.bf16.mxu0 0
    %2000 = vmatpush1.bf16.msra.mxu0 0
    %2001 = vmatprep.subr.bf16.mxu0 0
    %2002 = vmatpush1.bf16.msra.mxu0 0
    %2003 = vmatprep.subr.bf16.mxu0 0
    %2004 = vmatpush1.bf16.msra.mxu0 0
    %2005 = vmatprep.mubr.bf16.mxu0 0
    %2006 = vmatmul.mubr.bf16.gmra.mrb[0].mxu0 %v1931
    %v2007 = vpop.f32.mrb[0].mxu0
    %v2008 = vadd.f32 0.0, %v2007
    %v2009 = vpop.f32.mrb[0].mxu0
    %v2010 = vpop.f32.mrb[0].mxu0
    %v2011 = vpop.f32.mrb[0].mxu0
    %2012 = vdwg.mxu0
    %2013 = vmatprep.subr.bf16.mxu0 0
    %2014 = vmatpush1.bf16.msra.mxu0 %v497
    %2015 = vmatprep.subr.bf16.mxu0 0
    %2016 = vmatpush1.bf16.msra.mxu0 %v498
    %2017 = vmatprep.subr.bf16.mxu0 0
    %2018 = vmatpush1.bf16.msra.mxu0 0
    %2019 = vmatprep.subr.bf16.mxu0 0
    %2020 = vmatpush1.bf16.msra.mxu0 0
    %2021 = vmatprep.subr.bf16.mxu0 0
    %2022 = vmatpush1.bf16.msra.mxu0 0
    %2023 = vmatprep.subr.bf16.mxu0 0
    %2024 = vmatpush1.bf16.msra.mxu0 0
    %2025 = vmatprep.subr.bf16.mxu0 0
    %2026 = vmatpush1.bf16.msra.mxu0 0
    %2027 = vmatprep.subr.bf16.mxu0 0
    %2028 = vmatpush1.bf16.msra.mxu0 0
    %2029 = vmatprep.subr.bf16.mxu0 0
    %2030 = vmatpush1.bf16.msra.mxu0 0
    %2031 = vmatprep.subr.bf16.mxu0 0
    %2032 = vmatpush1.bf16.msra.mxu0 0
    %2033 = vmatprep.subr.bf16.mxu0 0
    %2034 = vmatpush1.bf16.msra.mxu0 0
    %2035 = vmatprep.subr.bf16.mxu0 0
    %2036 = vmatpush1.bf16.msra.mxu0 0
    %2037 = vmatprep.subr.bf16.mxu0 0
    %2038 = vmatpush1.bf16.msra.mxu0 0
    %2039 = vmatprep.subr.bf16.mxu0 0
    %2040 = vmatpush1.bf16.msra.mxu0 0
    %2041 = vmatprep.subr.bf16.mxu0 0
    %2042 = vmatpush1.bf16.msra.mxu0 0
    %2043 = vmatprep.subr.bf16.mxu0 0
    %2044 = vmatpush1.bf16.msra.mxu0 0
    %2045 = vmatprep.mubr.bf16.mxu0 0
    %2046 = vmatmul.mubr.bf16.gmra.mrb[0].mxu0 %v1931
    %v2047 = vpop.f32.mrb[0].mxu0
    %v2048 = vadd.f32 %v368, %v2047
    %v2049 = vpop.f32.mrb[0].mxu0
    %v2050 = vpop.f32.mrb[0].mxu0
    %v2051 = vpop.f32.mrb[0].mxu0
    %2052 = vdwg.mxu0
    %v2053 = vadd.f32 %v1926, %v1968
    %v2054 = vxor.u32 %v2053, 2147483648
    %v2055 = vmul.f32 %v2054, 1.442695
    %v2056 = vpow.pop %v2055
    %v2057 = vadd.f32 %v2056, 1.0
    %v2058 = vrcp.pop %v2057
    %v2059 = vmul.f32 1.0, %v2058
    %v2060 = vadd.f32 %v1927, %v2008
    %v2061 = vxor.u32 %v2060, 2147483648
    %v2062 = vmul.f32 %v2061, 1.442695
    %v2063 = vpow.pop %v2062
    %v2064 = vadd.f32 %v2063, 1.0
    %v2065 = vrcp.pop %v2064
    %v2066 = vmul.f32 1.0, %v2065
    %v2067 = vmul.f32 %v2059, %v2048
    %v2068 = vadd.f32 %v1928, %v2067
    %v2069 = vtanh.pop %v2068
    %v2070 = vsub.f32 %v1776, %v2069
    %v2071 = vmul.f32 %v2066, %v2070
    %v2072 = vadd.f32 %v2069, %v2071
    %v2073 = vld [vmem:[%s279] sm:$0x3]
    %v2074 = vld [vmem:[%s298] sm:$0x3]
    %v2075 = vld [vmem:[%s318] sm:$0x3]
    %v2076 = vpack.c.bf16 %v1923, %v1923
    %v2078 = vsel %vm393, %v2076, 0
    %2080 = vmatprep.subr.bf16.mxu0 0
    %2081 = vmatpush1.bf16.msra.mxu0 %v572
    %2082 = vmatprep.subr.bf16.mxu0 0
    %2083 = vmatpush1.bf16.msra.mxu0 %v573
    %2084 = vmatprep.subr.bf16.mxu0 0
    %2085 = vmatpush1.bf16.msra.mxu0 0
    %2086 = vmatprep.subr.bf16.mxu0 0
    %2087 = vmatpush1.bf16.msra.mxu0 0
    %2088 = vmatprep.subr.bf16.mxu0 0
    %2089 = vmatpush1.bf16.msra.mxu0 0
    %2090 = vmatprep.subr.bf16.mxu0 0
    %2091 = vmatpush1.bf16.msra.mxu0 0
    %2092 = vmatprep.subr.bf16.mxu0 0
    %2093 = vmatpush1.bf16.msra.mxu0 0
    %2094 = vmatprep.subr.bf16.mxu0 0
    %2095 = vmatpush1.bf16.msra.mxu0 0
    %2096 = vmatprep.subr.bf16.mxu0 0
    %2097 = vmatpush1.bf16.msra.mxu0 0
    %2098 = vmatprep.subr.bf16.mxu0 0
    %2099 = vmatpush1.bf16.msra.mxu0 0
    %2100 = vmatprep.subr.bf16.mxu0 0
    %2101 = vmatpush1.bf16.msra.mxu0 0
    %2102 = vmatprep.subr.bf16.mxu0 0
    %2103 = vmatpush1.bf16.msra.mxu0 0
    %2104 = vmatprep.subr.bf16.mxu0 0
    %2105 = vmatpush1.bf16.msra.mxu0 0
    %2106 = vmatprep.subr.bf16.mxu0 0
    %2107 = vmatpush1.bf16.msra.mxu0 0
    %2108 = vmatprep.subr.bf16.mxu0 0
    %2109 = vmatpush1.bf16.msra.mxu0 0
    %2110 = vmatprep.subr.bf16.mxu0 0
    %2111 = vmatpush1.bf16.msra.mxu0 0
    %2112 = vmatprep.mubr.bf16.mxu0 0
    %2113 = vmatmul.mubr.bf16.gmra.mrb[0].mxu0 %v2078
    %v2114 = vpop.f32.mrb[0].mxu0
    %v2115 = vadd.f32 0.0, %v2114
    %v2116 = vpop.f32.mrb[0].mxu0
    %v2117 = vpop.f32.mrb[0].mxu0
    %v2118 = vpop.f32.mrb[0].mxu0
    %2119 = vdwg.mxu0
    %2120 = vmatprep.subr.bf16.mxu0 0
    %2121 = vmatpush1.bf16.msra.mxu0 %v624
    %2122 = vmatprep.subr.bf16.mxu0 0
    %2123 = vmatpush1.bf16.msra.mxu0 %v625
    %2124 = vmatprep.subr.bf16.mxu0 0
    %2125 = vmatpush1.bf16.msra.mxu0 0
    %2126 = vmatprep.subr.bf16.mxu0 0
    %2127 = vmatpush1.bf16.msra.mxu0 0
    %2128 = vmatprep.subr.bf16.mxu0 0
    %2129 = vmatpush1.bf16.msra.mxu0 0
    %2130 = vmatprep.subr.bf16.mxu0 0
    %2131 = vmatpush1.bf16.msra.mxu0 0
    %2132 = vmatprep.subr.bf16.mxu0 0
    %2133 = vmatpush1.bf16.msra.mxu0 0
    %2134 = vmatprep.subr.bf16.mxu0 0
    %2135 = vmatpush1.bf16.msra.mxu0 0
    %2136 = vmatprep.subr.bf16.mxu0 0
    %2137 = vmatpush1.bf16.msra.mxu0 0
    %2138 = vmatprep.subr.bf16.mxu0 0
    %2139 = vmatpush1.bf16.msra.mxu0 0
    %2140 = vmatprep.subr.bf16.mxu0 0
    %2141 = vmatpush1.bf16.msra.mxu0 0
    %2142 = vmatprep.subr.bf16.mxu0 0
    %2143 = vmatpush1.bf16.msra.mxu0 0
    %2144 = vmatprep.subr.bf16.mxu0 0
    %2145 = vmatpush1.bf16.msra.mxu0 0
    %2146 = vmatprep.subr.bf16.mxu0 0
    %2147 = vmatpush1.bf16.msra.mxu0 0
    %2148 = vmatprep.subr.bf16.mxu0 0
    %2149 = vmatpush1.bf16.msra.mxu0 0
    %2150 = vmatprep.subr.bf16.mxu0 0
    %2151 = vmatpush1.bf16.msra.mxu0 0
    %2152 = vmatprep.mubr.bf16.mxu0 0
    %2153 = vmatmul.mubr.bf16.gmra.mrb[0].mxu0 %v2078
    %v2154 = vpop.f32.mrb[0].mxu0
    %v2155 = vadd.f32 0.0, %v2154
    %v2156 = vpop.f32.mrb[0].mxu0
    %v2157 = vpop.f32.mrb[0].mxu0
    %v2158 = vpop.f32.mrb[0].mxu0
    %2159 = vdwg.mxu0
    %2160 = vmatprep.subr.bf16.mxu0 0
    %2161 = vmatpush1.bf16.msra.mxu0 %v676
    %2162 = vmatprep.subr.bf16.mxu0 0
    %2163 = vmatpush1.bf16.msra.mxu0 %v677
    %2164 = vmatprep.subr.bf16.mxu0 0
    %2165 = vmatpush1.bf16.msra.mxu0 0
    %2166 = vmatprep.subr.bf16.mxu0 0
    %2167 = vmatpush1.bf16.msra.mxu0 0
    %2168 = vmatprep.subr.bf16.mxu0 0
    %2169 = vmatpush1.bf16.msra.mxu0 0
    %2170 = vmatprep.subr.bf16.mxu0 0
    %2171 = vmatpush1.bf16.msra.mxu0 0
    %2172 = vmatprep.subr.bf16.mxu0 0
    %2173 = vmatpush1.bf16.msra.mxu0 0
    %2174 = vmatprep.subr.bf16.mxu0 0
    %2175 = vmatpush1.bf16.msra.mxu0 0
    %2176 = vmatprep.subr.bf16.mxu0 0
    %2177 = vmatpush1.bf16.msra.mxu0 0
    %2178 = vmatprep.subr.bf16.mxu0 0
    %2179 = vmatpush1.bf16.msra.mxu0 0
    %2180 = vmatprep.subr.bf16.mxu0 0
    %2181 = vmatpush1.bf16.msra.mxu0 0
    %2182 = vmatprep.subr.bf16.mxu0 0
    %2183 = vmatpush1.bf16.msra.mxu0 0
    %2184 = vmatprep.subr.bf16.mxu0 0
    %2185 = vmatpush1.bf16.msra.mxu0 0
    %2186 = vmatprep.subr.bf16.mxu0 0
    %2187 = vmatpush1.bf16.msra.mxu0 0
    %2188 = vmatprep.subr.bf16.mxu0 0
    %2189 = vmatpush1.bf16.msra.mxu0 0
    %2190 = vmatprep.subr.bf16.mxu0 0
    %2191 = vmatpush1.bf16.msra.mxu0 0
    %2192 = vmatprep.mubr.bf16.mxu0 0
    %2193 = vmatmul.mubr.bf16.gmra.mrb[0].mxu0 %v2078
    %v2194 = vpop.f32.mrb[0].mxu0
    %v2195 = vadd.f32 %v376, %v2194
    %v2196 = vpop.f32.mrb[0].mxu0
    %v2197 = vpop.f32.mrb[0].mxu0
    %v2198 = vpop.f32.mrb[0].mxu0
    %2199 = vdwg.mxu0
    %v2200 = vadd.f32 %v2073, %v2115
    %v2201 = vxor.u32 %v2200, 2147483648
    %v2202 = vmul.f32 %v2201, 1.442695
    %v2203 = vpow.pop %v2202
    %v2204 = vadd.f32 %v2203, 1.0
    %v2205 = vrcp.pop %v2204
    %v2206 = vmul.f32 1.0, %v2205
    %v2207 = vadd.f32 %v2074, %v2155
    %v2208 = vxor.u32 %v2207, 2147483648
    %v2209 = vmul.f32 %v2208, 1.442695
    %v2210 = vpow.pop %v2209
    %v2211 = vadd.f32 %v2210, 1.0
    %v2212 = vrcp.pop %v2211
    %v2213 = vmul.f32 1.0, %v2212
    %v2214 = vmul.f32 %v2206, %v2195
    %v2215 = vadd.f32 %v2075, %v2214
    %v2216 = vtanh.pop %v2215
    %v2217 = vsub.f32 %v1923, %v2216
    %v2218 = vmul.f32 %v2213, %v2217
    %v2219 = vadd.f32 %v2216, %v2218
    %2220 = vst.msk [vmem:[#allocation3 + $0xa] sm:$0x3] %vm207, %v2072
    %2221 = vst.msk [vmem:[#allocation4 + $0x4] sm:$0x3] %vm207, %v2219
    %v2222 = vld [vmem:[%s222] sm:$0x3]
    %v2223 = vld [vmem:[%s246] sm:$0x3]
    %v2224 = vld [vmem:[%s268] sm:$0x3]
    %v2225 = vpack.c.bf16 %v2072, %v2072
    %v2227 = vsel %vm393, %v2225, 0
    %2229 = vmatprep.subr.bf16.mxu0 0
    %2230 = vmatpush1.bf16.msra.mxu0 %v389
    %2231 = vmatprep.subr.bf16.mxu0 0
    %2232 = vmatpush1.bf16.msra.mxu0 %v390
    %2233 = vmatprep.subr.bf16.mxu0 0
    %2234 = vmatpush1.bf16.msra.mxu0 0
    %2235 = vmatprep.subr.bf16.mxu0 0
    %2236 = vmatpush1.bf16.msra.mxu0 0
    %2237 = vmatprep.subr.bf16.mxu0 0
    %2238 = vmatpush1.bf16.msra.mxu0 0
    %2239 = vmatprep.subr.bf16.mxu0 0
    %2240 = vmatpush1.bf16.msra.mxu0 0
    %2241 = vmatprep.subr.bf16.mxu0 0
    %2242 = vmatpush1.bf16.msra.mxu0 0
    %2243 = vmatprep.subr.bf16.mxu0 0
    %2244 = vmatpush1.bf16.msra.mxu0 0
    %2245 = vmatprep.subr.bf16.mxu0 0
    %2246 = vmatpush1.bf16.msra.mxu0 0
    %2247 = vmatprep.subr.bf16.mxu0 0
    %2248 = vmatpush1.bf16.msra.mxu0 0
    %2249 = vmatprep.subr.bf16.mxu0 0
    %2250 = vmatpush1.bf16.msra.mxu0 0
    %2251 = vmatprep.subr.bf16.mxu0 0
    %2252 = vmatpush1.bf16.msra.mxu0 0
    %2253 = vmatprep.subr.bf16.mxu0 0
    %2254 = vmatpush1.bf16.msra.mxu0 0
    %2255 = vmatprep.subr.bf16.mxu0 0
    %2256 = vmatpush1.bf16.msra.mxu0 0
    %2257 = vmatprep.subr.bf16.mxu0 0
    %2258 = vmatpush1.bf16.msra.mxu0 0
    %2259 = vmatprep.subr.bf16.mxu0 0
    %2260 = vmatpush1.bf16.msra.mxu0 0
    %2261 = vmatprep.mubr.bf16.mxu0 0
    %2262 = vmatmul.mubr.bf16.gmra.mrb[0].mxu0 %v2227
    %v2263 = vpop.f32.mrb[0].mxu0
    %v2264 = vadd.f32 0.0, %v2263
    %v2265 = vpop.f32.mrb[0].mxu0
    %v2266 = vpop.f32.mrb[0].mxu0
    %v2267 = vpop.f32.mrb[0].mxu0
    %2268 = vdwg.mxu0
    %2269 = vmatprep.subr.bf16.mxu0 0
    %2270 = vmatpush1.bf16.msra.mxu0 %v445
    %2271 = vmatprep.subr.bf16.mxu0 0
    %2272 = vmatpush1.bf16.msra.mxu0 %v446
    %2273 = vmatprep.subr.bf16.mxu0 0
    %2274 = vmatpush1.bf16.msra.mxu0 0
    %2275 = vmatprep.subr.bf16.mxu0 0
    %2276 = vmatpush1.bf16.msra.mxu0 0
    %2277 = vmatprep.subr.bf16.mxu0 0
    %2278 = vmatpush1.bf16.msra.mxu0 0
    %2279 = vmatprep.subr.bf16.mxu0 0
    %2280 = vmatpush1.bf16.msra.mxu0 0
    %2281 = vmatprep.subr.bf16.mxu0 0
    %2282 = vmatpush1.bf16.msra.mxu0 0
    %2283 = vmatprep.subr.bf16.mxu0 0
    %2284 = vmatpush1.bf16.msra.mxu0 0
    %2285 = vmatprep.subr.bf16.mxu0 0
    %2286 = vmatpush1.bf16.msra.mxu0 0
    %2287 = vmatprep.subr.bf16.mxu0 0
    %2288 = vmatpush1.bf16.msra.mxu0 0
    %2289 = vmatprep.subr.bf16.mxu0 0
    %2290 = vmatpush1.bf16.msra.mxu0 0
    %2291 = vmatprep.subr.bf16.mxu0 0
    %2292 = vmatpush1.bf16.msra.mxu0 0
    %2293 = vmatprep.subr.bf16.mxu0 0
    %2294 = vmatpush1.bf16.msra.mxu0 0
    %2295 = vmatprep.subr.bf16.mxu0 0
    %2296 = vmatpush1.bf16.msra.mxu0 0
    %2297 = vmatprep.subr.bf16.mxu0 0
    %2298 = vmatpush1.bf16.msra.mxu0 0
    %2299 = vmatprep.subr.bf16.mxu0 0
    %2300 = vmatpush1.bf16.msra.mxu0 0
    %2301 = vmatprep.mubr.bf16.mxu0 0
    %2302 = vmatmul.mubr.bf16.gmra.mrb[0].mxu0 %v2227
    %v2303 = vpop.f32.mrb[0].mxu0
    %v2304 = vadd.f32 0.0, %v2303
    %v2305 = vpop.f32.mrb[0].mxu0
    %v2306 = vpop.f32.mrb[0].mxu0
    %v2307 = vpop.f32.mrb[0].mxu0
    %2308 = vdwg.mxu0
    %2309 = vmatprep.subr.bf16.mxu0 0
    %2310 = vmatpush1.bf16.msra.mxu0 %v497
    %2311 = vmatprep.subr.bf16.mxu0 0
    %2312 = vmatpush1.bf16.msra.mxu0 %v498
    %2313 = vmatprep.subr.bf16.mxu0 0
    %2314 = vmatpush1.bf16.msra.mxu0 0
    %2315 = vmatprep.subr.bf16.mxu0 0
    %2316 = vmatpush1.bf16.msra.mxu0 0
    %2317 = vmatprep.subr.bf16.mxu0 0
    %2318 = vmatpush1.bf16.msra.mxu0 0
    %2319 = vmatprep.subr.bf16.mxu0 0
    %2320 = vmatpush1.bf16.msra.mxu0 0
    %2321 = vmatprep.subr.bf16.mxu0 0
    %2322 = vmatpush1.bf16.msra.mxu0 0
    %2323 = vmatprep.subr.bf16.mxu0 0
    %2324 = vmatpush1.bf16.msra.mxu0 0
    %2325 = vmatprep.subr.bf16.mxu0 0
    %2326 = vmatpush1.bf16.msra.mxu0 0
    %2327 = vmatprep.subr.bf16.mxu0 0
    %2328 = vmatpush1.bf16.msra.mxu0 0
    %2329 = vmatprep.subr.bf16.mxu0 0
    %2330 = vmatpush1.bf16.msra.mxu0 0
    %2331 = vmatprep.subr.bf16.mxu0 0
    %2332 = vmatpush1.bf16.msra.mxu0 0
    %2333 = vmatprep.subr.bf16.mxu0 0
    %2334 = vmatpush1.bf16.msra.mxu0 0
    %2335 = vmatprep.subr.bf16.mxu0 0
    %2336 = vmatpush1.bf16.msra.mxu0 0
    %2337 = vmatprep.subr.bf16.mxu0 0
    %2338 = vmatpush1.bf16.msra.mxu0 0
    %2339 = vmatprep.subr.bf16.mxu0 0
    %2340 = vmatpush1.bf16.msra.mxu0 0
    %2341 = vmatprep.mubr.bf16.mxu0 0
    %2342 = vmatmul.mubr.bf16.gmra.mrb[0].mxu0 %v2227
    %v2343 = vpop.f32.mrb[0].mxu0
    %v2344 = vadd.f32 %v368, %v2343
    %v2345 = vpop.f32.mrb[0].mxu0
    %v2346 = vpop.f32.mrb[0].mxu0
    %v2347 = vpop.f32.mrb[0].mxu0
    %2348 = vdwg.mxu0
    %v2349 = vadd.f32 %v2222, %v2264
    %v2350 = vxor.u32 %v2349, 2147483648
    %v2351 = vmul.f32 %v2350, 1.442695
    %v2352 = vpow.pop %v2351
    %v2353 = vadd.f32 %v2352, 1.0
    %v2354 = vrcp.pop %v2353
    %v2355 = vmul.f32 1.0, %v2354
    %v2356 = vadd.f32 %v2223, %v2304
    %v2357 = vxor.u32 %v2356, 2147483648
    %v2358 = vmul.f32 %v2357, 1.442695
    %v2359 = vpow.pop %v2358
    %v2360 = vadd.f32 %v2359, 1.0
    %v2361 = vrcp.pop %v2360
    %v2362 = vmul.f32 1.0, %v2361
    %v2363 = vmul.f32 %v2355, %v2344
    %v2364 = vadd.f32 %v2224, %v2363
    %v2365 = vtanh.pop %v2364
    %v2366 = vsub.f32 %v2072, %v2365
    %v2367 = vmul.f32 %v2362, %v2366
    %v2368 = vadd.f32 %v2365, %v2367
    %v2369 = vld [vmem:[%s277] sm:$0x3]
    %v2370 = vld [vmem:[%s296] sm:$0x3]
    %v2371 = vld [vmem:[%s316] sm:$0x3]
    %v2372 = vpack.c.bf16 %v2219, %v2219
    %v2374 = vsel %vm393, %v2372, 0
    %2376 = vmatprep.subr.bf16.mxu0 0
    %2377 = vmatpush1.bf16.msra.mxu0 %v572
    %2378 = vmatprep.subr.bf16.mxu0 0
    %2379 = vmatpush1.bf16.msra.mxu0 %v573
    %2380 = vmatprep.subr.bf16.mxu0 0
    %2381 = vmatpush1.bf16.msra.mxu0 0
    %2382 = vmatprep.subr.bf16.mxu0 0
    %2383 = vmatpush1.bf16.msra.mxu0 0
    %2384 = vmatprep.subr.bf16.mxu0 0
    %2385 = vmatpush1.bf16.msra.mxu0 0
    %2386 = vmatprep.subr.bf16.mxu0 0
    %2387 = vmatpush1.bf16.msra.mxu0 0
    %2388 = vmatprep.subr.bf16.mxu0 0
    %2389 = vmatpush1.bf16.msra.mxu0 0
    %2390 = vmatprep.subr.bf16.mxu0 0
    %2391 = vmatpush1.bf16.msra.mxu0 0
    %2392 = vmatprep.subr.bf16.mxu0 0
    %2393 = vmatpush1.bf16.msra.mxu0 0
    %2394 = vmatprep.subr.bf16.mxu0 0
    %2395 = vmatpush1.bf16.msra.mxu0 0
    %2396 = vmatprep.subr.bf16.mxu0 0
    %2397 = vmatpush1.bf16.msra.mxu0 0
    %2398 = vmatprep.subr.bf16.mxu0 0
    %2399 = vmatpush1.bf16.msra.mxu0 0
    %2400 = vmatprep.subr.bf16.mxu0 0
    %2401 = vmatpush1.bf16.msra.mxu0 0
    %2402 = vmatprep.subr.bf16.mxu0 0
    %2403 = vmatpush1.bf16.msra.mxu0 0
    %2404 = vmatprep.subr.bf16.mxu0 0
    %2405 = vmatpush1.bf16.msra.mxu0 0
    %2406 = vmatprep.subr.bf16.mxu0 0
    %2407 = vmatpush1.bf16.msra.mxu0 0
    %2408 = vmatprep.mubr.bf16.mxu0 0
    %2409 = vmatmul.mubr.bf16.gmra.mrb[0].mxu0 %v2374
    %v2410 = vpop.f32.mrb[0].mxu0
    %v2411 = vadd.f32 0.0, %v2410
    %v2412 = vpop.f32.mrb[0].mxu0
    %v2413 = vpop.f32.mrb[0].mxu0
    %v2414 = vpop.f32.mrb[0].mxu0
    %2415 = vdwg.mxu0
    %2416 = vmatprep.subr.bf16.mxu0 0
    %2417 = vmatpush1.bf16.msra.mxu0 %v624
    %2418 = vmatprep.subr.bf16.mxu0 0
    %2419 = vmatpush1.bf16.msra.mxu0 %v625
    %2420 = vmatprep.subr.bf16.mxu0 0
    %2421 = vmatpush1.bf16.msra.mxu0 0
    %2422 = vmatprep.subr.bf16.mxu0 0
    %2423 = vmatpush1.bf16.msra.mxu0 0
    %2424 = vmatprep.subr.bf16.mxu0 0
    %2425 = vmatpush1.bf16.msra.mxu0 0
    %2426 = vmatprep.subr.bf16.mxu0 0
    %2427 = vmatpush1.bf16.msra.mxu0 0
    %2428 = vmatprep.subr.bf16.mxu0 0
    %2429 = vmatpush1.bf16.msra.mxu0 0
    %2430 = vmatprep.subr.bf16.mxu0 0
    %2431 = vmatpush1.bf16.msra.mxu0 0
    %2432 = vmatprep.subr.bf16.mxu0 0
    %2433 = vmatpush1.bf16.msra.mxu0 0
    %2434 = vmatprep.subr.bf16.mxu0 0
    %2435 = vmatpush1.bf16.msra.mxu0 0
    %2436 = vmatprep.subr.bf16.mxu0 0
    %2437 = vmatpush1.bf16.msra.mxu0 0
    %2438 = vmatprep.subr.bf16.mxu0 0
    %2439 = vmatpush1.bf16.msra.mxu0 0
    %2440 = vmatprep.subr.bf16.mxu0 0
    %2441 = vmatpush1.bf16.msra.mxu0 0
    %2442 = vmatprep.subr.bf16.mxu0 0
    %2443 = vmatpush1.bf16.msra.mxu0 0
    %2444 = vmatprep.subr.bf16.mxu0 0
    %2445 = vmatpush1.bf16.msra.mxu0 0
    %2446 = vmatprep.subr.bf16.mxu0 0
    %2447 = vmatpush1.bf16.msra.mxu0 0
    %2448 = vmatprep.mubr.bf16.mxu0 0
    %2449 = vmatmul.mubr.bf16.gmra.mrb[0].mxu0 %v2374
    %v2450 = vpop.f32.mrb[0].mxu0
    %v2451 = vadd.f32 0.0, %v2450
    %v2452 = vpop.f32.mrb[0].mxu0
    %v2453 = vpop.f32.mrb[0].mxu0
    %v2454 = vpop.f32.mrb[0].mxu0
    %2455 = vdwg.mxu0
    %2456 = vmatprep.subr.bf16.mxu0 0
    %2457 = vmatpush1.bf16.msra.mxu0 %v676
    %2458 = vmatprep.subr.bf16.mxu0 0
    %2459 = vmatpush1.bf16.msra.mxu0 %v677
    %2460 = vmatprep.subr.bf16.mxu0 0
    %2461 = vmatpush1.bf16.msra.mxu0 0
    %2462 = vmatprep.subr.bf16.mxu0 0
    %2463 = vmatpush1.bf16.msra.mxu0 0
    %2464 = vmatprep.subr.bf16.mxu0 0
    %2465 = vmatpush1.bf16.msra.mxu0 0
    %2466 = vmatprep.subr.bf16.mxu0 0
    %2467 = vmatpush1.bf16.msra.mxu0 0
    %2468 = vmatprep.subr.bf16.mxu0 0
    %2469 = vmatpush1.bf16.msra.mxu0 0
    %2470 = vmatprep.subr.bf16.mxu0 0
    %2471 = vmatpush1.bf16.msra.mxu0 0
    %2472 = vmatprep.subr.bf16.mxu0 0
    %2473 = vmatpush1.bf16.msra.mxu0 0
    %2474 = vmatprep.subr.bf16.mxu0 0
    %2475 = vmatpush1.bf16.msra.mxu0 0
    %2476 = vmatprep.subr.bf16.mxu0 0
    %2477 = vmatpush1.bf16.msra.mxu0 0
    %2478 = vmatprep.subr.bf16.mxu0 0
    %2479 = vmatpush1.bf16.msra.mxu0 0
    %2480 = vmatprep.subr.bf16.mxu0 0
    %2481 = vmatpush1.bf16.msra.mxu0 0
    %2482 = vmatprep.subr.bf16.mxu0 0
    %2483 = vmatpush1.bf16.msra.mxu0 0
    %2484 = vmatprep.subr.bf16.mxu0 0
    %2485 = vmatpush1.bf16.msra.mxu0 0
    %2486 = vmatprep.subr.bf16.mxu0 0
    %2487 = vmatpush1.bf16.msra.mxu0 0
    %2488 = vmatprep.mubr.bf16.mxu0 0
    %2489 = vmatmul.mubr.bf16.gmra.mrb[0].mxu0 %v2374
    %v2490 = vpop.f32.mrb[0].mxu0
    %v2491 = vadd.f32 %v376, %v2490
    %v2492 = vpop.f32.mrb[0].mxu0
    %v2493 = vpop.f32.mrb[0].mxu0
    %v2494 = vpop.f32.mrb[0].mxu0
    %2495 = vdwg.mxu0
    %v2496 = vadd.f32 %v2369, %v2411
    %v2497 = vxor.u32 %v2496, 2147483648
    %v2498 = vmul.f32 %v2497, 1.442695
    %v2499 = vpow.pop %v2498
    %v2500 = vadd.f32 %v2499, 1.0
    %v2501 = vrcp.pop %v2500
    %v2502 = vmul.f32 1.0, %v2501
    %v2503 = vadd.f32 %v2370, %v2451
    %v2504 = vxor.u32 %v2503, 2147483648
    %v2505 = vmul.f32 %v2504, 1.442695
    %v2506 = vpow.pop %v2505
    %v2507 = vadd.f32 %v2506, 1.0
    %v2508 = vrcp.pop %v2507
    %v2509 = vmul.f32 1.0, %v2508
    %v2510 = vmul.f32 %v2502, %v2491
    %v2511 = vadd.f32 %v2371, %v2510
    %v2512 = vtanh.pop %v2511
    %v2513 = vsub.f32 %v2219, %v2512
    %v2514 = vmul.f32 %v2509, %v2513
    %v2515 = vadd.f32 %v2512, %v2514
    %2516 = vst.msk [vmem:[#allocation3 + $0xc] sm:$0x3] %vm207, %v2368
    %2517 = vst.msk [vmem:[#allocation4 + $0x2] sm:$0x3] %vm207, %v2515
    %v2518 = vld [vmem:[%s224] sm:$0x3]
    %v2519 = vld [vmem:[%s248] sm:$0x3]
    %v2520 = vld [vmem:[%s270] sm:$0x3]
    %v2521 = vpack.c.bf16 %v2368, %v2368
    %v2523 = vsel %vm393, %v2521, 0
    %2525 = vmatprep.subr.bf16.mxu0 0
    %2526 = vmatpush1.bf16.msra.mxu0 %v389
    %2527 = vmatprep.subr.bf16.mxu0 0
    %2528 = vmatpush1.bf16.msra.mxu0 %v390
    %2529 = vmatprep.subr.bf16.mxu0 0
    %2530 = vmatpush1.bf16.msra.mxu0 0
    %2531 = vmatprep.subr.bf16.mxu0 0
    %2532 = vmatpush1.bf16.msra.mxu0 0
    %2533 = vmatprep.subr.bf16.mxu0 0
    %2534 = vmatpush1.bf16.msra.mxu0 0
    %2535 = vmatprep.subr.bf16.mxu0 0
    %2536 = vmatpush1.bf16.msra.mxu0 0
    %2537 = vmatprep.subr.bf16.mxu0 0
    %2538 = vmatpush1.bf16.msra.mxu0 0
    %2539 = vmatprep.subr.bf16.mxu0 0
    %2540 = vmatpush1.bf16.msra.mxu0 0
    %2541 = vmatprep.subr.bf16.mxu0 0
    %2542 = vmatpush1.bf16.msra.mxu0 0
    %2543 = vmatprep.subr.bf16.mxu0 0
    %2544 = vmatpush1.bf16.msra.mxu0 0
    %2545 = vmatprep.subr.bf16.mxu0 0
    %2546 = vmatpush1.bf16.msra.mxu0 0
    %2547 = vmatprep.subr.bf16.mxu0 0
    %2548 = vmatpush1.bf16.msra.mxu0 0
    %2549 = vmatprep.subr.bf16.mxu0 0
    %2550 = vmatpush1.bf16.msra.mxu0 0
    %2551 = vmatprep.subr.bf16.mxu0 0
    %2552 = vmatpush1.bf16.msra.mxu0 0
    %2553 = vmatprep.subr.bf16.mxu0 0
    %2554 = vmatpush1.bf16.msra.mxu0 0
    %2555 = vmatprep.subr.bf16.mxu0 0
    %2556 = vmatpush1.bf16.msra.mxu0 0
    %2557 = vmatprep.mubr.bf16.mxu0 0
    %2558 = vmatmul.mubr.bf16.gmra.mrb[0].mxu0 %v2523
    %v2559 = vpop.f32.mrb[0].mxu0
    %v2560 = vadd.f32 0.0, %v2559
    %v2561 = vpop.f32.mrb[0].mxu0
    %v2562 = vpop.f32.mrb[0].mxu0
    %v2563 = vpop.f32.mrb[0].mxu0
    %2564 = vdwg.mxu0
    %2565 = vmatprep.subr.bf16.mxu0 0
    %2566 = vmatpush1.bf16.msra.mxu0 %v445
    %2567 = vmatprep.subr.bf16.mxu0 0
    %2568 = vmatpush1.bf16.msra.mxu0 %v446
    %2569 = vmatprep.subr.bf16.mxu0 0
    %2570 = vmatpush1.bf16.msra.mxu0 0
    %2571 = vmatprep.subr.bf16.mxu0 0
    %2572 = vmatpush1.bf16.msra.mxu0 0
    %2573 = vmatprep.subr.bf16.mxu0 0
    %2574 = vmatpush1.bf16.msra.mxu0 0
    %2575 = vmatprep.subr.bf16.mxu0 0
    %2576 = vmatpush1.bf16.msra.mxu0 0
    %2577 = vmatprep.subr.bf16.mxu0 0
    %2578 = vmatpush1.bf16.msra.mxu0 0
    %2579 = vmatprep.subr.bf16.mxu0 0
    %2580 = vmatpush1.bf16.msra.mxu0 0
    %2581 = vmatprep.subr.bf16.mxu0 0
    %2582 = vmatpush1.bf16.msra.mxu0 0
    %2583 = vmatprep.subr.bf16.mxu0 0
    %2584 = vmatpush1.bf16.msra.mxu0 0
    %2585 = vmatprep.subr.bf16.mxu0 0
    %2586 = vmatpush1.bf16.msra.mxu0 0
    %2587 = vmatprep.subr.bf16.mxu0 0
    %2588 = vmatpush1.bf16.msra.mxu0 0
    %2589 = vmatprep.subr.bf16.mxu0 0
    %2590 = vmatpush1.bf16.msra.mxu0 0
    %2591 = vmatprep.subr.bf16.mxu0 0
    %2592 = vmatpush1.bf16.msra.mxu0 0
    %2593 = vmatprep.subr.bf16.mxu0 0
    %2594 = vmatpush1.bf16.msra.mxu0 0
    %2595 = vmatprep.subr.bf16.mxu0 0
    %2596 = vmatpush1.bf16.msra.mxu0 0
    %2597 = vmatprep.mubr.bf16.mxu0 0
    %2598 = vmatmul.mubr.bf16.gmra.mrb[0].mxu0 %v2523
    %v2599 = vpop.f32.mrb[0].mxu0
    %v2600 = vadd.f32 0.0, %v2599
    %v2601 = vpop.f32.mrb[0].mxu0
    %v2602 = vpop.f32.mrb[0].mxu0
    %v2603 = vpop.f32.mrb[0].mxu0
    %2604 = vdwg.mxu0
    %2605 = vmatprep.subr.bf16.mxu0 0
    %2606 = vmatpush1.bf16.msra.mxu0 %v497
    %2607 = vmatprep.subr.bf16.mxu0 0
    %2608 = vmatpush1.bf16.msra.mxu0 %v498
    %2609 = vmatprep.subr.bf16.mxu0 0
    %2610 = vmatpush1.bf16.msra.mxu0 0
    %2611 = vmatprep.subr.bf16.mxu0 0
    %2612 = vmatpush1.bf16.msra.mxu0 0
    %2613 = vmatprep.subr.bf16.mxu0 0
    %2614 = vmatpush1.bf16.msra.mxu0 0
    %2615 = vmatprep.subr.bf16.mxu0 0
    %2616 = vmatpush1.bf16.msra.mxu0 0
    %2617 = vmatprep.subr.bf16.mxu0 0
    %2618 = vmatpush1.bf16.msra.mxu0 0
    %2619 = vmatprep.subr.bf16.mxu0 0
    %2620 = vmatpush1.bf16.msra.mxu0 0
    %2621 = vmatprep.subr.bf16.mxu0 0
    %2622 = vmatpush1.bf16.msra.mxu0 0
    %2623 = vmatprep.subr.bf16.mxu0 0
    %2624 = vmatpush1.bf16.msra.mxu0 0
    %2625 = vmatprep.subr.bf16.mxu0 0
    %2626 = vmatpush1.bf16.msra.mxu0 0
    %2627 = vmatprep.subr.bf16.mxu0 0
    %2628 = vmatpush1.bf16.msra.mxu0 0
    %2629 = vmatprep.subr.bf16.mxu0 0
    %2630 = vmatpush1.bf16.msra.mxu0 0
    %2631 = vmatprep.subr.bf16.mxu0 0
    %2632 = vmatpush1.bf16.msra.mxu0 0
    %2633 = vmatprep.subr.bf16.mxu0 0
    %2634 = vmatpush1.bf16.msra.mxu0 0
    %2635 = vmatprep.subr.bf16.mxu0 0
    %2636 = vmatpush1.bf16.msra.mxu0 0
    %2637 = vmatprep.mubr.bf16.mxu0 0
    %2638 = vmatmul.mubr.bf16.gmra.mrb[0].mxu0 %v2523
    %v2639 = vpop.f32.mrb[0].mxu0
    %v2640 = vadd.f32 %v368, %v2639
    %v2641 = vpop.f32.mrb[0].mxu0
    %v2642 = vpop.f32.mrb[0].mxu0
    %v2643 = vpop.f32.mrb[0].mxu0
    %2644 = vdwg.mxu0
    %v2645 = vadd.f32 %v2518, %v2560
    %v2646 = vxor.u32 %v2645, 2147483648
    %v2647 = vmul.f32 %v2646, 1.442695
    %v2648 = vpow.pop %v2647
    %v2649 = vadd.f32 %v2648, 1.0
    %v2650 = vrcp.pop %v2649
    %v2651 = vmul.f32 1.0, %v2650
    %v2652 = vadd.f32 %v2519, %v2600
    %v2653 = vxor.u32 %v2652, 2147483648
    %v2654 = vmul.f32 %v2653, 1.442695
    %v2655 = vpow.pop %v2654
    %v2656 = vadd.f32 %v2655, 1.0
    %v2657 = vrcp.pop %v2656
    %v2658 = vmul.f32 1.0, %v2657
    %v2659 = vmul.f32 %v2651, %v2640
    %v2660 = vadd.f32 %v2520, %v2659
    %v2661 = vtanh.pop %v2660
    %v2662 = vsub.f32 %v2368, %v2661
    %v2663 = vmul.f32 %v2658, %v2662
    %v2664 = vadd.f32 %v2661, %v2663
    %v2665 = vld [vmem:[%s275] sm:$0x3]
    %v2666 = vld [vmem:[%s294] sm:$0x3]
    %v2667 = vld [vmem:[%s314] sm:$0x3]
    %v2668 = vpack.c.bf16 %v2515, %v2515
    %v2670 = vsel %vm393, %v2668, 0
    %2672 = vmatprep.subr.bf16.mxu0 0
    %2673 = vmatpush1.bf16.msra.mxu0 %v572
    %2674 = vmatprep.subr.bf16.mxu0 0
    %2675 = vmatpush1.bf16.msra.mxu0 %v573
    %2676 = vmatprep.subr.bf16.mxu0 0
    %2677 = vmatpush1.bf16.msra.mxu0 0
    %2678 = vmatprep.subr.bf16.mxu0 0
    %2679 = vmatpush1.bf16.msra.mxu0 0
    %2680 = vmatprep.subr.bf16.mxu0 0
    %2681 = vmatpush1.bf16.msra.mxu0 0
    %2682 = vmatprep.subr.bf16.mxu0 0
    %2683 = vmatpush1.bf16.msra.mxu0 0
    %2684 = vmatprep.subr.bf16.mxu0 0
    %2685 = vmatpush1.bf16.msra.mxu0 0
    %2686 = vmatprep.subr.bf16.mxu0 0
    %2687 = vmatpush1.bf16.msra.mxu0 0
    %2688 = vmatprep.subr.bf16.mxu0 0
    %2689 = vmatpush1.bf16.msra.mxu0 0
    %2690 = vmatprep.subr.bf16.mxu0 0
    %2691 = vmatpush1.bf16.msra.mxu0 0
    %2692 = vmatprep.subr.bf16.mxu0 0
    %2693 = vmatpush1.bf16.msra.mxu0 0
    %2694 = vmatprep.subr.bf16.mxu0 0
    %2695 = vmatpush1.bf16.msra.mxu0 0
    %2696 = vmatprep.subr.bf16.mxu0 0
    %2697 = vmatpush1.bf16.msra.mxu0 0
    %2698 = vmatprep.subr.bf16.mxu0 0
    %2699 = vmatpush1.bf16.msra.mxu0 0
    %2700 = vmatprep.subr.bf16.mxu0 0
    %2701 = vmatpush1.bf16.msra.mxu0 0
    %2702 = vmatprep.subr.bf16.mxu0 0
    %2703 = vmatpush1.bf16.msra.mxu0 0
    %2704 = vmatprep.mubr.bf16.mxu0 0
    %2705 = vmatmul.mubr.bf16.gmra.mrb[0].mxu0 %v2670
    %v2706 = vpop.f32.mrb[0].mxu0
    %v2707 = vadd.f32 0.0, %v2706
    %v2708 = vpop.f32.mrb[0].mxu0
    %v2709 = vpop.f32.mrb[0].mxu0
    %v2710 = vpop.f32.mrb[0].mxu0
    %2711 = vdwg.mxu0
    %2712 = vmatprep.subr.bf16.mxu0 0
    %2713 = vmatpush1.bf16.msra.mxu0 %v624
    %2714 = vmatprep.subr.bf16.mxu0 0
    %2715 = vmatpush1.bf16.msra.mxu0 %v625
    %2716 = vmatprep.subr.bf16.mxu0 0
    %2717 = vmatpush1.bf16.msra.mxu0 0
    %2718 = vmatprep.subr.bf16.mxu0 0
    %2719 = vmatpush1.bf16.msra.mxu0 0
    %2720 = vmatprep.subr.bf16.mxu0 0
    %2721 = vmatpush1.bf16.msra.mxu0 0
    %2722 = vmatprep.subr.bf16.mxu0 0
    %2723 = vmatpush1.bf16.msra.mxu0 0
    %2724 = vmatprep.subr.bf16.mxu0 0
    %2725 = vmatpush1.bf16.msra.mxu0 0
    %2726 = vmatprep.subr.bf16.mxu0 0
    %2727 = vmatpush1.bf16.msra.mxu0 0
    %2728 = vmatprep.subr.bf16.mxu0 0
    %2729 = vmatpush1.bf16.msra.mxu0 0
    %2730 = vmatprep.subr.bf16.mxu0 0
    %2731 = vmatpush1.bf16.msra.mxu0 0
    %2732 = vmatprep.subr.bf16.mxu0 0
    %2733 = vmatpush1.bf16.msra.mxu0 0
    %2734 = vmatprep.subr.bf16.mxu0 0
    %2735 = vmatpush1.bf16.msra.mxu0 0
    %2736 = vmatprep.subr.bf16.mxu0 0
    %2737 = vmatpush1.bf16.msra.mxu0 0
    %2738 = vmatprep.subr.bf16.mxu0 0
    %2739 = vmatpush1.bf16.msra.mxu0 0
    %2740 = vmatprep.subr.bf16.mxu0 0
    %2741 = vmatpush1.bf16.msra.mxu0 0
    %2742 = vmatprep.subr.bf16.mxu0 0
    %2743 = vmatpush1.bf16.msra.mxu0 0
    %2744 = vmatprep.mubr.bf16.mxu0 0
    %2745 = vmatmul.mubr.bf16.gmra.mrb[0].mxu0 %v2670
    %v2746 = vpop.f32.mrb[0].mxu0
    %v2747 = vadd.f32 0.0, %v2746
    %v2748 = vpop.f32.mrb[0].mxu0
    %v2749 = vpop.f32.mrb[0].mxu0
    %v2750 = vpop.f32.mrb[0].mxu0
    %2751 = vdwg.mxu0
    %2752 = vmatprep.subr.bf16.mxu0 0
    %2753 = vmatpush1.bf16.msra.mxu0 %v676
    %2754 = vmatprep.subr.bf16.mxu0 0
    %2755 = vmatpush1.bf16.msra.mxu0 %v677
    %2756 = vmatprep.subr.bf16.mxu0 0
    %2757 = vmatpush1.bf16.msra.mxu0 0
    %2758 = vmatprep.subr.bf16.mxu0 0
    %2759 = vmatpush1.bf16.msra.mxu0 0
    %2760 = vmatprep.subr.bf16.mxu0 0
    %2761 = vmatpush1.bf16.msra.mxu0 0
    %2762 = vmatprep.subr.bf16.mxu0 0
    %2763 = vmatpush1.bf16.msra.mxu0 0
    %2764 = vmatprep.subr.bf16.mxu0 0
    %2765 = vmatpush1.bf16.msra.mxu0 0
    %2766 = vmatprep.subr.bf16.mxu0 0
    %2767 = vmatpush1.bf16.msra.mxu0 0
    %2768 = vmatprep.subr.bf16.mxu0 0
    %2769 = vmatpush1.bf16.msra.mxu0 0
    %2770 = vmatprep.subr.bf16.mxu0 0
    %2771 = vmatpush1.bf16.msra.mxu0 0
    %2772 = vmatprep.subr.bf16.mxu0 0
    %2773 = vmatpush1.bf16.msra.mxu0 0
    %2774 = vmatprep.subr.bf16.mxu0 0
    %2775 = vmatpush1.bf16.msra.mxu0 0
    %2776 = vmatprep.subr.bf16.mxu0 0
    %2777 = vmatpush1.bf16.msra.mxu0 0
    %2778 = vmatprep.subr.bf16.mxu0 0
    %2779 = vmatpush1.bf16.msra.mxu0 0
    %2780 = vmatprep.subr.bf16.mxu0 0
    %2781 = vmatpush1.bf16.msra.mxu0 0
    %2782 = vmatprep.subr.bf16.mxu0 0
    %2783 = vmatpush1.bf16.msra.mxu0 0
    %2784 = vmatprep.mubr.bf16.mxu0 0
    %2785 = vmatmul.mubr.bf16.gmra.mrb[0].mxu0 %v2670
    %v2786 = vpop.f32.mrb[0].mxu0
    %v2787 = vadd.f32 %v376, %v2786
    %v2788 = vpop.f32.mrb[0].mxu0
    %v2789 = vpop.f32.mrb[0].mxu0
    %v2790 = vpop.f32.mrb[0].mxu0
    %2791 = vdwg.mxu0
    %v2792 = vadd.f32 %v2665, %v2707
    %v2793 = vxor.u32 %v2792, 2147483648
    %v2794 = vmul.f32 %v2793, 1.442695
    %v2795 = vpow.pop %v2794
    %v2796 = vadd.f32 %v2795, 1.0
    %v2797 = vrcp.pop %v2796
    %v2798 = vmul.f32 1.0, %v2797
    %v2799 = vadd.f32 %v2666, %v2747
    %v2800 = vxor.u32 %v2799, 2147483648
    %v2801 = vmul.f32 %v2800, 1.442695
    %v2802 = vpow.pop %v2801
    %v2803 = vadd.f32 %v2802, 1.0
    %v2804 = vrcp.pop %v2803
    %v2805 = vmul.f32 1.0, %v2804
    %v2806 = vmul.f32 %v2798, %v2787
    %v2807 = vadd.f32 %v2667, %v2806
    %v2808 = vtanh.pop %v2807
    %v2809 = vsub.f32 %v2515, %v2808
    %v2810 = vmul.f32 %v2805, %v2809
    %v2811 = vadd.f32 %v2808, %v2810
    %2812 = vst.msk [vmem:[#allocation3 + $0xe] sm:$0x3] %vm207, %v2664
    %2813 = vst.msk [vmem:[#allocation4] sm:$0x3] %vm207, %v2811
    %v2814 = vld [vmem:[#allocation3] sm:$0xff]
    %v2815 = vld [vmem:[#allocation3 + $0x8] sm:$0xff]
    %v2816 = vpack.c.bf16 %v2815, %v2814
    %v2817 = vld [vmem:[#allocation13] sm:$0xff]
    %v2818 = vld [vmem:[#allocation13 + $0x8] sm:$0xff]
    %v2819 = vld [vmem:[#allocation13 + $0x10] sm:$0xff]
    %v2820 = vld [vmem:[#allocation13 + $0x18] sm:$0xff]
    %v2821 = vld [vmem:[#allocation4] sm:$0xff]
    %v2822 = vld [vmem:[#allocation4 + $0x8] sm:$0xff]
    %v2823 = vpack.c.bf16 %v2822, %v2821
    %v2824 = vld [vmem:[#allocation13 + $0x20] sm:$0xff]
    %v2825 = vld [vmem:[#allocation13 + $0x28] sm:$0xff]
    %v2826 = vld [vmem:[#allocation13 + $0x30] sm:$0xff]
    %v2827 = vld [vmem:[#allocation13 + $0x38] sm:$0xff]
    %v2832 = vunpack.c.l.b16 %v2824
    %v2833 = vunpack.c.h.b16 %v2824
    %v2834 = vunpack.c.l.b16 %v2825
    %v2835 = vunpack.c.h.b16 %v2825
    %v2836 = vunpack.c.l.b16 %v2826
    %v2837 = vunpack.c.h.b16 %v2826
    %v2838 = vunpack.c.l.b16 %v2827
    %v2839 = vunpack.c.h.b16 %v2827
    %v2840 = vpack.c.b16 %v2834, %v2832
    %v2841 = vpack.c.b16 %v2835, %v2833
    %v2842 = vpack.c.b16 %v2838, %v2836
    %v2843 = vpack.c.b16 %v2839, %v2837
    %v2849 = vsel %vm393, %v2823, 0
    %2851 = vmatprep.subr.bf16.mxu0 %v2841
    %2852 = vmatpush1.bf16.msra.mxu0 %v2840
    %2853 = vmatprep.subr.bf16.mxu0 %v2843
    %2854 = vmatpush1.bf16.msra.mxu0 %v2842
    %2855 = vmatprep.subr.bf16.mxu0 0
    %2856 = vmatpush1.bf16.msra.mxu0 0
    %2857 = vmatprep.subr.bf16.mxu0 0
    %2858 = vmatpush1.bf16.msra.mxu0 0
    %2859 = vmatprep.subr.bf16.mxu0 0
    %2860 = vmatpush1.bf16.msra.mxu0 0
    %2861 = vmatprep.subr.bf16.mxu0 0
    %2862 = vmatpush1.bf16.msra.mxu0 0
    %2863 = vmatprep.subr.bf16.mxu0 0
    %2864 = vmatpush1.bf16.msra.mxu0 0
    %2865 = vmatprep.subr.bf16.mxu0 0
    %2866 = vmatpush1.bf16.msra.mxu0 0
    %2867 = vmatprep.subr.bf16.mxu0 0
    %2868 = vmatpush1.bf16.msra.mxu0 0
    %2869 = vmatprep.subr.bf16.mxu0 0
    %2870 = vmatpush1.bf16.msra.mxu0 0
    %2871 = vmatprep.subr.bf16.mxu0 0
    %2872 = vmatpush1.bf16.msra.mxu0 0
    %2873 = vmatprep.subr.bf16.mxu0 0
    %2874 = vmatpush1.bf16.msra.mxu0 0
    %2875 = vmatprep.subr.bf16.mxu0 0
    %2876 = vmatpush1.bf16.msra.mxu0 0
    %2877 = vmatprep.subr.bf16.mxu0 0
    %2878 = vmatpush1.bf16.msra.mxu0 0
    %2879 = vmatprep.subr.bf16.mxu0 0
    %2880 = vmatpush1.bf16.msra.mxu0 0
    %2881 = vmatprep.subr.bf16.mxu0 0
    %2882 = vmatpush1.bf16.msra.mxu0 0
    %2883 = vmatprep.mubr.bf16.mxu0 0
    %2884 = vmatmul.mubr.bf16.gmra.mrb[0].mxu0 %v2849
    %v2885 = vpop.f32.mrb[0].mxu0
    %v2886 = vadd.f32 0.0, %v2885
    %v2887 = vpop.f32.mrb[0].mxu0
    %v2888 = vadd.f32 0.0, %v2887
    %v2889 = vpop.f32.mrb[0].mxu0
    %v2890 = vadd.f32 0.0, %v2889
    %v2891 = vpop.f32.mrb[0].mxu0
    %v2892 = vadd.f32 0.0, %v2891
    %2893 = vdwg.mxu0
    %v2898 = vunpack.c.l.b16 %v2817
    %v2899 = vunpack.c.h.b16 %v2817
    %v2900 = vunpack.c.l.b16 %v2818
    %v2901 = vunpack.c.h.b16 %v2818
    %v2902 = vunpack.c.l.b16 %v2819
    %v2903 = vunpack.c.h.b16 %v2819
    %v2904 = vunpack.c.l.b16 %v2820
    %v2905 = vunpack.c.h.b16 %v2820
    %v2906 = vpack.c.b16 %v2900, %v2898
    %v2907 = vpack.c.b16 %v2901, %v2899
    %v2908 = vpack.c.b16 %v2904, %v2902
    %v2909 = vpack.c.b16 %v2905, %v2903
    %v2915 = vsel %vm393, %v2816, 0
    %2917 = vmatprep.subr.bf16.mxu0 %v2907
    %2918 = vmatpush1.bf16.msra.mxu0 %v2906
    %2919 = vmatprep.subr.bf16.mxu0 %v2909
    %2920 = vmatpush1.bf16.msra.mxu0 %v2908
    %2921 = vmatprep.subr.bf16.mxu0 0
    %2922 = vmatpush1.bf16.msra.mxu0 0
    %2923 = vmatprep.subr.bf16.mxu0 0
    %2924 = vmatpush1.bf16.msra.mxu0 0
    %2925 = vmatprep.subr.bf16.mxu0 0
    %2926 = vmatpush1.bf16.msra.mxu0 0
    %2927 = vmatprep.subr.bf16.mxu0 0
    %2928 = vmatpush1.bf16.msra.mxu0 0
    %2929 = vmatprep.subr.bf16.mxu0 0
    %2930 = vmatpush1.bf16.msra.mxu0 0
    %2931 = vmatprep.subr.bf16.mxu0 0
    %2932 = vmatpush1.bf16.msra.mxu0 0
    %2933 = vmatprep.subr.bf16.mxu0 0
    %2934 = vmatpush1.bf16.msra.mxu0 0
    %2935 = vmatprep.subr.bf16.mxu0 0
    %2936 = vmatpush1.bf16.msra.mxu0 0
    %2937 = vmatprep.subr.bf16.mxu0 0
    %2938 = vmatpush1.bf16.msra.mxu0 0
    %2939 = vmatprep.subr.bf16.mxu0 0
    %2940 = vmatpush1.bf16.msra.mxu0 0
    %2941 = vmatprep.subr.bf16.mxu0 0
    %2942 = vmatpush1.bf16.msra.mxu0 0
    %2943 = vmatprep.subr.bf16.mxu0 0
    %2944 = vmatpush1.bf16.msra.mxu0 0
    %2945 = vmatprep.subr.bf16.mxu0 0
    %2946 = vmatpush1.bf16.msra.mxu0 0
    %2947 = vmatprep.subr.bf16.mxu0 0
    %2948 = vmatpush1.bf16.msra.mxu0 0
    %2949 = vmatprep.mubr.bf16.mxu0 0
    %2950 = vmatmul.mubr.bf16.gmra.mrb[0].mxu0 %v2915
    %v2951 = vpop.f32.mrb[0].mxu0
    %v2952 = vadd.f32 %v2886, %v2951
    %v2953 = vpop.f32.mrb[0].mxu0
    %v2954 = vadd.f32 %v2888, %v2953
    %v2955 = vpop.f32.mrb[0].mxu0
    %v2956 = vadd.f32 %v2890, %v2955
    %v2957 = vpop.f32.mrb[0].mxu0
    %v2958 = vadd.f32 %v2892, %v2957
    %2959 = vdwg.mxu0
    %v2960 = vld [vmem:[#allocation14] sm:$0x3]
    %v2962 = vlaneseq
    %v2963 = vshrl.u32 %v2962, 7
    %v2964 = vsub.s32 0, %v2963
    %v2965 = vrot.slane %v2960, %v2964
    %v2966 = vlaneseq
    %v2967 = vshrl.u32 %v2966, 7
    %v2968 = vsub.s32 1, %v2967
    %v2969 = vrot.slane %v2960, %v2968
    %v2972 = vadd.f32 %v2952, %v2965
    %v2973 = vadd.f32 %v2954, %v2969
    %v2974 = vadd.f32 %v2956, %v2965
    %v2975 = vadd.f32 %v2958, %v2969
    %2976 = vst.msk [vmem:[#allocation2] sm:$0x3] %vm207, %v2972
    %2977 = vst.msk [vmem:[%s209 - $0x2] sm:$0xc] %vm210, %v2972
    %2978 = vst.msk [vmem:[%s212 - $0x4] sm:$0x30] %vm213, %v2972
    %2979 = vst.msk [vmem:[%s215 - $0x6] sm:$0xc0] %vm216, %v2972
    %2980 = vst.msk [vmem:[%s218] sm:$0x3] %vm207, %v2974
    %2981 = vst.msk [vmem:[%s220 - $0x2] sm:$0xc] %vm210, %v2974
    %2982 = vst.msk [vmem:[%s222 - $0x4] sm:$0x30] %vm213, %v2974
    %2983 = vst.msk [vmem:[%s224 - $0x6] sm:$0xc0] %vm216, %v2974
    %2985 = vrot.lane.b32.xlu0 %v2972, 96
    %v2986 = vpop.permute.xlu0 %2985
    %2988 = vst.msk [vmem:[%s230] sm:$0x3] %vm207, %v2986
    %2989 = vst.msk [vmem:[%s232 - $0x2] sm:$0xc] %vm210, %v2986
    %2990 = vst.msk [vmem:[%s234 - $0x4] sm:$0x30] %vm213, %v2986
    %2991 = vst.msk [vmem:[%s236 - $0x6] sm:$0xc0] %vm216, %v2986
    %2993 = vrot.lane.b32.xlu0 %v2974, 96
    %v2994 = vpop.permute.xlu0 %2993
    %2996 = vst.msk [vmem:[%s242] sm:$0x3] %vm207, %v2994
    %2997 = vst.msk [vmem:[%s244 - $0x2] sm:$0xc] %vm210, %v2994
    %2998 = vst.msk [vmem:[%s246 - $0x4] sm:$0x30] %vm213, %v2994
    %2999 = vst.msk [vmem:[%s248 - $0x6] sm:$0xc0] %vm216, %v2994
    %3000 = vrot.lane.b32.xlu0 %v2972, 64
    %v3001 = vpop.permute.xlu0 %3000
    %3003 = vst.msk [vmem:[%s253] sm:$0x3] %vm207, %v3001
    %3004 = vst.msk [vmem:[%s255 - $0x2] sm:$0xc] %vm210, %v3001
    %3005 = vst.msk [vmem:[%s257 - $0x4] sm:$0x30] %vm213, %v3001
    %3006 = vst.msk [vmem:[%s259 - $0x6] sm:$0xc0] %vm216, %v3001
    %3007 = vrot.lane.b32.xlu0 %v2974, 64
    %v3008 = vpop.permute.xlu0 %3007
    %3010 = vst.msk [vmem:[%s264] sm:$0x3] %vm207, %v3008
    %3011 = vst.msk [vmem:[%s266 - $0x2] sm:$0xc] %vm210, %v3008
    %3012 = vst.msk [vmem:[%s268 - $0x4] sm:$0x30] %vm213, %v3008
    %3013 = vst.msk [vmem:[%s270 - $0x6] sm:$0xc0] %vm216, %v3008
    %3014 = vrot.lane.b32.xlu0 %v2972, 32
    %v3015 = vpop.permute.xlu0 %3014
    %3017 = vst.msk [vmem:[%s275] sm:$0x3] %vm207, %v3015
    %3018 = vst.msk [vmem:[%s277 - $0x2] sm:$0xc] %vm210, %v3015
    %3019 = vst.msk [vmem:[%s279 - $0x4] sm:$0x30] %vm213, %v3015
    %3020 = vst.msk [vmem:[%s281 - $0x6] sm:$0xc0] %vm216, %v3015
    %3021 = vrot.lane.b32.xlu0 %v2974, 32
    %v3022 = vpop.permute.xlu0 %3021
    %3024 = vst.msk [vmem:[%s286] sm:$0x3] %vm207, %v3022
    %3025 = vst.msk [vmem:[%s288 - $0x2] sm:$0xc] %vm210, %v3022
    %3026 = vst.msk [vmem:[%s290 - $0x4] sm:$0x30] %vm213, %v3022
    %3027 = vst.msk [vmem:[%s292 - $0x6] sm:$0xc0] %vm216, %v3022
    %3028 = vst.msk [vmem:[%s294] sm:$0x3] %vm207, %v2973
    %3029 = vst.msk [vmem:[%s296 - $0x2] sm:$0xc] %vm210, %v2973
    %3030 = vst.msk [vmem:[%s298 - $0x4] sm:$0x30] %vm213, %v2973
    %3031 = vst.msk [vmem:[%s300 - $0x6] sm:$0xc0] %vm216, %v2973
    %3032 = vst.msk [vmem:[%s302] sm:$0x3] %vm207, %v2975
    %3033 = vst.msk [vmem:[%s304 - $0x2] sm:$0xc] %vm210, %v2975
    %3034 = vst.msk [vmem:[%s306 - $0x4] sm:$0x30] %vm213, %v2975
    %3035 = vst.msk [vmem:[%s308 - $0x6] sm:$0xc0] %vm216, %v2975
    %3037 = vrot.lane.b32.xlu0 %v2973, 96
    %v3038 = vpop.permute.xlu0 %3037
    %3040 = vst.msk [vmem:[%s314] sm:$0x3] %vm207, %v3038
    %3041 = vst.msk [vmem:[%s316 - $0x2] sm:$0xc] %vm210, %v3038
    %3042 = vst.msk [vmem:[%s318 - $0x4] sm:$0x30] %vm213, %v3038
    %3043 = vst.msk [vmem:[%s320 - $0x6] sm:$0xc0] %vm216, %v3038
    %3045 = vrot.lane.b32.xlu0 %v2975, 96
    %v3046 = vpop.permute.xlu0 %3045
    %3048 = vst.msk [vmem:[%s326] sm:$0x3] %vm207, %v3046
    %3049 = vst.msk [vmem:[%s328 - $0x2] sm:$0xc] %vm210, %v3046
    %3050 = vst.msk [vmem:[%s330 - $0x4] sm:$0x30] %vm213, %v3046
    %3051 = vst.msk [vmem:[%s332 - $0x6] sm:$0xc0] %vm216, %v3046
    %v3052 = vld [vmem:[%s7] sm:$0xf]
    %v3053 = vld [vmem:[%s7 + $0x4] sm:$0xf]
    %v3054 = vld [vmem:[%s7 + $0x8] sm:$0xf]
    %v3055 = vld [vmem:[%s7 + $0xc] sm:$0xf]
    %s3056 = scalar_lea.vmem %s7, 16
    %v3057 = vld [vmem:[%s3056] sm:$0xf]
    %v3058 = vld [vmem:[%s3056 + $0x4] sm:$0xf]
    %v3059 = vld [vmem:[%s3056 + $0x8] sm:$0xf]
    %v3060 = vld [vmem:[%s3056 + $0xc] sm:$0xf]
    %s3061 = scalar_lea.vmem %s7, 32
    %v3062 = vld [vmem:[%s3061] sm:$0xf]
    %v3063 = vld [vmem:[%s3061 + $0x4] sm:$0xf]
    %v3064 = vld [vmem:[%s3061 + $0x8] sm:$0xf]
    %v3065 = vld [vmem:[%s3061 + $0xc] sm:$0xf]
    %s3066 = scalar_lea.vmem %s7, 48
    %v3067 = vld [vmem:[%s3066] sm:$0xf]
    %v3068 = vld [vmem:[%s3066 + $0x4] sm:$0xf]
    %v3069 = vld [vmem:[%s3066 + $0x8] sm:$0xf]
    %v3070 = vld [vmem:[%s3066 + $0xc] sm:$0xf]
    %s3071 = scalar_lea.vmem %s7, 64
    %v3072 = vld [vmem:[%s3071] sm:$0xf]
    %v3073 = vld [vmem:[%s3071 + $0x4] sm:$0xf]
    %v3074 = vld [vmem:[%s3071 + $0x8] sm:$0xf]
    %v3075 = vld [vmem:[%s3071 + $0xc] sm:$0xf]
    %s3076 = scalar_lea.vmem %s7, 80
    %v3077 = vld [vmem:[%s3076] sm:$0xf]
    %v3078 = vld [vmem:[%s3076 + $0x4] sm:$0xf]
    %v3079 = vld [vmem:[%s3076 + $0x8] sm:$0xf]
    %v3080 = vld [vmem:[%s3076 + $0xc] sm:$0xf]
    %v3081 = vld [vmem:[#allocation16] sm:$0x1]
    %v3083 = vlaneseq
    %v3084 = vshrl.u32 %v3083, 7
    %v3085 = vsub.s32 0, %v3084
    %v3086 = vrot.slane %v3081, %v3085
    %s3088 = scalar_lea.vmem [#allocation16], 1
    %v3089 = vld [vmem:[%s3088] sm:$0x1]
    %v3091 = vlaneseq
    %v3092 = vshrl.u32 %v3091, 7
    %v3093 = vsub.s32 0, %v3092
    %v3094 = vrot.slane %v3089, %v3093
    %v3096 = vld [vmem:[%s292] sm:$0x3]
    %v3097 = vld [vmem:[%s308] sm:$0x3]
    %v3098 = vld [vmem:[%s332] sm:$0x3]
    %v3103 = vunpack.c.l.b16 %v3067
    %v3104 = vunpack.c.l.b16 %v3068
    %v3105 = vunpack.c.l.b16 %v3069
    %v3106 = vunpack.c.l.b16 %v3070
    %v3107 = vpack.c.b16 %v3104, %v3103
    %v3108 = vpack.c.b16 %v3106, %v3105
    %3111 = vmatprep.subr.bf16.mxu0 0
    %3112 = vmatpush1.bf16.msra.mxu0 %v3107
    %3113 = vmatprep.subr.bf16.mxu0 0
    %3114 = vmatpush1.bf16.msra.mxu0 %v3108
    %3115 = vmatprep.subr.bf16.mxu0 0
    %3116 = vmatpush1.bf16.msra.mxu0 0
    %3117 = vmatprep.subr.bf16.mxu0 0
    %3118 = vmatpush1.bf16.msra.mxu0 0
    %3119 = vmatprep.subr.bf16.mxu0 0
    %3120 = vmatpush1.bf16.msra.mxu0 0
    %3121 = vmatprep.subr.bf16.mxu0 0
    %3122 = vmatpush1.bf16.msra.mxu0 0
    %3123 = vmatprep.subr.bf16.mxu0 0
    %3124 = vmatpush1.bf16.msra.mxu0 0
    %3125 = vmatprep.subr.bf16.mxu0 0
    %3126 = vmatpush1.bf16.msra.mxu0 0
    %3127 = vmatprep.subr.bf16.mxu0 0
    %3128 = vmatpush1.bf16.msra.mxu0 0
    %3129 = vmatprep.subr.bf16.mxu0 0
    %3130 = vmatpush1.bf16.msra.mxu0 0
    %3131 = vmatprep.subr.bf16.mxu0 0
    %3132 = vmatpush1.bf16.msra.mxu0 0
    %3133 = vmatprep.subr.bf16.mxu0 0
    %3134 = vmatpush1.bf16.msra.mxu0 0
    %3135 = vmatprep.subr.bf16.mxu0 0
    %3136 = vmatpush1.bf16.msra.mxu0 0
    %3137 = vmatprep.subr.bf16.mxu0 0
    %3138 = vmatpush1.bf16.msra.mxu0 0
    %3139 = vmatprep.subr.bf16.mxu0 0
    %3140 = vmatpush1.bf16.msra.mxu0 0
    %3141 = vmatprep.subr.bf16.mxu0 0
    %3142 = vmatpush1.bf16.msra.mxu0 0
    %3143 = vmatprep.mubr.bf16.mxu0 0
    %3144 = vmatmul.mubr.bf16.gmra.mrb[0].mxu0 %v395
    %v3145 = vpop.f32.mrb[0].mxu0
    %v3146 = vadd.f32 0.0, %v3145
    %v3147 = vpop.f32.mrb[0].mxu0
    %v3148 = vpop.f32.mrb[0].mxu0
    %v3149 = vpop.f32.mrb[0].mxu0
    %3150 = vdwg.mxu0
    %v3155 = vunpack.c.l.b16 %v3072
    %v3156 = vunpack.c.l.b16 %v3073
    %v3157 = vunpack.c.l.b16 %v3074
    %v3158 = vunpack.c.l.b16 %v3075
    %v3159 = vpack.c.b16 %v3156, %v3155
    %v3160 = vpack.c.b16 %v3158, %v3157
    %3163 = vmatprep.subr.bf16.mxu0 0
    %3164 = vmatpush1.bf16.msra.mxu0 %v3159
    %3165 = vmatprep.subr.bf16.mxu0 0
    %3166 = vmatpush1.bf16.msra.mxu0 %v3160
    %3167 = vmatprep.subr.bf16.mxu0 0
    %3168 = vmatpush1.bf16.msra.mxu0 0
    %3169 = vmatprep.subr.bf16.mxu0 0
    %3170 = vmatpush1.bf16.msra.mxu0 0
    %3171 = vmatprep.subr.bf16.mxu0 0
    %3172 = vmatpush1.bf16.msra.mxu0 0
    %3173 = vmatprep.subr.bf16.mxu0 0
    %3174 = vmatpush1.bf16.msra.mxu0 0
    %3175 = vmatprep.subr.bf16.mxu0 0
    %3176 = vmatpush1.bf16.msra.mxu0 0
    %3177 = vmatprep.subr.bf16.mxu0 0
    %3178 = vmatpush1.bf16.msra.mxu0 0
    %3179 = vmatprep.subr.bf16.mxu0 0
    %3180 = vmatpush1.bf16.msra.mxu0 0
    %3181 = vmatprep.subr.bf16.mxu0 0
    %3182 = vmatpush1.bf16.msra.mxu0 0
    %3183 = vmatprep.subr.bf16.mxu0 0
    %3184 = vmatpush1.bf16.msra.mxu0 0
    %3185 = vmatprep.subr.bf16.mxu0 0
    %3186 = vmatpush1.bf16.msra.mxu0 0
    %3187 = vmatprep.subr.bf16.mxu0 0
    %3188 = vmatpush1.bf16.msra.mxu0 0
    %3189 = vmatprep.subr.bf16.mxu0 0
    %3190 = vmatpush1.bf16.msra.mxu0 0
    %3191 = vmatprep.subr.bf16.mxu0 0
    %3192 = vmatpush1.bf16.msra.mxu0 0
    %3193 = vmatprep.subr.bf16.mxu0 0
    %3194 = vmatpush1.bf16.msra.mxu0 0
    %3195 = vmatprep.mubr.bf16.mxu0 0
    %3196 = vmatmul.mubr.bf16.gmra.mrb[0].mxu0 %v395
    %v3197 = vpop.f32.mrb[0].mxu0
    %v3198 = vadd.f32 0.0, %v3197
    %v3199 = vpop.f32.mrb[0].mxu0
    %v3200 = vpop.f32.mrb[0].mxu0
    %v3201 = vpop.f32.mrb[0].mxu0
    %3202 = vdwg.mxu0
    %v3207 = vunpack.c.l.b16 %v3077
    %v3208 = vunpack.c.l.b16 %v3078
    %v3209 = vunpack.c.l.b16 %v3079
    %v3210 = vunpack.c.l.b16 %v3080
    %v3211 = vpack.c.b16 %v3208, %v3207
    %v3212 = vpack.c.b16 %v3210, %v3209
    %3215 = vmatprep.subr.bf16.mxu0 0
    %3216 = vmatpush1.bf16.msra.mxu0 %v3211
    %3217 = vmatprep.subr.bf16.mxu0 0
    %3218 = vmatpush1.bf16.msra.mxu0 %v3212
    %3219 = vmatprep.subr.bf16.mxu0 0
    %3220 = vmatpush1.bf16.msra.mxu0 0
    %3221 = vmatprep.subr.bf16.mxu0 0
    %3222 = vmatpush1.bf16.msra.mxu0 0
    %3223 = vmatprep.subr.bf16.mxu0 0
    %3224 = vmatpush1.bf16.msra.mxu0 0
    %3225 = vmatprep.subr.bf16.mxu0 0
    %3226 = vmatpush1.bf16.msra.mxu0 0
    %3227 = vmatprep.subr.bf16.mxu0 0
    %3228 = vmatpush1.bf16.msra.mxu0 0
    %3229 = vmatprep.subr.bf16.mxu0 0
    %3230 = vmatpush1.bf16.msra.mxu0 0
    %3231 = vmatprep.subr.bf16.mxu0 0
    %3232 = vmatpush1.bf16.msra.mxu0 0
    %3233 = vmatprep.subr.bf16.mxu0 0
    %3234 = vmatpush1.bf16.msra.mxu0 0
    %3235 = vmatprep.subr.bf16.mxu0 0
    %3236 = vmatpush1.bf16.msra.mxu0 0
    %3237 = vmatprep.subr.bf16.mxu0 0
    %3238 = vmatpush1.bf16.msra.mxu0 0
    %3239 = vmatprep.subr.bf16.mxu0 0
    %3240 = vmatpush1.bf16.msra.mxu0 0
    %3241 = vmatprep.subr.bf16.mxu0 0
    %3242 = vmatpush1.bf16.msra.mxu0 0
    %3243 = vmatprep.subr.bf16.mxu0 0
    %3244 = vmatpush1.bf16.msra.mxu0 0
    %3245 = vmatprep.subr.bf16.mxu0 0
    %3246 = vmatpush1.bf16.msra.mxu0 0
    %3247 = vmatprep.mubr.bf16.mxu0 0
    %3248 = vmatmul.mubr.bf16.gmra.mrb[0].mxu0 %v395
    %v3249 = vpop.f32.mrb[0].mxu0
    %v3250 = vadd.f32 %v3094, %v3249
    %v3251 = vpop.f32.mrb[0].mxu0
    %v3252 = vpop.f32.mrb[0].mxu0
    %v3253 = vpop.f32.mrb[0].mxu0
    %3254 = vdwg.mxu0
    %v3255 = vadd.f32 %v3096, %v3146
    %v3256 = vxor.u32 %v3255, 2147483648
    %v3257 = vmul.f32 %v3256, 1.442695
    %v3258 = vpow.pop %v3257
    %v3259 = vadd.f32 %v3258, 1.0
    %v3260 = vrcp.pop %v3259
    %v3261 = vmul.f32 1.0, %v3260
    %v3262 = vadd.f32 %v3097, %v3198
    %v3263 = vxor.u32 %v3262, 2147483648
    %v3264 = vmul.f32 %v3263, 1.442695
    %v3265 = vpow.pop %v3264
    %v3266 = vadd.f32 %v3265, 1.0
    %v3267 = vrcp.pop %v3266
    %v3268 = vmul.f32 1.0, %v3267
    %v3269 = vmul.f32 %v3261, %v3250
    %v3270 = vadd.f32 %v3098, %v3269
    %v3271 = vtanh.pop %v3270
    %v3272 = vsub.f32 0.0, %v3271
    %v3273 = vmul.f32 %v3268, %v3272
    %v3274 = vadd.f32 %v3271, %v3273
    %v3275 = vld [vmem:[#allocation2] sm:$0x3]
    %v3276 = vld [vmem:[%s230] sm:$0x3]
    %v3277 = vld [vmem:[%s253] sm:$0x3]
    %v3282 = vunpack.c.l.b16 %v3052
    %v3283 = vunpack.c.l.b16 %v3053
    %v3284 = vunpack.c.l.b16 %v3054
    %v3285 = vunpack.c.l.b16 %v3055
    %v3286 = vpack.c.b16 %v3283, %v3282
    %v3287 = vpack.c.b16 %v3285, %v3284
    %3290 = vmatprep.subr.bf16.mxu0 0
    %3291 = vmatpush1.bf16.msra.mxu0 %v3286
    %3292 = vmatprep.subr.bf16.mxu0 0
    %3293 = vmatpush1.bf16.msra.mxu0 %v3287
    %3294 = vmatprep.subr.bf16.mxu0 0
    %3295 = vmatpush1.bf16.msra.mxu0 0
    %3296 = vmatprep.subr.bf16.mxu0 0
    %3297 = vmatpush1.bf16.msra.mxu0 0
    %3298 = vmatprep.subr.bf16.mxu0 0
    %3299 = vmatpush1.bf16.msra.mxu0 0
    %3300 = vmatprep.subr.bf16.mxu0 0
    %3301 = vmatpush1.bf16.msra.mxu0 0
    %3302 = vmatprep.subr.bf16.mxu0 0
    %3303 = vmatpush1.bf16.msra.mxu0 0
    %3304 = vmatprep.subr.bf16.mxu0 0
    %3305 = vmatpush1.bf16.msra.mxu0 0
    %3306 = vmatprep.subr.bf16.mxu0 0
    %3307 = vmatpush1.bf16.msra.mxu0 0
    %3308 = vmatprep.subr.bf16.mxu0 0
    %3309 = vmatpush1.bf16.msra.mxu0 0
    %3310 = vmatprep.subr.bf16.mxu0 0
    %3311 = vmatpush1.bf16.msra.mxu0 0
    %3312 = vmatprep.subr.bf16.mxu0 0
    %3313 = vmatpush1.bf16.msra.mxu0 0
    %3314 = vmatprep.subr.bf16.mxu0 0
    %3315 = vmatpush1.bf16.msra.mxu0 0
    %3316 = vmatprep.subr.bf16.mxu0 0
    %3317 = vmatpush1.bf16.msra.mxu0 0
    %3318 = vmatprep.subr.bf16.mxu0 0
    %3319 = vmatpush1.bf16.msra.mxu0 0
    %3320 = vmatprep.subr.bf16.mxu0 0
    %3321 = vmatpush1.bf16.msra.mxu0 0
    %3322 = vmatprep.mubr.bf16.mxu0 0
    %3323 = vmatmul.mubr.bf16.gmra.mrb[0].mxu0 %v395
    %v3324 = vpop.f32.mrb[0].mxu0
    %v3325 = vadd.f32 0.0, %v3324
    %v3326 = vpop.f32.mrb[0].mxu0
    %v3327 = vpop.f32.mrb[0].mxu0
    %v3328 = vpop.f32.mrb[0].mxu0
    %3329 = vdwg.mxu0
    %v3334 = vunpack.c.l.b16 %v3057
    %v3335 = vunpack.c.l.b16 %v3058
    %v3336 = vunpack.c.l.b16 %v3059
    %v3337 = vunpack.c.l.b16 %v3060
    %v3338 = vpack.c.b16 %v3335, %v3334
    %v3339 = vpack.c.b16 %v3337, %v3336
    %3342 = vmatprep.subr.bf16.mxu0 0
    %3343 = vmatpush1.bf16.msra.mxu0 %v3338
    %3344 = vmatprep.subr.bf16.mxu0 0
    %3345 = vmatpush1.bf16.msra.mxu0 %v3339
    %3346 = vmatprep.subr.bf16.mxu0 0
    %3347 = vmatpush1.bf16.msra.mxu0 0
    %3348 = vmatprep.subr.bf16.mxu0 0
    %3349 = vmatpush1.bf16.msra.mxu0 0
    %3350 = vmatprep.subr.bf16.mxu0 0
    %3351 = vmatpush1.bf16.msra.mxu0 0
    %3352 = vmatprep.subr.bf16.mxu0 0
    %3353 = vmatpush1.bf16.msra.mxu0 0
    %3354 = vmatprep.subr.bf16.mxu0 0
    %3355 = vmatpush1.bf16.msra.mxu0 0
    %3356 = vmatprep.subr.bf16.mxu0 0
    %3357 = vmatpush1.bf16.msra.mxu0 0
    %3358 = vmatprep.subr.bf16.mxu0 0
    %3359 = vmatpush1.bf16.msra.mxu0 0
    %3360 = vmatprep.subr.bf16.mxu0 0
    %3361 = vmatpush1.bf16.msra.mxu0 0
    %3362 = vmatprep.subr.bf16.mxu0 0
    %3363 = vmatpush1.bf16.msra.mxu0 0
    %3364 = vmatprep.subr.bf16.mxu0 0
    %3365 = vmatpush1.bf16.msra.mxu0 0
    %3366 = vmatprep.subr.bf16.mxu0 0
    %3367 = vmatpush1.bf16.msra.mxu0 0
    %3368 = vmatprep.subr.bf16.mxu0 0
    %3369 = vmatpush1.bf16.msra.mxu0 0
    %3370 = vmatprep.subr.bf16.mxu0 0
    %3371 = vmatpush1.bf16.msra.mxu0 0
    %3372 = vmatprep.subr.bf16.mxu0 0
    %3373 = vmatpush1.bf16.msra.mxu0 0
    %3374 = vmatprep.mubr.bf16.mxu0 0
    %3375 = vmatmul.mubr.bf16.gmra.mrb[0].mxu0 %v395
    %v3376 = vpop.f32.mrb[0].mxu0
    %v3377 = vadd.f32 0.0, %v3376
    %v3378 = vpop.f32.mrb[0].mxu0
    %v3379 = vpop.f32.mrb[0].mxu0
    %v3380 = vpop.f32.mrb[0].mxu0
    %3381 = vdwg.mxu0
    %v3386 = vunpack.c.l.b16 %v3062
    %v3387 = vunpack.c.l.b16 %v3063
    %v3388 = vunpack.c.l.b16 %v3064
    %v3389 = vunpack.c.l.b16 %v3065
    %v3390 = vpack.c.b16 %v3387, %v3386
    %v3391 = vpack.c.b16 %v3389, %v3388
    %3394 = vmatprep.subr.bf16.mxu0 0
    %3395 = vmatpush1.bf16.msra.mxu0 %v3390
    %3396 = vmatprep.subr.bf16.mxu0 0
    %3397 = vmatpush1.bf16.msra.mxu0 %v3391
    %3398 = vmatprep.subr.bf16.mxu0 0
    %3399 = vmatpush1.bf16.msra.mxu0 0
    %3400 = vmatprep.subr.bf16.mxu0 0
    %3401 = vmatpush1.bf16.msra.mxu0 0
    %3402 = vmatprep.subr.bf16.mxu0 0
    %3403 = vmatpush1.bf16.msra.mxu0 0
    %3404 = vmatprep.subr.bf16.mxu0 0
    %3405 = vmatpush1.bf16.msra.mxu0 0
    %3406 = vmatprep.subr.bf16.mxu0 0
    %3407 = vmatpush1.bf16.msra.mxu0 0
    %3408 = vmatprep.subr.bf16.mxu0 0
    %3409 = vmatpush1.bf16.msra.mxu0 0
    %3410 = vmatprep.subr.bf16.mxu0 0
    %3411 = vmatpush1.bf16.msra.mxu0 0
    %3412 = vmatprep.subr.bf16.mxu0 0
    %3413 = vmatpush1.bf16.msra.mxu0 0
    %3414 = vmatprep.subr.bf16.mxu0 0
    %3415 = vmatpush1.bf16.msra.mxu0 0
    %3416 = vmatprep.subr.bf16.mxu0 0
    %3417 = vmatpush1.bf16.msra.mxu0 0
    %3418 = vmatprep.subr.bf16.mxu0 0
    %3419 = vmatpush1.bf16.msra.mxu0 0
    %3420 = vmatprep.subr.bf16.mxu0 0
    %3421 = vmatpush1.bf16.msra.mxu0 0
    %3422 = vmatprep.subr.bf16.mxu0 0
    %3423 = vmatpush1.bf16.msra.mxu0 0
    %3424 = vmatprep.subr.bf16.mxu0 0
    %3425 = vmatpush1.bf16.msra.mxu0 0
    %3426 = vmatprep.mubr.bf16.mxu0 0
    %3427 = vmatmul.mubr.bf16.gmra.mrb[0].mxu0 %v395
    %v3428 = vpop.f32.mrb[0].mxu0
    %v3429 = vadd.f32 %v3086, %v3428
    %v3430 = vpop.f32.mrb[0].mxu0
    %v3431 = vpop.f32.mrb[0].mxu0
    %v3432 = vpop.f32.mrb[0].mxu0
    %3433 = vdwg.mxu0
    %v3434 = vadd.f32 %v3275, %v3325
    %v3435 = vxor.u32 %v3434, 2147483648
    %v3436 = vmul.f32 %v3435, 1.442695
    %v3437 = vpow.pop %v3436
    %v3438 = vadd.f32 %v3437, 1.0
    %v3439 = vrcp.pop %v3438
    %v3440 = vmul.f32 1.0, %v3439
    %v3441 = vadd.f32 %v3276, %v3377
    %v3442 = vxor.u32 %v3441, 2147483648
    %v3443 = vmul.f32 %v3442, 1.442695
    %v3444 = vpow.pop %v3443
    %v3445 = vadd.f32 %v3444, 1.0
    %v3446 = vrcp.pop %v3445
    %v3447 = vmul.f32 1.0, %v3446
    %v3448 = vmul.f32 %v3440, %v3429
    %v3449 = vadd.f32 %v3277, %v3448
    %v3450 = vtanh.pop %v3449
    %v3451 = vsub.f32 0.0, %v3450
    %v3452 = vmul.f32 %v3447, %v3451
    %v3453 = vadd.f32 %v3450, %v3452
    %v3454 = vld [vmem:[%s209] sm:$0x3]
    %v3455 = vld [vmem:[%s232] sm:$0x3]
    %v3456 = vld [vmem:[%s255] sm:$0x3]
    %v3457 = vpack.c.bf16 %v3453, %v3453
    %v3459 = vsel %vm393, %v3457, 0
    %3461 = vmatprep.subr.bf16.mxu0 0
    %3462 = vmatpush1.bf16.msra.mxu0 %v3286
    %3463 = vmatprep.subr.bf16.mxu0 0
    %3464 = vmatpush1.bf16.msra.mxu0 %v3287
    %3465 = vmatprep.subr.bf16.mxu0 0
    %3466 = vmatpush1.bf16.msra.mxu0 0
    %3467 = vmatprep.subr.bf16.mxu0 0
    %3468 = vmatpush1.bf16.msra.mxu0 0
    %3469 = vmatprep.subr.bf16.mxu0 0
    %3470 = vmatpush1.bf16.msra.mxu0 0
    %3471 = vmatprep.subr.bf16.mxu0 0
    %3472 = vmatpush1.bf16.msra.mxu0 0
    %3473 = vmatprep.subr.bf16.mxu0 0
    %3474 = vmatpush1.bf16.msra.mxu0 0
    %3475 = vmatprep.subr.bf16.mxu0 0
    %3476 = vmatpush1.bf16.msra.mxu0 0
    %3477 = vmatprep.subr.bf16.mxu0 0
    %3478 = vmatpush1.bf16.msra.mxu0 0
    %3479 = vmatprep.subr.bf16.mxu0 0
    %3480 = vmatpush1.bf16.msra.mxu0 0
    %3481 = vmatprep.subr.bf16.mxu0 0
    %3482 = vmatpush1.bf16.msra.mxu0 0
    %3483 = vmatprep.subr.bf16.mxu0 0
    %3484 = vmatpush1.bf16.msra.mxu0 0
    %3485 = vmatprep.subr.bf16.mxu0 0
    %3486 = vmatpush1.bf16.msra.mxu0 0
    %3487 = vmatprep.subr.bf16.mxu0 0
    %3488 = vmatpush1.bf16.msra.mxu0 0
    %3489 = vmatprep.subr.bf16.mxu0 0
    %3490 = vmatpush1.bf16.msra.mxu0 0
    %3491 = vmatprep.subr.bf16.mxu0 0
    %3492 = vmatpush1.bf16.msra.mxu0 0
    %3493 = vmatprep.mubr.bf16.mxu0 0
    %3494 = vmatmul.mubr.bf16.gmra.mrb[0].mxu0 %v3459
    %v3495 = vpop.f32.mrb[0].mxu0
    %v3496 = vadd.f32 0.0, %v3495
    %v3497 = vpop.f32.mrb[0].mxu0
    %v3498 = vpop.f32.mrb[0].mxu0
    %v3499 = vpop.f32.mrb[0].mxu0
    %3500 = vdwg.mxu0
    %3501 = vmatprep.subr.bf16.mxu0 0
    %3502 = vmatpush1.bf16.msra.mxu0 %v3338
    %3503 = vmatprep.subr.bf16.mxu0 0
    %3504 = vmatpush1.bf16.msra.mxu0 %v3339
    %3505 = vmatprep.subr.bf16.mxu0 0
    %3506 = vmatpush1.bf16.msra.mxu0 0
    %3507 = vmatprep.subr.bf16.mxu0 0
    %3508 = vmatpush1.bf16.msra.mxu0 0
    %3509 = vmatprep.subr.bf16.mxu0 0
    %3510 = vmatpush1.bf16.msra.mxu0 0
    %3511 = vmatprep.subr.bf16.mxu0 0
    %3512 = vmatpush1.bf16.msra.mxu0 0
    %3513 = vmatprep.subr.bf16.mxu0 0
    %3514 = vmatpush1.bf16.msra.mxu0 0
    %3515 = vmatprep.subr.bf16.mxu0 0
    %3516 = vmatpush1.bf16.msra.mxu0 0
    %3517 = vmatprep.subr.bf16.mxu0 0
    %3518 = vmatpush1.bf16.msra.mxu0 0
    %3519 = vmatprep.subr.bf16.mxu0 0
    %3520 = vmatpush1.bf16.msra.mxu0 0
    %3521 = vmatprep.subr.bf16.mxu0 0
    %3522 = vmatpush1.bf16.msra.mxu0 0
    %3523 = vmatprep.subr.bf16.mxu0 0
    %3524 = vmatpush1.bf16.msra.mxu0 0
    %3525 = vmatprep.subr.bf16.mxu0 0
    %3526 = vmatpush1.bf16.msra.mxu0 0
    %3527 = vmatprep.subr.bf16.mxu0 0
    %3528 = vmatpush1.bf16.msra.mxu0 0
    %3529 = vmatprep.subr.bf16.mxu0 0
    %3530 = vmatpush1.bf16.msra.mxu0 0
    %3531 = vmatprep.subr.bf16.mxu0 0
    %3532 = vmatpush1.bf16.msra.mxu0 0
    %3533 = vmatprep.mubr.bf16.mxu0 0
    %3534 = vmatmul.mubr.bf16.gmra.mrb[0].mxu0 %v3459
    %v3535 = vpop.f32.mrb[0].mxu0
    %v3536 = vadd.f32 0.0, %v3535
    %v3537 = vpop.f32.mrb[0].mxu0
    %v3538 = vpop.f32.mrb[0].mxu0
    %v3539 = vpop.f32.mrb[0].mxu0
    %3540 = vdwg.mxu0
    %3541 = vmatprep.subr.bf16.mxu0 0
    %3542 = vmatpush1.bf16.msra.mxu0 %v3390
    %3543 = vmatprep.subr.bf16.mxu0 0
    %3544 = vmatpush1.bf16.msra.mxu0 %v3391
    %3545 = vmatprep.subr.bf16.mxu0 0
    %3546 = vmatpush1.bf16.msra.mxu0 0
    %3547 = vmatprep.subr.bf16.mxu0 0
    %3548 = vmatpush1.bf16.msra.mxu0 0
    %3549 = vmatprep.subr.bf16.mxu0 0
    %3550 = vmatpush1.bf16.msra.mxu0 0
    %3551 = vmatprep.subr.bf16.mxu0 0
    %3552 = vmatpush1.bf16.msra.mxu0 0
    %3553 = vmatprep.subr.bf16.mxu0 0
    %3554 = vmatpush1.bf16.msra.mxu0 0
    %3555 = vmatprep.subr.bf16.mxu0 0
    %3556 = vmatpush1.bf16.msra.mxu0 0
    %3557 = vmatprep.subr.bf16.mxu0 0
    %3558 = vmatpush1.bf16.msra.mxu0 0
    %3559 = vmatprep.subr.bf16.mxu0 0
    %3560 = vmatpush1.bf16.msra.mxu0 0
    %3561 = vmatprep.subr.bf16.mxu0 0
    %3562 = vmatpush1.bf16.msra.mxu0 0
    %3563 = vmatprep.subr.bf16.mxu0 0
    %3564 = vmatpush1.bf16.msra.mxu0 0
    %3565 = vmatprep.subr.bf16.mxu0 0
    %3566 = vmatpush1.bf16.msra.mxu0 0
    %3567 = vmatprep.subr.bf16.mxu0 0
    %3568 = vmatpush1.bf16.msra.mxu0 0
    %3569 = vmatprep.subr.bf16.mxu0 0
    %3570 = vmatpush1.bf16.msra.mxu0 0
    %3571 = vmatprep.subr.bf16.mxu0 0
    %3572 = vmatpush1.bf16.msra.mxu0 0
    %3573 = vmatprep.mubr.bf16.mxu0 0
    %3574 = vmatmul.mubr.bf16.gmra.mrb[0].mxu0 %v3459
    %v3575 = vpop.f32.mrb[0].mxu0
    %v3576 = vadd.f32 %v3086, %v3575
    %v3577 = vpop.f32.mrb[0].mxu0
    %v3578 = vpop.f32.mrb[0].mxu0
    %v3579 = vpop.f32.mrb[0].mxu0
    %3580 = vdwg.mxu0
    %v3581 = vadd.f32 %v3454, %v3496
    %v3582 = vxor.u32 %v3581, 2147483648
    %v3583 = vmul.f32 %v3582, 1.442695
    %v3584 = vpow.pop %v3583
    %v3585 = vadd.f32 %v3584, 1.0
    %v3586 = vrcp.pop %v3585
    %v3587 = vmul.f32 1.0, %v3586
    %v3588 = vadd.f32 %v3455, %v3536
    %v3589 = vxor.u32 %v3588, 2147483648
    %v3590 = vmul.f32 %v3589, 1.442695
    %v3591 = vpow.pop %v3590
    %v3592 = vadd.f32 %v3591, 1.0
    %v3593 = vrcp.pop %v3592
    %v3594 = vmul.f32 1.0, %v3593
    %v3595 = vmul.f32 %v3587, %v3576
    %v3596 = vadd.f32 %v3456, %v3595
    %v3597 = vtanh.pop %v3596
    %v3598 = vsub.f32 %v3453, %v3597
    %v3599 = vmul.f32 %v3594, %v3598
    %v3600 = vadd.f32 %v3597, %v3599
    %v3601 = vld [vmem:[%s212] sm:$0x3]
    %v3602 = vld [vmem:[%s234] sm:$0x3]
    %v3603 = vld [vmem:[%s257] sm:$0x3]
    %v3604 = vpack.c.bf16 %v3600, %v3600
    %v3606 = vsel %vm393, %v3604, 0
    %3608 = vmatprep.subr.bf16.mxu0 0
    %3609 = vmatpush1.bf16.msra.mxu0 %v3286
    %3610 = vmatprep.subr.bf16.mxu0 0
    %3611 = vmatpush1.bf16.msra.mxu0 %v3287
    %3612 = vmatprep.subr.bf16.mxu0 0
    %3613 = vmatpush1.bf16.msra.mxu0 0
    %3614 = vmatprep.subr.bf16.mxu0 0
    %3615 = vmatpush1.bf16.msra.mxu0 0
    %3616 = vmatprep.subr.bf16.mxu0 0
    %3617 = vmatpush1.bf16.msra.mxu0 0
    %3618 = vmatprep.subr.bf16.mxu0 0
    %3619 = vmatpush1.bf16.msra.mxu0 0
    %3620 = vmatprep.subr.bf16.mxu0 0
    %3621 = vmatpush1.bf16.msra.mxu0 0
    %3622 = vmatprep.subr.bf16.mxu0 0
    %3623 = vmatpush1.bf16.msra.mxu0 0
    %3624 = vmatprep.subr.bf16.mxu0 0
    %3625 = vmatpush1.bf16.msra.mxu0 0
    %3626 = vmatprep.subr.bf16.mxu0 0
    %3627 = vmatpush1.bf16.msra.mxu0 0
    %3628 = vmatprep.subr.bf16.mxu0 0
    %3629 = vmatpush1.bf16.msra.mxu0 0
    %3630 = vmatprep.subr.bf16.mxu0 0
    %3631 = vmatpush1.bf16.msra.mxu0 0
    %3632 = vmatprep.subr.bf16.mxu0 0
    %3633 = vmatpush1.bf16.msra.mxu0 0
    %3634 = vmatprep.subr.bf16.mxu0 0
    %3635 = vmatpush1.bf16.msra.mxu0 0
    %3636 = vmatprep.subr.bf16.mxu0 0
    %3637 = vmatpush1.bf16.msra.mxu0 0
    %3638 = vmatprep.subr.bf16.mxu0 0
    %3639 = vmatpush1.bf16.msra.mxu0 0
    %3640 = vmatprep.mubr.bf16.mxu0 0
    %3641 = vmatmul.mubr.bf16.gmra.mrb[0].mxu0 %v3606
    %v3642 = vpop.f32.mrb[0].mxu0
    %v3643 = vadd.f32 0.0, %v3642
    %v3644 = vpop.f32.mrb[0].mxu0
    %v3645 = vpop.f32.mrb[0].mxu0
    %v3646 = vpop.f32.mrb[0].mxu0
    %3647 = vdwg.mxu0
    %3648 = vmatprep.subr.bf16.mxu0 0
    %3649 = vmatpush1.bf16.msra.mxu0 %v3338
    %3650 = vmatprep.subr.bf16.mxu0 0
    %3651 = vmatpush1.bf16.msra.mxu0 %v3339
    %3652 = vmatprep.subr.bf16.mxu0 0
    %3653 = vmatpush1.bf16.msra.mxu0 0
    %3654 = vmatprep.subr.bf16.mxu0 0
    %3655 = vmatpush1.bf16.msra.mxu0 0
    %3656 = vmatprep.subr.bf16.mxu0 0
    %3657 = vmatpush1.bf16.msra.mxu0 0
    %3658 = vmatprep.subr.bf16.mxu0 0
    %3659 = vmatpush1.bf16.msra.mxu0 0
    %3660 = vmatprep.subr.bf16.mxu0 0
    %3661 = vmatpush1.bf16.msra.mxu0 0
    %3662 = vmatprep.subr.bf16.mxu0 0
    %3663 = vmatpush1.bf16.msra.mxu0 0
    %3664 = vmatprep.subr.bf16.mxu0 0
    %3665 = vmatpush1.bf16.msra.mxu0 0
    %3666 = vmatprep.subr.bf16.mxu0 0
    %3667 = vmatpush1.bf16.msra.mxu0 0
    %3668 = vmatprep.subr.bf16.mxu0 0
    %3669 = vmatpush1.bf16.msra.mxu0 0
    %3670 = vmatprep.subr.bf16.mxu0 0
    %3671 = vmatpush1.bf16.msra.mxu0 0
    %3672 = vmatprep.subr.bf16.mxu0 0
    %3673 = vmatpush1.bf16.msra.mxu0 0
    %3674 = vmatprep.subr.bf16.mxu0 0
    %3675 = vmatpush1.bf16.msra.mxu0 0
    %3676 = vmatprep.subr.bf16.mxu0 0
    %3677 = vmatpush1.bf16.msra.mxu0 0
    %3678 = vmatprep.subr.bf16.mxu0 0
    %3679 = vmatpush1.bf16.msra.mxu0 0
    %3680 = vmatprep.mubr.bf16.mxu0 0
    %3681 = vmatmul.mubr.bf16.gmra.mrb[0].mxu0 %v3606
    %v3682 = vpop.f32.mrb[0].mxu0
    %v3683 = vadd.f32 0.0, %v3682
    %v3684 = vpop.f32.mrb[0].mxu0
    %v3685 = vpop.f32.mrb[0].mxu0
    %v3686 = vpop.f32.mrb[0].mxu0
    %3687 = vdwg.mxu0
    %3688 = vmatprep.subr.bf16.mxu0 0
    %3689 = vmatpush1.bf16.msra.mxu0 %v3390
    %3690 = vmatprep.subr.bf16.mxu0 0
    %3691 = vmatpush1.bf16.msra.mxu0 %v3391
    %3692 = vmatprep.subr.bf16.mxu0 0
    %3693 = vmatpush1.bf16.msra.mxu0 0
    %3694 = vmatprep.subr.bf16.mxu0 0
    %3695 = vmatpush1.bf16.msra.mxu0 0
    %3696 = vmatprep.subr.bf16.mxu0 0
    %3697 = vmatpush1.bf16.msra.mxu0 0
    %3698 = vmatprep.subr.bf16.mxu0 0
    %3699 = vmatpush1.bf16.msra.mxu0 0
    %3700 = vmatprep.subr.bf16.mxu0 0
    %3701 = vmatpush1.bf16.msra.mxu0 0
    %3702 = vmatprep.subr.bf16.mxu0 0
    %3703 = vmatpush1.bf16.msra.mxu0 0
    %3704 = vmatprep.subr.bf16.mxu0 0
    %3705 = vmatpush1.bf16.msra.mxu0 0
    %3706 = vmatprep.subr.bf16.mxu0 0
    %3707 = vmatpush1.bf16.msra.mxu0 0
    %3708 = vmatprep.subr.bf16.mxu0 0
    %3709 = vmatpush1.bf16.msra.mxu0 0
    %3710 = vmatprep.subr.bf16.mxu0 0
    %3711 = vmatpush1.bf16.msra.mxu0 0
    %3712 = vmatprep.subr.bf16.mxu0 0
    %3713 = vmatpush1.bf16.msra.mxu0 0
    %3714 = vmatprep.subr.bf16.mxu0 0
    %3715 = vmatpush1.bf16.msra.mxu0 0
    %3716 = vmatprep.subr.bf16.mxu0 0
    %3717 = vmatpush1.bf16.msra.mxu0 0
    %3718 = vmatprep.subr.bf16.mxu0 0
    %3719 = vmatpush1.bf16.msra.mxu0 0
    %3720 = vmatprep.mubr.bf16.mxu0 0
    %3721 = vmatmul.mubr.bf16.gmra.mrb[0].mxu0 %v3606
    %v3722 = vpop.f32.mrb[0].mxu0
    %v3723 = vadd.f32 %v3086, %v3722
    %v3724 = vpop.f32.mrb[0].mxu0
    %v3725 = vpop.f32.mrb[0].mxu0
    %v3726 = vpop.f32.mrb[0].mxu0
    %3727 = vdwg.mxu0
    %v3728 = vadd.f32 %v3601, %v3643
    %v3729 = vxor.u32 %v3728, 2147483648
    %v3730 = vmul.f32 %v3729, 1.442695
    %v3731 = vpow.pop %v3730
    %v3732 = vadd.f32 %v3731, 1.0
    %v3733 = vrcp.pop %v3732
    %v3734 = vmul.f32 1.0, %v3733
    %v3735 = vadd.f32 %v3602, %v3683
    %v3736 = vxor.u32 %v3735, 2147483648
    %v3737 = vmul.f32 %v3736, 1.442695
    %v3738 = vpow.pop %v3737
    %v3739 = vadd.f32 %v3738, 1.0
    %v3740 = vrcp.pop %v3739
    %v3741 = vmul.f32 1.0, %v3740
    %v3742 = vmul.f32 %v3734, %v3723
    %v3743 = vadd.f32 %v3603, %v3742
    %v3744 = vtanh.pop %v3743
    %v3745 = vsub.f32 %v3600, %v3744
    %v3746 = vmul.f32 %v3741, %v3745
    %v3747 = vadd.f32 %v3744, %v3746
    %v3748 = vld [vmem:[%s215] sm:$0x3]
    %v3749 = vld [vmem:[%s236] sm:$0x3]
    %v3750 = vld [vmem:[%s259] sm:$0x3]
    %v3751 = vpack.c.bf16 %v3747, %v3747
    %v3753 = vsel %vm393, %v3751, 0
    %3755 = vmatprep.subr.bf16.mxu0 0
    %3756 = vmatpush1.bf16.msra.mxu0 %v3286
    %3757 = vmatprep.subr.bf16.mxu0 0
    %3758 = vmatpush1.bf16.msra.mxu0 %v3287
    %3759 = vmatprep.subr.bf16.mxu0 0
    %3760 = vmatpush1.bf16.msra.mxu0 0
    %3761 = vmatprep.subr.bf16.mxu0 0
    %3762 = vmatpush1.bf16.msra.mxu0 0
    %3763 = vmatprep.subr.bf16.mxu0 0
    %3764 = vmatpush1.bf16.msra.mxu0 0
    %3765 = vmatprep.subr.bf16.mxu0 0
    %3766 = vmatpush1.bf16.msra.mxu0 0
    %3767 = vmatprep.subr.bf16.mxu0 0
    %3768 = vmatpush1.bf16.msra.mxu0 0
    %3769 = vmatprep.subr.bf16.mxu0 0
    %3770 = vmatpush1.bf16.msra.mxu0 0
    %3771 = vmatprep.subr.bf16.mxu0 0
    %3772 = vmatpush1.bf16.msra.mxu0 0
    %3773 = vmatprep.subr.bf16.mxu0 0
    %3774 = vmatpush1.bf16.msra.mxu0 0
    %3775 = vmatprep.subr.bf16.mxu0 0
    %3776 = vmatpush1.bf16.msra.mxu0 0
    %3777 = vmatprep.subr.bf16.mxu0 0
    %3778 = vmatpush1.bf16.msra.mxu0 0
    %3779 = vmatprep.subr.bf16.mxu0 0
    %3780 = vmatpush1.bf16.msra.mxu0 0
    %3781 = vmatprep.subr.bf16.mxu0 0
    %3782 = vmatpush1.bf16.msra.mxu0 0
    %3783 = vmatprep.subr.bf16.mxu0 0
    %3784 = vmatpush1.bf16.msra.mxu0 0
    %3785 = vmatprep.subr.bf16.mxu0 0
    %3786 = vmatpush1.bf16.msra.mxu0 0
    %3787 = vmatprep.mubr.bf16.mxu0 0
    %3788 = vmatmul.mubr.bf16.gmra.mrb[0].mxu0 %v3753
    %v3789 = vpop.f32.mrb[0].mxu0
    %v3790 = vadd.f32 0.0, %v3789
    %v3791 = vpop.f32.mrb[0].mxu0
    %v3792 = vpop.f32.mrb[0].mxu0
    %v3793 = vpop.f32.mrb[0].mxu0
    %3794 = vdwg.mxu0
    %3795 = vmatprep.subr.bf16.mxu0 0
    %3796 = vmatpush1.bf16.msra.mxu0 %v3338
    %3797 = vmatprep.subr.bf16.mxu0 0
    %3798 = vmatpush1.bf16.msra.mxu0 %v3339
    %3799 = vmatprep.subr.bf16.mxu0 0
    %3800 = vmatpush1.bf16.msra.mxu0 0
    %3801 = vmatprep.subr.bf16.mxu0 0
    %3802 = vmatpush1.bf16.msra.mxu0 0
    %3803 = vmatprep.subr.bf16.mxu0 0
    %3804 = vmatpush1.bf16.msra.mxu0 0
    %3805 = vmatprep.subr.bf16.mxu0 0
    %3806 = vmatpush1.bf16.msra.mxu0 0
    %3807 = vmatprep.subr.bf16.mxu0 0
    %3808 = vmatpush1.bf16.msra.mxu0 0
    %3809 = vmatprep.subr.bf16.mxu0 0
    %3810 = vmatpush1.bf16.msra.mxu0 0
    %3811 = vmatprep.subr.bf16.mxu0 0
    %3812 = vmatpush1.bf16.msra.mxu0 0
    %3813 = vmatprep.subr.bf16.mxu0 0
    %3814 = vmatpush1.bf16.msra.mxu0 0
    %3815 = vmatprep.subr.bf16.mxu0 0
    %3816 = vmatpush1.bf16.msra.mxu0 0
    %3817 = vmatprep.subr.bf16.mxu0 0
    %3818 = vmatpush1.bf16.msra.mxu0 0
    %3819 = vmatprep.subr.bf16.mxu0 0
    %3820 = vmatpush1.bf16.msra.mxu0 0
    %3821 = vmatprep.subr.bf16.mxu0 0
    %3822 = vmatpush1.bf16.msra.mxu0 0
    %3823 = vmatprep.subr.bf16.mxu0 0
    %3824 = vmatpush1.bf16.msra.mxu0 0
    %3825 = vmatprep.subr.bf16.mxu0 0
    %3826 = vmatpush1.bf16.msra.mxu0 0
    %3827 = vmatprep.mubr.bf16.mxu0 0
    %3828 = vmatmul.mubr.bf16.gmra.mrb[0].mxu0 %v3753
    %v3829 = vpop.f32.mrb[0].mxu0
    %v3830 = vadd.f32 0.0, %v3829
    %v3831 = vpop.f32.mrb[0].mxu0
    %v3832 = vpop.f32.mrb[0].mxu0
    %v3833 = vpop.f32.mrb[0].mxu0
    %3834 = vdwg.mxu0
    %3835 = vmatprep.subr.bf16.mxu0 0
    %3836 = vmatpush1.bf16.msra.mxu0 %v3390
    %3837 = vmatprep.subr.bf16.mxu0 0
    %3838 = vmatpush1.bf16.msra.mxu0 %v3391
    %3839 = vmatprep.subr.bf16.mxu0 0
    %3840 = vmatpush1.bf16.msra.mxu0 0
    %3841 = vmatprep.subr.bf16.mxu0 0
    %3842 = vmatpush1.bf16.msra.mxu0 0
    %3843 = vmatprep.subr.bf16.mxu0 0
    %3844 = vmatpush1.bf16.msra.mxu0 0
    %3845 = vmatprep.subr.bf16.mxu0 0
    %3846 = vmatpush1.bf16.msra.mxu0 0
    %3847 = vmatprep.subr.bf16.mxu0 0
    %3848 = vmatpush1.bf16.msra.mxu0 0
    %3849 = vmatprep.subr.bf16.mxu0 0
    %3850 = vmatpush1.bf16.msra.mxu0 0
    %3851 = vmatprep.subr.bf16.mxu0 0
    %3852 = vmatpush1.bf16.msra.mxu0 0
    %3853 = vmatprep.subr.bf16.mxu0 0
    %3854 = vmatpush1.bf16.msra.mxu0 0
    %3855 = vmatprep.subr.bf16.mxu0 0
    %3856 = vmatpush1.bf16.msra.mxu0 0
    %3857 = vmatprep.subr.bf16.mxu0 0
    %3858 = vmatpush1.bf16.msra.mxu0 0
    %3859 = vmatprep.subr.bf16.mxu0 0
    %3860 = vmatpush1.bf16.msra.mxu0 0
    %3861 = vmatprep.subr.bf16.mxu0 0
    %3862 = vmatpush1.bf16.msra.mxu0 0
    %3863 = vmatprep.subr.bf16.mxu0 0
    %3864 = vmatpush1.bf16.msra.mxu0 0
    %3865 = vmatprep.subr.bf16.mxu0 0
    %3866 = vmatpush1.bf16.msra.mxu0 0
    %3867 = vmatprep.mubr.bf16.mxu0 0
    %3868 = vmatmul.mubr.bf16.gmra.mrb[0].mxu0 %v3753
    %v3869 = vpop.f32.mrb[0].mxu0
    %v3870 = vadd.f32 %v3086, %v3869
    %v3871 = vpop.f32.mrb[0].mxu0
    %v3872 = vpop.f32.mrb[0].mxu0
    %v3873 = vpop.f32.mrb[0].mxu0
    %3874 = vdwg.mxu0
    %v3875 = vadd.f32 %v3748, %v3790
    %v3876 = vxor.u32 %v3875, 2147483648
    %v3877 = vmul.f32 %v3876, 1.442695
    %v3878 = vpow.pop %v3877
    %v3879 = vadd.f32 %v3878, 1.0
    %v3880 = vrcp.pop %v3879
    %v3881 = vmul.f32 1.0, %v3880
    %v3882 = vadd.f32 %v3749, %v3830
    %v3883 = vxor.u32 %v3882, 2147483648
    %v3884 = vmul.f32 %v3883, 1.442695
    %v3885 = vpow.pop %v3884
    %v3886 = vadd.f32 %v3885, 1.0
    %v3887 = vrcp.pop %v3886
    %v3888 = vmul.f32 1.0, %v3887
    %v3889 = vmul.f32 %v3881, %v3870
    %v3890 = vadd.f32 %v3750, %v3889
    %v3891 = vtanh.pop %v3890
    %v3892 = vsub.f32 %v3747, %v3891
    %v3893 = vmul.f32 %v3888, %v3892
    %v3894 = vadd.f32 %v3891, %v3893
    %v3895 = vld [vmem:[%s218] sm:$0x3]
    %v3896 = vld [vmem:[%s242] sm:$0x3]
    %v3897 = vld [vmem:[%s264] sm:$0x3]
    %v3898 = vpack.c.bf16 %v3894, %v3894
    %v3900 = vsel %vm393, %v3898, 0
    %3902 = vmatprep.subr.bf16.mxu0 0
    %3903 = vmatpush1.bf16.msra.mxu0 %v3286
    %3904 = vmatprep.subr.bf16.mxu0 0
    %3905 = vmatpush1.bf16.msra.mxu0 %v3287
    %3906 = vmatprep.subr.bf16.mxu0 0
    %3907 = vmatpush1.bf16.msra.mxu0 0
    %3908 = vmatprep.subr.bf16.mxu0 0
    %3909 = vmatpush1.bf16.msra.mxu0 0
    %3910 = vmatprep.subr.bf16.mxu0 0
    %3911 = vmatpush1.bf16.msra.mxu0 0
    %3912 = vmatprep.subr.bf16.mxu0 0
    %3913 = vmatpush1.bf16.msra.mxu0 0
    %3914 = vmatprep.subr.bf16.mxu0 0
    %3915 = vmatpush1.bf16.msra.mxu0 0
    %3916 = vmatprep.subr.bf16.mxu0 0
    %3917 = vmatpush1.bf16.msra.mxu0 0
    %3918 = vmatprep.subr.bf16.mxu0 0
    %3919 = vmatpush1.bf16.msra.mxu0 0
    %3920 = vmatprep.subr.bf16.mxu0 0
    %3921 = vmatpush1.bf16.msra.mxu0 0
    %3922 = vmatprep.subr.bf16.mxu0 0
    %3923 = vmatpush1.bf16.msra.mxu0 0
    %3924 = vmatprep.subr.bf16.mxu0 0
    %3925 = vmatpush1.bf16.msra.mxu0 0
    %3926 = vmatprep.subr.bf16.mxu0 0
    %3927 = vmatpush1.bf16.msra.mxu0 0
    %3928 = vmatprep.subr.bf16.mxu0 0
    %3929 = vmatpush1.bf16.msra.mxu0 0
    %3930 = vmatprep.subr.bf16.mxu0 0
    %3931 = vmatpush1.bf16.msra.mxu0 0
    %3932 = vmatprep.subr.bf16.mxu0 0
    %3933 = vmatpush1.bf16.msra.mxu0 0
    %3934 = vmatprep.mubr.bf16.mxu0 0
    %3935 = vmatmul.mubr.bf16.gmra.mrb[0].mxu0 %v3900
    %v3936 = vpop.f32.mrb[0].mxu0
    %v3937 = vadd.f32 0.0, %v3936
    %v3938 = vpop.f32.mrb[0].mxu0
    %v3939 = vpop.f32.mrb[0].mxu0
    %v3940 = vpop.f32.mrb[0].mxu0
    %3941 = vdwg.mxu0
    %3942 = vmatprep.subr.bf16.mxu0 0
    %3943 = vmatpush1.bf16.msra.mxu0 %v3338
    %3944 = vmatprep.subr.bf16.mxu0 0
    %3945 = vmatpush1.bf16.msra.mxu0 %v3339
    %3946 = vmatprep.subr.bf16.mxu0 0
    %3947 = vmatpush1.bf16.msra.mxu0 0
    %3948 = vmatprep.subr.bf16.mxu0 0
    %3949 = vmatpush1.bf16.msra.mxu0 0
    %3950 = vmatprep.subr.bf16.mxu0 0
    %3951 = vmatpush1.bf16.msra.mxu0 0
    %3952 = vmatprep.subr.bf16.mxu0 0
    %3953 = vmatpush1.bf16.msra.mxu0 0
    %3954 = vmatprep.subr.bf16.mxu0 0
    %3955 = vmatpush1.bf16.msra.mxu0 0
    %3956 = vmatprep.subr.bf16.mxu0 0
    %3957 = vmatpush1.bf16.msra.mxu0 0
    %3958 = vmatprep.subr.bf16.mxu0 0
    %3959 = vmatpush1.bf16.msra.mxu0 0
    %3960 = vmatprep.subr.bf16.mxu0 0
    %3961 = vmatpush1.bf16.msra.mxu0 0
    %3962 = vmatprep.subr.bf16.mxu0 0
    %3963 = vmatpush1.bf16.msra.mxu0 0
    %3964 = vmatprep.subr.bf16.mxu0 0
    %3965 = vmatpush1.bf16.msra.mxu0 0
    %3966 = vmatprep.subr.bf16.mxu0 0
    %3967 = vmatpush1.bf16.msra.mxu0 0
    %3968 = vmatprep.subr.bf16.mxu0 0
    %3969 = vmatpush1.bf16.msra.mxu0 0
    %3970 = vmatprep.subr.bf16.mxu0 0
    %3971 = vmatpush1.bf16.msra.mxu0 0
    %3972 = vmatprep.subr.bf16.mxu0 0
    %3973 = vmatpush1.bf16.msra.mxu0 0
    %3974 = vmatprep.mubr.bf16.mxu0 0
    %3975 = vmatmul.mubr.bf16.gmra.mrb[0].mxu0 %v3900
    %v3976 = vpop.f32.mrb[0].mxu0
    %v3977 = vadd.f32 0.0, %v3976
    %v3978 = vpop.f32.mrb[0].mxu0
    %v3979 = vpop.f32.mrb[0].mxu0
    %v3980 = vpop.f32.mrb[0].mxu0
    %3981 = vdwg.mxu0
    %3982 = vmatprep.subr.bf16.mxu0 0
    %3983 = vmatpush1.bf16.msra.mxu0 %v3390
    %3984 = vmatprep.subr.bf16.mxu0 0
    %3985 = vmatpush1.bf16.msra.mxu0 %v3391
    %3986 = vmatprep.subr.bf16.mxu0 0
    %3987 = vmatpush1.bf16.msra.mxu0 0
    %3988 = vmatprep.subr.bf16.mxu0 0
    %3989 = vmatpush1.bf16.msra.mxu0 0
    %3990 = vmatprep.subr.bf16.mxu0 0
    %3991 = vmatpush1.bf16.msra.mxu0 0
    %3992 = vmatprep.subr.bf16.mxu0 0
    %3993 = vmatpush1.bf16.msra.mxu0 0
    %3994 = vmatprep.subr.bf16.mxu0 0
    %3995 = vmatpush1.bf16.msra.mxu0 0
    %3996 = vmatprep.subr.bf16.mxu0 0
    %3997 = vmatpush1.bf16.msra.mxu0 0
    %3998 = vmatprep.subr.bf16.mxu0 0
    %3999 = vmatpush1.bf16.msra.mxu0 0
    %4000 = vmatprep.subr.bf16.mxu0 0
    %4001 = vmatpush1.bf16.msra.mxu0 0
    %4002 = vmatprep.subr.bf16.mxu0 0
    %4003 = vmatpush1.bf16.msra.mxu0 0
    %4004 = vmatprep.subr.bf16.mxu0 0
    %4005 = vmatpush1.bf16.msra.mxu0 0
    %4006 = vmatprep.subr.bf16.mxu0 0
    %4007 = vmatpush1.bf16.msra.mxu0 0
    %4008 = vmatprep.subr.bf16.mxu0 0
    %4009 = vmatpush1.bf16.msra.mxu0 0
    %4010 = vmatprep.subr.bf16.mxu0 0
    %4011 = vmatpush1.bf16.msra.mxu0 0
    %4012 = vmatprep.subr.bf16.mxu0 0
    %4013 = vmatpush1.bf16.msra.mxu0 0
    %4014 = vmatprep.mubr.bf16.mxu0 0
    %4015 = vmatmul.mubr.bf16.gmra.mrb[0].mxu0 %v3900
    %v4016 = vpop.f32.mrb[0].mxu0
    %v4017 = vadd.f32 %v3086, %v4016
    %v4018 = vpop.f32.mrb[0].mxu0
    %v4019 = vpop.f32.mrb[0].mxu0
    %v4020 = vpop.f32.mrb[0].mxu0
    %4021 = vdwg.mxu0
    %v4022 = vadd.f32 %v3895, %v3937
    %v4023 = vxor.u32 %v4022, 2147483648
    %v4024 = vmul.f32 %v4023, 1.442695
    %v4025 = vpow.pop %v4024
    %v4026 = vadd.f32 %v4025, 1.0
    %v4027 = vrcp.pop %v4026
    %v4028 = vmul.f32 1.0, %v4027
    %v4029 = vadd.f32 %v3896, %v3977
    %v4030 = vxor.u32 %v4029, 2147483648
    %v4031 = vmul.f32 %v4030, 1.442695
    %v4032 = vpow.pop %v4031
    %v4033 = vadd.f32 %v4032, 1.0
    %v4034 = vrcp.pop %v4033
    %v4035 = vmul.f32 1.0, %v4034
    %v4036 = vmul.f32 %v4028, %v4017
    %v4037 = vadd.f32 %v3897, %v4036
    %v4038 = vtanh.pop %v4037
    %v4039 = vsub.f32 %v3894, %v4038
    %v4040 = vmul.f32 %v4035, %v4039
    %v4041 = vadd.f32 %v4038, %v4040
    %v4042 = vld [vmem:[%s220] sm:$0x3]
    %v4043 = vld [vmem:[%s244] sm:$0x3]
    %v4044 = vld [vmem:[%s266] sm:$0x3]
    %v4045 = vpack.c.bf16 %v4041, %v4041
    %v4047 = vsel %vm393, %v4045, 0
    %4049 = vmatprep.subr.bf16.mxu0 0
    %4050 = vmatpush1.bf16.msra.mxu0 %v3286
    %4051 = vmatprep.subr.bf16.mxu0 0
    %4052 = vmatpush1.bf16.msra.mxu0 %v3287
    %4053 = vmatprep.subr.bf16.mxu0 0
    %4054 = vmatpush1.bf16.msra.mxu0 0
    %4055 = vmatprep.subr.bf16.mxu0 0
    %4056 = vmatpush1.bf16.msra.mxu0 0
    %4057 = vmatprep.subr.bf16.mxu0 0
    %4058 = vmatpush1.bf16.msra.mxu0 0
    %4059 = vmatprep.subr.bf16.mxu0 0
    %4060 = vmatpush1.bf16.msra.mxu0 0
    %4061 = vmatprep.subr.bf16.mxu0 0
    %4062 = vmatpush1.bf16.msra.mxu0 0
    %4063 = vmatprep.subr.bf16.mxu0 0
    %4064 = vmatpush1.bf16.msra.mxu0 0
    %4065 = vmatprep.subr.bf16.mxu0 0
    %4066 = vmatpush1.bf16.msra.mxu0 0
    %4067 = vmatprep.subr.bf16.mxu0 0
    %4068 = vmatpush1.bf16.msra.mxu0 0
    %4069 = vmatprep.subr.bf16.mxu0 0
    %4070 = vmatpush1.bf16.msra.mxu0 0
    %4071 = vmatprep.subr.bf16.mxu0 0
    %4072 = vmatpush1.bf16.msra.mxu0 0
    %4073 = vmatprep.subr.bf16.mxu0 0
    %4074 = vmatpush1.bf16.msra.mxu0 0
    %4075 = vmatprep.subr.bf16.mxu0 0
    %4076 = vmatpush1.bf16.msra.mxu0 0
    %4077 = vmatprep.subr.bf16.mxu0 0
    %4078 = vmatpush1.bf16.msra.mxu0 0
    %4079 = vmatprep.subr.bf16.mxu0 0
    %4080 = vmatpush1.bf16.msra.mxu0 0
    %4081 = vmatprep.mubr.bf16.mxu0 0
    %4082 = vmatmul.mubr.bf16.gmra.mrb[0].mxu0 %v4047
    %v4083 = vpop.f32.mrb[0].mxu0
    %v4084 = vadd.f32 0.0, %v4083
    %v4085 = vpop.f32.mrb[0].mxu0
    %v4086 = vpop.f32.mrb[0].mxu0
    %v4087 = vpop.f32.mrb[0].mxu0
    %4088 = vdwg.mxu0
    %4089 = vmatprep.subr.bf16.mxu0 0
    %4090 = vmatpush1.bf16.msra.mxu0 %v3338
    %4091 = vmatprep.subr.bf16.mxu0 0
    %4092 = vmatpush1.bf16.msra.mxu0 %v3339
    %4093 = vmatprep.subr.bf16.mxu0 0
    %4094 = vmatpush1.bf16.msra.mxu0 0
    %4095 = vmatprep.subr.bf16.mxu0 0
    %4096 = vmatpush1.bf16.msra.mxu0 0
    %4097 = vmatprep.subr.bf16.mxu0 0
    %4098 = vmatpush1.bf16.msra.mxu0 0
    %4099 = vmatprep.subr.bf16.mxu0 0
    %4100 = vmatpush1.bf16.msra.mxu0 0
    %4101 = vmatprep.subr.bf16.mxu0 0
    %4102 = vmatpush1.bf16.msra.mxu0 0
    %4103 = vmatprep.subr.bf16.mxu0 0
    %4104 = vmatpush1.bf16.msra.mxu0 0
    %4105 = vmatprep.subr.bf16.mxu0 0
    %4106 = vmatpush1.bf16.msra.mxu0 0
    %4107 = vmatprep.subr.bf16.mxu0 0
    %4108 = vmatpush1.bf16.msra.mxu0 0
    %4109 = vmatprep.subr.bf16.mxu0 0
    %4110 = vmatpush1.bf16.msra.mxu0 0
    %4111 = vmatprep.subr.bf16.mxu0 0
    %4112 = vmatpush1.bf16.msra.mxu0 0
    %4113 = vmatprep.subr.bf16.mxu0 0
    %4114 = vmatpush1.bf16.msra.mxu0 0
    %4115 = vmatprep.subr.bf16.mxu0 0
    %4116 = vmatpush1.bf16.msra.mxu0 0
    %4117 = vmatprep.subr.bf16.mxu0 0
    %4118 = vmatpush1.bf16.msra.mxu0 0
    %4119 = vmatprep.subr.bf16.mxu0 0
    %4120 = vmatpush1.bf16.msra.mxu0 0
    %4121 = vmatprep.mubr.bf16.mxu0 0
    %4122 = vmatmul.mubr.bf16.gmra.mrb[0].mxu0 %v4047
    %v4123 = vpop.f32.mrb[0].mxu0
    %v4124 = vadd.f32 0.0, %v4123
    %v4125 = vpop.f32.mrb[0].mxu0
    %v4126 = vpop.f32.mrb[0].mxu0
    %v4127 = vpop.f32.mrb[0].mxu0
    %4128 = vdwg.mxu0
    %4129 = vmatprep.subr.bf16.mxu0 0
    %4130 = vmatpush1.bf16.msra.mxu0 %v3390
    %4131 = vmatprep.subr.bf16.mxu0 0
    %4132 = vmatpush1.bf16.msra.mxu0 %v3391
    %4133 = vmatprep.subr.bf16.mxu0 0
    %4134 = vmatpush1.bf16.msra.mxu0 0
    %4135 = vmatprep.subr.bf16.mxu0 0
    %4136 = vmatpush1.bf16.msra.mxu0 0
    %4137 = vmatprep.subr.bf16.mxu0 0
    %4138 = vmatpush1.bf16.msra.mxu0 0
    %4139 = vmatprep.subr.bf16.mxu0 0
    %4140 = vmatpush1.bf16.msra.mxu0 0
    %4141 = vmatprep.subr.bf16.mxu0 0
    %4142 = vmatpush1.bf16.msra.mxu0 0
    %4143 = vmatprep.subr.bf16.mxu0 0
    %4144 = vmatpush1.bf16.msra.mxu0 0
    %4145 = vmatprep.subr.bf16.mxu0 0
    %4146 = vmatpush1.bf16.msra.mxu0 0
    %4147 = vmatprep.subr.bf16.mxu0 0
    %4148 = vmatpush1.bf16.msra.mxu0 0
    %4149 = vmatprep.subr.bf16.mxu0 0
    %4150 = vmatpush1.bf16.msra.mxu0 0
    %4151 = vmatprep.subr.bf16.mxu0 0
    %4152 = vmatpush1.bf16.msra.mxu0 0
    %4153 = vmatprep.subr.bf16.mxu0 0
    %4154 = vmatpush1.bf16.msra.mxu0 0
    %4155 = vmatprep.subr.bf16.mxu0 0
    %4156 = vmatpush1.bf16.msra.mxu0 0
    %4157 = vmatprep.subr.bf16.mxu0 0
    %4158 = vmatpush1.bf16.msra.mxu0 0
    %4159 = vmatprep.subr.bf16.mxu0 0
    %4160 = vmatpush1.bf16.msra.mxu0 0
    %4161 = vmatprep.mubr.bf16.mxu0 0
    %4162 = vmatmul.mubr.bf16.gmra.mrb[0].mxu0 %v4047
    %v4163 = vpop.f32.mrb[0].mxu0
    %v4164 = vadd.f32 %v3086, %v4163
    %v4165 = vpop.f32.mrb[0].mxu0
    %v4166 = vpop.f32.mrb[0].mxu0
    %v4167 = vpop.f32.mrb[0].mxu0
    %4168 = vdwg.mxu0
    %v4169 = vadd.f32 %v4042, %v4084
    %v4170 = vxor.u32 %v4169, 2147483648
    %v4171 = vmul.f32 %v4170, 1.442695
    %v4172 = vpow.pop %v4171
    %v4173 = vadd.f32 %v4172, 1.0
    %v4174 = vrcp.pop %v4173
    %v4175 = vmul.f32 1.0, %v4174
    %v4176 = vadd.f32 %v4043, %v4124
    %v4177 = vxor.u32 %v4176, 2147483648
    %v4178 = vmul.f32 %v4177, 1.442695
    %v4179 = vpow.pop %v4178
    %v4180 = vadd.f32 %v4179, 1.0
    %v4181 = vrcp.pop %v4180
    %v4182 = vmul.f32 1.0, %v4181
    %v4183 = vmul.f32 %v4175, %v4164
    %v4184 = vadd.f32 %v4044, %v4183
    %v4185 = vtanh.pop %v4184
    %v4186 = vsub.f32 %v4041, %v4185
    %v4187 = vmul.f32 %v4182, %v4186
    %v4188 = vadd.f32 %v4185, %v4187
    %v4189 = vld [vmem:[%s222] sm:$0x3]
    %v4190 = vld [vmem:[%s246] sm:$0x3]
    %v4191 = vld [vmem:[%s268] sm:$0x3]
    %v4192 = vpack.c.bf16 %v4188, %v4188
    %v4194 = vsel %vm393, %v4192, 0
    %4196 = vmatprep.subr.bf16.mxu0 0
    %4197 = vmatpush1.bf16.msra.mxu0 %v3286
    %4198 = vmatprep.subr.bf16.mxu0 0
    %4199 = vmatpush1.bf16.msra.mxu0 %v3287
    %4200 = vmatprep.subr.bf16.mxu0 0
    %4201 = vmatpush1.bf16.msra.mxu0 0
    %4202 = vmatprep.subr.bf16.mxu0 0
    %4203 = vmatpush1.bf16.msra.mxu0 0
    %4204 = vmatprep.subr.bf16.mxu0 0
    %4205 = vmatpush1.bf16.msra.mxu0 0
    %4206 = vmatprep.subr.bf16.mxu0 0
    %4207 = vmatpush1.bf16.msra.mxu0 0
    %4208 = vmatprep.subr.bf16.mxu0 0
    %4209 = vmatpush1.bf16.msra.mxu0 0
    %4210 = vmatprep.subr.bf16.mxu0 0
    %4211 = vmatpush1.bf16.msra.mxu0 0
    %4212 = vmatprep.subr.bf16.mxu0 0
    %4213 = vmatpush1.bf16.msra.mxu0 0
    %4214 = vmatprep.subr.bf16.mxu0 0
    %4215 = vmatpush1.bf16.msra.mxu0 0
    %4216 = vmatprep.subr.bf16.mxu0 0
    %4217 = vmatpush1.bf16.msra.mxu0 0
    %4218 = vmatprep.subr.bf16.mxu0 0
    %4219 = vmatpush1.bf16.msra.mxu0 0
    %4220 = vmatprep.subr.bf16.mxu0 0
    %4221 = vmatpush1.bf16.msra.mxu0 0
    %4222 = vmatprep.subr.bf16.mxu0 0
    %4223 = vmatpush1.bf16.msra.mxu0 0
    %4224 = vmatprep.subr.bf16.mxu0 0
    %4225 = vmatpush1.bf16.msra.mxu0 0
    %4226 = vmatprep.subr.bf16.mxu0 0
    %4227 = vmatpush1.bf16.msra.mxu0 0
    %4228 = vmatprep.mubr.bf16.mxu0 0
    %4229 = vmatmul.mubr.bf16.gmra.mrb[0].mxu0 %v4194
    %v4230 = vpop.f32.mrb[0].mxu0
    %v4231 = vadd.f32 0.0, %v4230
    %v4232 = vpop.f32.mrb[0].mxu0
    %v4233 = vpop.f32.mrb[0].mxu0
    %v4234 = vpop.f32.mrb[0].mxu0
    %4235 = vdwg.mxu0
    %4236 = vmatprep.subr.bf16.mxu0 0
    %4237 = vmatpush1.bf16.msra.mxu0 %v3338
    %4238 = vmatprep.subr.bf16.mxu0 0
    %4239 = vmatpush1.bf16.msra.mxu0 %v3339
    %4240 = vmatprep.subr.bf16.mxu0 0
    %4241 = vmatpush1.bf16.msra.mxu0 0
    %4242 = vmatprep.subr.bf16.mxu0 0
    %4243 = vmatpush1.bf16.msra.mxu0 0
    %4244 = vmatprep.subr.bf16.mxu0 0
    %4245 = vmatpush1.bf16.msra.mxu0 0
    %4246 = vmatprep.subr.bf16.mxu0 0
    %4247 = vmatpush1.bf16.msra.mxu0 0
    %4248 = vmatprep.subr.bf16.mxu0 0
    %4249 = vmatpush1.bf16.msra.mxu0 0
    %4250 = vmatprep.subr.bf16.mxu0 0
    %4251 = vmatpush1.bf16.msra.mxu0 0
    %4252 = vmatprep.subr.bf16.mxu0 0
    %4253 = vmatpush1.bf16.msra.mxu0 0
    %4254 = vmatprep.subr.bf16.mxu0 0
    %4255 = vmatpush1.bf16.msra.mxu0 0
    %4256 = vmatprep.subr.bf16.mxu0 0
    %4257 = vmatpush1.bf16.msra.mxu0 0
    %4258 = vmatprep.subr.bf16.mxu0 0
    %4259 = vmatpush1.bf16.msra.mxu0 0
    %4260 = vmatprep.subr.bf16.mxu0 0
    %4261 = vmatpush1.bf16.msra.mxu0 0
    %4262 = vmatprep.subr.bf16.mxu0 0
    %4263 = vmatpush1.bf16.msra.mxu0 0
    %4264 = vmatprep.subr.bf16.mxu0 0
    %4265 = vmatpush1.bf16.msra.mxu0 0
    %4266 = vmatprep.subr.bf16.mxu0 0
    %4267 = vmatpush1.bf16.msra.mxu0 0
    %4268 = vmatprep.mubr.bf16.mxu0 0
    %4269 = vmatmul.mubr.bf16.gmra.mrb[0].mxu0 %v4194
    %v4270 = vpop.f32.mrb[0].mxu0
    %v4271 = vadd.f32 0.0, %v4270
    %v4272 = vpop.f32.mrb[0].mxu0
    %v4273 = vpop.f32.mrb[0].mxu0
    %v4274 = vpop.f32.mrb[0].mxu0
    %4275 = vdwg.mxu0
    %4276 = vmatprep.subr.bf16.mxu0 0
    %4277 = vmatpush1.bf16.msra.mxu0 %v3390
    %4278 = vmatprep.subr.bf16.mxu0 0
    %4279 = vmatpush1.bf16.msra.mxu0 %v3391
    %4280 = vmatprep.subr.bf16.mxu0 0
    %4281 = vmatpush1.bf16.msra.mxu0 0
    %4282 = vmatprep.subr.bf16.mxu0 0
    %4283 = vmatpush1.bf16.msra.mxu0 0
    %4284 = vmatprep.subr.bf16.mxu0 0
    %4285 = vmatpush1.bf16.msra.mxu0 0
    %4286 = vmatprep.subr.bf16.mxu0 0
    %4287 = vmatpush1.bf16.msra.mxu0 0
    %4288 = vmatprep.subr.bf16.mxu0 0
    %4289 = vmatpush1.bf16.msra.mxu0 0
    %4290 = vmatprep.subr.bf16.mxu0 0
    %4291 = vmatpush1.bf16.msra.mxu0 0
    %4292 = vmatprep.subr.bf16.mxu0 0
    %4293 = vmatpush1.bf16.msra.mxu0 0
    %4294 = vmatprep.subr.bf16.mxu0 0
    %4295 = vmatpush1.bf16.msra.mxu0 0
    %4296 = vmatprep.subr.bf16.mxu0 0
    %4297 = vmatpush1.bf16.msra.mxu0 0
    %4298 = vmatprep.subr.bf16.mxu0 0
    %4299 = vmatpush1.bf16.msra.mxu0 0
    %4300 = vmatprep.subr.bf16.mxu0 0
    %4301 = vmatpush1.bf16.msra.mxu0 0
    %4302 = vmatprep.subr.bf16.mxu0 0
    %4303 = vmatpush1.bf16.msra.mxu0 0
    %4304 = vmatprep.subr.bf16.mxu0 0
    %4305 = vmatpush1.bf16.msra.mxu0 0
    %4306 = vmatprep.subr.bf16.mxu0 0
    %4307 = vmatpush1.bf16.msra.mxu0 0
    %4308 = vmatprep.mubr.bf16.mxu0 0
    %4309 = vmatmul.mubr.bf16.gmra.mrb[0].mxu0 %v4194
    %v4310 = vpop.f32.mrb[0].mxu0
    %v4311 = vadd.f32 %v3086, %v4310
    %v4312 = vpop.f32.mrb[0].mxu0
    %v4313 = vpop.f32.mrb[0].mxu0
    %v4314 = vpop.f32.mrb[0].mxu0
    %4315 = vdwg.mxu0
    %v4316 = vadd.f32 %v4189, %v4231
    %v4317 = vxor.u32 %v4316, 2147483648
    %v4318 = vmul.f32 %v4317, 1.442695
    %v4319 = vpow.pop %v4318
    %v4320 = vadd.f32 %v4319, 1.0
    %v4321 = vrcp.pop %v4320
    %v4322 = vmul.f32 1.0, %v4321
    %v4323 = vadd.f32 %v4190, %v4271
    %v4324 = vxor.u32 %v4323, 2147483648
    %v4325 = vmul.f32 %v4324, 1.442695
    %v4326 = vpow.pop %v4325
    %v4327 = vadd.f32 %v4326, 1.0
    %v4328 = vrcp.pop %v4327
    %v4329 = vmul.f32 1.0, %v4328
    %v4330 = vmul.f32 %v4322, %v4311
    %v4331 = vadd.f32 %v4191, %v4330
    %v4332 = vtanh.pop %v4331
    %v4333 = vsub.f32 %v4188, %v4332
    %v4334 = vmul.f32 %v4329, %v4333
    %v4335 = vadd.f32 %v4332, %v4334
    %v4336 = vld [vmem:[%s224] sm:$0x3]
    %v4337 = vld [vmem:[%s248] sm:$0x3]
    %v4338 = vld [vmem:[%s270] sm:$0x3]
    %v4339 = vpack.c.bf16 %v4335, %v4335
    %v4341 = vsel %vm393, %v4339, 0
    %4343 = vmatprep.subr.bf16.mxu0 0
    %4344 = vmatpush1.bf16.msra.mxu0 %v3286
    %4345 = vmatprep.subr.bf16.mxu0 0
    %4346 = vmatpush1.bf16.msra.mxu0 %v3287
    %4347 = vmatprep.subr.bf16.mxu0 0
    %4348 = vmatpush1.bf16.msra.mxu0 0
    %4349 = vmatprep.subr.bf16.mxu0 0
    %4350 = vmatpush1.bf16.msra.mxu0 0
    %4351 = vmatprep.subr.bf16.mxu0 0
    %4352 = vmatpush1.bf16.msra.mxu0 0
    %4353 = vmatprep.subr.bf16.mxu0 0
    %4354 = vmatpush1.bf16.msra.mxu0 0
    %4355 = vmatprep.subr.bf16.mxu0 0
    %4356 = vmatpush1.bf16.msra.mxu0 0
    %4357 = vmatprep.subr.bf16.mxu0 0
    %4358 = vmatpush1.bf16.msra.mxu0 0
    %4359 = vmatprep.subr.bf16.mxu0 0
    %4360 = vmatpush1.bf16.msra.mxu0 0
    %4361 = vmatprep.subr.bf16.mxu0 0
    %4362 = vmatpush1.bf16.msra.mxu0 0
    %4363 = vmatprep.subr.bf16.mxu0 0
    %4364 = vmatpush1.bf16.msra.mxu0 0
    %4365 = vmatprep.subr.bf16.mxu0 0
    %4366 = vmatpush1.bf16.msra.mxu0 0
    %4367 = vmatprep.subr.bf16.mxu0 0
    %4368 = vmatpush1.bf16.msra.mxu0 0
    %4369 = vmatprep.subr.bf16.mxu0 0
    %4370 = vmatpush1.bf16.msra.mxu0 0
    %4371 = vmatprep.subr.bf16.mxu0 0
    %4372 = vmatpush1.bf16.msra.mxu0 0
    %4373 = vmatprep.subr.bf16.mxu0 0
    %4374 = vmatpush1.bf16.msra.mxu0 0
    %4375 = vmatprep.mubr.bf16.mxu0 0
    %4376 = vmatmul.mubr.bf16.gmra.mrb[0].mxu0 %v4341
    %v4377 = vpop.f32.mrb[0].mxu0
    %v4378 = vadd.f32 0.0, %v4377
    %v4379 = vpop.f32.mrb[0].mxu0
    %v4380 = vpop.f32.mrb[0].mxu0
    %v4381 = vpop.f32.mrb[0].mxu0
    %4382 = vdwg.mxu0
    %4383 = vmatprep.subr.bf16.mxu0 0
    %4384 = vmatpush1.bf16.msra.mxu0 %v3338
    %4385 = vmatprep.subr.bf16.mxu0 0
    %4386 = vmatpush1.bf16.msra.mxu0 %v3339
    %4387 = vmatprep.subr.bf16.mxu0 0
    %4388 = vmatpush1.bf16.msra.mxu0 0
    %4389 = vmatprep.subr.bf16.mxu0 0
    %4390 = vmatpush1.bf16.msra.mxu0 0
    %4391 = vmatprep.subr.bf16.mxu0 0
    %4392 = vmatpush1.bf16.msra.mxu0 0
    %4393 = vmatprep.subr.bf16.mxu0 0
    %4394 = vmatpush1.bf16.msra.mxu0 0
    %4395 = vmatprep.subr.bf16.mxu0 0
    %4396 = vmatpush1.bf16.msra.mxu0 0
    %4397 = vmatprep.subr.bf16.mxu0 0
    %4398 = vmatpush1.bf16.msra.mxu0 0
    %4399 = vmatprep.subr.bf16.mxu0 0
    %4400 = vmatpush1.bf16.msra.mxu0 0
    %4401 = vmatprep.subr.bf16.mxu0 0
    %4402 = vmatpush1.bf16.msra.mxu0 0
    %4403 = vmatprep.subr.bf16.mxu0 0
    %4404 = vmatpush1.bf16.msra.mxu0 0
    %4405 = vmatprep.subr.bf16.mxu0 0
    %4406 = vmatpush1.bf16.msra.mxu0 0
    %4407 = vmatprep.subr.bf16.mxu0 0
    %4408 = vmatpush1.bf16.msra.mxu0 0
    %4409 = vmatprep.subr.bf16.mxu0 0
    %4410 = vmatpush1.bf16.msra.mxu0 0
    %4411 = vmatprep.subr.bf16.mxu0 0
    %4412 = vmatpush1.bf16.msra.mxu0 0
    %4413 = vmatprep.subr.bf16.mxu0 0
    %4414 = vmatpush1.bf16.msra.mxu0 0
    %4415 = vmatprep.mubr.bf16.mxu0 0
    %4416 = vmatmul.mubr.bf16.gmra.mrb[0].mxu0 %v4341
    %v4417 = vpop.f32.mrb[0].mxu0
    %v4418 = vadd.f32 0.0, %v4417
    %v4419 = vpop.f32.mrb[0].mxu0
    %v4420 = vpop.f32.mrb[0].mxu0
    %v4421 = vpop.f32.mrb[0].mxu0
    %4422 = vdwg.mxu0
    %4423 = vmatprep.subr.bf16.mxu0 0
    %4424 = vmatpush1.bf16.msra.mxu0 %v3390
    %4425 = vmatprep.subr.bf16.mxu0 0
    %4426 = vmatpush1.bf16.msra.mxu0 %v3391
    %4427 = vmatprep.subr.bf16.mxu0 0
    %4428 = vmatpush1.bf16.msra.mxu0 0
    %4429 = vmatprep.subr.bf16.mxu0 0
    %4430 = vmatpush1.bf16.msra.mxu0 0
    %4431 = vmatprep.subr.bf16.mxu0 0
    %4432 = vmatpush1.bf16.msra.mxu0 0
    %4433 = vmatprep.subr.bf16.mxu0 0
    %4434 = vmatpush1.bf16.msra.mxu0 0
    %4435 = vmatprep.subr.bf16.mxu0 0
    %4436 = vmatpush1.bf16.msra.mxu0 0
    %4437 = vmatprep.subr.bf16.mxu0 0
    %4438 = vmatpush1.bf16.msra.mxu0 0
    %4439 = vmatprep.subr.bf16.mxu0 0
    %4440 = vmatpush1.bf16.msra.mxu0 0
    %4441 = vmatprep.subr.bf16.mxu0 0
    %4442 = vmatpush1.bf16.msra.mxu0 0
    %4443 = vmatprep.subr.bf16.mxu0 0
    %4444 = vmatpush1.bf16.msra.mxu0 0
    %4445 = vmatprep.subr.bf16.mxu0 0
    %4446 = vmatpush1.bf16.msra.mxu0 0
    %4447 = vmatprep.subr.bf16.mxu0 0
    %4448 = vmatpush1.bf16.msra.mxu0 0
    %4449 = vmatprep.subr.bf16.mxu0 0
    %4450 = vmatpush1.bf16.msra.mxu0 0
    %4451 = vmatprep.subr.bf16.mxu0 0
    %4452 = vmatpush1.bf16.msra.mxu0 0
    %4453 = vmatprep.subr.bf16.mxu0 0
    %4454 = vmatpush1.bf16.msra.mxu0 0
    %4455 = vmatprep.mubr.bf16.mxu0 0
    %4456 = vmatmul.mubr.bf16.gmra.mrb[0].mxu0 %v4341
    %v4457 = vpop.f32.mrb[0].mxu0
    %v4458 = vadd.f32 %v3086, %v4457
    %v4459 = vpop.f32.mrb[0].mxu0
    %v4460 = vpop.f32.mrb[0].mxu0
    %v4461 = vpop.f32.mrb[0].mxu0
    %4462 = vdwg.mxu0
    %v4463 = vadd.f32 %v4336, %v4378
    %v4464 = vxor.u32 %v4463, 2147483648
    %v4465 = vmul.f32 %v4464, 1.442695
    %v4466 = vpow.pop %v4465
    %v4467 = vadd.f32 %v4466, 1.0
    %v4468 = vrcp.pop %v4467
    %v4469 = vmul.f32 1.0, %v4468
    %v4470 = vadd.f32 %v4337, %v4418
    %v4471 = vxor.u32 %v4470, 2147483648
    %v4472 = vmul.f32 %v4471, 1.442695
    %v4473 = vpow.pop %v4472
    %v4474 = vadd.f32 %v4473, 1.0
    %v4475 = vrcp.pop %v4474
    %v4476 = vmul.f32 1.0, %v4475
    %v4477 = vmul.f32 %v4469, %v4458
    %v4478 = vadd.f32 %v4338, %v4477
    %v4479 = vtanh.pop %v4478
    %v4480 = vsub.f32 %v4335, %v4479
    %v4481 = vmul.f32 %v4476, %v4480
    %v4482 = vadd.f32 %v4479, %v4481
    %v4483 = vld [vmem:[%s9] sm:$0xff]
    %v4484 = vld [vmem:[%s9 + $0x8] sm:$0xff]
    %v4485 = vld [vmem:[%s9 + $0x10] sm:$0xff]
    %v4486 = vld [vmem:[%s9 + $0x18] sm:$0xff]
    %v4487 = vld [vmem:[%s9 + $0x20] sm:$0xff]
    %v4488 = vld [vmem:[%s9 + $0x28] sm:$0xff]
    %v4489 = vld [vmem:[%s9 + $0x30] sm:$0xff]
    %v4490 = vld [vmem:[%s9 + $0x38] sm:$0xff]
    %v4492 = vsel %vm393, %v3274, 0
    %4494 = vmatprep.subr.mxu0 0.0
    %4495 = vmatpush1.msra.mxu0 %v4487
    %4496 = vmatprep.subr.mxu0 0.0
    %4497 = vmatpush1.msra.mxu0 %v4488
    %4498 = vmatprep.subr.mxu0 0.0
    %4499 = vmatpush1.msra.mxu0 %v4489
    %4500 = vmatprep.subr.mxu0 0.0
    %4501 = vmatpush1.msra.mxu0 %v4490
    %4502 = vmatprep.subr.mxu0 0.0
    %4503 = vmatpush1.msra.mxu0 0.0
    %4504 = vmatprep.subr.mxu0 0.0
    %4505 = vmatpush1.msra.mxu0 0.0
    %4506 = vmatprep.subr.mxu0 0.0
    %4507 = vmatpush1.msra.mxu0 0.0
    %4508 = vmatprep.subr.mxu0 0.0
    %4509 = vmatpush1.msra.mxu0 0.0
    %4510 = vmatprep.subr.mxu0 0.0
    %4511 = vmatpush1.msra.mxu0 0.0
    %4512 = vmatprep.subr.mxu0 0.0
    %4513 = vmatpush1.msra.mxu0 0.0
    %4514 = vmatprep.subr.mxu0 0.0
    %4515 = vmatpush1.msra.mxu0 0.0
    %4516 = vmatprep.subr.mxu0 0.0
    %4517 = vmatpush1.msra.mxu0 0.0
    %4518 = vmatprep.subr.mxu0 0.0
    %4519 = vmatpush1.msra.mxu0 0.0
    %4520 = vmatprep.subr.mxu0 0.0
    %4521 = vmatpush1.msra.mxu0 0.0
    %4522 = vmatprep.subr.mxu0 0.0
    %4523 = vmatpush1.msra.mxu0 0.0
    %4524 = vmatprep.subr.mxu0 0.0
    %4525 = vmatpush1.msra.mxu0 0.0
    %4526 = vmatprep.subr.mxu0 0.0
    %4527 = vmatpush1.msra.mxu0 0.0
    %4528 = vmatprep.subr.mxu0 0.0
    %4529 = vmatpush1.msra.mxu0 0.0
    %4530 = vmatprep.subr.mxu0 0.0
    %4531 = vmatpush1.msra.mxu0 0.0
    %4532 = vmatprep.subr.mxu0 0.0
    %4533 = vmatpush1.msra.mxu0 0.0
    %4534 = vmatprep.subr.mxu0 0.0
    %4535 = vmatpush1.msra.mxu0 0.0
    %4536 = vmatprep.subr.mxu0 0.0
    %4537 = vmatpush1.msra.mxu0 0.0
    %4538 = vmatprep.subr.mxu0 0.0
    %4539 = vmatpush1.msra.mxu0 0.0
    %4540 = vmatprep.subr.mxu0 0.0
    %4541 = vmatpush1.msra.mxu0 0.0
    %4542 = vmatprep.subr.mxu0 0.0
    %4543 = vmatpush1.msra.mxu0 0.0
    %4544 = vmatprep.subr.mxu0 0.0
    %4545 = vmatpush1.msra.mxu0 0.0
    %4546 = vmatprep.subr.mxu0 0.0
    %4547 = vmatpush1.msra.mxu0 0.0
    %4548 = vmatprep.subr.mxu0 0.0
    %4549 = vmatpush1.msra.mxu0 0.0
    %4550 = vmatprep.subr.mxu0 0.0
    %4551 = vmatpush1.msra.mxu0 0.0
    %4552 = vmatprep.subr.mxu0 0.0
    %4553 = vmatpush1.msra.mxu0 0.0
    %4554 = vmatprep.subr.mxu0 0.0
    %4555 = vmatpush1.msra.mxu0 0.0
    %4556 = vmatprep.subr.mxu0 0.0
    %4557 = vmatpush1.msra.mxu0 0.0
    %4558 = vmatprep.mubr.f32.mxu0 0.0
    %4559 = vmatmul.mubr.f32.gmra.mrb[0].mxu0 %v4492
    %v4560 = vpop.f32.mrb[0].mxu0
    %v4561 = vadd.f32 0.0, %v4560
    %v4562 = vpop.f32.mrb[0].mxu0
    %4563 = vdwg.mxu0
    %v4565 = vsel %vm393, %v4482, 0
    %4567 = vmatprep.subr.mxu0 0.0
    %4568 = vmatpush1.msra.mxu0 %v4483
    %4569 = vmatprep.subr.mxu0 0.0
    %4570 = vmatpush1.msra.mxu0 %v4484
    %4571 = vmatprep.subr.mxu0 0.0
    %4572 = vmatpush1.msra.mxu0 %v4485
    %4573 = vmatprep.subr.mxu0 0.0
    %4574 = vmatpush1.msra.mxu0 %v4486
    %4575 = vmatprep.subr.mxu0 0.0
    %4576 = vmatpush1.msra.mxu0 0.0
    %4577 = vmatprep.subr.mxu0 0.0
    %4578 = vmatpush1.msra.mxu0 0.0
    %4579 = vmatprep.subr.mxu0 0.0
    %4580 = vmatpush1.msra.mxu0 0.0
    %4581 = vmatprep.subr.mxu0 0.0
    %4582 = vmatpush1.msra.mxu0 0.0
    %4583 = vmatprep.subr.mxu0 0.0
    %4584 = vmatpush1.msra.mxu0 0.0
    %4585 = vmatprep.subr.mxu0 0.0
    %4586 = vmatpush1.msra.mxu0 0.0
    %4587 = vmatprep.subr.mxu0 0.0
    %4588 = vmatpush1.msra.mxu0 0.0
    %4589 = vmatprep.subr.mxu0 0.0
    %4590 = vmatpush1.msra.mxu0 0.0
    %4591 = vmatprep.subr.mxu0 0.0
    %4592 = vmatpush1.msra.mxu0 0.0
    %4593 = vmatprep.subr.mxu0 0.0
    %4594 = vmatpush1.msra.mxu0 0.0
    %4595 = vmatprep.subr.mxu0 0.0
    %4596 = vmatpush1.msra.mxu0 0.0
    %4597 = vmatprep.subr.mxu0 0.0
    %4598 = vmatpush1.msra.mxu0 0.0
    %4599 = vmatprep.subr.mxu0 0.0
    %4600 = vmatpush1.msra.mxu0 0.0
    %4601 = vmatprep.subr.mxu0 0.0
    %4602 = vmatpush1.msra.mxu0 0.0
    %4603 = vmatprep.subr.mxu0 0.0
    %4604 = vmatpush1.msra.mxu0 0.0
    %4605 = vmatprep.subr.mxu0 0.0
    %4606 = vmatpush1.msra.mxu0 0.0
    %4607 = vmatprep.subr.mxu0 0.0
    %4608 = vmatpush1.msra.mxu0 0.0
    %4609 = vmatprep.subr.mxu0 0.0
    %4610 = vmatpush1.msra.mxu0 0.0
    %4611 = vmatprep.subr.mxu0 0.0
    %4612 = vmatpush1.msra.mxu0 0.0
    %4613 = vmatprep.subr.mxu0 0.0
    %4614 = vmatpush1.msra.mxu0 0.0
    %4615 = vmatprep.subr.mxu0 0.0
    %4616 = vmatpush1.msra.mxu0 0.0
    %4617 = vmatprep.subr.mxu0 0.0
    %4618 = vmatpush1.msra.mxu0 0.0
    %4619 = vmatprep.subr.mxu0 0.0
    %4620 = vmatpush1.msra.mxu0 0.0
    %4621 = vmatprep.subr.mxu0 0.0
    %4622 = vmatpush1.msra.mxu0 0.0
    %4623 = vmatprep.subr.mxu0 0.0
    %4624 = vmatpush1.msra.mxu0 0.0
    %4625 = vmatprep.subr.mxu0 0.0
    %4626 = vmatpush1.msra.mxu0 0.0
    %4627 = vmatprep.subr.mxu0 0.0
    %4628 = vmatpush1.msra.mxu0 0.0
    %4629 = vmatprep.subr.mxu0 0.0
    %4630 = vmatpush1.msra.mxu0 0.0
    %4631 = vmatprep.mubr.f32.mxu0 0.0
    %4632 = vmatmul.mubr.f32.gmra.mrb[0].mxu0 %v4565
    %v4633 = vpop.f32.mrb[0].mxu0
    %v4634 = vadd.f32 %v4561, %v4633
    %v4635 = vpop.f32.mrb[0].mxu0
    %4636 = vdwg.mxu0
    %v4637 = vld [vmem:[%s10] sm:$0x1]
    %v4639 = vlaneseq
    %v4640 = vshrl.u32 %v4639, 7
    %v4641 = vsub.s32 0, %v4640
    %v4642 = vrot.slane %v4637, %v4641
    %v4644 = vadd.f32 %v4634, %v4642
    %vm4645 = vcmask 74752
    %4646 = vst.msk [vmem:[#allocation17] sm:$0x3] %vm4645, %v4644
    // Predicated region
    $region74: #{tpu_custom_call.1} parent=1 // pred_check
      _
    $region75: #{tpu_custom_call.1} parent=1 // pred_check_branch
      %4648 = sbr.rel (0) target = $region77
    $region76: #{tpu_custom_call.1} parent=1 // pred_region
      %s4650 = ssub.s32 32, 32
      %4651 = vsyncadd [#allocation7], %s4650
      %s4653 = sshll.u32 [#allocation17], 4
      %s4654 = int_to_ptr.vmem [resolvable:$true] %s4653
      %4656 = dma.vmem_to_hbm [thread:$0]  %s4654, 32, %s11, [#allocation7]
    $region77: #{tpu_custom_call.1} parent=1 // pred_fallthru
      _
    // Predicated region
    $region78: #{tpu_custom_call.1} parent=1 // pred_check
      _
    $region79: #{tpu_custom_call.1} parent=1 // pred_check_branch
      %4658 = sbr.rel (0) target = $region81
    $region80: #{tpu_custom_call.1} parent=1 // pred_region
      %4659 = dma.done [#allocation7], 32
    $region81: #{tpu_custom_call.1} parent=1 // pred_fallthru
      _
    %4660 = vsyncpa [#allocation6], 1
    %4661 = vsyncpa [#allocation9], 1
    %4662 = vsyncpa [#allocation12], 1
    %4663 = vsyncpa [#allocation15], 1
    %4664 = vsyncpa [#allocation7], 1

</llo_original>
